<compile_context>
chip_gen: v6e
topology: v6e:2x2x1
jax: 0.10.0
libtpu: 0.0.40
codegen_flags: <defaults>
</compile_context>

<pallas_src>
import functools

import jax
import jax.numpy as jnp
from jax.experimental import pallas as pl
from jax.experimental.pallas import tpu as pltpu

# Architecture constants fixed by the PyTorch module.
_K1, _S1, _C1 = 8, 4, 32
_K2, _S2, _C2 = 4, 2, 64
_K3, _S3, _C3 = 3, 1, 64
_FC1 = 512
_LANE = 128


def _conv_out(n, k, s):
    return (n - k) // s + 1


def _ceil_div(a, b):
    return -(-a // b)


# ---------------------------------------------------------------------------
# Fused forward kernel: conv1 -> conv2 -> conv3 -> fc1 -> fc2 for ONE batch
# element per grid step. All activations stay in VMEM / vregs.
# ---------------------------------------------------------------------------
def _qnet_kernel(xph_ref, w1_ref, w2_ref, w3_ref, wf1_ref, wf2_ref,
                 b1_ref, b2_ref, b3_ref, bf1_ref, bf2_ref, o_ref, *, dims):
    H1, W1, H2, W2, H3, W3 = dims
    f32, bf16 = jnp.float32, jnp.bfloat16

    def half(n, p):  # number of conv1 output rows/cols belonging to phase p
        return (n - p + 1) // 2

    b1 = b1_ref[...]      # (1, 32)  f32
    b2 = b2_ref[...]      # (1, 64)  f32
    b3 = b3_ref[...]      # (1, 64)  f32

    # ---- conv1: 8x8 stride-4 conv == 2x2 stride-1 conv over the s2d(4) input,
    # computed per 2x2 output phase so conv2's stride-2 reads are contiguous.
    # y1_rows[p][q][i] is conv1 output row oh1 = 2*i + p at columns
    # ow1 = 2*j + q, shape (half(W1, q), 32), f32, post-ReLU.
    y1_rows = [[None, None], [None, None]]
    for p in range(2):
        for q in range(2):
            n_i, n_j = half(H1, p), half(W1, q)
            rows = []
            for i in range(n_i):
                acc = jnp.zeros((n_j, _C1), f32)
                for a in range(2):
                    for b in range(2):
                        sp, oi = (p + a) % 2, (p + a) // 2
                        sq, oj = (q + b) % 2, (q + b) // 2
                        piece = xph_ref[sp * 2 + sq, 0, i + oi,
                                        oj:oj + n_j, :]           # (n_j, 16*C)
                        acc = acc + jnp.dot(piece.astype(bf16),
                                            w1_ref[a * 2 + b],
                                            preferred_element_type=f32)
                rows.append(jnp.maximum(acc + b1, 0.0))
            y1_rows[p][q] = rows

    # ---- conv2: 4x4 stride-2 conv; stride handled by the phase layout above.
    # y2_rows[oh2]: (W2, 64) f32, post-ReLU.
    y2_rows = []
    for oh2 in range(H2):
        acc = jnp.zeros((W2, _C2), f32)
        for a in range(2):
            for p in range(2):
                for b in range(2):
                    for q in range(2):
                        piece = y1_rows[p][q][oh2 + a][b:b + W2, :]  # (W2, 32)
                        tap = (2 * a + p) * _K2 + (2 * b + q)
                        acc = acc + jnp.dot(piece.astype(bf16), w2_ref[tap],
                                            preferred_element_type=f32)
        y2_rows.append(jnp.maximum(acc + b2, 0.0))

    # ---- conv3: 3x3 stride-1 conv -------------------------------------------
    y3_rows = []
    for oh3 in range(H3):
        acc = jnp.zeros((W3, _C3), f32)
        for ki in range(_K3):
            for kj in range(_K3):
                piece = y2_rows[oh3 + ki][kj:kj + W3, :]             # (W3, 64)
                acc = acc + jnp.dot(piece.astype(bf16),
                                    w3_ref[ki * _K3 + kj],
                                    preferred_element_type=f32)
        y3_rows.append(jnp.maximum(acc + b3, 0.0))

    # ---- flatten ((h, w, c) order) + fully-connected head -------------------
    if H3 == 1 and W3 == 1:
        flat = y3_rows[0]                                            # (1, 64)
    else:
        flat = jnp.concatenate(
            [y3_rows[i][j:j + 1, :] for i in range(H3) for j in range(W3)],
            axis=-1)                                                 # (1, H3*W3*64)

    h = jnp.maximum(jnp.dot(flat.astype(bf16), wf1_ref[...],
                            preferred_element_type=f32) + bf1_ref[...], 0.0)
    q_out = jnp.dot(h.astype(bf16), wf2_ref[...],
                    preferred_element_type=f32) + bf2_ref[...]       # (1, Npad)
    o_ref[0] = q_out


# ---------------------------------------------------------------------------
# Wrapper-side layout plumbing (tiny input / weight rearrangement only).
# ---------------------------------------------------------------------------
def _prep_input(x_nchw):
    """NCHW -> space-to-depth(4), 2x2 phase-decomposed planes (4,B,n,m,16C)."""
    B, C, H, W = x_nchw.shape
    H1, W1 = _conv_out(H, _K1, _S1), _conv_out(W, _K1, _S1)
    Hs, Ws = H1 + 1, W1 + 1
    x = jnp.transpose(x_nchw, (0, 2, 3, 1))           # NHWC
    x = x[:, :_S1 * Hs, :_S1 * Ws, :]                 # crop to the used region
    # space-to-depth by 4: channel index = (p*4 + q)*C + c
    x = x.reshape(B, Hs, _S1, Ws, _S1, C)
    x = x.transpose(0, 1, 3, 2, 4, 5).reshape(B, Hs, Ws, _S1 * _S1 * C)
    nmax, mmax = _ceil_div(Hs, 2), _ceil_div(Ws, 2)
    planes = []
    for p in range(2):
        for q in range(2):
            ph = x[:, p::2, q::2, :]
            ph = jnp.pad(ph, ((0, 0), (0, nmax - ph.shape[1]),
                              (0, mmax - ph.shape[2]), (0, 0)))
            planes.append(ph)
    xph = jnp.stack(planes, axis=0)                   # (4, B, nmax, mmax, 16*C)
    return xph.astype(jnp.float32), nmax, mmax


def _prep_params(params, num_actions):
    C = params["w1"].shape[2]
    bf16 = jnp.bfloat16
    # conv1 -> 2x2 s2d taps: (4, 16*C, 32); tap = a*2+b, rows ordered (p, q, c).
    w1 = params["w1"].reshape(2, _S1, 2, _S1, C, _C1)          # (a,p,b,q,c,o)
    w1 = w1.transpose(0, 2, 1, 3, 4, 5).reshape(4, _S1 * _S1 * C, _C1)
    w2 = params["w2"].reshape(_K2 * _K2, _C1, _C2)             # (16, 32, 64)
    w3 = params["w3"].reshape(_K3 * _K3, _C2, _C3)             # (9, 64, 64)
    n_pad = _ceil_div(num_actions, _LANE) * _LANE
    wf2 = jnp.pad(params["wf2"], ((0, 0), (0, n_pad - num_actions)))
    bf2 = jnp.pad(params["bf2"], (0, n_pad - num_actions))
    weights = [w1.astype(bf16), w2.astype(bf16), w3.astype(bf16),
               params["wf1"].astype(bf16), wf2.astype(bf16)]
    biases = [params["b1"].reshape(1, -1).astype(jnp.float32),
              params["b2"].reshape(1, -1).astype(jnp.float32),
              params["b3"].reshape(1, -1).astype(jnp.float32),
              params["bf1"].reshape(1, -1).astype(jnp.float32),
              bf2.reshape(1, -1).astype(jnp.float32)]
    return weights, biases, n_pad


@functools.partial(jax.jit, static_argnames=("num_actions",))
def qnetwork_forward(x_nchw, params, *, num_actions):
    """x_nchw: (B, C, H, W) float32 -> (B, num_actions) float32."""
    B, C, H, W = x_nchw.shape
    H1, W1 = _conv_out(H, _K1, _S1), _conv_out(W, _K1, _S1)
    H2, W2 = _conv_out(H1, _K2, _S2), _conv_out(W1, _K2, _S2)
    H3, W3 = _conv_out(H2, _K3, _S3), _conv_out(W2, _K3, _S3)

    xph, nmax, mmax = _prep_input(x_nchw)
    weights, biases, n_pad = _prep_params(params, num_actions)
    w1, w2, w3, wf1, wf2 = weights
    b1, b2, b3, bf1, bf2 = biases

    kernel = functools.partial(_qnet_kernel, dims=(H1, W1, H2, W2, H3, W3))

    def full(arr):  # whole-array block, constant block index across the grid
        nd = arr.ndim
        return pl.BlockSpec(arr.shape, lambda i, _n=nd: (0,) * _n)

    out = pl.pallas_call(
        kernel,
        out_shape=jax.ShapeDtypeStruct((B, 1, n_pad), jnp.float32),
        grid=(B,),
        in_specs=[
            pl.BlockSpec((4, 1, nmax, mmax, xph.shape[-1]),
                         lambda i: (0, i, 0, 0, 0)),
            full(w1), full(w2), full(w3), full(wf1), full(wf2),
            full(b1), full(b2), full(b3), full(bf1), full(bf2),
        ],
        out_specs=pl.BlockSpec((1, 1, n_pad), lambda i: (i, 0, 0)),
        compiler_params=pltpu.CompilerParams(
            dimension_semantics=("parallel",)),
    )(xph, w1, w2, w3, wf1, wf2, b1, b2, b3, bf1, bf2)
    return out.reshape(B, n_pad)[:, :num_actions]


# ---------------------------------------------------------------------------
# Deterministic synthetic parameter init (PyTorch-style uniform +-1/sqrt(fan)).
# ---------------------------------------------------------------------------
def init_params(key, input_shape, num_actions):
    C, H, W = input_shape
    H1, W1 = _conv_out(H, _K1, _S1), _conv_out(W, _K1, _S1)
    H2, W2 = _conv_out(H1, _K2, _S2), _conv_out(W1, _K2, _S2)
    H3, W3 = _conv_out(H2, _K3, _S3), _conv_out(W2, _K3, _S3)
    conv_out_size = H3 * W3 * _C3

    def u(k, shape, fan_in):
        bound = 1.0 / (fan_in ** 0.5)
        return jax.random.uniform(k, shape, jnp.float32, -bound, bound)

    ks = jax.random.split(key, 10)
    params = {
        "w1": u(ks[0], (_K1, _K1, C, _C1), C * _K1 * _K1),
        "b1": u(ks[1], (_C1,), C * _K1 * _K1),
        "w2": u(ks[2], (_K2, _K2, _C1, _C2), _C1 * _K2 * _K2),
        "b2": u(ks[3], (_C2,), _C1 * _K2 * _K2),
        "w3": u(ks[4], (_K3, _K3, _C2, _C3), _C2 * _K3 * _K3),
        "b3": u(ks[5], (_C3,), _C2 * _K3 * _K3),
        "wf1": u(ks[6], (conv_out_size, _FC1), conv_out_size),
        "bf1": u(ks[7], (_FC1,), conv_out_size),
        "wf2": u(ks[8], (_FC1, num_actions), _FC1),
        "bf2": u(ks[9], (num_actions,), _FC1),
    }
    return params, conv_out_size


# Pure-JAX reference (same (h, w, c) flatten order as the kernel).
def reference_forward(x_nchw, params):
    dn = ("NHWC", "HWIO", "NHWC")
    x = jnp.transpose(x_nchw, (0, 2, 3, 1))
    y = jax.lax.conv_general_dilated(x, params["w1"], (_S1, _S1), "VALID",
                                     dimension_numbers=dn)
    y = jax.nn.relu(y + params["b1"])
    y = jax.lax.conv_general_dilated(y, params["w2"], (_S2, _S2), "VALID",
                                     dimension_numbers=dn)
    y = jax.nn.relu(y + params["b2"])
    y = jax.lax.conv_general_dilated(y, params["w3"], (_S3, _S3), "VALID",
                                     dimension_numbers=dn)
    y = jax.nn.relu(y + params["b3"])
    flat = y.reshape(y.shape[0], -1)
    h = jax.nn.relu(flat @ params["wf1"] + params["bf1"])
    return h @ params["wf2"] + params["bf2"]


if __name__ == "__main__":
    key = jax.random.PRNGKey(0)
    k_param, k_input = jax.random.split(key)

    # Small shapes: batch=2, 4 stacked 36x36 frames (smallest spatial size for
    # which all three convs stay valid: 36 -> 8 -> 3 -> 1).
    batch = 2
    input_shape = (4, 36, 36)       # (num_stack, H, W)
    num_actions = 6

    params, conv_out_size = init_params(k_param, input_shape, num_actions)
    x = jax.random.normal(k_input, (batch, *input_shape), jnp.float32)

    q_values = qnetwork_forward(x, params, num_actions=num_actions)
    q_values = jax.block_until_ready(q_values)

    assert q_values.shape == (batch, num_actions), q_values.shape
    assert q_values.dtype == jnp.float32
    assert bool(jnp.all(jnp.isfinite(q_values)))

    # Numerical sanity check against a pure-JAX f32 reference (kernel matmuls
    # run with bf16 operands, hence the loose tolerance).
    q_ref = reference_forward(x, params)
    max_err = float(jnp.max(jnp.abs(q_values - q_ref)))
    assert max_err < 5e-2, f"mismatch vs reference: {max_err}"

    print("KERNEL_OK")
</pallas_src>

<mosaic_0001>
module attributes {stable_mosaic.version = 11 : i64} {
  func.func @_qnet_kernel(%arg0: i32, %arg1: memref<4x1x5x5x64xf32, #tpu.memory_space<vmem>>, %arg2: memref<4x64x32xbf16, #tpu.memory_space<vmem>>, %arg3: memref<16x32x64xbf16, #tpu.memory_space<vmem>>, %arg4: memref<9x64x64xbf16, #tpu.memory_space<vmem>>, %arg5: memref<64x512xbf16, #tpu.memory_space<vmem>>, %arg6: memref<512x128xbf16, #tpu.memory_space<vmem>>, %arg7: memref<1x32xf32, #tpu.memory_space<vmem>>, %arg8: memref<1x64xf32, #tpu.memory_space<vmem>>, %arg9: memref<1x64xf32, #tpu.memory_space<vmem>>, %arg10: memref<1x512xf32, #tpu.memory_space<vmem>>, %arg11: memref<1x128xf32, #tpu.memory_space<vmem>>, %arg12: memref<1x1x128xf32, #tpu.memory_space<vmem>>) attributes {dimension_semantics = [#tpu.dimension_semantics<parallel>], iteration_bounds = array<i64: 2>, scalar_prefetch = 0 : i64, scratch_operands = 0 : i64, tpu.core_type = #tpu.core_type<tc>, window_params = [{transform_indices = @transform_0, window_bounds = array<i64: 4, 1, 5, 5, 64>}, {pipeline_mode = #tpu.pipeline_mode<synchronous>, transform_indices = @transform_1, window_bounds = array<i64: 4, 64, 32>}, {pipeline_mode = #tpu.pipeline_mode<synchronous>, transform_indices = @transform_2, window_bounds = array<i64: 16, 32, 64>}, {pipeline_mode = #tpu.pipeline_mode<synchronous>, transform_indices = @transform_3, window_bounds = array<i64: 9, 64, 64>}, {pipeline_mode = #tpu.pipeline_mode<synchronous>, transform_indices = @transform_4, window_bounds = array<i64: 64, 512>}, {pipeline_mode = #tpu.pipeline_mode<synchronous>, transform_indices = @transform_5, window_bounds = array<i64: 512, 128>}, {pipeline_mode = #tpu.pipeline_mode<synchronous>, transform_indices = @transform_6, window_bounds = array<i64: 1, 32>}, {pipeline_mode = #tpu.pipeline_mode<synchronous>, transform_indices = @transform_7, window_bounds = array<i64: 1, 64>}, {pipeline_mode = #tpu.pipeline_mode<synchronous>, transform_indices = @transform_8, window_bounds = array<i64: 1, 64>}, {pipeline_mode = #tpu.pipeline_mode<synchronous>, transform_indices = @transform_9, window_bounds = array<i64: 1, 512>}, {pipeline_mode = #tpu.pipeline_mode<synchronous>, transform_indices = @transform_10, window_bounds = array<i64: 1, 128>}, {transform_indices = @transform_11, window_bounds = array<i64: 1, 1, 128>}]} {
    %c0 = arith.constant 0 : index
    %c0_0 = arith.constant 0 : index
    %0 = vector.load %arg7[%c0, %c0_0] : memref<1x32xf32, #tpu.memory_space<vmem>>, vector<1x32xf32>
    %c0_1 = arith.constant 0 : index
    %c0_2 = arith.constant 0 : index
    %1 = vector.load %arg8[%c0_1, %c0_2] : memref<1x64xf32, #tpu.memory_space<vmem>>, vector<1x64xf32>
    %c0_3 = arith.constant 0 : index
    %c0_4 = arith.constant 0 : index
    %2 = vector.load %arg9[%c0_3, %c0_4] : memref<1x64xf32, #tpu.memory_space<vmem>>, vector<1x64xf32>
    %cst = arith.constant 0.000000e+00 : f32
    %3 = vector.broadcast %cst : f32 to vector<4x32xf32>
    %c0_5 = arith.constant 0 : index
    %c0_6 = arith.constant 0 : index
    %c0_7 = arith.constant 0 : index
    %c0_8 = arith.constant 0 : index
    %c0_9 = arith.constant 0 : index
    %4 = vector.load %arg1[%c0_5, %c0_6, %c0_7, %c0_8, %c0_9] : memref<4x1x5x5x64xf32, #tpu.memory_space<vmem>>, vector<1x1x1x4x64xf32>
    %5 = vector.shape_cast %4 : vector<1x1x1x4x64xf32> to vector<4x64xf32>
    %6 = arith.truncf %5 : vector<4x64xf32> to vector<4x64xbf16>
    %c0_10 = arith.constant 0 : index
    %c0_11 = arith.constant 0 : index
    %c0_12 = arith.constant 0 : index
    %7 = vector.load %arg2[%c0_10, %c0_11, %c0_12] : memref<4x64x32xbf16, #tpu.memory_space<vmem>>, vector<1x64x32xbf16>
    %8 = vector.shape_cast %7 : vector<1x64x32xbf16> to vector<64x32xbf16>
    %cst_13 = arith.constant dense<0.000000e+00> : vector<4x32xf32>
    %9 = tpu.matmul %6, %8, %cst_13 {dimension_numbers = #tpu.dot_dimension_numbers<[1], [0], [0], [1], [0, 0, 1, 1], [], []>} : vector<4x64xbf16>, vector<64x32xbf16>, vector<4x32xf32> -> vector<4x32xf32>
    %10 = arith.addf %3, %9 : vector<4x32xf32>
    %c1 = arith.constant 1 : index
    %c0_14 = arith.constant 0 : index
    %c0_15 = arith.constant 0 : index
    %c0_16 = arith.constant 0 : index
    %c0_17 = arith.constant 0 : index
    %11 = vector.load %arg1[%c1, %c0_14, %c0_15, %c0_16, %c0_17] : memref<4x1x5x5x64xf32, #tpu.memory_space<vmem>>, vector<1x1x1x4x64xf32>
    %12 = vector.shape_cast %11 : vector<1x1x1x4x64xf32> to vector<4x64xf32>
    %13 = arith.truncf %12 : vector<4x64xf32> to vector<4x64xbf16>
    %c1_18 = arith.constant 1 : index
    %c0_19 = arith.constant 0 : index
    %c0_20 = arith.constant 0 : index
    %14 = vector.load %arg2[%c1_18, %c0_19, %c0_20] : memref<4x64x32xbf16, #tpu.memory_space<vmem>>, vector<1x64x32xbf16>
    %15 = vector.shape_cast %14 : vector<1x64x32xbf16> to vector<64x32xbf16>
    %cst_21 = arith.constant dense<0.000000e+00> : vector<4x32xf32>
    %16 = tpu.matmul %13, %15, %cst_21 {dimension_numbers = #tpu.dot_dimension_numbers<[1], [0], [0], [1], [0, 0, 1, 1], [], []>} : vector<4x64xbf16>, vector<64x32xbf16>, vector<4x32xf32> -> vector<4x32xf32>
    %17 = arith.addf %10, %16 : vector<4x32xf32>
    %c2 = arith.constant 2 : index
    %c0_22 = arith.constant 0 : index
    %c0_23 = arith.constant 0 : index
    %c0_24 = arith.constant 0 : index
    %c0_25 = arith.constant 0 : index
    %18 = vector.load %arg1[%c2, %c0_22, %c0_23, %c0_24, %c0_25] : memref<4x1x5x5x64xf32, #tpu.memory_space<vmem>>, vector<1x1x1x4x64xf32>
    %19 = vector.shape_cast %18 : vector<1x1x1x4x64xf32> to vector<4x64xf32>
    %20 = arith.truncf %19 : vector<4x64xf32> to vector<4x64xbf16>
    %c2_26 = arith.constant 2 : index
    %c0_27 = arith.constant 0 : index
    %c0_28 = arith.constant 0 : index
    %21 = vector.load %arg2[%c2_26, %c0_27, %c0_28] : memref<4x64x32xbf16, #tpu.memory_space<vmem>>, vector<1x64x32xbf16>
    %22 = vector.shape_cast %21 : vector<1x64x32xbf16> to vector<64x32xbf16>
    %cst_29 = arith.constant dense<0.000000e+00> : vector<4x32xf32>
    %23 = tpu.matmul %20, %22, %cst_29 {dimension_numbers = #tpu.dot_dimension_numbers<[1], [0], [0], [1], [0, 0, 1, 1], [], []>} : vector<4x64xbf16>, vector<64x32xbf16>, vector<4x32xf32> -> vector<4x32xf32>
    %24 = arith.addf %17, %23 : vector<4x32xf32>
    %c3 = arith.constant 3 : index
    %c0_30 = arith.constant 0 : index
    %c0_31 = arith.constant 0 : index
    %c0_32 = arith.constant 0 : index
    %c0_33 = arith.constant 0 : index
    %25 = vector.load %arg1[%c3, %c0_30, %c0_31, %c0_32, %c0_33] : memref<4x1x5x5x64xf32, #tpu.memory_space<vmem>>, vector<1x1x1x4x64xf32>
    %26 = vector.shape_cast %25 : vector<1x1x1x4x64xf32> to vector<4x64xf32>
    %27 = arith.truncf %26 : vector<4x64xf32> to vector<4x64xbf16>
    %c3_34 = arith.constant 3 : index
    %c0_35 = arith.constant 0 : index
    %c0_36 = arith.constant 0 : index
    %28 = vector.load %arg2[%c3_34, %c0_35, %c0_36] : memref<4x64x32xbf16, #tpu.memory_space<vmem>>, vector<1x64x32xbf16>
    %29 = vector.shape_cast %28 : vector<1x64x32xbf16> to vector<64x32xbf16>
    %cst_37 = arith.constant dense<0.000000e+00> : vector<4x32xf32>
    %30 = tpu.matmul %27, %29, %cst_37 {dimension_numbers = #tpu.dot_dimension_numbers<[1], [0], [0], [1], [0, 0, 1, 1], [], []>} : vector<4x64xbf16>, vector<64x32xbf16>, vector<4x32xf32> -> vector<4x32xf32>
    %31 = arith.addf %24, %30 : vector<4x32xf32>
    %32 = vector.broadcast %0 : vector<1x32xf32> to vector<4x32xf32>
    %33 = arith.addf %31, %32 : vector<4x32xf32>
    %cst_38 = arith.constant 0.000000e+00 : f32
    %34 = vector.broadcast %cst_38 : f32 to vector<4x32xf32>
    %35 = arith.maximumf %33, %34 : vector<4x32xf32>
    %cst_39 = arith.constant 0.000000e+00 : f32
    %36 = vector.broadcast %cst_39 : f32 to vector<4x32xf32>
    %c0_40 = arith.constant 0 : index
    %c0_41 = arith.constant 0 : index
    %c1_42 = arith.constant 1 : index
    %c0_43 = arith.constant 0 : index
    %c0_44 = arith.constant 0 : index
    %37 = vector.load %arg1[%c0_40, %c0_41, %c1_42, %c0_43, %c0_44] : memref<4x1x5x5x64xf32, #tpu.memory_space<vmem>>, vector<1x1x1x4x64xf32>
    %38 = vector.shape_cast %37 : vector<1x1x1x4x64xf32> to vector<4x64xf32>
    %39 = arith.truncf %38 : vector<4x64xf32> to vector<4x64xbf16>
    %c0_45 = arith.constant 0 : index
    %c0_46 = arith.constant 0 : index
    %c0_47 = arith.constant 0 : index
    %40 = vector.load %arg2[%c0_45, %c0_46, %c0_47] : memref<4x64x32xbf16, #tpu.memory_space<vmem>>, vector<1x64x32xbf16>
    %41 = vector.shape_cast %40 : vector<1x64x32xbf16> to vector<64x32xbf16>
    %cst_48 = arith.constant dense<0.000000e+00> : vector<4x32xf32>
    %42 = tpu.matmul %39, %41, %cst_48 {dimension_numbers = #tpu.dot_dimension_numbers<[1], [0], [0], [1], [0, 0, 1, 1], [], []>} : vector<4x64xbf16>, vector<64x32xbf16>, vector<4x32xf32> -> vector<4x32xf32>
    %43 = arith.addf %36, %42 : vector<4x32xf32>
    %c1_49 = arith.constant 1 : index
    %c0_50 = arith.constant 0 : index
    %c1_51 = arith.constant 1 : index
    %c0_52 = arith.constant 0 : index
    %c0_53 = arith.constant 0 : index
    %44 = vector.load %arg1[%c1_49, %c0_50, %c1_51, %c0_52, %c0_53] : memref<4x1x5x5x64xf32, #tpu.memory_space<vmem>>, vector<1x1x1x4x64xf32>
    %45 = vector.shape_cast %44 : vector<1x1x1x4x64xf32> to vector<4x64xf32>
    %46 = arith.truncf %45 : vector<4x64xf32> to vector<4x64xbf16>
    %c1_54 = arith.constant 1 : index
    %c0_55 = arith.constant 0 : index
    %c0_56 = arith.constant 0 : index
    %47 = vector.load %arg2[%c1_54, %c0_55, %c0_56] : memref<4x64x32xbf16, #tpu.memory_space<vmem>>, vector<1x64x32xbf16>
    %48 = vector.shape_cast %47 : vector<1x64x32xbf16> to vector<64x32xbf16>
    %cst_57 = arith.constant dense<0.000000e+00> : vector<4x32xf32>
    %49 = tpu.matmul %46, %48, %cst_57 {dimension_numbers = #tpu.dot_dimension_numbers<[1], [0], [0], [1], [0, 0, 1, 1], [], []>} : vector<4x64xbf16>, vector<64x32xbf16>, vector<4x32xf32> -> vector<4x32xf32>
    %50 = arith.addf %43, %49 : vector<4x32xf32>
    %c2_58 = arith.constant 2 : index
    %c0_59 = arith.constant 0 : index
    %c1_60 = arith.constant 1 : index
    %c0_61 = arith.constant 0 : index
    %c0_62 = arith.constant 0 : index
    %51 = vector.load %arg1[%c2_58, %c0_59, %c1_60, %c0_61, %c0_62] : memref<4x1x5x5x64xf32, #tpu.memory_space<vmem>>, vector<1x1x1x4x64xf32>
    %52 = vector.shape_cast %51 : vector<1x1x1x4x64xf32> to vector<4x64xf32>
    %53 = arith.truncf %52 : vector<4x64xf32> to vector<4x64xbf16>
    %c2_63 = arith.constant 2 : index
    %c0_64 = arith.constant 0 : index
    %c0_65 = arith.constant 0 : index
    %54 = vector.load %arg2[%c2_63, %c0_64, %c0_65] : memref<4x64x32xbf16, #tpu.memory_space<vmem>>, vector<1x64x32xbf16>
    %55 = vector.shape_cast %54 : vector<1x64x32xbf16> to vector<64x32xbf16>
    %cst_66 = arith.constant dense<0.000000e+00> : vector<4x32xf32>
    %56 = tpu.matmul %53, %55, %cst_66 {dimension_numbers = #tpu.dot_dimension_numbers<[1], [0], [0], [1], [0, 0, 1, 1], [], []>} : vector<4x64xbf16>, vector<64x32xbf16>, vector<4x32xf32> -> vector<4x32xf32>
    %57 = arith.addf %50, %56 : vector<4x32xf32>
    %c3_67 = arith.constant 3 : index
    %c0_68 = arith.constant 0 : index
    %c1_69 = arith.constant 1 : index
    %c0_70 = arith.constant 0 : index
    %c0_71 = arith.constant 0 : index
    %58 = vector.load %arg1[%c3_67, %c0_68, %c1_69, %c0_70, %c0_71] : memref<4x1x5x5x64xf32, #tpu.memory_space<vmem>>, vector<1x1x1x4x64xf32>
    %59 = vector.shape_cast %58 : vector<1x1x1x4x64xf32> to vector<4x64xf32>
    %60 = arith.truncf %59 : vector<4x64xf32> to vector<4x64xbf16>
    %c3_72 = arith.constant 3 : index
    %c0_73 = arith.constant 0 : index
    %c0_74 = arith.constant 0 : index
    %61 = vector.load %arg2[%c3_72, %c0_73, %c0_74] : memref<4x64x32xbf16, #tpu.memory_space<vmem>>, vector<1x64x32xbf16>
    %62 = vector.shape_cast %61 : vector<1x64x32xbf16> to vector<64x32xbf16>
    %cst_75 = arith.constant dense<0.000000e+00> : vector<4x32xf32>
    %63 = tpu.matmul %60, %62, %cst_75 {dimension_numbers = #tpu.dot_dimension_numbers<[1], [0], [0], [1], [0, 0, 1, 1], [], []>} : vector<4x64xbf16>, vector<64x32xbf16>, vector<4x32xf32> -> vector<4x32xf32>
    %64 = arith.addf %57, %63 : vector<4x32xf32>
    %65 = vector.broadcast %0 : vector<1x32xf32> to vector<4x32xf32>
    %66 = arith.addf %64, %65 : vector<4x32xf32>
    %cst_76 = arith.constant 0.000000e+00 : f32
    %67 = vector.broadcast %cst_76 : f32 to vector<4x32xf32>
    %68 = arith.maximumf %66, %67 : vector<4x32xf32>
    %cst_77 = arith.constant 0.000000e+00 : f32
    %69 = vector.broadcast %cst_77 : f32 to vector<4x32xf32>
    %c0_78 = arith.constant 0 : index
    %c0_79 = arith.constant 0 : index
    %c2_80 = arith.constant 2 : index
    %c0_81 = arith.constant 0 : index
    %c0_82 = arith.constant 0 : index
    %70 = vector.load %arg1[%c0_78, %c0_79, %c2_80, %c0_81, %c0_82] : memref<4x1x5x5x64xf32, #tpu.memory_space<vmem>>, vector<1x1x1x4x64xf32>
    %71 = vector.shape_cast %70 : vector<1x1x1x4x64xf32> to vector<4x64xf32>
    %72 = arith.truncf %71 : vector<4x64xf32> to vector<4x64xbf16>
    %c0_83 = arith.constant 0 : index
    %c0_84 = arith.constant 0 : index
    %c0_85 = arith.constant 0 : index
    %73 = vector.load %arg2[%c0_83, %c0_84, %c0_85] : memref<4x64x32xbf16, #tpu.memory_space<vmem>>, vector<1x64x32xbf16>
    %74 = vector.shape_cast %73 : vector<1x64x32xbf16> to vector<64x32xbf16>
    %cst_86 = arith.constant dense<0.000000e+00> : vector<4x32xf32>
    %75 = tpu.matmul %72, %74, %cst_86 {dimension_numbers = #tpu.dot_dimension_numbers<[1], [0], [0], [1], [0, 0, 1, 1], [], []>} : vector<4x64xbf16>, vector<64x32xbf16>, vector<4x32xf32> -> vector<4x32xf32>
    %76 = arith.addf %69, %75 : vector<4x32xf32>
    %c1_87 = arith.constant 1 : index
    %c0_88 = arith.constant 0 : index
    %c2_89 = arith.constant 2 : index
    %c0_90 = arith.constant 0 : index
    %c0_91 = arith.constant 0 : index
    %77 = vector.load %arg1[%c1_87, %c0_88, %c2_89, %c0_90, %c0_91] : memref<4x1x5x5x64xf32, #tpu.memory_space<vmem>>, vector<1x1x1x4x64xf32>
    %78 = vector.shape_cast %77 : vector<1x1x1x4x64xf32> to vector<4x64xf32>
    %79 = arith.truncf %78 : vector<4x64xf32> to vector<4x64xbf16>
    %c1_92 = arith.constant 1 : index
    %c0_93 = arith.constant 0 : index
    %c0_94 = arith.constant 0 : index
    %80 = vector.load %arg2[%c1_92, %c0_93, %c0_94] : memref<4x64x32xbf16, #tpu.memory_space<vmem>>, vector<1x64x32xbf16>
    %81 = vector.shape_cast %80 : vector<1x64x32xbf16> to vector<64x32xbf16>
    %cst_95 = arith.constant dense<0.000000e+00> : vector<4x32xf32>
    %82 = tpu.matmul %79, %81, %cst_95 {dimension_numbers = #tpu.dot_dimension_numbers<[1], [0], [0], [1], [0, 0, 1, 1], [], []>} : vector<4x64xbf16>, vector<64x32xbf16>, vector<4x32xf32> -> vector<4x32xf32>
    %83 = arith.addf %76, %82 : vector<4x32xf32>
    %c2_96 = arith.constant 2 : index
    %c0_97 = arith.constant 0 : index
    %c2_98 = arith.constant 2 : index
    %c0_99 = arith.constant 0 : index
    %c0_100 = arith.constant 0 : index
    %84 = vector.load %arg1[%c2_96, %c0_97, %c2_98, %c0_99, %c0_100] : memref<4x1x5x5x64xf32, #tpu.memory_space<vmem>>, vector<1x1x1x4x64xf32>
    %85 = vector.shape_cast %84 : vector<1x1x1x4x64xf32> to vector<4x64xf32>
    %86 = arith.truncf %85 : vector<4x64xf32> to vector<4x64xbf16>
    %c2_101 = arith.constant 2 : index
    %c0_102 = arith.constant 0 : index
    %c0_103 = arith.constant 0 : index
    %87 = vector.load %arg2[%c2_101, %c0_102, %c0_103] : memref<4x64x32xbf16, #tpu.memory_space<vmem>>, vector<1x64x32xbf16>
    %88 = vector.shape_cast %87 : vector<1x64x32xbf16> to vector<64x32xbf16>
    %cst_104 = arith.constant dense<0.000000e+00> : vector<4x32xf32>
    %89 = tpu.matmul %86, %88, %cst_104 {dimension_numbers = #tpu.dot_dimension_numbers<[1], [0], [0], [1], [0, 0, 1, 1], [], []>} : vector<4x64xbf16>, vector<64x32xbf16>, vector<4x32xf32> -> vector<4x32xf32>
    %90 = arith.addf %83, %89 : vector<4x32xf32>
    %c3_105 = arith.constant 3 : index
    %c0_106 = arith.constant 0 : index
    %c2_107 = arith.constant 2 : index
    %c0_108 = arith.constant 0 : index
    %c0_109 = arith.constant 0 : index
    %91 = vector.load %arg1[%c3_105, %c0_106, %c2_107, %c0_108, %c0_109] : memref<4x1x5x5x64xf32, #tpu.memory_space<vmem>>, vector<1x1x1x4x64xf32>
    %92 = vector.shape_cast %91 : vector<1x1x1x4x64xf32> to vector<4x64xf32>
    %93 = arith.truncf %92 : vector<4x64xf32> to vector<4x64xbf16>
    %c3_110 = arith.constant 3 : index
    %c0_111 = arith.constant 0 : index
    %c0_112 = arith.constant 0 : index
    %94 = vector.load %arg2[%c3_110, %c0_111, %c0_112] : memref<4x64x32xbf16, #tpu.memory_space<vmem>>, vector<1x64x32xbf16>
    %95 = vector.shape_cast %94 : vector<1x64x32xbf16> to vector<64x32xbf16>
    %cst_113 = arith.constant dense<0.000000e+00> : vector<4x32xf32>
    %96 = tpu.matmul %93, %95, %cst_113 {dimension_numbers = #tpu.dot_dimension_numbers<[1], [0], [0], [1], [0, 0, 1, 1], [], []>} : vector<4x64xbf16>, vector<64x32xbf16>, vector<4x32xf32> -> vector<4x32xf32>
    %97 = arith.addf %90, %96 : vector<4x32xf32>
    %98 = vector.broadcast %0 : vector<1x32xf32> to vector<4x32xf32>
    %99 = arith.addf %97, %98 : vector<4x32xf32>
    %cst_114 = arith.constant 0.000000e+00 : f32
    %100 = vector.broadcast %cst_114 : f32 to vector<4x32xf32>
    %101 = arith.maximumf %99, %100 : vector<4x32xf32>
    %cst_115 = arith.constant 0.000000e+00 : f32
    %102 = vector.broadcast %cst_115 : f32 to vector<4x32xf32>
    %c0_116 = arith.constant 0 : index
    %c0_117 = arith.constant 0 : index
    %c3_118 = arith.constant 3 : index
    %c0_119 = arith.constant 0 : index
    %c0_120 = arith.constant 0 : index
    %103 = vector.load %arg1[%c0_116, %c0_117, %c3_118, %c0_119, %c0_120] : memref<4x1x5x5x64xf32, #tpu.memory_space<vmem>>, vector<1x1x1x4x64xf32>
    %104 = vector.shape_cast %103 : vector<1x1x1x4x64xf32> to vector<4x64xf32>
    %105 = arith.truncf %104 : vector<4x64xf32> to vector<4x64xbf16>
    %c0_121 = arith.constant 0 : index
    %c0_122 = arith.constant 0 : index
    %c0_123 = arith.constant 0 : index
    %106 = vector.load %arg2[%c0_121, %c0_122, %c0_123] : memref<4x64x32xbf16, #tpu.memory_space<vmem>>, vector<1x64x32xbf16>
    %107 = vector.shape_cast %106 : vector<1x64x32xbf16> to vector<64x32xbf16>
    %cst_124 = arith.constant dense<0.000000e+00> : vector<4x32xf32>
    %108 = tpu.matmul %105, %107, %cst_124 {dimension_numbers = #tpu.dot_dimension_numbers<[1], [0], [0], [1], [0, 0, 1, 1], [], []>} : vector<4x64xbf16>, vector<64x32xbf16>, vector<4x32xf32> -> vector<4x32xf32>
    %109 = arith.addf %102, %108 : vector<4x32xf32>
    %c1_125 = arith.constant 1 : index
    %c0_126 = arith.constant 0 : index
    %c3_127 = arith.constant 3 : index
    %c0_128 = arith.constant 0 : index
    %c0_129 = arith.constant 0 : index
    %110 = vector.load %arg1[%c1_125, %c0_126, %c3_127, %c0_128, %c0_129] : memref<4x1x5x5x64xf32, #tpu.memory_space<vmem>>, vector<1x1x1x4x64xf32>
    %111 = vector.shape_cast %110 : vector<1x1x1x4x64xf32> to vector<4x64xf32>
    %112 = arith.truncf %111 : vector<4x64xf32> to vector<4x64xbf16>
    %c1_130 = arith.constant 1 : index
    %c0_131 = arith.constant 0 : index
    %c0_132 = arith.constant 0 : index
    %113 = vector.load %arg2[%c1_130, %c0_131, %c0_132] : memref<4x64x32xbf16, #tpu.memory_space<vmem>>, vector<1x64x32xbf16>
    %114 = vector.shape_cast %113 : vector<1x64x32xbf16> to vector<64x32xbf16>
    %cst_133 = arith.constant dense<0.000000e+00> : vector<4x32xf32>
    %115 = tpu.matmul %112, %114, %cst_133 {dimension_numbers = #tpu.dot_dimension_numbers<[1], [0], [0], [1], [0, 0, 1, 1], [], []>} : vector<4x64xbf16>, vector<64x32xbf16>, vector<4x32xf32> -> vector<4x32xf32>
    %116 = arith.addf %109, %115 : vector<4x32xf32>
    %c2_134 = arith.constant 2 : index
    %c0_135 = arith.constant 0 : index
    %c3_136 = arith.constant 3 : index
    %c0_137 = arith.constant 0 : index
    %c0_138 = arith.constant 0 : index
    %117 = vector.load %arg1[%c2_134, %c0_135, %c3_136, %c0_137, %c0_138] : memref<4x1x5x5x64xf32, #tpu.memory_space<vmem>>, vector<1x1x1x4x64xf32>
    %118 = vector.shape_cast %117 : vector<1x1x1x4x64xf32> to vector<4x64xf32>
    %119 = arith.truncf %118 : vector<4x64xf32> to vector<4x64xbf16>
    %c2_139 = arith.constant 2 : index
    %c0_140 = arith.constant 0 : index
    %c0_141 = arith.constant 0 : index
    %120 = vector.load %arg2[%c2_139, %c0_140, %c0_141] : memref<4x64x32xbf16, #tpu.memory_space<vmem>>, vector<1x64x32xbf16>
    %121 = vector.shape_cast %120 : vector<1x64x32xbf16> to vector<64x32xbf16>
    %cst_142 = arith.constant dense<0.000000e+00> : vector<4x32xf32>
    %122 = tpu.matmul %119, %121, %cst_142 {dimension_numbers = #tpu.dot_dimension_numbers<[1], [0], [0], [1], [0, 0, 1, 1], [], []>} : vector<4x64xbf16>, vector<64x32xbf16>, vector<4x32xf32> -> vector<4x32xf32>
    %123 = arith.addf %116, %122 : vector<4x32xf32>
    %c3_143 = arith.constant 3 : index
    %c0_144 = arith.constant 0 : index
    %c3_145 = arith.constant 3 : index
    %c0_146 = arith.constant 0 : index
    %c0_147 = arith.constant 0 : index
    %124 = vector.load %arg1[%c3_143, %c0_144, %c3_145, %c0_146, %c0_147] : memref<4x1x5x5x64xf32, #tpu.memory_space<vmem>>, vector<1x1x1x4x64xf32>
    %125 = vector.shape_cast %124 : vector<1x1x1x4x64xf32> to vector<4x64xf32>
    %126 = arith.truncf %125 : vector<4x64xf32> to vector<4x64xbf16>
    %c3_148 = arith.constant 3 : index
    %c0_149 = arith.constant 0 : index
    %c0_150 = arith.constant 0 : index
    %127 = vector.load %arg2[%c3_148, %c0_149, %c0_150] : memref<4x64x32xbf16, #tpu.memory_space<vmem>>, vector<1x64x32xbf16>
    %128 = vector.shape_cast %127 : vector<1x64x32xbf16> to vector<64x32xbf16>
    %cst_151 = arith.constant dense<0.000000e+00> : vector<4x32xf32>
    %129 = tpu.matmul %126, %128, %cst_151 {dimension_numbers = #tpu.dot_dimension_numbers<[1], [0], [0], [1], [0, 0, 1, 1], [], []>} : vector<4x64xbf16>, vector<64x32xbf16>, vector<4x32xf32> -> vector<4x32xf32>
    %130 = arith.addf %123, %129 : vector<4x32xf32>
    %131 = vector.broadcast %0 : vector<1x32xf32> to vector<4x32xf32>
    %132 = arith.addf %130, %131 : vector<4x32xf32>
    %cst_152 = arith.constant 0.000000e+00 : f32
    %133 = vector.broadcast %cst_152 : f32 to vector<4x32xf32>
    %134 = arith.maximumf %132, %133 : vector<4x32xf32>
    %cst_153 = arith.constant 0.000000e+00 : f32
    %135 = vector.broadcast %cst_153 : f32 to vector<4x32xf32>
    %c1_154 = arith.constant 1 : index
    %c0_155 = arith.constant 0 : index
    %c0_156 = arith.constant 0 : index
    %c0_157 = arith.constant 0 : index
    %c0_158 = arith.constant 0 : index
    %136 = vector.load %arg1[%c1_154, %c0_155, %c0_156, %c0_157, %c0_158] : memref<4x1x5x5x64xf32, #tpu.memory_space<vmem>>, vector<1x1x1x4x64xf32>
    %137 = vector.shape_cast %136 : vector<1x1x1x4x64xf32> to vector<4x64xf32>
    %138 = arith.truncf %137 : vector<4x64xf32> to vector<4x64xbf16>
    %c0_159 = arith.constant 0 : index
    %c0_160 = arith.constant 0 : index
    %c0_161 = arith.constant 0 : index
    %139 = vector.load %arg2[%c0_159, %c0_160, %c0_161] : memref<4x64x32xbf16, #tpu.memory_space<vmem>>, vector<1x64x32xbf16>
    %140 = vector.shape_cast %139 : vector<1x64x32xbf16> to vector<64x32xbf16>
    %cst_162 = arith.constant dense<0.000000e+00> : vector<4x32xf32>
    %141 = tpu.matmul %138, %140, %cst_162 {dimension_numbers = #tpu.dot_dimension_numbers<[1], [0], [0], [1], [0, 0, 1, 1], [], []>} : vector<4x64xbf16>, vector<64x32xbf16>, vector<4x32xf32> -> vector<4x32xf32>
    %142 = arith.addf %135, %141 : vector<4x32xf32>
    %c0_163 = arith.constant 0 : index
    %c0_164 = arith.constant 0 : index
    %c0_165 = arith.constant 0 : index
    %c1_166 = arith.constant 1 : index
    %c0_167 = arith.constant 0 : index
    %143 = vector.load %arg1[%c0_163, %c0_164, %c0_165, %c1_166, %c0_167] : memref<4x1x5x5x64xf32, #tpu.memory_space<vmem>>, vector<1x1x1x4x64xf32>
    %144 = vector.shape_cast %143 : vector<1x1x1x4x64xf32> to vector<4x64xf32>
    %145 = arith.truncf %144 : vector<4x64xf32> to vector<4x64xbf16>
    %c1_168 = arith.constant 1 : index
    %c0_169 = arith.constant 0 : index
    %c0_170 = arith.constant 0 : index
    %146 = vector.load %arg2[%c1_168, %c0_169, %c0_170] : memref<4x64x32xbf16, #tpu.memory_space<vmem>>, vector<1x64x32xbf16>
    %147 = vector.shape_cast %146 : vector<1x64x32xbf16> to vector<64x32xbf16>
    %cst_171 = arith.constant dense<0.000000e+00> : vector<4x32xf32>
    %148 = tpu.matmul %145, %147, %cst_171 {dimension_numbers = #tpu.dot_dimension_numbers<[1], [0], [0], [1], [0, 0, 1, 1], [], []>} : vector<4x64xbf16>, vector<64x32xbf16>, vector<4x32xf32> -> vector<4x32xf32>
    %149 = arith.addf %142, %148 : vector<4x32xf32>
    %c3_172 = arith.constant 3 : index
    %c0_173 = arith.constant 0 : index
    %c0_174 = arith.constant 0 : index
    %c0_175 = arith.constant 0 : index
    %c0_176 = arith.constant 0 : index
    %150 = vector.load %arg1[%c3_172, %c0_173, %c0_174, %c0_175, %c0_176] : memref<4x1x5x5x64xf32, #tpu.memory_space<vmem>>, vector<1x1x1x4x64xf32>
    %151 = vector.shape_cast %150 : vector<1x1x1x4x64xf32> to vector<4x64xf32>
    %152 = arith.truncf %151 : vector<4x64xf32> to vector<4x64xbf16>
    %c2_177 = arith.constant 2 : index
    %c0_178 = arith.constant 0 : index
    %c0_179 = arith.constant 0 : index
    %153 = vector.load %arg2[%c2_177, %c0_178, %c0_179] : memref<4x64x32xbf16, #tpu.memory_space<vmem>>, vector<1x64x32xbf16>
    %154 = vector.shape_cast %153 : vector<1x64x32xbf16> to vector<64x32xbf16>
    %cst_180 = arith.constant dense<0.000000e+00> : vector<4x32xf32>
    %155 = tpu.matmul %152, %154, %cst_180 {dimension_numbers = #tpu.dot_dimension_numbers<[1], [0], [0], [1], [0, 0, 1, 1], [], []>} : vector<4x64xbf16>, vector<64x32xbf16>, vector<4x32xf32> -> vector<4x32xf32>
    %156 = arith.addf %149, %155 : vector<4x32xf32>
    %c2_181 = arith.constant 2 : index
    %c0_182 = arith.constant 0 : index
    %c0_183 = arith.constant 0 : index
    %c1_184 = arith.constant 1 : index
    %c0_185 = arith.constant 0 : index
    %157 = vector.load %arg1[%c2_181, %c0_182, %c0_183, %c1_184, %c0_185] : memref<4x1x5x5x64xf32, #tpu.memory_space<vmem>>, vector<1x1x1x4x64xf32>
    %158 = vector.shape_cast %157 : vector<1x1x1x4x64xf32> to vector<4x64xf32>
    %159 = arith.truncf %158 : vector<4x64xf32> to vector<4x64xbf16>
    %c3_186 = arith.constant 3 : index
    %c0_187 = arith.constant 0 : index
    %c0_188 = arith.constant 0 : index
    %160 = vector.load %arg2[%c3_186, %c0_187, %c0_188] : memref<4x64x32xbf16, #tpu.memory_space<vmem>>, vector<1x64x32xbf16>
    %161 = vector.shape_cast %160 : vector<1x64x32xbf16> to vector<64x32xbf16>
    %cst_189 = arith.constant dense<0.000000e+00> : vector<4x32xf32>
    %162 = tpu.matmul %159, %161, %cst_189 {dimension_numbers = #tpu.dot_dimension_numbers<[1], [0], [0], [1], [0, 0, 1, 1], [], []>} : vector<4x64xbf16>, vector<64x32xbf16>, vector<4x32xf32> -> vector<4x32xf32>
    %163 = arith.addf %156, %162 : vector<4x32xf32>
    %164 = vector.broadcast %0 : vector<1x32xf32> to vector<4x32xf32>
    %165 = arith.addf %163, %164 : vector<4x32xf32>
    %cst_190 = arith.constant 0.000000e+00 : f32
    %166 = vector.broadcast %cst_190 : f32 to vector<4x32xf32>
    %167 = arith.maximumf %165, %166 : vector<4x32xf32>
    %cst_191 = arith.constant 0.000000e+00 : f32
    %168 = vector.broadcast %cst_191 : f32 to vector<4x32xf32>
    %c1_192 = arith.constant 1 : index
    %c0_193 = arith.constant 0 : index
    %c1_194 = arith.constant 1 : index
    %c0_195 = arith.constant 0 : index
    %c0_196 = arith.constant 0 : index
    %169 = vector.load %arg1[%c1_192, %c0_193, %c1_194, %c0_195, %c0_196] : memref<4x1x5x5x64xf32, #tpu.memory_space<vmem>>, vector<1x1x1x4x64xf32>
    %170 = vector.shape_cast %169 : vector<1x1x1x4x64xf32> to vector<4x64xf32>
    %171 = arith.truncf %170 : vector<4x64xf32> to vector<4x64xbf16>
    %c0_197 = arith.constant 0 : index
    %c0_198 = arith.constant 0 : index
    %c0_199 = arith.constant 0 : index
    %172 = vector.load %arg2[%c0_197, %c0_198, %c0_199] : memref<4x64x32xbf16, #tpu.memory_space<vmem>>, vector<1x64x32xbf16>
    %173 = vector.shape_cast %172 : vector<1x64x32xbf16> to vector<64x32xbf16>
    %cst_200 = arith.constant dense<0.000000e+00> : vector<4x32xf32>
    %174 = tpu.matmul %171, %173, %cst_200 {dimension_numbers = #tpu.dot_dimension_numbers<[1], [0], [0], [1], [0, 0, 1, 1], [], []>} : vector<4x64xbf16>, vector<64x32xbf16>, vector<4x32xf32> -> vector<4x32xf32>
    %175 = arith.addf %168, %174 : vector<4x32xf32>
    %c0_201 = arith.constant 0 : index
    %c0_202 = arith.constant 0 : index
    %c1_203 = arith.constant 1 : index
    %c1_204 = arith.constant 1 : index
    %c0_205 = arith.constant 0 : index
    %176 = vector.load %arg1[%c0_201, %c0_202, %c1_203, %c1_204, %c0_205] : memref<4x1x5x5x64xf32, #tpu.memory_space<vmem>>, vector<1x1x1x4x64xf32>
    %177 = vector.shape_cast %176 : vector<1x1x1x4x64xf32> to vector<4x64xf32>
    %178 = arith.truncf %177 : vector<4x64xf32> to vector<4x64xbf16>
    %c1_206 = arith.constant 1 : index
    %c0_207 = arith.constant 0 : index
    %c0_208 = arith.constant 0 : index
    %179 = vector.load %arg2[%c1_206, %c0_207, %c0_208] : memref<4x64x32xbf16, #tpu.memory_space<vmem>>, vector<1x64x32xbf16>
    %180 = vector.shape_cast %179 : vector<1x64x32xbf16> to vector<64x32xbf16>
    %cst_209 = arith.constant dense<0.000000e+00> : vector<4x32xf32>
    %181 = tpu.matmul %178, %180, %cst_209 {dimension_numbers = #tpu.dot_dimension_numbers<[1], [0], [0], [1], [0, 0, 1, 1], [], []>} : vector<4x64xbf16>, vector<64x32xbf16>, vector<4x32xf32> -> vector<4x32xf32>
    %182 = arith.addf %175, %181 : vector<4x32xf32>
    %c3_210 = arith.constant 3 : index
    %c0_211 = arith.constant 0 : index
    %c1_212 = arith.constant 1 : index
    %c0_213 = arith.constant 0 : index
    %c0_214 = arith.constant 0 : index
    %183 = vector.load %arg1[%c3_210, %c0_211, %c1_212, %c0_213, %c0_214] : memref<4x1x5x5x64xf32, #tpu.memory_space<vmem>>, vector<1x1x1x4x64xf32>
    %184 = vector.shape_cast %183 : vector<1x1x1x4x64xf32> to vector<4x64xf32>
    %185 = arith.truncf %184 : vector<4x64xf32> to vector<4x64xbf16>
    %c2_215 = arith.constant 2 : index
    %c0_216 = arith.constant 0 : index
    %c0_217 = arith.constant 0 : index
    %186 = vector.load %arg2[%c2_215, %c0_216, %c0_217] : memref<4x64x32xbf16, #tpu.memory_space<vmem>>, vector<1x64x32xbf16>
    %187 = vector.shape_cast %186 : vector<1x64x32xbf16> to vector<64x32xbf16>
    %cst_218 = arith.constant dense<0.000000e+00> : vector<4x32xf32>
    %188 = tpu.matmul %185, %187, %cst_218 {dimension_numbers = #tpu.dot_dimension_numbers<[1], [0], [0], [1], [0, 0, 1, 1], [], []>} : vector<4x64xbf16>, vector<64x32xbf16>, vector<4x32xf32> -> vector<4x32xf32>
    %189 = arith.addf %182, %188 : vector<4x32xf32>
    %c2_219 = arith.constant 2 : index
    %c0_220 = arith.constant 0 : index
    %c1_221 = arith.constant 1 : index
    %c1_222 = arith.constant 1 : index
    %c0_223 = arith.constant 0 : index
    %190 = vector.load %arg1[%c2_219, %c0_220, %c1_221, %c1_222, %c0_223] : memref<4x1x5x5x64xf32, #tpu.memory_space<vmem>>, vector<1x1x1x4x64xf32>
    %191 = vector.shape_cast %190 : vector<1x1x1x4x64xf32> to vector<4x64xf32>
    %192 = arith.truncf %191 : vector<4x64xf32> to vector<4x64xbf16>
    %c3_224 = arith.constant 3 : index
    %c0_225 = arith.constant 0 : index
    %c0_226 = arith.constant 0 : index
    %193 = vector.load %arg2[%c3_224, %c0_225, %c0_226] : memref<4x64x32xbf16, #tpu.memory_space<vmem>>, vector<1x64x32xbf16>
    %194 = vector.shape_cast %193 : vector<1x64x32xbf16> to vector<64x32xbf16>
    %cst_227 = arith.constant dense<0.000000e+00> : vector<4x32xf32>
    %195 = tpu.matmul %192, %194, %cst_227 {dimension_numbers = #tpu.dot_dimension_numbers<[1], [0], [0], [1], [0, 0, 1, 1], [], []>} : vector<4x64xbf16>, vector<64x32xbf16>, vector<4x32xf32> -> vector<4x32xf32>
    %196 = arith.addf %189, %195 : vector<4x32xf32>
    %197 = vector.broadcast %0 : vector<1x32xf32> to vector<4x32xf32>
    %198 = arith.addf %196, %197 : vector<4x32xf32>
    %cst_228 = arith.constant 0.000000e+00 : f32
    %199 = vector.broadcast %cst_228 : f32 to vector<4x32xf32>
    %200 = arith.maximumf %198, %199 : vector<4x32xf32>
    %cst_229 = arith.constant 0.000000e+00 : f32
    %201 = vector.broadcast %cst_229 : f32 to vector<4x32xf32>
    %c1_230 = arith.constant 1 : index
    %c0_231 = arith.constant 0 : index
    %c2_232 = arith.constant 2 : index
    %c0_233 = arith.constant 0 : index
    %c0_234 = arith.constant 0 : index
    %202 = vector.load %arg1[%c1_230, %c0_231, %c2_232, %c0_233, %c0_234] : memref<4x1x5x5x64xf32, #tpu.memory_space<vmem>>, vector<1x1x1x4x64xf32>
    %203 = vector.shape_cast %202 : vector<1x1x1x4x64xf32> to vector<4x64xf32>
    %204 = arith.truncf %203 : vector<4x64xf32> to vector<4x64xbf16>
    %c0_235 = arith.constant 0 : index
    %c0_236 = arith.constant 0 : index
    %c0_237 = arith.constant 0 : index
    %205 = vector.load %arg2[%c0_235, %c0_236, %c0_237] : memref<4x64x32xbf16, #tpu.memory_space<vmem>>, vector<1x64x32xbf16>
    %206 = vector.shape_cast %205 : vector<1x64x32xbf16> to vector<64x32xbf16>
    %cst_238 = arith.constant dense<0.000000e+00> : vector<4x32xf32>
    %207 = tpu.matmul %204, %206, %cst_238 {dimension_numbers = #tpu.dot_dimension_numbers<[1], [0], [0], [1], [0, 0, 1, 1], [], []>} : vector<4x64xbf16>, vector<64x32xbf16>, vector<4x32xf32> -> vector<4x32xf32>
    %208 = arith.addf %201, %207 : vector<4x32xf32>
    %c0_239 = arith.constant 0 : index
    %c0_240 = arith.constant 0 : index
    %c2_241 = arith.constant 2 : index
    %c1_242 = arith.constant 1 : index
    %c0_243 = arith.constant 0 : index
    %209 = vector.load %arg1[%c0_239, %c0_240, %c2_241, %c1_242, %c0_243] : memref<4x1x5x5x64xf32, #tpu.memory_space<vmem>>, vector<1x1x1x4x64xf32>
    %210 = vector.shape_cast %209 : vector<1x1x1x4x64xf32> to vector<4x64xf32>
    %211 = arith.truncf %210 : vector<4x64xf32> to vector<4x64xbf16>
    %c1_244 = arith.constant 1 : index
    %c0_245 = arith.constant 0 : index
    %c0_246 = arith.constant 0 : index
    %212 = vector.load %arg2[%c1_244, %c0_245, %c0_246] : memref<4x64x32xbf16, #tpu.memory_space<vmem>>, vector<1x64x32xbf16>
    %213 = vector.shape_cast %212 : vector<1x64x32xbf16> to vector<64x32xbf16>
    %cst_247 = arith.constant dense<0.000000e+00> : vector<4x32xf32>
    %214 = tpu.matmul %211, %213, %cst_247 {dimension_numbers = #tpu.dot_dimension_numbers<[1], [0], [0], [1], [0, 0, 1, 1], [], []>} : vector<4x64xbf16>, vector<64x32xbf16>, vector<4x32xf32> -> vector<4x32xf32>
    %215 = arith.addf %208, %214 : vector<4x32xf32>
    %c3_248 = arith.constant 3 : index
    %c0_249 = arith.constant 0 : index
    %c2_250 = arith.constant 2 : index
    %c0_251 = arith.constant 0 : index
    %c0_252 = arith.constant 0 : index
    %216 = vector.load %arg1[%c3_248, %c0_249, %c2_250, %c0_251, %c0_252] : memref<4x1x5x5x64xf32, #tpu.memory_space<vmem>>, vector<1x1x1x4x64xf32>
    %217 = vector.shape_cast %216 : vector<1x1x1x4x64xf32> to vector<4x64xf32>
    %218 = arith.truncf %217 : vector<4x64xf32> to vector<4x64xbf16>
    %c2_253 = arith.constant 2 : index
    %c0_254 = arith.constant 0 : index
    %c0_255 = arith.constant 0 : index
    %219 = vector.load %arg2[%c2_253, %c0_254, %c0_255] : memref<4x64x32xbf16, #tpu.memory_space<vmem>>, vector<1x64x32xbf16>
    %220 = vector.shape_cast %219 : vector<1x64x32xbf16> to vector<64x32xbf16>
    %cst_256 = arith.constant dense<0.000000e+00> : vector<4x32xf32>
    %221 = tpu.matmul %218, %220, %cst_256 {dimension_numbers = #tpu.dot_dimension_numbers<[1], [0], [0], [1], [0, 0, 1, 1], [], []>} : vector<4x64xbf16>, vector<64x32xbf16>, vector<4x32xf32> -> vector<4x32xf32>
    %222 = arith.addf %215, %221 : vector<4x32xf32>
    %c2_257 = arith.constant 2 : index
    %c0_258 = arith.constant 0 : index
    %c2_259 = arith.constant 2 : index
    %c1_260 = arith.constant 1 : index
    %c0_261 = arith.constant 0 : index
    %223 = vector.load %arg1[%c2_257, %c0_258, %c2_259, %c1_260, %c0_261] : memref<4x1x5x5x64xf32, #tpu.memory_space<vmem>>, vector<1x1x1x4x64xf32>
    %224 = vector.shape_cast %223 : vector<1x1x1x4x64xf32> to vector<4x64xf32>
    %225 = arith.truncf %224 : vector<4x64xf32> to vector<4x64xbf16>
    %c3_262 = arith.constant 3 : index
    %c0_263 = arith.constant 0 : index
    %c0_264 = arith.constant 0 : index
    %226 = vector.load %arg2[%c3_262, %c0_263, %c0_264] : memref<4x64x32xbf16, #tpu.memory_space<vmem>>, vector<1x64x32xbf16>
    %227 = vector.shape_cast %226 : vector<1x64x32xbf16> to vector<64x32xbf16>
    %cst_265 = arith.constant dense<0.000000e+00> : vector<4x32xf32>
    %228 = tpu.matmul %225, %227, %cst_265 {dimension_numbers = #tpu.dot_dimension_numbers<[1], [0], [0], [1], [0, 0, 1, 1], [], []>} : vector<4x64xbf16>, vector<64x32xbf16>, vector<4x32xf32> -> vector<4x32xf32>
    %229 = arith.addf %222, %228 : vector<4x32xf32>
    %230 = vector.broadcast %0 : vector<1x32xf32> to vector<4x32xf32>
    %231 = arith.addf %229, %230 : vector<4x32xf32>
    %cst_266 = arith.constant 0.000000e+00 : f32
    %232 = vector.broadcast %cst_266 : f32 to vector<4x32xf32>
    %233 = arith.maximumf %231, %232 : vector<4x32xf32>
    %cst_267 = arith.constant 0.000000e+00 : f32
    %234 = vector.broadcast %cst_267 : f32 to vector<4x32xf32>
    %c1_268 = arith.constant 1 : index
    %c0_269 = arith.constant 0 : index
    %c3_270 = arith.constant 3 : index
    %c0_271 = arith.constant 0 : index
    %c0_272 = arith.constant 0 : index
    %235 = vector.load %arg1[%c1_268, %c0_269, %c3_270, %c0_271, %c0_272] : memref<4x1x5x5x64xf32, #tpu.memory_space<vmem>>, vector<1x1x1x4x64xf32>
    %236 = vector.shape_cast %235 : vector<1x1x1x4x64xf32> to vector<4x64xf32>
    %237 = arith.truncf %236 : vector<4x64xf32> to vector<4x64xbf16>
    %c0_273 = arith.constant 0 : index
    %c0_274 = arith.constant 0 : index
    %c0_275 = arith.constant 0 : index
    %238 = vector.load %arg2[%c0_273, %c0_274, %c0_275] : memref<4x64x32xbf16, #tpu.memory_space<vmem>>, vector<1x64x32xbf16>
    %239 = vector.shape_cast %238 : vector<1x64x32xbf16> to vector<64x32xbf16>
    %cst_276 = arith.constant dense<0.000000e+00> : vector<4x32xf32>
    %240 = tpu.matmul %237, %239, %cst_276 {dimension_numbers = #tpu.dot_dimension_numbers<[1], [0], [0], [1], [0, 0, 1, 1], [], []>} : vector<4x64xbf16>, vector<64x32xbf16>, vector<4x32xf32> -> vector<4x32xf32>
    %241 = arith.addf %234, %240 : vector<4x32xf32>
    %c0_277 = arith.constant 0 : index
    %c0_278 = arith.constant 0 : index
    %c3_279 = arith.constant 3 : index
    %c1_280 = arith.constant 1 : index
    %c0_281 = arith.constant 0 : index
    %242 = vector.load %arg1[%c0_277, %c0_278, %c3_279, %c1_280, %c0_281] : memref<4x1x5x5x64xf32, #tpu.memory_space<vmem>>, vector<1x1x1x4x64xf32>
    %243 = vector.shape_cast %242 : vector<1x1x1x4x64xf32> to vector<4x64xf32>
    %244 = arith.truncf %243 : vector<4x64xf32> to vector<4x64xbf16>
    %c1_282 = arith.constant 1 : index
    %c0_283 = arith.constant 0 : index
    %c0_284 = arith.constant 0 : index
    %245 = vector.load %arg2[%c1_282, %c0_283, %c0_284] : memref<4x64x32xbf16, #tpu.memory_space<vmem>>, vector<1x64x32xbf16>
    %246 = vector.shape_cast %245 : vector<1x64x32xbf16> to vector<64x32xbf16>
    %cst_285 = arith.constant dense<0.000000e+00> : vector<4x32xf32>
    %247 = tpu.matmul %244, %246, %cst_285 {dimension_numbers = #tpu.dot_dimension_numbers<[1], [0], [0], [1], [0, 0, 1, 1], [], []>} : vector<4x64xbf16>, vector<64x32xbf16>, vector<4x32xf32> -> vector<4x32xf32>
    %248 = arith.addf %241, %247 : vector<4x32xf32>
    %c3_286 = arith.constant 3 : index
    %c0_287 = arith.constant 0 : index
    %c3_288 = arith.constant 3 : index
    %c0_289 = arith.constant 0 : index
    %c0_290 = arith.constant 0 : index
    %249 = vector.load %arg1[%c3_286, %c0_287, %c3_288, %c0_289, %c0_290] : memref<4x1x5x5x64xf32, #tpu.memory_space<vmem>>, vector<1x1x1x4x64xf32>
    %250 = vector.shape_cast %249 : vector<1x1x1x4x64xf32> to vector<4x64xf32>
    %251 = arith.truncf %250 : vector<4x64xf32> to vector<4x64xbf16>
    %c2_291 = arith.constant 2 : index
    %c0_292 = arith.constant 0 : index
    %c0_293 = arith.constant 0 : index
    %252 = vector.load %arg2[%c2_291, %c0_292, %c0_293] : memref<4x64x32xbf16, #tpu.memory_space<vmem>>, vector<1x64x32xbf16>
    %253 = vector.shape_cast %252 : vector<1x64x32xbf16> to vector<64x32xbf16>
    %cst_294 = arith.constant dense<0.000000e+00> : vector<4x32xf32>
    %254 = tpu.matmul %251, %253, %cst_294 {dimension_numbers = #tpu.dot_dimension_numbers<[1], [0], [0], [1], [0, 0, 1, 1], [], []>} : vector<4x64xbf16>, vector<64x32xbf16>, vector<4x32xf32> -> vector<4x32xf32>
    %255 = arith.addf %248, %254 : vector<4x32xf32>
    %c2_295 = arith.constant 2 : index
    %c0_296 = arith.constant 0 : index
    %c3_297 = arith.constant 3 : index
    %c1_298 = arith.constant 1 : index
    %c0_299 = arith.constant 0 : index
    %256 = vector.load %arg1[%c2_295, %c0_296, %c3_297, %c1_298, %c0_299] : memref<4x1x5x5x64xf32, #tpu.memory_space<vmem>>, vector<1x1x1x4x64xf32>
    %257 = vector.shape_cast %256 : vector<1x1x1x4x64xf32> to vector<4x64xf32>
    %258 = arith.truncf %257 : vector<4x64xf32> to vector<4x64xbf16>
    %c3_300 = arith.constant 3 : index
    %c0_301 = arith.constant 0 : index
    %c0_302 = arith.constant 0 : index
    %259 = vector.load %arg2[%c3_300, %c0_301, %c0_302] : memref<4x64x32xbf16, #tpu.memory_space<vmem>>, vector<1x64x32xbf16>
    %260 = vector.shape_cast %259 : vector<1x64x32xbf16> to vector<64x32xbf16>
    %cst_303 = arith.constant dense<0.000000e+00> : vector<4x32xf32>
    %261 = tpu.matmul %258, %260, %cst_303 {dimension_numbers = #tpu.dot_dimension_numbers<[1], [0], [0], [1], [0, 0, 1, 1], [], []>} : vector<4x64xbf16>, vector<64x32xbf16>, vector<4x32xf32> -> vector<4x32xf32>
    %262 = arith.addf %255, %261 : vector<4x32xf32>
    %263 = vector.broadcast %0 : vector<1x32xf32> to vector<4x32xf32>
    %264 = arith.addf %262, %263 : vector<4x32xf32>
    %cst_304 = arith.constant 0.000000e+00 : f32
    %265 = vector.broadcast %cst_304 : f32 to vector<4x32xf32>
    %266 = arith.maximumf %264, %265 : vector<4x32xf32>
    %cst_305 = arith.constant 0.000000e+00 : f32
    %267 = vector.broadcast %cst_305 : f32 to vector<4x32xf32>
    %c2_306 = arith.constant 2 : index
    %c0_307 = arith.constant 0 : index
    %c0_308 = arith.constant 0 : index
    %c0_309 = arith.constant 0 : index
    %c0_310 = arith.constant 0 : index
    %268 = vector.load %arg1[%c2_306, %c0_307, %c0_308, %c0_309, %c0_310] : memref<4x1x5x5x64xf32, #tpu.memory_space<vmem>>, vector<1x1x1x4x64xf32>
    %269 = vector.shape_cast %268 : vector<1x1x1x4x64xf32> to vector<4x64xf32>
    %270 = arith.truncf %269 : vector<4x64xf32> to vector<4x64xbf16>
    %c0_311 = arith.constant 0 : index
    %c0_312 = arith.constant 0 : index
    %c0_313 = arith.constant 0 : index
    %271 = vector.load %arg2[%c0_311, %c0_312, %c0_313] : memref<4x64x32xbf16, #tpu.memory_space<vmem>>, vector<1x64x32xbf16>
    %272 = vector.shape_cast %271 : vector<1x64x32xbf16> to vector<64x32xbf16>
    %cst_314 = arith.constant dense<0.000000e+00> : vector<4x32xf32>
    %273 = tpu.matmul %270, %272, %cst_314 {dimension_numbers = #tpu.dot_dimension_numbers<[1], [0], [0], [1], [0, 0, 1, 1], [], []>} : vector<4x64xbf16>, vector<64x32xbf16>, vector<4x32xf32> -> vector<4x32xf32>
    %274 = arith.addf %267, %273 : vector<4x32xf32>
    %c3_315 = arith.constant 3 : index
    %c0_316 = arith.constant 0 : index
    %c0_317 = arith.constant 0 : index
    %c0_318 = arith.constant 0 : index
    %c0_319 = arith.constant 0 : index
    %275 = vector.load %arg1[%c3_315, %c0_316, %c0_317, %c0_318, %c0_319] : memref<4x1x5x5x64xf32, #tpu.memory_space<vmem>>, vector<1x1x1x4x64xf32>
    %276 = vector.shape_cast %275 : vector<1x1x1x4x64xf32> to vector<4x64xf32>
    %277 = arith.truncf %276 : vector<4x64xf32> to vector<4x64xbf16>
    %c1_320 = arith.constant 1 : index
    %c0_321 = arith.constant 0 : index
    %c0_322 = arith.constant 0 : index
    %278 = vector.load %arg2[%c1_320, %c0_321, %c0_322] : memref<4x64x32xbf16, #tpu.memory_space<vmem>>, vector<1x64x32xbf16>
    %279 = vector.shape_cast %278 : vector<1x64x32xbf16> to vector<64x32xbf16>
    %cst_323 = arith.constant dense<0.000000e+00> : vector<4x32xf32>
    %280 = tpu.matmul %277, %279, %cst_323 {dimension_numbers = #tpu.dot_dimension_numbers<[1], [0], [0], [1], [0, 0, 1, 1], [], []>} : vector<4x64xbf16>, vector<64x32xbf16>, vector<4x32xf32> -> vector<4x32xf32>
    %281 = arith.addf %274, %280 : vector<4x32xf32>
    %c0_324 = arith.constant 0 : index
    %c0_325 = arith.constant 0 : index
    %c1_326 = arith.constant 1 : index
    %c0_327 = arith.constant 0 : index
    %c0_328 = arith.constant 0 : index
    %282 = vector.load %arg1[%c0_324, %c0_325, %c1_326, %c0_327, %c0_328] : memref<4x1x5x5x64xf32, #tpu.memory_space<vmem>>, vector<1x1x1x4x64xf32>
    %283 = vector.shape_cast %282 : vector<1x1x1x4x64xf32> to vector<4x64xf32>
    %284 = arith.truncf %283 : vector<4x64xf32> to vector<4x64xbf16>
    %c2_329 = arith.constant 2 : index
    %c0_330 = arith.constant 0 : index
    %c0_331 = arith.constant 0 : index
    %285 = vector.load %arg2[%c2_329, %c0_330, %c0_331] : memref<4x64x32xbf16, #tpu.memory_space<vmem>>, vector<1x64x32xbf16>
    %286 = vector.shape_cast %285 : vector<1x64x32xbf16> to vector<64x32xbf16>
    %cst_332 = arith.constant dense<0.000000e+00> : vector<4x32xf32>
    %287 = tpu.matmul %284, %286, %cst_332 {dimension_numbers = #tpu.dot_dimension_numbers<[1], [0], [0], [1], [0, 0, 1, 1], [], []>} : vector<4x64xbf16>, vector<64x32xbf16>, vector<4x32xf32> -> vector<4x32xf32>
    %288 = arith.addf %281, %287 : vector<4x32xf32>
    %c1_333 = arith.constant 1 : index
    %c0_334 = arith.constant 0 : index
    %c1_335 = arith.constant 1 : index
    %c0_336 = arith.constant 0 : index
    %c0_337 = arith.constant 0 : index
    %289 = vector.load %arg1[%c1_333, %c0_334, %c1_335, %c0_336, %c0_337] : memref<4x1x5x5x64xf32, #tpu.memory_space<vmem>>, vector<1x1x1x4x64xf32>
    %290 = vector.shape_cast %289 : vector<1x1x1x4x64xf32> to vector<4x64xf32>
    %291 = arith.truncf %290 : vector<4x64xf32> to vector<4x64xbf16>
    %c3_338 = arith.constant 3 : index
    %c0_339 = arith.constant 0 : index
    %c0_340 = arith.constant 0 : index
    %292 = vector.load %arg2[%c3_338, %c0_339, %c0_340] : memref<4x64x32xbf16, #tpu.memory_space<vmem>>, vector<1x64x32xbf16>
    %293 = vector.shape_cast %292 : vector<1x64x32xbf16> to vector<64x32xbf16>
    %cst_341 = arith.constant dense<0.000000e+00> : vector<4x32xf32>
    %294 = tpu.matmul %291, %293, %cst_341 {dimension_numbers = #tpu.dot_dimension_numbers<[1], [0], [0], [1], [0, 0, 1, 1], [], []>} : vector<4x64xbf16>, vector<64x32xbf16>, vector<4x32xf32> -> vector<4x32xf32>
    %295 = arith.addf %288, %294 : vector<4x32xf32>
    %296 = vector.broadcast %0 : vector<1x32xf32> to vector<4x32xf32>
    %297 = arith.addf %295, %296 : vector<4x32xf32>
    %cst_342 = arith.constant 0.000000e+00 : f32
    %298 = vector.broadcast %cst_342 : f32 to vector<4x32xf32>
    %299 = arith.maximumf %297, %298 : vector<4x32xf32>
    %cst_343 = arith.constant 0.000000e+00 : f32
    %300 = vector.broadcast %cst_343 : f32 to vector<4x32xf32>
    %c2_344 = arith.constant 2 : index
    %c0_345 = arith.constant 0 : index
    %c1_346 = arith.constant 1 : index
    %c0_347 = arith.constant 0 : index
    %c0_348 = arith.constant 0 : index
    %301 = vector.load %arg1[%c2_344, %c0_345, %c1_346, %c0_347, %c0_348] : memref<4x1x5x5x64xf32, #tpu.memory_space<vmem>>, vector<1x1x1x4x64xf32>
    %302 = vector.shape_cast %301 : vector<1x1x1x4x64xf32> to vector<4x64xf32>
    %303 = arith.truncf %302 : vector<4x64xf32> to vector<4x64xbf16>
    %c0_349 = arith.constant 0 : index
    %c0_350 = arith.constant 0 : index
    %c0_351 = arith.constant 0 : index
    %304 = vector.load %arg2[%c0_349, %c0_350, %c0_351] : memref<4x64x32xbf16, #tpu.memory_space<vmem>>, vector<1x64x32xbf16>
    %305 = vector.shape_cast %304 : vector<1x64x32xbf16> to vector<64x32xbf16>
    %cst_352 = arith.constant dense<0.000000e+00> : vector<4x32xf32>
    %306 = tpu.matmul %303, %305, %cst_352 {dimension_numbers = #tpu.dot_dimension_numbers<[1], [0], [0], [1], [0, 0, 1, 1], [], []>} : vector<4x64xbf16>, vector<64x32xbf16>, vector<4x32xf32> -> vector<4x32xf32>
    %307 = arith.addf %300, %306 : vector<4x32xf32>
    %c3_353 = arith.constant 3 : index
    %c0_354 = arith.constant 0 : index
    %c1_355 = arith.constant 1 : index
    %c0_356 = arith.constant 0 : index
    %c0_357 = arith.constant 0 : index
    %308 = vector.load %arg1[%c3_353, %c0_354, %c1_355, %c0_356, %c0_357] : memref<4x1x5x5x64xf32, #tpu.memory_space<vmem>>, vector<1x1x1x4x64xf32>
    %309 = vector.shape_cast %308 : vector<1x1x1x4x64xf32> to vector<4x64xf32>
    %310 = arith.truncf %309 : vector<4x64xf32> to vector<4x64xbf16>
    %c1_358 = arith.constant 1 : index
    %c0_359 = arith.constant 0 : index
    %c0_360 = arith.constant 0 : index
    %311 = vector.load %arg2[%c1_358, %c0_359, %c0_360] : memref<4x64x32xbf16, #tpu.memory_space<vmem>>, vector<1x64x32xbf16>
    %312 = vector.shape_cast %311 : vector<1x64x32xbf16> to vector<64x32xbf16>
    %cst_361 = arith.constant dense<0.000000e+00> : vector<4x32xf32>
    %313 = tpu.matmul %310, %312, %cst_361 {dimension_numbers = #tpu.dot_dimension_numbers<[1], [0], [0], [1], [0, 0, 1, 1], [], []>} : vector<4x64xbf16>, vector<64x32xbf16>, vector<4x32xf32> -> vector<4x32xf32>
    %314 = arith.addf %307, %313 : vector<4x32xf32>
    %c0_362 = arith.constant 0 : index
    %c0_363 = arith.constant 0 : index
    %c2_364 = arith.constant 2 : index
    %c0_365 = arith.constant 0 : index
    %c0_366 = arith.constant 0 : index
    %315 = vector.load %arg1[%c0_362, %c0_363, %c2_364, %c0_365, %c0_366] : memref<4x1x5x5x64xf32, #tpu.memory_space<vmem>>, vector<1x1x1x4x64xf32>
    %316 = vector.shape_cast %315 : vector<1x1x1x4x64xf32> to vector<4x64xf32>
    %317 = arith.truncf %316 : vector<4x64xf32> to vector<4x64xbf16>
    %c2_367 = arith.constant 2 : index
    %c0_368 = arith.constant 0 : index
    %c0_369 = arith.constant 0 : index
    %318 = vector.load %arg2[%c2_367, %c0_368, %c0_369] : memref<4x64x32xbf16, #tpu.memory_space<vmem>>, vector<1x64x32xbf16>
    %319 = vector.shape_cast %318 : vector<1x64x32xbf16> to vector<64x32xbf16>
    %cst_370 = arith.constant dense<0.000000e+00> : vector<4x32xf32>
    %320 = tpu.matmul %317, %319, %cst_370 {dimension_numbers = #tpu.dot_dimension_numbers<[1], [0], [0], [1], [0, 0, 1, 1], [], []>} : vector<4x64xbf16>, vector<64x32xbf16>, vector<4x32xf32> -> vector<4x32xf32>
    %321 = arith.addf %314, %320 : vector<4x32xf32>
    %c1_371 = arith.constant 1 : index
    %c0_372 = arith.constant 0 : index
    %c2_373 = arith.constant 2 : index
    %c0_374 = arith.constant 0 : index
    %c0_375 = arith.constant 0 : index
    %322 = vector.load %arg1[%c1_371, %c0_372, %c2_373, %c0_374, %c0_375] : memref<4x1x5x5x64xf32, #tpu.memory_space<vmem>>, vector<1x1x1x4x64xf32>
    %323 = vector.shape_cast %322 : vector<1x1x1x4x64xf32> to vector<4x64xf32>
    %324 = arith.truncf %323 : vector<4x64xf32> to vector<4x64xbf16>
    %c3_376 = arith.constant 3 : index
    %c0_377 = arith.constant 0 : index
    %c0_378 = arith.constant 0 : index
    %325 = vector.load %arg2[%c3_376, %c0_377, %c0_378] : memref<4x64x32xbf16, #tpu.memory_space<vmem>>, vector<1x64x32xbf16>
    %326 = vector.shape_cast %325 : vector<1x64x32xbf16> to vector<64x32xbf16>
    %cst_379 = arith.constant dense<0.000000e+00> : vector<4x32xf32>
    %327 = tpu.matmul %324, %326, %cst_379 {dimension_numbers = #tpu.dot_dimension_numbers<[1], [0], [0], [1], [0, 0, 1, 1], [], []>} : vector<4x64xbf16>, vector<64x32xbf16>, vector<4x32xf32> -> vector<4x32xf32>
    %328 = arith.addf %321, %327 : vector<4x32xf32>
    %329 = vector.broadcast %0 : vector<1x32xf32> to vector<4x32xf32>
    %330 = arith.addf %328, %329 : vector<4x32xf32>
    %cst_380 = arith.constant 0.000000e+00 : f32
    %331 = vector.broadcast %cst_380 : f32 to vector<4x32xf32>
    %332 = arith.maximumf %330, %331 : vector<4x32xf32>
    %cst_381 = arith.constant 0.000000e+00 : f32
    %333 = vector.broadcast %cst_381 : f32 to vector<4x32xf32>
    %c2_382 = arith.constant 2 : index
    %c0_383 = arith.constant 0 : index
    %c2_384 = arith.constant 2 : index
    %c0_385 = arith.constant 0 : index
    %c0_386 = arith.constant 0 : index
    %334 = vector.load %arg1[%c2_382, %c0_383, %c2_384, %c0_385, %c0_386] : memref<4x1x5x5x64xf32, #tpu.memory_space<vmem>>, vector<1x1x1x4x64xf32>
    %335 = vector.shape_cast %334 : vector<1x1x1x4x64xf32> to vector<4x64xf32>
    %336 = arith.truncf %335 : vector<4x64xf32> to vector<4x64xbf16>
    %c0_387 = arith.constant 0 : index
    %c0_388 = arith.constant 0 : index
    %c0_389 = arith.constant 0 : index
    %337 = vector.load %arg2[%c0_387, %c0_388, %c0_389] : memref<4x64x32xbf16, #tpu.memory_space<vmem>>, vector<1x64x32xbf16>
    %338 = vector.shape_cast %337 : vector<1x64x32xbf16> to vector<64x32xbf16>
    %cst_390 = arith.constant dense<0.000000e+00> : vector<4x32xf32>
    %339 = tpu.matmul %336, %338, %cst_390 {dimension_numbers = #tpu.dot_dimension_numbers<[1], [0], [0], [1], [0, 0, 1, 1], [], []>} : vector<4x64xbf16>, vector<64x32xbf16>, vector<4x32xf32> -> vector<4x32xf32>
    %340 = arith.addf %333, %339 : vector<4x32xf32>
    %c3_391 = arith.constant 3 : index
    %c0_392 = arith.constant 0 : index
    %c2_393 = arith.constant 2 : index
    %c0_394 = arith.constant 0 : index
    %c0_395 = arith.constant 0 : index
    %341 = vector.load %arg1[%c3_391, %c0_392, %c2_393, %c0_394, %c0_395] : memref<4x1x5x5x64xf32, #tpu.memory_space<vmem>>, vector<1x1x1x4x64xf32>
    %342 = vector.shape_cast %341 : vector<1x1x1x4x64xf32> to vector<4x64xf32>
    %343 = arith.truncf %342 : vector<4x64xf32> to vector<4x64xbf16>
    %c1_396 = arith.constant 1 : index
    %c0_397 = arith.constant 0 : index
    %c0_398 = arith.constant 0 : index
    %344 = vector.load %arg2[%c1_396, %c0_397, %c0_398] : memref<4x64x32xbf16, #tpu.memory_space<vmem>>, vector<1x64x32xbf16>
    %345 = vector.shape_cast %344 : vector<1x64x32xbf16> to vector<64x32xbf16>
    %cst_399 = arith.constant dense<0.000000e+00> : vector<4x32xf32>
    %346 = tpu.matmul %343, %345, %cst_399 {dimension_numbers = #tpu.dot_dimension_numbers<[1], [0], [0], [1], [0, 0, 1, 1], [], []>} : vector<4x64xbf16>, vector<64x32xbf16>, vector<4x32xf32> -> vector<4x32xf32>
    %347 = arith.addf %340, %346 : vector<4x32xf32>
    %c0_400 = arith.constant 0 : index
    %c0_401 = arith.constant 0 : index
    %c3_402 = arith.constant 3 : index
    %c0_403 = arith.constant 0 : index
    %c0_404 = arith.constant 0 : index
    %348 = vector.load %arg1[%c0_400, %c0_401, %c3_402, %c0_403, %c0_404] : memref<4x1x5x5x64xf32, #tpu.memory_space<vmem>>, vector<1x1x1x4x64xf32>
    %349 = vector.shape_cast %348 : vector<1x1x1x4x64xf32> to vector<4x64xf32>
    %350 = arith.truncf %349 : vector<4x64xf32> to vector<4x64xbf16>
    %c2_405 = arith.constant 2 : index
    %c0_406 = arith.constant 0 : index
    %c0_407 = arith.constant 0 : index
    %351 = vector.load %arg2[%c2_405, %c0_406, %c0_407] : memref<4x64x32xbf16, #tpu.memory_space<vmem>>, vector<1x64x32xbf16>
    %352 = vector.shape_cast %351 : vector<1x64x32xbf16> to vector<64x32xbf16>
    %cst_408 = arith.constant dense<0.000000e+00> : vector<4x32xf32>
    %353 = tpu.matmul %350, %352, %cst_408 {dimension_numbers = #tpu.dot_dimension_numbers<[1], [0], [0], [1], [0, 0, 1, 1], [], []>} : vector<4x64xbf16>, vector<64x32xbf16>, vector<4x32xf32> -> vector<4x32xf32>
    %354 = arith.addf %347, %353 : vector<4x32xf32>
    %c1_409 = arith.constant 1 : index
    %c0_410 = arith.constant 0 : index
    %c3_411 = arith.constant 3 : index
    %c0_412 = arith.constant 0 : index
    %c0_413 = arith.constant 0 : index
    %355 = vector.load %arg1[%c1_409, %c0_410, %c3_411, %c0_412, %c0_413] : memref<4x1x5x5x64xf32, #tpu.memory_space<vmem>>, vector<1x1x1x4x64xf32>
    %356 = vector.shape_cast %355 : vector<1x1x1x4x64xf32> to vector<4x64xf32>
    %357 = arith.truncf %356 : vector<4x64xf32> to vector<4x64xbf16>
    %c3_414 = arith.constant 3 : index
    %c0_415 = arith.constant 0 : index
    %c0_416 = arith.constant 0 : index
    %358 = vector.load %arg2[%c3_414, %c0_415, %c0_416] : memref<4x64x32xbf16, #tpu.memory_space<vmem>>, vector<1x64x32xbf16>
    %359 = vector.shape_cast %358 : vector<1x64x32xbf16> to vector<64x32xbf16>
    %cst_417 = arith.constant dense<0.000000e+00> : vector<4x32xf32>
    %360 = tpu.matmul %357, %359, %cst_417 {dimension_numbers = #tpu.dot_dimension_numbers<[1], [0], [0], [1], [0, 0, 1, 1], [], []>} : vector<4x64xbf16>, vector<64x32xbf16>, vector<4x32xf32> -> vector<4x32xf32>
    %361 = arith.addf %354, %360 : vector<4x32xf32>
    %362 = vector.broadcast %0 : vector<1x32xf32> to vector<4x32xf32>
    %363 = arith.addf %361, %362 : vector<4x32xf32>
    %cst_418 = arith.constant 0.000000e+00 : f32
    %364 = vector.broadcast %cst_418 : f32 to vector<4x32xf32>
    %365 = arith.maximumf %363, %364 : vector<4x32xf32>
    %cst_419 = arith.constant 0.000000e+00 : f32
    %366 = vector.broadcast %cst_419 : f32 to vector<4x32xf32>
    %c2_420 = arith.constant 2 : index
    %c0_421 = arith.constant 0 : index
    %c3_422 = arith.constant 3 : index
    %c0_423 = arith.constant 0 : index
    %c0_424 = arith.constant 0 : index
    %367 = vector.load %arg1[%c2_420, %c0_421, %c3_422, %c0_423, %c0_424] : memref<4x1x5x5x64xf32, #tpu.memory_space<vmem>>, vector<1x1x1x4x64xf32>
    %368 = vector.shape_cast %367 : vector<1x1x1x4x64xf32> to vector<4x64xf32>
    %369 = arith.truncf %368 : vector<4x64xf32> to vector<4x64xbf16>
    %c0_425 = arith.constant 0 : index
    %c0_426 = arith.constant 0 : index
    %c0_427 = arith.constant 0 : index
    %370 = vector.load %arg2[%c0_425, %c0_426, %c0_427] : memref<4x64x32xbf16, #tpu.memory_space<vmem>>, vector<1x64x32xbf16>
    %371 = vector.shape_cast %370 : vector<1x64x32xbf16> to vector<64x32xbf16>
    %cst_428 = arith.constant dense<0.000000e+00> : vector<4x32xf32>
    %372 = tpu.matmul %369, %371, %cst_428 {dimension_numbers = #tpu.dot_dimension_numbers<[1], [0], [0], [1], [0, 0, 1, 1], [], []>} : vector<4x64xbf16>, vector<64x32xbf16>, vector<4x32xf32> -> vector<4x32xf32>
    %373 = arith.addf %366, %372 : vector<4x32xf32>
    %c3_429 = arith.constant 3 : index
    %c0_430 = arith.constant 0 : index
    %c3_431 = arith.constant 3 : index
    %c0_432 = arith.constant 0 : index
    %c0_433 = arith.constant 0 : index
    %374 = vector.load %arg1[%c3_429, %c0_430, %c3_431, %c0_432, %c0_433] : memref<4x1x5x5x64xf32, #tpu.memory_space<vmem>>, vector<1x1x1x4x64xf32>
    %375 = vector.shape_cast %374 : vector<1x1x1x4x64xf32> to vector<4x64xf32>
    %376 = arith.truncf %375 : vector<4x64xf32> to vector<4x64xbf16>
    %c1_434 = arith.constant 1 : index
    %c0_435 = arith.constant 0 : index
    %c0_436 = arith.constant 0 : index
    %377 = vector.load %arg2[%c1_434, %c0_435, %c0_436] : memref<4x64x32xbf16, #tpu.memory_space<vmem>>, vector<1x64x32xbf16>
    %378 = vector.shape_cast %377 : vector<1x64x32xbf16> to vector<64x32xbf16>
    %cst_437 = arith.constant dense<0.000000e+00> : vector<4x32xf32>
    %379 = tpu.matmul %376, %378, %cst_437 {dimension_numbers = #tpu.dot_dimension_numbers<[1], [0], [0], [1], [0, 0, 1, 1], [], []>} : vector<4x64xbf16>, vector<64x32xbf16>, vector<4x32xf32> -> vector<4x32xf32>
    %380 = arith.addf %373, %379 : vector<4x32xf32>
    %c0_438 = arith.constant 0 : index
    %c0_439 = arith.constant 0 : index
    %c4 = arith.constant 4 : index
    %c0_440 = arith.constant 0 : index
    %c0_441 = arith.constant 0 : index
    %381 = vector.load %arg1[%c0_438, %c0_439, %c4, %c0_440, %c0_441] : memref<4x1x5x5x64xf32, #tpu.memory_space<vmem>>, vector<1x1x1x4x64xf32>
    %382 = vector.shape_cast %381 : vector<1x1x1x4x64xf32> to vector<4x64xf32>
    %383 = arith.truncf %382 : vector<4x64xf32> to vector<4x64xbf16>
    %c2_442 = arith.constant 2 : index
    %c0_443 = arith.constant 0 : index
    %c0_444 = arith.constant 0 : index
    %384 = vector.load %arg2[%c2_442, %c0_443, %c0_444] : memref<4x64x32xbf16, #tpu.memory_space<vmem>>, vector<1x64x32xbf16>
    %385 = vector.shape_cast %384 : vector<1x64x32xbf16> to vector<64x32xbf16>
    %cst_445 = arith.constant dense<0.000000e+00> : vector<4x32xf32>
    %386 = tpu.matmul %383, %385, %cst_445 {dimension_numbers = #tpu.dot_dimension_numbers<[1], [0], [0], [1], [0, 0, 1, 1], [], []>} : vector<4x64xbf16>, vector<64x32xbf16>, vector<4x32xf32> -> vector<4x32xf32>
    %387 = arith.addf %380, %386 : vector<4x32xf32>
    %c1_446 = arith.constant 1 : index
    %c0_447 = arith.constant 0 : index
    %c4_448 = arith.constant 4 : index
    %c0_449 = arith.constant 0 : index
    %c0_450 = arith.constant 0 : index
    %388 = vector.load %arg1[%c1_446, %c0_447, %c4_448, %c0_449, %c0_450] : memref<4x1x5x5x64xf32, #tpu.memory_space<vmem>>, vector<1x1x1x4x64xf32>
    %389 = vector.shape_cast %388 : vector<1x1x1x4x64xf32> to vector<4x64xf32>
    %390 = arith.truncf %389 : vector<4x64xf32> to vector<4x64xbf16>
    %c3_451 = arith.constant 3 : index
    %c0_452 = arith.constant 0 : index
    %c0_453 = arith.constant 0 : index
    %391 = vector.load %arg2[%c3_451, %c0_452, %c0_453] : memref<4x64x32xbf16, #tpu.memory_space<vmem>>, vector<1x64x32xbf16>
    %392 = vector.shape_cast %391 : vector<1x64x32xbf16> to vector<64x32xbf16>
    %cst_454 = arith.constant dense<0.000000e+00> : vector<4x32xf32>
    %393 = tpu.matmul %390, %392, %cst_454 {dimension_numbers = #tpu.dot_dimension_numbers<[1], [0], [0], [1], [0, 0, 1, 1], [], []>} : vector<4x64xbf16>, vector<64x32xbf16>, vector<4x32xf32> -> vector<4x32xf32>
    %394 = arith.addf %387, %393 : vector<4x32xf32>
    %395 = vector.broadcast %0 : vector<1x32xf32> to vector<4x32xf32>
    %396 = arith.addf %394, %395 : vector<4x32xf32>
    %cst_455 = arith.constant 0.000000e+00 : f32
    %397 = vector.broadcast %cst_455 : f32 to vector<4x32xf32>
    %398 = arith.maximumf %396, %397 : vector<4x32xf32>
    %cst_456 = arith.constant 0.000000e+00 : f32
    %399 = vector.broadcast %cst_456 : f32 to vector<4x32xf32>
    %c3_457 = arith.constant 3 : index
    %c0_458 = arith.constant 0 : index
    %c0_459 = arith.constant 0 : index
    %c0_460 = arith.constant 0 : index
    %c0_461 = arith.constant 0 : index
    %400 = vector.load %arg1[%c3_457, %c0_458, %c0_459, %c0_460, %c0_461] : memref<4x1x5x5x64xf32, #tpu.memory_space<vmem>>, vector<1x1x1x4x64xf32>
    %401 = vector.shape_cast %400 : vector<1x1x1x4x64xf32> to vector<4x64xf32>
    %402 = arith.truncf %401 : vector<4x64xf32> to vector<4x64xbf16>
    %c0_462 = arith.constant 0 : index
    %c0_463 = arith.constant 0 : index
    %c0_464 = arith.constant 0 : index
    %403 = vector.load %arg2[%c0_462, %c0_463, %c0_464] : memref<4x64x32xbf16, #tpu.memory_space<vmem>>, vector<1x64x32xbf16>
    %404 = vector.shape_cast %403 : vector<1x64x32xbf16> to vector<64x32xbf16>
    %cst_465 = arith.constant dense<0.000000e+00> : vector<4x32xf32>
    %405 = tpu.matmul %402, %404, %cst_465 {dimension_numbers = #tpu.dot_dimension_numbers<[1], [0], [0], [1], [0, 0, 1, 1], [], []>} : vector<4x64xbf16>, vector<64x32xbf16>, vector<4x32xf32> -> vector<4x32xf32>
    %406 = arith.addf %399, %405 : vector<4x32xf32>
    %c2_466 = arith.constant 2 : index
    %c0_467 = arith.constant 0 : index
    %c0_468 = arith.constant 0 : index
    %c1_469 = arith.constant 1 : index
    %c0_470 = arith.constant 0 : index
    %407 = vector.load %arg1[%c2_466, %c0_467, %c0_468, %c1_469, %c0_470] : memref<4x1x5x5x64xf32, #tpu.memory_space<vmem>>, vector<1x1x1x4x64xf32>
    %408 = vector.shape_cast %407 : vector<1x1x1x4x64xf32> to vector<4x64xf32>
    %409 = arith.truncf %408 : vector<4x64xf32> to vector<4x64xbf16>
    %c1_471 = arith.constant 1 : index
    %c0_472 = arith.constant 0 : index
    %c0_473 = arith.constant 0 : index
    %410 = vector.load %arg2[%c1_471, %c0_472, %c0_473] : memref<4x64x32xbf16, #tpu.memory_space<vmem>>, vector<1x64x32xbf16>
    %411 = vector.shape_cast %410 : vector<1x64x32xbf16> to vector<64x32xbf16>
    %cst_474 = arith.constant dense<0.000000e+00> : vector<4x32xf32>
    %412 = tpu.matmul %409, %411, %cst_474 {dimension_numbers = #tpu.dot_dimension_numbers<[1], [0], [0], [1], [0, 0, 1, 1], [], []>} : vector<4x64xbf16>, vector<64x32xbf16>, vector<4x32xf32> -> vector<4x32xf32>
    %413 = arith.addf %406, %412 : vector<4x32xf32>
    %c1_475 = arith.constant 1 : index
    %c0_476 = arith.constant 0 : index
    %c1_477 = arith.constant 1 : index
    %c0_478 = arith.constant 0 : index
    %c0_479 = arith.constant 0 : index
    %414 = vector.load %arg1[%c1_475, %c0_476, %c1_477, %c0_478, %c0_479] : memref<4x1x5x5x64xf32, #tpu.memory_space<vmem>>, vector<1x1x1x4x64xf32>
    %415 = vector.shape_cast %414 : vector<1x1x1x4x64xf32> to vector<4x64xf32>
    %416 = arith.truncf %415 : vector<4x64xf32> to vector<4x64xbf16>
    %c2_480 = arith.constant 2 : index
    %c0_481 = arith.constant 0 : index
    %c0_482 = arith.constant 0 : index
    %417 = vector.load %arg2[%c2_480, %c0_481, %c0_482] : memref<4x64x32xbf16, #tpu.memory_space<vmem>>, vector<1x64x32xbf16>
    %418 = vector.shape_cast %417 : vector<1x64x32xbf16> to vector<64x32xbf16>
    %cst_483 = arith.constant dense<0.000000e+00> : vector<4x32xf32>
    %419 = tpu.matmul %416, %418, %cst_483 {dimension_numbers = #tpu.dot_dimension_numbers<[1], [0], [0], [1], [0, 0, 1, 1], [], []>} : vector<4x64xbf16>, vector<64x32xbf16>, vector<4x32xf32> -> vector<4x32xf32>
    %420 = arith.addf %413, %419 : vector<4x32xf32>
    %c0_484 = arith.constant 0 : index
    %c0_485 = arith.constant 0 : index
    %c1_486 = arith.constant 1 : index
    %c1_487 = arith.constant 1 : index
    %c0_488 = arith.constant 0 : index
    %421 = vector.load %arg1[%c0_484, %c0_485, %c1_486, %c1_487, %c0_488] : memref<4x1x5x5x64xf32, #tpu.memory_space<vmem>>, vector<1x1x1x4x64xf32>
    %422 = vector.shape_cast %421 : vector<1x1x1x4x64xf32> to vector<4x64xf32>
    %423 = arith.truncf %422 : vector<4x64xf32> to vector<4x64xbf16>
    %c3_489 = arith.constant 3 : index
    %c0_490 = arith.constant 0 : index
    %c0_491 = arith.constant 0 : index
    %424 = vector.load %arg2[%c3_489, %c0_490, %c0_491] : memref<4x64x32xbf16, #tpu.memory_space<vmem>>, vector<1x64x32xbf16>
    %425 = vector.shape_cast %424 : vector<1x64x32xbf16> to vector<64x32xbf16>
    %cst_492 = arith.constant dense<0.000000e+00> : vector<4x32xf32>
    %426 = tpu.matmul %423, %425, %cst_492 {dimension_numbers = #tpu.dot_dimension_numbers<[1], [0], [0], [1], [0, 0, 1, 1], [], []>} : vector<4x64xbf16>, vector<64x32xbf16>, vector<4x32xf32> -> vector<4x32xf32>
    %427 = arith.addf %420, %426 : vector<4x32xf32>
    %428 = vector.broadcast %0 : vector<1x32xf32> to vector<4x32xf32>
    %429 = arith.addf %427, %428 : vector<4x32xf32>
    %cst_493 = arith.constant 0.000000e+00 : f32
    %430 = vector.broadcast %cst_493 : f32 to vector<4x32xf32>
    %431 = arith.maximumf %429, %430 : vector<4x32xf32>
    %cst_494 = arith.constant 0.000000e+00 : f32
    %432 = vector.broadcast %cst_494 : f32 to vector<4x32xf32>
    %c3_495 = arith.constant 3 : index
    %c0_496 = arith.constant 0 : index
    %c1_497 = arith.constant 1 : index
    %c0_498 = arith.constant 0 : index
    %c0_499 = arith.constant 0 : index
    %433 = vector.load %arg1[%c3_495, %c0_496, %c1_497, %c0_498, %c0_499] : memref<4x1x5x5x64xf32, #tpu.memory_space<vmem>>, vector<1x1x1x4x64xf32>
    %434 = vector.shape_cast %433 : vector<1x1x1x4x64xf32> to vector<4x64xf32>
    %435 = arith.truncf %434 : vector<4x64xf32> to vector<4x64xbf16>
    %c0_500 = arith.constant 0 : index
    %c0_501 = arith.constant 0 : index
    %c0_502 = arith.constant 0 : index
    %436 = vector.load %arg2[%c0_500, %c0_501, %c0_502] : memref<4x64x32xbf16, #tpu.memory_space<vmem>>, vector<1x64x32xbf16>
    %437 = vector.shape_cast %436 : vector<1x64x32xbf16> to vector<64x32xbf16>
    %cst_503 = arith.constant dense<0.000000e+00> : vector<4x32xf32>
    %438 = tpu.matmul %435, %437, %cst_503 {dimension_numbers = #tpu.dot_dimension_numbers<[1], [0], [0], [1], [0, 0, 1, 1], [], []>} : vector<4x64xbf16>, vector<64x32xbf16>, vector<4x32xf32> -> vector<4x32xf32>
    %439 = arith.addf %432, %438 : vector<4x32xf32>
    %c2_504 = arith.constant 2 : index
    %c0_505 = arith.constant 0 : index
    %c1_506 = arith.constant 1 : index
    %c1_507 = arith.constant 1 : index
    %c0_508 = arith.constant 0 : index
    %440 = vector.load %arg1[%c2_504, %c0_505, %c1_506, %c1_507, %c0_508] : memref<4x1x5x5x64xf32, #tpu.memory_space<vmem>>, vector<1x1x1x4x64xf32>
    %441 = vector.shape_cast %440 : vector<1x1x1x4x64xf32> to vector<4x64xf32>
    %442 = arith.truncf %441 : vector<4x64xf32> to vector<4x64xbf16>
    %c1_509 = arith.constant 1 : index
    %c0_510 = arith.constant 0 : index
    %c0_511 = arith.constant 0 : index
    %443 = vector.load %arg2[%c1_509, %c0_510, %c0_511] : memref<4x64x32xbf16, #tpu.memory_space<vmem>>, vector<1x64x32xbf16>
    %444 = vector.shape_cast %443 : vector<1x64x32xbf16> to vector<64x32xbf16>
    %cst_512 = arith.constant dense<0.000000e+00> : vector<4x32xf32>
    %445 = tpu.matmul %442, %444, %cst_512 {dimension_numbers = #tpu.dot_dimension_numbers<[1], [0], [0], [1], [0, 0, 1, 1], [], []>} : vector<4x64xbf16>, vector<64x32xbf16>, vector<4x32xf32> -> vector<4x32xf32>
    %446 = arith.addf %439, %445 : vector<4x32xf32>
    %c1_513 = arith.constant 1 : index
    %c0_514 = arith.constant 0 : index
    %c2_515 = arith.constant 2 : index
    %c0_516 = arith.constant 0 : index
    %c0_517 = arith.constant 0 : index
    %447 = vector.load %arg1[%c1_513, %c0_514, %c2_515, %c0_516, %c0_517] : memref<4x1x5x5x64xf32, #tpu.memory_space<vmem>>, vector<1x1x1x4x64xf32>
    %448 = vector.shape_cast %447 : vector<1x1x1x4x64xf32> to vector<4x64xf32>
    %449 = arith.truncf %448 : vector<4x64xf32> to vector<4x64xbf16>
    %c2_518 = arith.constant 2 : index
    %c0_519 = arith.constant 0 : index
    %c0_520 = arith.constant 0 : index
    %450 = vector.load %arg2[%c2_518, %c0_519, %c0_520] : memref<4x64x32xbf16, #tpu.memory_space<vmem>>, vector<1x64x32xbf16>
    %451 = vector.shape_cast %450 : vector<1x64x32xbf16> to vector<64x32xbf16>
    %cst_521 = arith.constant dense<0.000000e+00> : vector<4x32xf32>
    %452 = tpu.matmul %449, %451, %cst_521 {dimension_numbers = #tpu.dot_dimension_numbers<[1], [0], [0], [1], [0, 0, 1, 1], [], []>} : vector<4x64xbf16>, vector<64x32xbf16>, vector<4x32xf32> -> vector<4x32xf32>
    %453 = arith.addf %446, %452 : vector<4x32xf32>
    %c0_522 = arith.constant 0 : index
    %c0_523 = arith.constant 0 : index
    %c2_524 = arith.constant 2 : index
    %c1_525 = arith.constant 1 : index
    %c0_526 = arith.constant 0 : index
    %454 = vector.load %arg1[%c0_522, %c0_523, %c2_524, %c1_525, %c0_526] : memref<4x1x5x5x64xf32, #tpu.memory_space<vmem>>, vector<1x1x1x4x64xf32>
    %455 = vector.shape_cast %454 : vector<1x1x1x4x64xf32> to vector<4x64xf32>
    %456 = arith.truncf %455 : vector<4x64xf32> to vector<4x64xbf16>
    %c3_527 = arith.constant 3 : index
    %c0_528 = arith.constant 0 : index
    %c0_529 = arith.constant 0 : index
    %457 = vector.load %arg2[%c3_527, %c0_528, %c0_529] : memref<4x64x32xbf16, #tpu.memory_space<vmem>>, vector<1x64x32xbf16>
    %458 = vector.shape_cast %457 : vector<1x64x32xbf16> to vector<64x32xbf16>
    %cst_530 = arith.constant dense<0.000000e+00> : vector<4x32xf32>
    %459 = tpu.matmul %456, %458, %cst_530 {dimension_numbers = #tpu.dot_dimension_numbers<[1], [0], [0], [1], [0, 0, 1, 1], [], []>} : vector<4x64xbf16>, vector<64x32xbf16>, vector<4x32xf32> -> vector<4x32xf32>
    %460 = arith.addf %453, %459 : vector<4x32xf32>
    %461 = vector.broadcast %0 : vector<1x32xf32> to vector<4x32xf32>
    %462 = arith.addf %460, %461 : vector<4x32xf32>
    %cst_531 = arith.constant 0.000000e+00 : f32
    %463 = vector.broadcast %cst_531 : f32 to vector<4x32xf32>
    %464 = arith.maximumf %462, %463 : vector<4x32xf32>
    %cst_532 = arith.constant 0.000000e+00 : f32
    %465 = vector.broadcast %cst_532 : f32 to vector<4x32xf32>
    %c3_533 = arith.constant 3 : index
    %c0_534 = arith.constant 0 : index
    %c2_535 = arith.constant 2 : index
    %c0_536 = arith.constant 0 : index
    %c0_537 = arith.constant 0 : index
    %466 = vector.load %arg1[%c3_533, %c0_534, %c2_535, %c0_536, %c0_537] : memref<4x1x5x5x64xf32, #tpu.memory_space<vmem>>, vector<1x1x1x4x64xf32>
    %467 = vector.shape_cast %466 : vector<1x1x1x4x64xf32> to vector<4x64xf32>
    %468 = arith.truncf %467 : vector<4x64xf32> to vector<4x64xbf16>
    %c0_538 = arith.constant 0 : index
    %c0_539 = arith.constant 0 : index
    %c0_540 = arith.constant 0 : index
    %469 = vector.load %arg2[%c0_538, %c0_539, %c0_540] : memref<4x64x32xbf16, #tpu.memory_space<vmem>>, vector<1x64x32xbf16>
    %470 = vector.shape_cast %469 : vector<1x64x32xbf16> to vector<64x32xbf16>
    %cst_541 = arith.constant dense<0.000000e+00> : vector<4x32xf32>
    %471 = tpu.matmul %468, %470, %cst_541 {dimension_numbers = #tpu.dot_dimension_numbers<[1], [0], [0], [1], [0, 0, 1, 1], [], []>} : vector<4x64xbf16>, vector<64x32xbf16>, vector<4x32xf32> -> vector<4x32xf32>
    %472 = arith.addf %465, %471 : vector<4x32xf32>
    %c2_542 = arith.constant 2 : index
    %c0_543 = arith.constant 0 : index
    %c2_544 = arith.constant 2 : index
    %c1_545 = arith.constant 1 : index
    %c0_546 = arith.constant 0 : index
    %473 = vector.load %arg1[%c2_542, %c0_543, %c2_544, %c1_545, %c0_546] : memref<4x1x5x5x64xf32, #tpu.memory_space<vmem>>, vector<1x1x1x4x64xf32>
    %474 = vector.shape_cast %473 : vector<1x1x1x4x64xf32> to vector<4x64xf32>
    %475 = arith.truncf %474 : vector<4x64xf32> to vector<4x64xbf16>
    %c1_547 = arith.constant 1 : index
    %c0_548 = arith.constant 0 : index
    %c0_549 = arith.constant 0 : index
    %476 = vector.load %arg2[%c1_547, %c0_548, %c0_549] : memref<4x64x32xbf16, #tpu.memory_space<vmem>>, vector<1x64x32xbf16>
    %477 = vector.shape_cast %476 : vector<1x64x32xbf16> to vector<64x32xbf16>
    %cst_550 = arith.constant dense<0.000000e+00> : vector<4x32xf32>
    %478 = tpu.matmul %475, %477, %cst_550 {dimension_numbers = #tpu.dot_dimension_numbers<[1], [0], [0], [1], [0, 0, 1, 1], [], []>} : vector<4x64xbf16>, vector<64x32xbf16>, vector<4x32xf32> -> vector<4x32xf32>
    %479 = arith.addf %472, %478 : vector<4x32xf32>
    %c1_551 = arith.constant 1 : index
    %c0_552 = arith.constant 0 : index
    %c3_553 = arith.constant 3 : index
    %c0_554 = arith.constant 0 : index
    %c0_555 = arith.constant 0 : index
    %480 = vector.load %arg1[%c1_551, %c0_552, %c3_553, %c0_554, %c0_555] : memref<4x1x5x5x64xf32, #tpu.memory_space<vmem>>, vector<1x1x1x4x64xf32>
    %481 = vector.shape_cast %480 : vector<1x1x1x4x64xf32> to vector<4x64xf32>
    %482 = arith.truncf %481 : vector<4x64xf32> to vector<4x64xbf16>
    %c2_556 = arith.constant 2 : index
    %c0_557 = arith.constant 0 : index
    %c0_558 = arith.constant 0 : index
    %483 = vector.load %arg2[%c2_556, %c0_557, %c0_558] : memref<4x64x32xbf16, #tpu.memory_space<vmem>>, vector<1x64x32xbf16>
    %484 = vector.shape_cast %483 : vector<1x64x32xbf16> to vector<64x32xbf16>
    %cst_559 = arith.constant dense<0.000000e+00> : vector<4x32xf32>
    %485 = tpu.matmul %482, %484, %cst_559 {dimension_numbers = #tpu.dot_dimension_numbers<[1], [0], [0], [1], [0, 0, 1, 1], [], []>} : vector<4x64xbf16>, vector<64x32xbf16>, vector<4x32xf32> -> vector<4x32xf32>
    %486 = arith.addf %479, %485 : vector<4x32xf32>
    %c0_560 = arith.constant 0 : index
    %c0_561 = arith.constant 0 : index
    %c3_562 = arith.constant 3 : index
    %c1_563 = arith.constant 1 : index
    %c0_564 = arith.constant 0 : index
    %487 = vector.load %arg1[%c0_560, %c0_561, %c3_562, %c1_563, %c0_564] : memref<4x1x5x5x64xf32, #tpu.memory_space<vmem>>, vector<1x1x1x4x64xf32>
    %488 = vector.shape_cast %487 : vector<1x1x1x4x64xf32> to vector<4x64xf32>
    %489 = arith.truncf %488 : vector<4x64xf32> to vector<4x64xbf16>
    %c3_565 = arith.constant 3 : index
    %c0_566 = arith.constant 0 : index
    %c0_567 = arith.constant 0 : index
    %490 = vector.load %arg2[%c3_565, %c0_566, %c0_567] : memref<4x64x32xbf16, #tpu.memory_space<vmem>>, vector<1x64x32xbf16>
    %491 = vector.shape_cast %490 : vector<1x64x32xbf16> to vector<64x32xbf16>
    %cst_568 = arith.constant dense<0.000000e+00> : vector<4x32xf32>
    %492 = tpu.matmul %489, %491, %cst_568 {dimension_numbers = #tpu.dot_dimension_numbers<[1], [0], [0], [1], [0, 0, 1, 1], [], []>} : vector<4x64xbf16>, vector<64x32xbf16>, vector<4x32xf32> -> vector<4x32xf32>
    %493 = arith.addf %486, %492 : vector<4x32xf32>
    %494 = vector.broadcast %0 : vector<1x32xf32> to vector<4x32xf32>
    %495 = arith.addf %493, %494 : vector<4x32xf32>
    %cst_569 = arith.constant 0.000000e+00 : f32
    %496 = vector.broadcast %cst_569 : f32 to vector<4x32xf32>
    %497 = arith.maximumf %495, %496 : vector<4x32xf32>
    %cst_570 = arith.constant 0.000000e+00 : f32
    %498 = vector.broadcast %cst_570 : f32 to vector<4x32xf32>
    %c3_571 = arith.constant 3 : index
    %c0_572 = arith.constant 0 : index
    %c3_573 = arith.constant 3 : index
    %c0_574 = arith.constant 0 : index
    %c0_575 = arith.constant 0 : index
    %499 = vector.load %arg1[%c3_571, %c0_572, %c3_573, %c0_574, %c0_575] : memref<4x1x5x5x64xf32, #tpu.memory_space<vmem>>, vector<1x1x1x4x64xf32>
    %500 = vector.shape_cast %499 : vector<1x1x1x4x64xf32> to vector<4x64xf32>
    %501 = arith.truncf %500 : vector<4x64xf32> to vector<4x64xbf16>
    %c0_576 = arith.constant 0 : index
    %c0_577 = arith.constant 0 : index
    %c0_578 = arith.constant 0 : index
    %502 = vector.load %arg2[%c0_576, %c0_577, %c0_578] : memref<4x64x32xbf16, #tpu.memory_space<vmem>>, vector<1x64x32xbf16>
    %503 = vector.shape_cast %502 : vector<1x64x32xbf16> to vector<64x32xbf16>
    %cst_579 = arith.constant dense<0.000000e+00> : vector<4x32xf32>
    %504 = tpu.matmul %501, %503, %cst_579 {dimension_numbers = #tpu.dot_dimension_numbers<[1], [0], [0], [1], [0, 0, 1, 1], [], []>} : vector<4x64xbf16>, vector<64x32xbf16>, vector<4x32xf32> -> vector<4x32xf32>
    %505 = arith.addf %498, %504 : vector<4x32xf32>
    %c2_580 = arith.constant 2 : index
    %c0_581 = arith.constant 0 : index
    %c3_582 = arith.constant 3 : index
    %c1_583 = arith.constant 1 : index
    %c0_584 = arith.constant 0 : index
    %506 = vector.load %arg1[%c2_580, %c0_581, %c3_582, %c1_583, %c0_584] : memref<4x1x5x5x64xf32, #tpu.memory_space<vmem>>, vector<1x1x1x4x64xf32>
    %507 = vector.shape_cast %506 : vector<1x1x1x4x64xf32> to vector<4x64xf32>
    %508 = arith.truncf %507 : vector<4x64xf32> to vector<4x64xbf16>
    %c1_585 = arith.constant 1 : index
    %c0_586 = arith.constant 0 : index
    %c0_587 = arith.constant 0 : index
    %509 = vector.load %arg2[%c1_585, %c0_586, %c0_587] : memref<4x64x32xbf16, #tpu.memory_space<vmem>>, vector<1x64x32xbf16>
    %510 = vector.shape_cast %509 : vector<1x64x32xbf16> to vector<64x32xbf16>
    %cst_588 = arith.constant dense<0.000000e+00> : vector<4x32xf32>
    %511 = tpu.matmul %508, %510, %cst_588 {dimension_numbers = #tpu.dot_dimension_numbers<[1], [0], [0], [1], [0, 0, 1, 1], [], []>} : vector<4x64xbf16>, vector<64x32xbf16>, vector<4x32xf32> -> vector<4x32xf32>
    %512 = arith.addf %505, %511 : vector<4x32xf32>
    %c1_589 = arith.constant 1 : index
    %c0_590 = arith.constant 0 : index
    %c4_591 = arith.constant 4 : index
    %c0_592 = arith.constant 0 : index
    %c0_593 = arith.constant 0 : index
    %513 = vector.load %arg1[%c1_589, %c0_590, %c4_591, %c0_592, %c0_593] : memref<4x1x5x5x64xf32, #tpu.memory_space<vmem>>, vector<1x1x1x4x64xf32>
    %514 = vector.shape_cast %513 : vector<1x1x1x4x64xf32> to vector<4x64xf32>
    %515 = arith.truncf %514 : vector<4x64xf32> to vector<4x64xbf16>
    %c2_594 = arith.constant 2 : index
    %c0_595 = arith.constant 0 : index
    %c0_596 = arith.constant 0 : index
    %516 = vector.load %arg2[%c2_594, %c0_595, %c0_596] : memref<4x64x32xbf16, #tpu.memory_space<vmem>>, vector<1x64x32xbf16>
    %517 = vector.shape_cast %516 : vector<1x64x32xbf16> to vector<64x32xbf16>
    %cst_597 = arith.constant dense<0.000000e+00> : vector<4x32xf32>
    %518 = tpu.matmul %515, %517, %cst_597 {dimension_numbers = #tpu.dot_dimension_numbers<[1], [0], [0], [1], [0, 0, 1, 1], [], []>} : vector<4x64xbf16>, vector<64x32xbf16>, vector<4x32xf32> -> vector<4x32xf32>
    %519 = arith.addf %512, %518 : vector<4x32xf32>
    %c0_598 = arith.constant 0 : index
    %c0_599 = arith.constant 0 : index
    %c4_600 = arith.constant 4 : index
    %c1_601 = arith.constant 1 : index
    %c0_602 = arith.constant 0 : index
    %520 = vector.load %arg1[%c0_598, %c0_599, %c4_600, %c1_601, %c0_602] : memref<4x1x5x5x64xf32, #tpu.memory_space<vmem>>, vector<1x1x1x4x64xf32>
    %521 = vector.shape_cast %520 : vector<1x1x1x4x64xf32> to vector<4x64xf32>
    %522 = arith.truncf %521 : vector<4x64xf32> to vector<4x64xbf16>
    %c3_603 = arith.constant 3 : index
    %c0_604 = arith.constant 0 : index
    %c0_605 = arith.constant 0 : index
    %523 = vector.load %arg2[%c3_603, %c0_604, %c0_605] : memref<4x64x32xbf16, #tpu.memory_space<vmem>>, vector<1x64x32xbf16>
    %524 = vector.shape_cast %523 : vector<1x64x32xbf16> to vector<64x32xbf16>
    %cst_606 = arith.constant dense<0.000000e+00> : vector<4x32xf32>
    %525 = tpu.matmul %522, %524, %cst_606 {dimension_numbers = #tpu.dot_dimension_numbers<[1], [0], [0], [1], [0, 0, 1, 1], [], []>} : vector<4x64xbf16>, vector<64x32xbf16>, vector<4x32xf32> -> vector<4x32xf32>
    %526 = arith.addf %519, %525 : vector<4x32xf32>
    %527 = vector.broadcast %0 : vector<1x32xf32> to vector<4x32xf32>
    %528 = arith.addf %526, %527 : vector<4x32xf32>
    %cst_607 = arith.constant 0.000000e+00 : f32
    %529 = vector.broadcast %cst_607 : f32 to vector<4x32xf32>
    %530 = arith.maximumf %528, %529 : vector<4x32xf32>
    %cst_608 = arith.constant 0.000000e+00 : f32
    %531 = vector.broadcast %cst_608 : f32 to vector<3x64xf32>
    %532 = vector.extract_strided_slice %35 {offsets = [0, 0], sizes = [3, 32], strides = [1, 1]} : vector<4x32xf32> to vector<3x32xf32>
    %533 = arith.truncf %532 : vector<3x32xf32> to vector<3x32xbf16>
    %c0_609 = arith.constant 0 : index
    %c0_610 = arith.constant 0 : index
    %c0_611 = arith.constant 0 : index
    %534 = vector.load %arg3[%c0_609, %c0_610, %c0_611] : memref<16x32x64xbf16, #tpu.memory_space<vmem>>, vector<1x32x64xbf16>
    %535 = vector.shape_cast %534 : vector<1x32x64xbf16> to vector<32x64xbf16>
    %cst_612 = arith.constant dense<0.000000e+00> : vector<3x64xf32>
    %536 = tpu.matmul %533, %535, %cst_612 {dimension_numbers = #tpu.dot_dimension_numbers<[1], [0], [0], [1], [0, 0, 1, 1], [], []>} : vector<3x32xbf16>, vector<32x64xbf16>, vector<3x64xf32> -> vector<3x64xf32>
    %537 = arith.addf %531, %536 : vector<3x64xf32>
    %538 = vector.extract_strided_slice %167 {offsets = [0, 0], sizes = [3, 32], strides = [1, 1]} : vector<4x32xf32> to vector<3x32xf32>
    %539 = arith.truncf %538 : vector<3x32xf32> to vector<3x32xbf16>
    %c1_613 = arith.constant 1 : index
    %c0_614 = arith.constant 0 : index
    %c0_615 = arith.constant 0 : index
    %540 = vector.load %arg3[%c1_613, %c0_614, %c0_615] : memref<16x32x64xbf16, #tpu.memory_space<vmem>>, vector<1x32x64xbf16>
    %541 = vector.shape_cast %540 : vector<1x32x64xbf16> to vector<32x64xbf16>
    %cst_616 = arith.constant dense<0.000000e+00> : vector<3x64xf32>
    %542 = tpu.matmul %539, %541, %cst_616 {dimension_numbers = #tpu.dot_dimension_numbers<[1], [0], [0], [1], [0, 0, 1, 1], [], []>} : vector<3x32xbf16>, vector<32x64xbf16>, vector<3x64xf32> -> vector<3x64xf32>
    %543 = arith.addf %537, %542 : vector<3x64xf32>
    %544 = vector.extract_strided_slice %35 {offsets = [1, 0], sizes = [3, 32], strides = [1, 1]} : vector<4x32xf32> to vector<3x32xf32>
    %545 = arith.truncf %544 : vector<3x32xf32> to vector<3x32xbf16>
    %c2_617 = arith.constant 2 : index
    %c0_618 = arith.constant 0 : index
    %c0_619 = arith.constant 0 : index
    %546 = vector.load %arg3[%c2_617, %c0_618, %c0_619] : memref<16x32x64xbf16, #tpu.memory_space<vmem>>, vector<1x32x64xbf16>
    %547 = vector.shape_cast %546 : vector<1x32x64xbf16> to vector<32x64xbf16>
    %cst_620 = arith.constant dense<0.000000e+00> : vector<3x64xf32>
    %548 = tpu.matmul %545, %547, %cst_620 {dimension_numbers = #tpu.dot_dimension_numbers<[1], [0], [0], [1], [0, 0, 1, 1], [], []>} : vector<3x32xbf16>, vector<32x64xbf16>, vector<3x64xf32> -> vector<3x64xf32>
    %549 = arith.addf %543, %548 : vector<3x64xf32>
    %550 = vector.extract_strided_slice %167 {offsets = [1, 0], sizes = [3, 32], strides = [1, 1]} : vector<4x32xf32> to vector<3x32xf32>
    %551 = arith.truncf %550 : vector<3x32xf32> to vector<3x32xbf16>
    %c3_621 = arith.constant 3 : index
    %c0_622 = arith.constant 0 : index
    %c0_623 = arith.constant 0 : index
    %552 = vector.load %arg3[%c3_621, %c0_622, %c0_623] : memref<16x32x64xbf16, #tpu.memory_space<vmem>>, vector<1x32x64xbf16>
    %553 = vector.shape_cast %552 : vector<1x32x64xbf16> to vector<32x64xbf16>
    %cst_624 = arith.constant dense<0.000000e+00> : vector<3x64xf32>
    %554 = tpu.matmul %551, %553, %cst_624 {dimension_numbers = #tpu.dot_dimension_numbers<[1], [0], [0], [1], [0, 0, 1, 1], [], []>} : vector<3x32xbf16>, vector<32x64xbf16>, vector<3x64xf32> -> vector<3x64xf32>
    %555 = arith.addf %549, %554 : vector<3x64xf32>
    %556 = vector.extract_strided_slice %299 {offsets = [0, 0], sizes = [3, 32], strides = [1, 1]} : vector<4x32xf32> to vector<3x32xf32>
    %557 = arith.truncf %556 : vector<3x32xf32> to vector<3x32xbf16>
    %c4_625 = arith.constant 4 : index
    %c0_626 = arith.constant 0 : index
    %c0_627 = arith.constant 0 : index
    %558 = vector.load %arg3[%c4_625, %c0_626, %c0_627] : memref<16x32x64xbf16, #tpu.memory_space<vmem>>, vector<1x32x64xbf16>
    %559 = vector.shape_cast %558 : vector<1x32x64xbf16> to vector<32x64xbf16>
    %cst_628 = arith.constant dense<0.000000e+00> : vector<3x64xf32>
    %560 = tpu.matmul %557, %559, %cst_628 {dimension_numbers = #tpu.dot_dimension_numbers<[1], [0], [0], [1], [0, 0, 1, 1], [], []>} : vector<3x32xbf16>, vector<32x64xbf16>, vector<3x64xf32> -> vector<3x64xf32>
    %561 = arith.addf %555, %560 : vector<3x64xf32>
    %562 = vector.extract_strided_slice %431 {offsets = [0, 0], sizes = [3, 32], strides = [1, 1]} : vector<4x32xf32> to vector<3x32xf32>
    %563 = arith.truncf %562 : vector<3x32xf32> to vector<3x32xbf16>
    %c5 = arith.constant 5 : index
    %c0_629 = arith.constant 0 : index
    %c0_630 = arith.constant 0 : index
    %564 = vector.load %arg3[%c5, %c0_629, %c0_630] : memref<16x32x64xbf16, #tpu.memory_space<vmem>>, vector<1x32x64xbf16>
    %565 = vector.shape_cast %564 : vector<1x32x64xbf16> to vector<32x64xbf16>
    %cst_631 = arith.constant dense<0.000000e+00> : vector<3x64xf32>
    %566 = tpu.matmul %563, %565, %cst_631 {dimension_numbers = #tpu.dot_dimension_numbers<[1], [0], [0], [1], [0, 0, 1, 1], [], []>} : vector<3x32xbf16>, vector<32x64xbf16>, vector<3x64xf32> -> vector<3x64xf32>
    %567 = arith.addf %561, %566 : vector<3x64xf32>
    %568 = vector.extract_strided_slice %299 {offsets = [1, 0], sizes = [3, 32], strides = [1, 1]} : vector<4x32xf32> to vector<3x32xf32>
    %569 = arith.truncf %568 : vector<3x32xf32> to vector<3x32xbf16>
    %c6 = arith.constant 6 : index
    %c0_632 = arith.constant 0 : index
    %c0_633 = arith.constant 0 : index
    %570 = vector.load %arg3[%c6, %c0_632, %c0_633] : memref<16x32x64xbf16, #tpu.memory_space<vmem>>, vector<1x32x64xbf16>
    %571 = vector.shape_cast %570 : vector<1x32x64xbf16> to vector<32x64xbf16>
    %cst_634 = arith.constant dense<0.000000e+00> : vector<3x64xf32>
    %572 = tpu.matmul %569, %571, %cst_634 {dimension_numbers = #tpu.dot_dimension_numbers<[1], [0], [0], [1], [0, 0, 1, 1], [], []>} : vector<3x32xbf16>, vector<32x64xbf16>, vector<3x64xf32> -> vector<3x64xf32>
    %573 = arith.addf %567, %572 : vector<3x64xf32>
    %574 = vector.extract_strided_slice %431 {offsets = [1, 0], sizes = [3, 32], strides = [1, 1]} : vector<4x32xf32> to vector<3x32xf32>
    %575 = arith.truncf %574 : vector<3x32xf32> to vector<3x32xbf16>
    %c7 = arith.constant 7 : index
    %c0_635 = arith.constant 0 : index
    %c0_636 = arith.constant 0 : index
    %576 = vector.load %arg3[%c7, %c0_635, %c0_636] : memref<16x32x64xbf16, #tpu.memory_space<vmem>>, vector<1x32x64xbf16>
    %577 = vector.shape_cast %576 : vector<1x32x64xbf16> to vector<32x64xbf16>
    %cst_637 = arith.constant dense<0.000000e+00> : vector<3x64xf32>
    %578 = tpu.matmul %575, %577, %cst_637 {dimension_numbers = #tpu.dot_dimension_numbers<[1], [0], [0], [1], [0, 0, 1, 1], [], []>} : vector<3x32xbf16>, vector<32x64xbf16>, vector<3x64xf32> -> vector<3x64xf32>
    %579 = arith.addf %573, %578 : vector<3x64xf32>
    %580 = vector.extract_strided_slice %68 {offsets = [0, 0], sizes = [3, 32], strides = [1, 1]} : vector<4x32xf32> to vector<3x32xf32>
    %581 = arith.truncf %580 : vector<3x32xf32> to vector<3x32xbf16>
    %c8 = arith.constant 8 : index
    %c0_638 = arith.constant 0 : index
    %c0_639 = arith.constant 0 : index
    %582 = vector.load %arg3[%c8, %c0_638, %c0_639] : memref<16x32x64xbf16, #tpu.memory_space<vmem>>, vector<1x32x64xbf16>
    %583 = vector.shape_cast %582 : vector<1x32x64xbf16> to vector<32x64xbf16>
    %cst_640 = arith.constant dense<0.000000e+00> : vector<3x64xf32>
    %584 = tpu.matmul %581, %583, %cst_640 {dimension_numbers = #tpu.dot_dimension_numbers<[1], [0], [0], [1], [0, 0, 1, 1], [], []>} : vector<3x32xbf16>, vector<32x64xbf16>, vector<3x64xf32> -> vector<3x64xf32>
    %585 = arith.addf %579, %584 : vector<3x64xf32>
    %586 = vector.extract_strided_slice %200 {offsets = [0, 0], sizes = [3, 32], strides = [1, 1]} : vector<4x32xf32> to vector<3x32xf32>
    %587 = arith.truncf %586 : vector<3x32xf32> to vector<3x32xbf16>
    %c9 = arith.constant 9 : index
    %c0_641 = arith.constant 0 : index
    %c0_642 = arith.constant 0 : index
    %588 = vector.load %arg3[%c9, %c0_641, %c0_642] : memref<16x32x64xbf16, #tpu.memory_space<vmem>>, vector<1x32x64xbf16>
    %589 = vector.shape_cast %588 : vector<1x32x64xbf16> to vector<32x64xbf16>
    %cst_643 = arith.constant dense<0.000000e+00> : vector<3x64xf32>
    %590 = tpu.matmul %587, %589, %cst_643 {dimension_numbers = #tpu.dot_dimension_numbers<[1], [0], [0], [1], [0, 0, 1, 1], [], []>} : vector<3x32xbf16>, vector<32x64xbf16>, vector<3x64xf32> -> vector<3x64xf32>
    %591 = arith.addf %585, %590 : vector<3x64xf32>
    %592 = vector.extract_strided_slice %68 {offsets = [1, 0], sizes = [3, 32], strides = [1, 1]} : vector<4x32xf32> to vector<3x32xf32>
    %593 = arith.truncf %592 : vector<3x32xf32> to vector<3x32xbf16>
    %c10 = arith.constant 10 : index
    %c0_644 = arith.constant 0 : index
    %c0_645 = arith.constant 0 : index
    %594 = vector.load %arg3[%c10, %c0_644, %c0_645] : memref<16x32x64xbf16, #tpu.memory_space<vmem>>, vector<1x32x64xbf16>
    %595 = vector.shape_cast %594 : vector<1x32x64xbf16> to vector<32x64xbf16>
    %cst_646 = arith.constant dense<0.000000e+00> : vector<3x64xf32>
    %596 = tpu.matmul %593, %595, %cst_646 {dimension_numbers = #tpu.dot_dimension_numbers<[1], [0], [0], [1], [0, 0, 1, 1], [], []>} : vector<3x32xbf16>, vector<32x64xbf16>, vector<3x64xf32> -> vector<3x64xf32>
    %597 = arith.addf %591, %596 : vector<3x64xf32>
    %598 = vector.extract_strided_slice %200 {offsets = [1, 0], sizes = [3, 32], strides = [1, 1]} : vector<4x32xf32> to vector<3x32xf32>
    %599 = arith.truncf %598 : vector<3x32xf32> to vector<3x32xbf16>
    %c11 = arith.constant 11 : index
    %c0_647 = arith.constant 0 : index
    %c0_648 = arith.constant 0 : index
    %600 = vector.load %arg3[%c11, %c0_647, %c0_648] : memref<16x32x64xbf16, #tpu.memory_space<vmem>>, vector<1x32x64xbf16>
    %601 = vector.shape_cast %600 : vector<1x32x64xbf16> to vector<32x64xbf16>
    %cst_649 = arith.constant dense<0.000000e+00> : vector<3x64xf32>
    %602 = tpu.matmul %599, %601, %cst_649 {dimension_numbers = #tpu.dot_dimension_numbers<[1], [0], [0], [1], [0, 0, 1, 1], [], []>} : vector<3x32xbf16>, vector<32x64xbf16>, vector<3x64xf32> -> vector<3x64xf32>
    %603 = arith.addf %597, %602 : vector<3x64xf32>
    %604 = vector.extract_strided_slice %332 {offsets = [0, 0], sizes = [3, 32], strides = [1, 1]} : vector<4x32xf32> to vector<3x32xf32>
    %605 = arith.truncf %604 : vector<3x32xf32> to vector<3x32xbf16>
    %c12 = arith.constant 12 : index
    %c0_650 = arith.constant 0 : index
    %c0_651 = arith.constant 0 : index
    %606 = vector.load %arg3[%c12, %c0_650, %c0_651] : memref<16x32x64xbf16, #tpu.memory_space<vmem>>, vector<1x32x64xbf16>
    %607 = vector.shape_cast %606 : vector<1x32x64xbf16> to vector<32x64xbf16>
    %cst_652 = arith.constant dense<0.000000e+00> : vector<3x64xf32>
    %608 = tpu.matmul %605, %607, %cst_652 {dimension_numbers = #tpu.dot_dimension_numbers<[1], [0], [0], [1], [0, 0, 1, 1], [], []>} : vector<3x32xbf16>, vector<32x64xbf16>, vector<3x64xf32> -> vector<3x64xf32>
    %609 = arith.addf %603, %608 : vector<3x64xf32>
    %610 = vector.extract_strided_slice %464 {offsets = [0, 0], sizes = [3, 32], strides = [1, 1]} : vector<4x32xf32> to vector<3x32xf32>
    %611 = arith.truncf %610 : vector<3x32xf32> to vector<3x32xbf16>
    %c13 = arith.constant 13 : index
    %c0_653 = arith.constant 0 : index
    %c0_654 = arith.constant 0 : index
    %612 = vector.load %arg3[%c13, %c0_653, %c0_654] : memref<16x32x64xbf16, #tpu.memory_space<vmem>>, vector<1x32x64xbf16>
    %613 = vector.shape_cast %612 : vector<1x32x64xbf16> to vector<32x64xbf16>
    %cst_655 = arith.constant dense<0.000000e+00> : vector<3x64xf32>
    %614 = tpu.matmul %611, %613, %cst_655 {dimension_numbers = #tpu.dot_dimension_numbers<[1], [0], [0], [1], [0, 0, 1, 1], [], []>} : vector<3x32xbf16>, vector<32x64xbf16>, vector<3x64xf32> -> vector<3x64xf32>
    %615 = arith.addf %609, %614 : vector<3x64xf32>
    %616 = vector.extract_strided_slice %332 {offsets = [1, 0], sizes = [3, 32], strides = [1, 1]} : vector<4x32xf32> to vector<3x32xf32>
    %617 = arith.truncf %616 : vector<3x32xf32> to vector<3x32xbf16>
    %c14 = arith.constant 14 : index
    %c0_656 = arith.constant 0 : index
    %c0_657 = arith.constant 0 : index
    %618 = vector.load %arg3[%c14, %c0_656, %c0_657] : memref<16x32x64xbf16, #tpu.memory_space<vmem>>, vector<1x32x64xbf16>
    %619 = vector.shape_cast %618 : vector<1x32x64xbf16> to vector<32x64xbf16>
    %cst_658 = arith.constant dense<0.000000e+00> : vector<3x64xf32>
    %620 = tpu.matmul %617, %619, %cst_658 {dimension_numbers = #tpu.dot_dimension_numbers<[1], [0], [0], [1], [0, 0, 1, 1], [], []>} : vector<3x32xbf16>, vector<32x64xbf16>, vector<3x64xf32> -> vector<3x64xf32>
    %621 = arith.addf %615, %620 : vector<3x64xf32>
    %622 = vector.extract_strided_slice %464 {offsets = [1, 0], sizes = [3, 32], strides = [1, 1]} : vector<4x32xf32> to vector<3x32xf32>
    %623 = arith.truncf %622 : vector<3x32xf32> to vector<3x32xbf16>
    %c15 = arith.constant 15 : index
    %c0_659 = arith.constant 0 : index
    %c0_660 = arith.constant 0 : index
    %624 = vector.load %arg3[%c15, %c0_659, %c0_660] : memref<16x32x64xbf16, #tpu.memory_space<vmem>>, vector<1x32x64xbf16>
    %625 = vector.shape_cast %624 : vector<1x32x64xbf16> to vector<32x64xbf16>
    %cst_661 = arith.constant dense<0.000000e+00> : vector<3x64xf32>
    %626 = tpu.matmul %623, %625, %cst_661 {dimension_numbers = #tpu.dot_dimension_numbers<[1], [0], [0], [1], [0, 0, 1, 1], [], []>} : vector<3x32xbf16>, vector<32x64xbf16>, vector<3x64xf32> -> vector<3x64xf32>
    %627 = arith.addf %621, %626 : vector<3x64xf32>
    %628 = vector.broadcast %1 : vector<1x64xf32> to vector<3x64xf32>
    %629 = arith.addf %627, %628 : vector<3x64xf32>
    %cst_662 = arith.constant 0.000000e+00 : f32
    %630 = vector.broadcast %cst_662 : f32 to vector<3x64xf32>
    %631 = arith.maximumf %629, %630 : vector<3x64xf32>
    %cst_663 = arith.constant 0.000000e+00 : f32
    %632 = vector.broadcast %cst_663 : f32 to vector<3x64xf32>
    %633 = vector.extract_strided_slice %68 {offsets = [0, 0], sizes = [3, 32], strides = [1, 1]} : vector<4x32xf32> to vector<3x32xf32>
    %634 = arith.truncf %633 : vector<3x32xf32> to vector<3x32xbf16>
    %c0_664 = arith.constant 0 : index
    %c0_665 = arith.constant 0 : index
    %c0_666 = arith.constant 0 : index
    %635 = vector.load %arg3[%c0_664, %c0_665, %c0_666] : memref<16x32x64xbf16, #tpu.memory_space<vmem>>, vector<1x32x64xbf16>
    %636 = vector.shape_cast %635 : vector<1x32x64xbf16> to vector<32x64xbf16>
    %cst_667 = arith.constant dense<0.000000e+00> : vector<3x64xf32>
    %637 = tpu.matmul %634, %636, %cst_667 {dimension_numbers = #tpu.dot_dimension_numbers<[1], [0], [0], [1], [0, 0, 1, 1], [], []>} : vector<3x32xbf16>, vector<32x64xbf16>, vector<3x64xf32> -> vector<3x64xf32>
    %638 = arith.addf %632, %637 : vector<3x64xf32>
    %639 = vector.extract_strided_slice %200 {offsets = [0, 0], sizes = [3, 32], strides = [1, 1]} : vector<4x32xf32> to vector<3x32xf32>
    %640 = arith.truncf %639 : vector<3x32xf32> to vector<3x32xbf16>
    %c1_668 = arith.constant 1 : index
    %c0_669 = arith.constant 0 : index
    %c0_670 = arith.constant 0 : index
    %641 = vector.load %arg3[%c1_668, %c0_669, %c0_670] : memref<16x32x64xbf16, #tpu.memory_space<vmem>>, vector<1x32x64xbf16>
    %642 = vector.shape_cast %641 : vector<1x32x64xbf16> to vector<32x64xbf16>
    %cst_671 = arith.constant dense<0.000000e+00> : vector<3x64xf32>
    %643 = tpu.matmul %640, %642, %cst_671 {dimension_numbers = #tpu.dot_dimension_numbers<[1], [0], [0], [1], [0, 0, 1, 1], [], []>} : vector<3x32xbf16>, vector<32x64xbf16>, vector<3x64xf32> -> vector<3x64xf32>
    %644 = arith.addf %638, %643 : vector<3x64xf32>
    %645 = vector.extract_strided_slice %68 {offsets = [1, 0], sizes = [3, 32], strides = [1, 1]} : vector<4x32xf32> to vector<3x32xf32>
    %646 = arith.truncf %645 : vector<3x32xf32> to vector<3x32xbf16>
    %c2_672 = arith.constant 2 : index
    %c0_673 = arith.constant 0 : index
    %c0_674 = arith.constant 0 : index
    %647 = vector.load %arg3[%c2_672, %c0_673, %c0_674] : memref<16x32x64xbf16, #tpu.memory_space<vmem>>, vector<1x32x64xbf16>
    %648 = vector.shape_cast %647 : vector<1x32x64xbf16> to vector<32x64xbf16>
    %cst_675 = arith.constant dense<0.000000e+00> : vector<3x64xf32>
    %649 = tpu.matmul %646, %648, %cst_675 {dimension_numbers = #tpu.dot_dimension_numbers<[1], [0], [0], [1], [0, 0, 1, 1], [], []>} : vector<3x32xbf16>, vector<32x64xbf16>, vector<3x64xf32> -> vector<3x64xf32>
    %650 = arith.addf %644, %649 : vector<3x64xf32>
    %651 = vector.extract_strided_slice %200 {offsets = [1, 0], sizes = [3, 32], strides = [1, 1]} : vector<4x32xf32> to vector<3x32xf32>
    %652 = arith.truncf %651 : vector<3x32xf32> to vector<3x32xbf16>
    %c3_676 = arith.constant 3 : index
    %c0_677 = arith.constant 0 : index
    %c0_678 = arith.constant 0 : index
    %653 = vector.load %arg3[%c3_676, %c0_677, %c0_678] : memref<16x32x64xbf16, #tpu.memory_space<vmem>>, vector<1x32x64xbf16>
    %654 = vector.shape_cast %653 : vector<1x32x64xbf16> to vector<32x64xbf16>
    %cst_679 = arith.constant dense<0.000000e+00> : vector<3x64xf32>
    %655 = tpu.matmul %652, %654, %cst_679 {dimension_numbers = #tpu.dot_dimension_numbers<[1], [0], [0], [1], [0, 0, 1, 1], [], []>} : vector<3x32xbf16>, vector<32x64xbf16>, vector<3x64xf32> -> vector<3x64xf32>
    %656 = arith.addf %650, %655 : vector<3x64xf32>
    %657 = vector.extract_strided_slice %332 {offsets = [0, 0], sizes = [3, 32], strides = [1, 1]} : vector<4x32xf32> to vector<3x32xf32>
    %658 = arith.truncf %657 : vector<3x32xf32> to vector<3x32xbf16>
    %c4_680 = arith.constant 4 : index
    %c0_681 = arith.constant 0 : index
    %c0_682 = arith.constant 0 : index
    %659 = vector.load %arg3[%c4_680, %c0_681, %c0_682] : memref<16x32x64xbf16, #tpu.memory_space<vmem>>, vector<1x32x64xbf16>
    %660 = vector.shape_cast %659 : vector<1x32x64xbf16> to vector<32x64xbf16>
    %cst_683 = arith.constant dense<0.000000e+00> : vector<3x64xf32>
    %661 = tpu.matmul %658, %660, %cst_683 {dimension_numbers = #tpu.dot_dimension_numbers<[1], [0], [0], [1], [0, 0, 1, 1], [], []>} : vector<3x32xbf16>, vector<32x64xbf16>, vector<3x64xf32> -> vector<3x64xf32>
    %662 = arith.addf %656, %661 : vector<3x64xf32>
    %663 = vector.extract_strided_slice %464 {offsets = [0, 0], sizes = [3, 32], strides = [1, 1]} : vector<4x32xf32> to vector<3x32xf32>
    %664 = arith.truncf %663 : vector<3x32xf32> to vector<3x32xbf16>
    %c5_684 = arith.constant 5 : index
    %c0_685 = arith.constant 0 : index
    %c0_686 = arith.constant 0 : index
    %665 = vector.load %arg3[%c5_684, %c0_685, %c0_686] : memref<16x32x64xbf16, #tpu.memory_space<vmem>>, vector<1x32x64xbf16>
    %666 = vector.shape_cast %665 : vector<1x32x64xbf16> to vector<32x64xbf16>
    %cst_687 = arith.constant dense<0.000000e+00> : vector<3x64xf32>
    %667 = tpu.matmul %664, %666, %cst_687 {dimension_numbers = #tpu.dot_dimension_numbers<[1], [0], [0], [1], [0, 0, 1, 1], [], []>} : vector<3x32xbf16>, vector<32x64xbf16>, vector<3x64xf32> -> vector<3x64xf32>
    %668 = arith.addf %662, %667 : vector<3x64xf32>
    %669 = vector.extract_strided_slice %332 {offsets = [1, 0], sizes = [3, 32], strides = [1, 1]} : vector<4x32xf32> to vector<3x32xf32>
    %670 = arith.truncf %669 : vector<3x32xf32> to vector<3x32xbf16>
    %c6_688 = arith.constant 6 : index
    %c0_689 = arith.constant 0 : index
    %c0_690 = arith.constant 0 : index
    %671 = vector.load %arg3[%c6_688, %c0_689, %c0_690] : memref<16x32x64xbf16, #tpu.memory_space<vmem>>, vector<1x32x64xbf16>
    %672 = vector.shape_cast %671 : vector<1x32x64xbf16> to vector<32x64xbf16>
    %cst_691 = arith.constant dense<0.000000e+00> : vector<3x64xf32>
    %673 = tpu.matmul %670, %672, %cst_691 {dimension_numbers = #tpu.dot_dimension_numbers<[1], [0], [0], [1], [0, 0, 1, 1], [], []>} : vector<3x32xbf16>, vector<32x64xbf16>, vector<3x64xf32> -> vector<3x64xf32>
    %674 = arith.addf %668, %673 : vector<3x64xf32>
    %675 = vector.extract_strided_slice %464 {offsets = [1, 0], sizes = [3, 32], strides = [1, 1]} : vector<4x32xf32> to vector<3x32xf32>
    %676 = arith.truncf %675 : vector<3x32xf32> to vector<3x32xbf16>
    %c7_692 = arith.constant 7 : index
    %c0_693 = arith.constant 0 : index
    %c0_694 = arith.constant 0 : index
    %677 = vector.load %arg3[%c7_692, %c0_693, %c0_694] : memref<16x32x64xbf16, #tpu.memory_space<vmem>>, vector<1x32x64xbf16>
    %678 = vector.shape_cast %677 : vector<1x32x64xbf16> to vector<32x64xbf16>
    %cst_695 = arith.constant dense<0.000000e+00> : vector<3x64xf32>
    %679 = tpu.matmul %676, %678, %cst_695 {dimension_numbers = #tpu.dot_dimension_numbers<[1], [0], [0], [1], [0, 0, 1, 1], [], []>} : vector<3x32xbf16>, vector<32x64xbf16>, vector<3x64xf32> -> vector<3x64xf32>
    %680 = arith.addf %674, %679 : vector<3x64xf32>
    %681 = vector.extract_strided_slice %101 {offsets = [0, 0], sizes = [3, 32], strides = [1, 1]} : vector<4x32xf32> to vector<3x32xf32>
    %682 = arith.truncf %681 : vector<3x32xf32> to vector<3x32xbf16>
    %c8_696 = arith.constant 8 : index
    %c0_697 = arith.constant 0 : index
    %c0_698 = arith.constant 0 : index
    %683 = vector.load %arg3[%c8_696, %c0_697, %c0_698] : memref<16x32x64xbf16, #tpu.memory_space<vmem>>, vector<1x32x64xbf16>
    %684 = vector.shape_cast %683 : vector<1x32x64xbf16> to vector<32x64xbf16>
    %cst_699 = arith.constant dense<0.000000e+00> : vector<3x64xf32>
    %685 = tpu.matmul %682, %684, %cst_699 {dimension_numbers = #tpu.dot_dimension_numbers<[1], [0], [0], [1], [0, 0, 1, 1], [], []>} : vector<3x32xbf16>, vector<32x64xbf16>, vector<3x64xf32> -> vector<3x64xf32>
    %686 = arith.addf %680, %685 : vector<3x64xf32>
    %687 = vector.extract_strided_slice %233 {offsets = [0, 0], sizes = [3, 32], strides = [1, 1]} : vector<4x32xf32> to vector<3x32xf32>
    %688 = arith.truncf %687 : vector<3x32xf32> to vector<3x32xbf16>
    %c9_700 = arith.constant 9 : index
    %c0_701 = arith.constant 0 : index
    %c0_702 = arith.constant 0 : index
    %689 = vector.load %arg3[%c9_700, %c0_701, %c0_702] : memref<16x32x64xbf16, #tpu.memory_space<vmem>>, vector<1x32x64xbf16>
    %690 = vector.shape_cast %689 : vector<1x32x64xbf16> to vector<32x64xbf16>
    %cst_703 = arith.constant dense<0.000000e+00> : vector<3x64xf32>
    %691 = tpu.matmul %688, %690, %cst_703 {dimension_numbers = #tpu.dot_dimension_numbers<[1], [0], [0], [1], [0, 0, 1, 1], [], []>} : vector<3x32xbf16>, vector<32x64xbf16>, vector<3x64xf32> -> vector<3x64xf32>
    %692 = arith.addf %686, %691 : vector<3x64xf32>
    %693 = vector.extract_strided_slice %101 {offsets = [1, 0], sizes = [3, 32], strides = [1, 1]} : vector<4x32xf32> to vector<3x32xf32>
    %694 = arith.truncf %693 : vector<3x32xf32> to vector<3x32xbf16>
    %c10_704 = arith.constant 10 : index
    %c0_705 = arith.constant 0 : index
    %c0_706 = arith.constant 0 : index
    %695 = vector.load %arg3[%c10_704, %c0_705, %c0_706] : memref<16x32x64xbf16, #tpu.memory_space<vmem>>, vector<1x32x64xbf16>
    %696 = vector.shape_cast %695 : vector<1x32x64xbf16> to vector<32x64xbf16>
    %cst_707 = arith.constant dense<0.000000e+00> : vector<3x64xf32>
    %697 = tpu.matmul %694, %696, %cst_707 {dimension_numbers = #tpu.dot_dimension_numbers<[1], [0], [0], [1], [0, 0, 1, 1], [], []>} : vector<3x32xbf16>, vector<32x64xbf16>, vector<3x64xf32> -> vector<3x64xf32>
    %698 = arith.addf %692, %697 : vector<3x64xf32>
    %699 = vector.extract_strided_slice %233 {offsets = [1, 0], sizes = [3, 32], strides = [1, 1]} : vector<4x32xf32> to vector<3x32xf32>
    %700 = arith.truncf %699 : vector<3x32xf32> to vector<3x32xbf16>
    %c11_708 = arith.constant 11 : index
    %c0_709 = arith.constant 0 : index
    %c0_710 = arith.constant 0 : index
    %701 = vector.load %arg3[%c11_708, %c0_709, %c0_710] : memref<16x32x64xbf16, #tpu.memory_space<vmem>>, vector<1x32x64xbf16>
    %702 = vector.shape_cast %701 : vector<1x32x64xbf16> to vector<32x64xbf16>
    %cst_711 = arith.constant dense<0.000000e+00> : vector<3x64xf32>
    %703 = tpu.matmul %700, %702, %cst_711 {dimension_numbers = #tpu.dot_dimension_numbers<[1], [0], [0], [1], [0, 0, 1, 1], [], []>} : vector<3x32xbf16>, vector<32x64xbf16>, vector<3x64xf32> -> vector<3x64xf32>
    %704 = arith.addf %698, %703 : vector<3x64xf32>
    %705 = vector.extract_strided_slice %365 {offsets = [0, 0], sizes = [3, 32], strides = [1, 1]} : vector<4x32xf32> to vector<3x32xf32>
    %706 = arith.truncf %705 : vector<3x32xf32> to vector<3x32xbf16>
    %c12_712 = arith.constant 12 : index
    %c0_713 = arith.constant 0 : index
    %c0_714 = arith.constant 0 : index
    %707 = vector.load %arg3[%c12_712, %c0_713, %c0_714] : memref<16x32x64xbf16, #tpu.memory_space<vmem>>, vector<1x32x64xbf16>
    %708 = vector.shape_cast %707 : vector<1x32x64xbf16> to vector<32x64xbf16>
    %cst_715 = arith.constant dense<0.000000e+00> : vector<3x64xf32>
    %709 = tpu.matmul %706, %708, %cst_715 {dimension_numbers = #tpu.dot_dimension_numbers<[1], [0], [0], [1], [0, 0, 1, 1], [], []>} : vector<3x32xbf16>, vector<32x64xbf16>, vector<3x64xf32> -> vector<3x64xf32>
    %710 = arith.addf %704, %709 : vector<3x64xf32>
    %711 = vector.extract_strided_slice %497 {offsets = [0, 0], sizes = [3, 32], strides = [1, 1]} : vector<4x32xf32> to vector<3x32xf32>
    %712 = arith.truncf %711 : vector<3x32xf32> to vector<3x32xbf16>
    %c13_716 = arith.constant 13 : index
    %c0_717 = arith.constant 0 : index
    %c0_718 = arith.constant 0 : index
    %713 = vector.load %arg3[%c13_716, %c0_717, %c0_718] : memref<16x32x64xbf16, #tpu.memory_space<vmem>>, vector<1x32x64xbf16>
    %714 = vector.shape_cast %713 : vector<1x32x64xbf16> to vector<32x64xbf16>
    %cst_719 = arith.constant dense<0.000000e+00> : vector<3x64xf32>
    %715 = tpu.matmul %712, %714, %cst_719 {dimension_numbers = #tpu.dot_dimension_numbers<[1], [0], [0], [1], [0, 0, 1, 1], [], []>} : vector<3x32xbf16>, vector<32x64xbf16>, vector<3x64xf32> -> vector<3x64xf32>
    %716 = arith.addf %710, %715 : vector<3x64xf32>
    %717 = vector.extract_strided_slice %365 {offsets = [1, 0], sizes = [3, 32], strides = [1, 1]} : vector<4x32xf32> to vector<3x32xf32>
    %718 = arith.truncf %717 : vector<3x32xf32> to vector<3x32xbf16>
    %c14_720 = arith.constant 14 : index
    %c0_721 = arith.constant 0 : index
    %c0_722 = arith.constant 0 : index
    %719 = vector.load %arg3[%c14_720, %c0_721, %c0_722] : memref<16x32x64xbf16, #tpu.memory_space<vmem>>, vector<1x32x64xbf16>
    %720 = vector.shape_cast %719 : vector<1x32x64xbf16> to vector<32x64xbf16>
    %cst_723 = arith.constant dense<0.000000e+00> : vector<3x64xf32>
    %721 = tpu.matmul %718, %720, %cst_723 {dimension_numbers = #tpu.dot_dimension_numbers<[1], [0], [0], [1], [0, 0, 1, 1], [], []>} : vector<3x32xbf16>, vector<32x64xbf16>, vector<3x64xf32> -> vector<3x64xf32>
    %722 = arith.addf %716, %721 : vector<3x64xf32>
    %723 = vector.extract_strided_slice %497 {offsets = [1, 0], sizes = [3, 32], strides = [1, 1]} : vector<4x32xf32> to vector<3x32xf32>
    %724 = arith.truncf %723 : vector<3x32xf32> to vector<3x32xbf16>
    %c15_724 = arith.constant 15 : index
    %c0_725 = arith.constant 0 : index
    %c0_726 = arith.constant 0 : index
    %725 = vector.load %arg3[%c15_724, %c0_725, %c0_726] : memref<16x32x64xbf16, #tpu.memory_space<vmem>>, vector<1x32x64xbf16>
    %726 = vector.shape_cast %725 : vector<1x32x64xbf16> to vector<32x64xbf16>
    %cst_727 = arith.constant dense<0.000000e+00> : vector<3x64xf32>
    %727 = tpu.matmul %724, %726, %cst_727 {dimension_numbers = #tpu.dot_dimension_numbers<[1], [0], [0], [1], [0, 0, 1, 1], [], []>} : vector<3x32xbf16>, vector<32x64xbf16>, vector<3x64xf32> -> vector<3x64xf32>
    %728 = arith.addf %722, %727 : vector<3x64xf32>
    %729 = vector.broadcast %1 : vector<1x64xf32> to vector<3x64xf32>
    %730 = arith.addf %728, %729 : vector<3x64xf32>
    %cst_728 = arith.constant 0.000000e+00 : f32
    %731 = vector.broadcast %cst_728 : f32 to vector<3x64xf32>
    %732 = arith.maximumf %730, %731 : vector<3x64xf32>
    %cst_729 = arith.constant 0.000000e+00 : f32
    %733 = vector.broadcast %cst_729 : f32 to vector<3x64xf32>
    %734 = vector.extract_strided_slice %101 {offsets = [0, 0], sizes = [3, 32], strides = [1, 1]} : vector<4x32xf32> to vector<3x32xf32>
    %735 = arith.truncf %734 : vector<3x32xf32> to vector<3x32xbf16>
    %c0_730 = arith.constant 0 : index
    %c0_731 = arith.constant 0 : index
    %c0_732 = arith.constant 0 : index
    %736 = vector.load %arg3[%c0_730, %c0_731, %c0_732] : memref<16x32x64xbf16, #tpu.memory_space<vmem>>, vector<1x32x64xbf16>
    %737 = vector.shape_cast %736 : vector<1x32x64xbf16> to vector<32x64xbf16>
    %cst_733 = arith.constant dense<0.000000e+00> : vector<3x64xf32>
    %738 = tpu.matmul %735, %737, %cst_733 {dimension_numbers = #tpu.dot_dimension_numbers<[1], [0], [0], [1], [0, 0, 1, 1], [], []>} : vector<3x32xbf16>, vector<32x64xbf16>, vector<3x64xf32> -> vector<3x64xf32>
    %739 = arith.addf %733, %738 : vector<3x64xf32>
    %740 = vector.extract_strided_slice %233 {offsets = [0, 0], sizes = [3, 32], strides = [1, 1]} : vector<4x32xf32> to vector<3x32xf32>
    %741 = arith.truncf %740 : vector<3x32xf32> to vector<3x32xbf16>
    %c1_734 = arith.constant 1 : index
    %c0_735 = arith.constant 0 : index
    %c0_736 = arith.constant 0 : index
    %742 = vector.load %arg3[%c1_734, %c0_735, %c0_736] : memref<16x32x64xbf16, #tpu.memory_space<vmem>>, vector<1x32x64xbf16>
    %743 = vector.shape_cast %742 : vector<1x32x64xbf16> to vector<32x64xbf16>
    %cst_737 = arith.constant dense<0.000000e+00> : vector<3x64xf32>
    %744 = tpu.matmul %741, %743, %cst_737 {dimension_numbers = #tpu.dot_dimension_numbers<[1], [0], [0], [1], [0, 0, 1, 1], [], []>} : vector<3x32xbf16>, vector<32x64xbf16>, vector<3x64xf32> -> vector<3x64xf32>
    %745 = arith.addf %739, %744 : vector<3x64xf32>
    %746 = vector.extract_strided_slice %101 {offsets = [1, 0], sizes = [3, 32], strides = [1, 1]} : vector<4x32xf32> to vector<3x32xf32>
    %747 = arith.truncf %746 : vector<3x32xf32> to vector<3x32xbf16>
    %c2_738 = arith.constant 2 : index
    %c0_739 = arith.constant 0 : index
    %c0_740 = arith.constant 0 : index
    %748 = vector.load %arg3[%c2_738, %c0_739, %c0_740] : memref<16x32x64xbf16, #tpu.memory_space<vmem>>, vector<1x32x64xbf16>
    %749 = vector.shape_cast %748 : vector<1x32x64xbf16> to vector<32x64xbf16>
    %cst_741 = arith.constant dense<0.000000e+00> : vector<3x64xf32>
    %750 = tpu.matmul %747, %749, %cst_741 {dimension_numbers = #tpu.dot_dimension_numbers<[1], [0], [0], [1], [0, 0, 1, 1], [], []>} : vector<3x32xbf16>, vector<32x64xbf16>, vector<3x64xf32> -> vector<3x64xf32>
    %751 = arith.addf %745, %750 : vector<3x64xf32>
    %752 = vector.extract_strided_slice %233 {offsets = [1, 0], sizes = [3, 32], strides = [1, 1]} : vector<4x32xf32> to vector<3x32xf32>
    %753 = arith.truncf %752 : vector<3x32xf32> to vector<3x32xbf16>
    %c3_742 = arith.constant 3 : index
    %c0_743 = arith.constant 0 : index
    %c0_744 = arith.constant 0 : index
    %754 = vector.load %arg3[%c3_742, %c0_743, %c0_744] : memref<16x32x64xbf16, #tpu.memory_space<vmem>>, vector<1x32x64xbf16>
    %755 = vector.shape_cast %754 : vector<1x32x64xbf16> to vector<32x64xbf16>
    %cst_745 = arith.constant dense<0.000000e+00> : vector<3x64xf32>
    %756 = tpu.matmul %753, %755, %cst_745 {dimension_numbers = #tpu.dot_dimension_numbers<[1], [0], [0], [1], [0, 0, 1, 1], [], []>} : vector<3x32xbf16>, vector<32x64xbf16>, vector<3x64xf32> -> vector<3x64xf32>
    %757 = arith.addf %751, %756 : vector<3x64xf32>
    %758 = vector.extract_strided_slice %365 {offsets = [0, 0], sizes = [3, 32], strides = [1, 1]} : vector<4x32xf32> to vector<3x32xf32>
    %759 = arith.truncf %758 : vector<3x32xf32> to vector<3x32xbf16>
    %c4_746 = arith.constant 4 : index
    %c0_747 = arith.constant 0 : index
    %c0_748 = arith.constant 0 : index
    %760 = vector.load %arg3[%c4_746, %c0_747, %c0_748] : memref<16x32x64xbf16, #tpu.memory_space<vmem>>, vector<1x32x64xbf16>
    %761 = vector.shape_cast %760 : vector<1x32x64xbf16> to vector<32x64xbf16>
    %cst_749 = arith.constant dense<0.000000e+00> : vector<3x64xf32>
    %762 = tpu.matmul %759, %761, %cst_749 {dimension_numbers = #tpu.dot_dimension_numbers<[1], [0], [0], [1], [0, 0, 1, 1], [], []>} : vector<3x32xbf16>, vector<32x64xbf16>, vector<3x64xf32> -> vector<3x64xf32>
    %763 = arith.addf %757, %762 : vector<3x64xf32>
    %764 = vector.extract_strided_slice %497 {offsets = [0, 0], sizes = [3, 32], strides = [1, 1]} : vector<4x32xf32> to vector<3x32xf32>
    %765 = arith.truncf %764 : vector<3x32xf32> to vector<3x32xbf16>
    %c5_750 = arith.constant 5 : index
    %c0_751 = arith.constant 0 : index
    %c0_752 = arith.constant 0 : index
    %766 = vector.load %arg3[%c5_750, %c0_751, %c0_752] : memref<16x32x64xbf16, #tpu.memory_space<vmem>>, vector<1x32x64xbf16>
    %767 = vector.shape_cast %766 : vector<1x32x64xbf16> to vector<32x64xbf16>
    %cst_753 = arith.constant dense<0.000000e+00> : vector<3x64xf32>
    %768 = tpu.matmul %765, %767, %cst_753 {dimension_numbers = #tpu.dot_dimension_numbers<[1], [0], [0], [1], [0, 0, 1, 1], [], []>} : vector<3x32xbf16>, vector<32x64xbf16>, vector<3x64xf32> -> vector<3x64xf32>
    %769 = arith.addf %763, %768 : vector<3x64xf32>
    %770 = vector.extract_strided_slice %365 {offsets = [1, 0], sizes = [3, 32], strides = [1, 1]} : vector<4x32xf32> to vector<3x32xf32>
    %771 = arith.truncf %770 : vector<3x32xf32> to vector<3x32xbf16>
    %c6_754 = arith.constant 6 : index
    %c0_755 = arith.constant 0 : index
    %c0_756 = arith.constant 0 : index
    %772 = vector.load %arg3[%c6_754, %c0_755, %c0_756] : memref<16x32x64xbf16, #tpu.memory_space<vmem>>, vector<1x32x64xbf16>
    %773 = vector.shape_cast %772 : vector<1x32x64xbf16> to vector<32x64xbf16>
    %cst_757 = arith.constant dense<0.000000e+00> : vector<3x64xf32>
    %774 = tpu.matmul %771, %773, %cst_757 {dimension_numbers = #tpu.dot_dimension_numbers<[1], [0], [0], [1], [0, 0, 1, 1], [], []>} : vector<3x32xbf16>, vector<32x64xbf16>, vector<3x64xf32> -> vector<3x64xf32>
    %775 = arith.addf %769, %774 : vector<3x64xf32>
    %776 = vector.extract_strided_slice %497 {offsets = [1, 0], sizes = [3, 32], strides = [1, 1]} : vector<4x32xf32> to vector<3x32xf32>
    %777 = arith.truncf %776 : vector<3x32xf32> to vector<3x32xbf16>
    %c7_758 = arith.constant 7 : index
    %c0_759 = arith.constant 0 : index
    %c0_760 = arith.constant 0 : index
    %778 = vector.load %arg3[%c7_758, %c0_759, %c0_760] : memref<16x32x64xbf16, #tpu.memory_space<vmem>>, vector<1x32x64xbf16>
    %779 = vector.shape_cast %778 : vector<1x32x64xbf16> to vector<32x64xbf16>
    %cst_761 = arith.constant dense<0.000000e+00> : vector<3x64xf32>
    %780 = tpu.matmul %777, %779, %cst_761 {dimension_numbers = #tpu.dot_dimension_numbers<[1], [0], [0], [1], [0, 0, 1, 1], [], []>} : vector<3x32xbf16>, vector<32x64xbf16>, vector<3x64xf32> -> vector<3x64xf32>
    %781 = arith.addf %775, %780 : vector<3x64xf32>
    %782 = vector.extract_strided_slice %134 {offsets = [0, 0], sizes = [3, 32], strides = [1, 1]} : vector<4x32xf32> to vector<3x32xf32>
    %783 = arith.truncf %782 : vector<3x32xf32> to vector<3x32xbf16>
    %c8_762 = arith.constant 8 : index
    %c0_763 = arith.constant 0 : index
    %c0_764 = arith.constant 0 : index
    %784 = vector.load %arg3[%c8_762, %c0_763, %c0_764] : memref<16x32x64xbf16, #tpu.memory_space<vmem>>, vector<1x32x64xbf16>
    %785 = vector.shape_cast %784 : vector<1x32x64xbf16> to vector<32x64xbf16>
    %cst_765 = arith.constant dense<0.000000e+00> : vector<3x64xf32>
    %786 = tpu.matmul %783, %785, %cst_765 {dimension_numbers = #tpu.dot_dimension_numbers<[1], [0], [0], [1], [0, 0, 1, 1], [], []>} : vector<3x32xbf16>, vector<32x64xbf16>, vector<3x64xf32> -> vector<3x64xf32>
    %787 = arith.addf %781, %786 : vector<3x64xf32>
    %788 = vector.extract_strided_slice %266 {offsets = [0, 0], sizes = [3, 32], strides = [1, 1]} : vector<4x32xf32> to vector<3x32xf32>
    %789 = arith.truncf %788 : vector<3x32xf32> to vector<3x32xbf16>
    %c9_766 = arith.constant 9 : index
    %c0_767 = arith.constant 0 : index
    %c0_768 = arith.constant 0 : index
    %790 = vector.load %arg3[%c9_766, %c0_767, %c0_768] : memref<16x32x64xbf16, #tpu.memory_space<vmem>>, vector<1x32x64xbf16>
    %791 = vector.shape_cast %790 : vector<1x32x64xbf16> to vector<32x64xbf16>
    %cst_769 = arith.constant dense<0.000000e+00> : vector<3x64xf32>
    %792 = tpu.matmul %789, %791, %cst_769 {dimension_numbers = #tpu.dot_dimension_numbers<[1], [0], [0], [1], [0, 0, 1, 1], [], []>} : vector<3x32xbf16>, vector<32x64xbf16>, vector<3x64xf32> -> vector<3x64xf32>
    %793 = arith.addf %787, %792 : vector<3x64xf32>
    %794 = vector.extract_strided_slice %134 {offsets = [1, 0], sizes = [3, 32], strides = [1, 1]} : vector<4x32xf32> to vector<3x32xf32>
    %795 = arith.truncf %794 : vector<3x32xf32> to vector<3x32xbf16>
    %c10_770 = arith.constant 10 : index
    %c0_771 = arith.constant 0 : index
    %c0_772 = arith.constant 0 : index
    %796 = vector.load %arg3[%c10_770, %c0_771, %c0_772] : memref<16x32x64xbf16, #tpu.memory_space<vmem>>, vector<1x32x64xbf16>
    %797 = vector.shape_cast %796 : vector<1x32x64xbf16> to vector<32x64xbf16>
    %cst_773 = arith.constant dense<0.000000e+00> : vector<3x64xf32>
    %798 = tpu.matmul %795, %797, %cst_773 {dimension_numbers = #tpu.dot_dimension_numbers<[1], [0], [0], [1], [0, 0, 1, 1], [], []>} : vector<3x32xbf16>, vector<32x64xbf16>, vector<3x64xf32> -> vector<3x64xf32>
    %799 = arith.addf %793, %798 : vector<3x64xf32>
    %800 = vector.extract_strided_slice %266 {offsets = [1, 0], sizes = [3, 32], strides = [1, 1]} : vector<4x32xf32> to vector<3x32xf32>
    %801 = arith.truncf %800 : vector<3x32xf32> to vector<3x32xbf16>
    %c11_774 = arith.constant 11 : index
    %c0_775 = arith.constant 0 : index
    %c0_776 = arith.constant 0 : index
    %802 = vector.load %arg3[%c11_774, %c0_775, %c0_776] : memref<16x32x64xbf16, #tpu.memory_space<vmem>>, vector<1x32x64xbf16>
    %803 = vector.shape_cast %802 : vector<1x32x64xbf16> to vector<32x64xbf16>
    %cst_777 = arith.constant dense<0.000000e+00> : vector<3x64xf32>
    %804 = tpu.matmul %801, %803, %cst_777 {dimension_numbers = #tpu.dot_dimension_numbers<[1], [0], [0], [1], [0, 0, 1, 1], [], []>} : vector<3x32xbf16>, vector<32x64xbf16>, vector<3x64xf32> -> vector<3x64xf32>
    %805 = arith.addf %799, %804 : vector<3x64xf32>
    %806 = vector.extract_strided_slice %398 {offsets = [0, 0], sizes = [3, 32], strides = [1, 1]} : vector<4x32xf32> to vector<3x32xf32>
    %807 = arith.truncf %806 : vector<3x32xf32> to vector<3x32xbf16>
    %c12_778 = arith.constant 12 : index
    %c0_779 = arith.constant 0 : index
    %c0_780 = arith.constant 0 : index
    %808 = vector.load %arg3[%c12_778, %c0_779, %c0_780] : memref<16x32x64xbf16, #tpu.memory_space<vmem>>, vector<1x32x64xbf16>
    %809 = vector.shape_cast %808 : vector<1x32x64xbf16> to vector<32x64xbf16>
    %cst_781 = arith.constant dense<0.000000e+00> : vector<3x64xf32>
    %810 = tpu.matmul %807, %809, %cst_781 {dimension_numbers = #tpu.dot_dimension_numbers<[1], [0], [0], [1], [0, 0, 1, 1], [], []>} : vector<3x32xbf16>, vector<32x64xbf16>, vector<3x64xf32> -> vector<3x64xf32>
    %811 = arith.addf %805, %810 : vector<3x64xf32>
    %812 = vector.extract_strided_slice %530 {offsets = [0, 0], sizes = [3, 32], strides = [1, 1]} : vector<4x32xf32> to vector<3x32xf32>
    %813 = arith.truncf %812 : vector<3x32xf32> to vector<3x32xbf16>
    %c13_782 = arith.constant 13 : index
    %c0_783 = arith.constant 0 : index
    %c0_784 = arith.constant 0 : index
    %814 = vector.load %arg3[%c13_782, %c0_783, %c0_784] : memref<16x32x64xbf16, #tpu.memory_space<vmem>>, vector<1x32x64xbf16>
    %815 = vector.shape_cast %814 : vector<1x32x64xbf16> to vector<32x64xbf16>
    %cst_785 = arith.constant dense<0.000000e+00> : vector<3x64xf32>
    %816 = tpu.matmul %813, %815, %cst_785 {dimension_numbers = #tpu.dot_dimension_numbers<[1], [0], [0], [1], [0, 0, 1, 1], [], []>} : vector<3x32xbf16>, vector<32x64xbf16>, vector<3x64xf32> -> vector<3x64xf32>
    %817 = arith.addf %811, %816 : vector<3x64xf32>
    %818 = vector.extract_strided_slice %398 {offsets = [1, 0], sizes = [3, 32], strides = [1, 1]} : vector<4x32xf32> to vector<3x32xf32>
    %819 = arith.truncf %818 : vector<3x32xf32> to vector<3x32xbf16>
    %c14_786 = arith.constant 14 : index
    %c0_787 = arith.constant 0 : index
    %c0_788 = arith.constant 0 : index
    %820 = vector.load %arg3[%c14_786, %c0_787, %c0_788] : memref<16x32x64xbf16, #tpu.memory_space<vmem>>, vector<1x32x64xbf16>
    %821 = vector.shape_cast %820 : vector<1x32x64xbf16> to vector<32x64xbf16>
    %cst_789 = arith.constant dense<0.000000e+00> : vector<3x64xf32>
    %822 = tpu.matmul %819, %821, %cst_789 {dimension_numbers = #tpu.dot_dimension_numbers<[1], [0], [0], [1], [0, 0, 1, 1], [], []>} : vector<3x32xbf16>, vector<32x64xbf16>, vector<3x64xf32> -> vector<3x64xf32>
    %823 = arith.addf %817, %822 : vector<3x64xf32>
    %824 = vector.extract_strided_slice %530 {offsets = [1, 0], sizes = [3, 32], strides = [1, 1]} : vector<4x32xf32> to vector<3x32xf32>
    %825 = arith.truncf %824 : vector<3x32xf32> to vector<3x32xbf16>
    %c15_790 = arith.constant 15 : index
    %c0_791 = arith.constant 0 : index
    %c0_792 = arith.constant 0 : index
    %826 = vector.load %arg3[%c15_790, %c0_791, %c0_792] : memref<16x32x64xbf16, #tpu.memory_space<vmem>>, vector<1x32x64xbf16>
    %827 = vector.shape_cast %826 : vector<1x32x64xbf16> to vector<32x64xbf16>
    %cst_793 = arith.constant dense<0.000000e+00> : vector<3x64xf32>
    %828 = tpu.matmul %825, %827, %cst_793 {dimension_numbers = #tpu.dot_dimension_numbers<[1], [0], [0], [1], [0, 0, 1, 1], [], []>} : vector<3x32xbf16>, vector<32x64xbf16>, vector<3x64xf32> -> vector<3x64xf32>
    %829 = arith.addf %823, %828 : vector<3x64xf32>
    %830 = vector.broadcast %1 : vector<1x64xf32> to vector<3x64xf32>
    %831 = arith.addf %829, %830 : vector<3x64xf32>
    %cst_794 = arith.constant 0.000000e+00 : f32
    %832 = vector.broadcast %cst_794 : f32 to vector<3x64xf32>
    %833 = arith.maximumf %831, %832 : vector<3x64xf32>
    %cst_795 = arith.constant 0.000000e+00 : f32
    %834 = vector.broadcast %cst_795 : f32 to vector<1x64xf32>
    %835 = vector.extract_strided_slice %631 {offsets = [0, 0], sizes = [1, 64], strides = [1, 1]} : vector<3x64xf32> to vector<1x64xf32>
    %836 = arith.truncf %835 : vector<1x64xf32> to vector<1x64xbf16>
    %c0_796 = arith.constant 0 : index
    %c0_797 = arith.constant 0 : index
    %c0_798 = arith.constant 0 : index
    %837 = vector.load %arg4[%c0_796, %c0_797, %c0_798] : memref<9x64x64xbf16, #tpu.memory_space<vmem>>, vector<1x64x64xbf16>
    %838 = vector.shape_cast %837 : vector<1x64x64xbf16> to vector<64x64xbf16>
    %cst_799 = arith.constant dense<0.000000e+00> : vector<1x64xf32>
    %839 = tpu.matmul %836, %838, %cst_799 {dimension_numbers = #tpu.dot_dimension_numbers<[1], [0], [0], [1], [0, 0, 1, 1], [], []>} : vector<1x64xbf16>, vector<64x64xbf16>, vector<1x64xf32> -> vector<1x64xf32>
    %840 = arith.addf %834, %839 : vector<1x64xf32>
    %841 = vector.extract_strided_slice %631 {offsets = [1, 0], sizes = [1, 64], strides = [1, 1]} : vector<3x64xf32> to vector<1x64xf32>
    %842 = arith.truncf %841 : vector<1x64xf32> to vector<1x64xbf16>
    %c1_800 = arith.constant 1 : index
    %c0_801 = arith.constant 0 : index
    %c0_802 = arith.constant 0 : index
    %843 = vector.load %arg4[%c1_800, %c0_801, %c0_802] : memref<9x64x64xbf16, #tpu.memory_space<vmem>>, vector<1x64x64xbf16>
    %844 = vector.shape_cast %843 : vector<1x64x64xbf16> to vector<64x64xbf16>
    %cst_803 = arith.constant dense<0.000000e+00> : vector<1x64xf32>
    %845 = tpu.matmul %842, %844, %cst_803 {dimension_numbers = #tpu.dot_dimension_numbers<[1], [0], [0], [1], [0, 0, 1, 1], [], []>} : vector<1x64xbf16>, vector<64x64xbf16>, vector<1x64xf32> -> vector<1x64xf32>
    %846 = arith.addf %840, %845 : vector<1x64xf32>
    %847 = vector.extract_strided_slice %631 {offsets = [2, 0], sizes = [1, 64], strides = [1, 1]} : vector<3x64xf32> to vector<1x64xf32>
    %848 = arith.truncf %847 : vector<1x64xf32> to vector<1x64xbf16>
    %c2_804 = arith.constant 2 : index
    %c0_805 = arith.constant 0 : index
    %c0_806 = arith.constant 0 : index
    %849 = vector.load %arg4[%c2_804, %c0_805, %c0_806] : memref<9x64x64xbf16, #tpu.memory_space<vmem>>, vector<1x64x64xbf16>
    %850 = vector.shape_cast %849 : vector<1x64x64xbf16> to vector<64x64xbf16>
    %cst_807 = arith.constant dense<0.000000e+00> : vector<1x64xf32>
    %851 = tpu.matmul %848, %850, %cst_807 {dimension_numbers = #tpu.dot_dimension_numbers<[1], [0], [0], [1], [0, 0, 1, 1], [], []>} : vector<1x64xbf16>, vector<64x64xbf16>, vector<1x64xf32> -> vector<1x64xf32>
    %852 = arith.addf %846, %851 : vector<1x64xf32>
    %853 = vector.extract_strided_slice %732 {offsets = [0, 0], sizes = [1, 64], strides = [1, 1]} : vector<3x64xf32> to vector<1x64xf32>
    %854 = arith.truncf %853 : vector<1x64xf32> to vector<1x64xbf16>
    %c3_808 = arith.constant 3 : index
    %c0_809 = arith.constant 0 : index
    %c0_810 = arith.constant 0 : index
    %855 = vector.load %arg4[%c3_808, %c0_809, %c0_810] : memref<9x64x64xbf16, #tpu.memory_space<vmem>>, vector<1x64x64xbf16>
    %856 = vector.shape_cast %855 : vector<1x64x64xbf16> to vector<64x64xbf16>
    %cst_811 = arith.constant dense<0.000000e+00> : vector<1x64xf32>
    %857 = tpu.matmul %854, %856, %cst_811 {dimension_numbers = #tpu.dot_dimension_numbers<[1], [0], [0], [1], [0, 0, 1, 1], [], []>} : vector<1x64xbf16>, vector<64x64xbf16>, vector<1x64xf32> -> vector<1x64xf32>
    %858 = arith.addf %852, %857 : vector<1x64xf32>
    %859 = vector.extract_strided_slice %732 {offsets = [1, 0], sizes = [1, 64], strides = [1, 1]} : vector<3x64xf32> to vector<1x64xf32>
    %860 = arith.truncf %859 : vector<1x64xf32> to vector<1x64xbf16>
    %c4_812 = arith.constant 4 : index
    %c0_813 = arith.constant 0 : index
    %c0_814 = arith.constant 0 : index
    %861 = vector.load %arg4[%c4_812, %c0_813, %c0_814] : memref<9x64x64xbf16, #tpu.memory_space<vmem>>, vector<1x64x64xbf16>
    %862 = vector.shape_cast %861 : vector<1x64x64xbf16> to vector<64x64xbf16>
    %cst_815 = arith.constant dense<0.000000e+00> : vector<1x64xf32>
    %863 = tpu.matmul %860, %862, %cst_815 {dimension_numbers = #tpu.dot_dimension_numbers<[1], [0], [0], [1], [0, 0, 1, 1], [], []>} : vector<1x64xbf16>, vector<64x64xbf16>, vector<1x64xf32> -> vector<1x64xf32>
    %864 = arith.addf %858, %863 : vector<1x64xf32>
    %865 = vector.extract_strided_slice %732 {offsets = [2, 0], sizes = [1, 64], strides = [1, 1]} : vector<3x64xf32> to vector<1x64xf32>
    %866 = arith.truncf %865 : vector<1x64xf32> to vector<1x64xbf16>
    %c5_816 = arith.constant 5 : index
    %c0_817 = arith.constant 0 : index
    %c0_818 = arith.constant 0 : index
    %867 = vector.load %arg4[%c5_816, %c0_817, %c0_818] : memref<9x64x64xbf16, #tpu.memory_space<vmem>>, vector<1x64x64xbf16>
    %868 = vector.shape_cast %867 : vector<1x64x64xbf16> to vector<64x64xbf16>
    %cst_819 = arith.constant dense<0.000000e+00> : vector<1x64xf32>
    %869 = tpu.matmul %866, %868, %cst_819 {dimension_numbers = #tpu.dot_dimension_numbers<[1], [0], [0], [1], [0, 0, 1, 1], [], []>} : vector<1x64xbf16>, vector<64x64xbf16>, vector<1x64xf32> -> vector<1x64xf32>
    %870 = arith.addf %864, %869 : vector<1x64xf32>
    %871 = vector.extract_strided_slice %833 {offsets = [0, 0], sizes = [1, 64], strides = [1, 1]} : vector<3x64xf32> to vector<1x64xf32>
    %872 = arith.truncf %871 : vector<1x64xf32> to vector<1x64xbf16>
    %c6_820 = arith.constant 6 : index
    %c0_821 = arith.constant 0 : index
    %c0_822 = arith.constant 0 : index
    %873 = vector.load %arg4[%c6_820, %c0_821, %c0_822] : memref<9x64x64xbf16, #tpu.memory_space<vmem>>, vector<1x64x64xbf16>
    %874 = vector.shape_cast %873 : vector<1x64x64xbf16> to vector<64x64xbf16>
    %cst_823 = arith.constant dense<0.000000e+00> : vector<1x64xf32>
    %875 = tpu.matmul %872, %874, %cst_823 {dimension_numbers = #tpu.dot_dimension_numbers<[1], [0], [0], [1], [0, 0, 1, 1], [], []>} : vector<1x64xbf16>, vector<64x64xbf16>, vector<1x64xf32> -> vector<1x64xf32>
    %876 = arith.addf %870, %875 : vector<1x64xf32>
    %877 = vector.extract_strided_slice %833 {offsets = [1, 0], sizes = [1, 64], strides = [1, 1]} : vector<3x64xf32> to vector<1x64xf32>
    %878 = arith.truncf %877 : vector<1x64xf32> to vector<1x64xbf16>
    %c7_824 = arith.constant 7 : index
    %c0_825 = arith.constant 0 : index
    %c0_826 = arith.constant 0 : index
    %879 = vector.load %arg4[%c7_824, %c0_825, %c0_826] : memref<9x64x64xbf16, #tpu.memory_space<vmem>>, vector<1x64x64xbf16>
    %880 = vector.shape_cast %879 : vector<1x64x64xbf16> to vector<64x64xbf16>
    %cst_827 = arith.constant dense<0.000000e+00> : vector<1x64xf32>
    %881 = tpu.matmul %878, %880, %cst_827 {dimension_numbers = #tpu.dot_dimension_numbers<[1], [0], [0], [1], [0, 0, 1, 1], [], []>} : vector<1x64xbf16>, vector<64x64xbf16>, vector<1x64xf32> -> vector<1x64xf32>
    %882 = arith.addf %876, %881 : vector<1x64xf32>
    %883 = vector.extract_strided_slice %833 {offsets = [2, 0], sizes = [1, 64], strides = [1, 1]} : vector<3x64xf32> to vector<1x64xf32>
    %884 = arith.truncf %883 : vector<1x64xf32> to vector<1x64xbf16>
    %c8_828 = arith.constant 8 : index
    %c0_829 = arith.constant 0 : index
    %c0_830 = arith.constant 0 : index
    %885 = vector.load %arg4[%c8_828, %c0_829, %c0_830] : memref<9x64x64xbf16, #tpu.memory_space<vmem>>, vector<1x64x64xbf16>
    %886 = vector.shape_cast %885 : vector<1x64x64xbf16> to vector<64x64xbf16>
    %cst_831 = arith.constant dense<0.000000e+00> : vector<1x64xf32>
    %887 = tpu.matmul %884, %886, %cst_831 {dimension_numbers = #tpu.dot_dimension_numbers<[1], [0], [0], [1], [0, 0, 1, 1], [], []>} : vector<1x64xbf16>, vector<64x64xbf16>, vector<1x64xf32> -> vector<1x64xf32>
    %888 = arith.addf %882, %887 : vector<1x64xf32>
    %889 = arith.addf %888, %2 : vector<1x64xf32>
    %cst_832 = arith.constant 0.000000e+00 : f32
    %890 = vector.broadcast %cst_832 : f32 to vector<1x64xf32>
    %891 = arith.maximumf %889, %890 : vector<1x64xf32>
    %892 = arith.truncf %891 : vector<1x64xf32> to vector<1x64xbf16>
    %c0_833 = arith.constant 0 : index
    %c0_834 = arith.constant 0 : index
    %893 = vector.load %arg5[%c0_833, %c0_834] : memref<64x512xbf16, #tpu.memory_space<vmem>>, vector<64x512xbf16>
    %cst_835 = arith.constant dense<0.000000e+00> : vector<1x512xf32>
    %894 = tpu.matmul %892, %893, %cst_835 {dimension_numbers = #tpu.dot_dimension_numbers<[1], [0], [0], [1], [0, 0, 1, 1], [], []>} : vector<1x64xbf16>, vector<64x512xbf16>, vector<1x512xf32> -> vector<1x512xf32>
    %c0_836 = arith.constant 0 : index
    %c0_837 = arith.constant 0 : index
    %895 = vector.load %arg10[%c0_836, %c0_837] : memref<1x512xf32, #tpu.memory_space<vmem>>, vector<1x512xf32>
    %896 = arith.addf %894, %895 : vector<1x512xf32>
    %cst_838 = arith.constant 0.000000e+00 : f32
    %897 = vector.broadcast %cst_838 : f32 to vector<1x512xf32>
    %898 = arith.maximumf %896, %897 : vector<1x512xf32>
    %899 = arith.truncf %898 : vector<1x512xf32> to vector<1x512xbf16>
    %c0_839 = arith.constant 0 : index
    %c0_840 = arith.constant 0 : index
    %900 = vector.load %arg6[%c0_839, %c0_840] : memref<512x128xbf16, #tpu.memory_space<vmem>>, vector<512x128xbf16>
    %cst_841 = arith.constant dense<0.000000e+00> : vector<1x128xf32>
    %901 = tpu.matmul %899, %900, %cst_841 {dimension_numbers = #tpu.dot_dimension_numbers<[1], [0], [0], [1], [0, 0, 1, 1], [], []>} : vector<1x512xbf16>, vector<512x128xbf16>, vector<1x128xf32> -> vector<1x128xf32>
    %c0_842 = arith.constant 0 : index
    %c0_843 = arith.constant 0 : index
    %902 = vector.load %arg11[%c0_842, %c0_843] : memref<1x128xf32, #tpu.memory_space<vmem>>, vector<1x128xf32>
    %903 = arith.addf %901, %902 : vector<1x128xf32>
    %c0_844 = arith.constant 0 : index
    %c0_845 = arith.constant 0 : index
    %c0_846 = arith.constant 0 : index
    %904 = vector.load %arg12[%c0_844, %c0_845, %c0_846] : memref<1x1x128xf32, #tpu.memory_space<vmem>>, vector<1x1x128xf32>
    %905 = vector.shape_cast %904 : vector<1x1x128xf32> to vector<1x128xf32>
    %906 = vector.shape_cast %903 : vector<1x128xf32> to vector<1x1x128xf32>
    tpu.vector_store %arg12[%c0_844, %c0_845, %c0_846], %906 {strides = array<i32>} : memref<1x1x128xf32, #tpu.memory_space<vmem>>, vector<1x1x128xf32>,
    return
  }
  func.func @transform_0(%arg0: i32) -> (i32, i32, i32, i32, i32) {
    %c0_i32 = arith.constant 0 : i32
    %c0_i32_0 = arith.constant 0 : i32
    %c0_i32_1 = arith.constant 0 : i32
    %c0_i32_2 = arith.constant 0 : i32
    %c0_i32_3 = arith.constant 0 : i32
    return %c0_i32, %arg0, %c0_i32_0, %c0_i32_1, %c0_i32_2 : i32, i32, i32, i32, i32
  }
  func.func @transform_1(%arg0: i32) -> (i32, i32, i32) {
    %c0_i32 = arith.constant 0 : i32
    %c0_i32_0 = arith.constant 0 : i32
    %c0_i32_1 = arith.constant 0 : i32
    %c0_i32_2 = arith.constant 0 : i32
    return %c0_i32, %c0_i32_0, %c0_i32_1 : i32, i32, i32
  }
  func.func @transform_2(%arg0: i32) -> (i32, i32, i32) {
    %c0_i32 = arith.constant 0 : i32
    %c0_i32_0 = arith.constant 0 : i32
    %c0_i32_1 = arith.constant 0 : i32
    %c0_i32_2 = arith.constant 0 : i32
    return %c0_i32, %c0_i32_0, %c0_i32_1 : i32, i32, i32
  }
  func.func @transform_3(%arg0: i32) -> (i32, i32, i32) {
    %c0_i32 = arith.constant 0 : i32
    %c0_i32_0 = arith.constant 0 : i32
    %c0_i32_1 = arith.constant 0 : i32
    %c0_i32_2 = arith.constant 0 : i32
    return %c0_i32, %c0_i32_0, %c0_i32_1 : i32, i32, i32
  }
  func.func @transform_4(%arg0: i32) -> (i32, i32) {
    %c0_i32 = arith.constant 0 : i32
    %c0_i32_0 = arith.constant 0 : i32
    %c0_i32_1 = arith.constant 0 : i32
    return %c0_i32, %c0_i32_0 : i32, i32
  }
  func.func @transform_5(%arg0: i32) -> (i32, i32) {
    %c0_i32 = arith.constant 0 : i32
    %c0_i32_0 = arith.constant 0 : i32
    %c0_i32_1 = arith.constant 0 : i32
    return %c0_i32, %c0_i32_0 : i32, i32
  }
  func.func @transform_6(%arg0: i32) -> (i32, i32) {
    %c0_i32 = arith.constant 0 : i32
    %c0_i32_0 = arith.constant 0 : i32
    %c0_i32_1 = arith.constant 0 : i32
    return %c0_i32, %c0_i32_0 : i32, i32
  }
  func.func @transform_7(%arg0: i32) -> (i32, i32) {
    %c0_i32 = arith.constant 0 : i32
    %c0_i32_0 = arith.constant 0 : i32
    %c0_i32_1 = arith.constant 0 : i32
    return %c0_i32, %c0_i32_0 : i32, i32
  }
  func.func @transform_8(%arg0: i32) -> (i32, i32) {
    %c0_i32 = arith.constant 0 : i32
    %c0_i32_0 = arith.constant 0 : i32
    %c0_i32_1 = arith.constant 0 : i32
    return %c0_i32, %c0_i32_0 : i32, i32
  }
  func.func @transform_9(%arg0: i32) -> (i32, i32) {
    %c0_i32 = arith.constant 0 : i32
    %c0_i32_0 = arith.constant 0 : i32
    %c0_i32_1 = arith.constant 0 : i32
    return %c0_i32, %c0_i32_0 : i32, i32
  }
  func.func @transform_10(%arg0: i32) -> (i32, i32) {
    %c0_i32 = arith.constant 0 : i32
    %c0_i32_0 = arith.constant 0 : i32
    %c0_i32_1 = arith.constant 0 : i32
    return %c0_i32, %c0_i32_0 : i32, i32
  }
  func.func @transform_11(%arg0: i32) -> (i32, i32, i32) {
    %c0_i32 = arith.constant 0 : i32
    %c0_i32_0 = arith.constant 0 : i32
    %c0_i32_1 = arith.constant 0 : i32
    return %arg0, %c0_i32, %c0_i32_0 : i32, i32, i32
  }
}

</mosaic_0001>

<llo_original>
// kernel: qnetwork_forward.1
$region0: #{qnetwork_forward.1}
  #allocation0 [shape = 'u32[]', space=smem, size = 0x4, offset = 0x4, fixed_abs, tag = 'smem constant byte address 0x4 - core index']
  #allocation1 [shape = 'u32[144,128]{1,0:T(1,128)}', space=vmem, size = 0x12000, scoped, tag = 'internal scratch']
  %s0 = inlined_call_operand.vmem [shape: f32[4,2,5,5,64], index: 0, kind: input, shape index: {}]
  %s1 = inlined_call_operand.vmem [shape: bf16[4,64,32], index: 1, kind: input, shape index: {}]
  %s2 = inlined_call_operand.vmem [shape: bf16[16,32,64], index: 2, kind: input, shape index: {}]
  %s3 = inlined_call_operand.vmem [shape: bf16[9,64,64], index: 3, kind: input, shape index: {}]
  %s4 = inlined_call_operand.vmem [shape: bf16[64,512], index: 4, kind: input, shape index: {}]
  %s5 = inlined_call_operand.vmem [shape: bf16[512,128], index: 5, kind: input, shape index: {}]
  %s6 = inlined_call_operand.vmem [shape: f32[1,32], index: 6, kind: input, shape index: {}]
  %s7 = inlined_call_operand.vmem [shape: f32[1,64], index: 7, kind: input, shape index: {}]
  %s8 = inlined_call_operand.vmem [shape: f32[1,64], index: 8, kind: input, shape index: {}]
  %s9 = inlined_call_operand.vmem [shape: f32[1,512], index: 9, kind: input, shape index: {}]
  %s10 = inlined_call_operand.vmem [shape: f32[1,128], index: 10, kind: input, shape index: {}]
  %s11 = inlined_call_operand.hbm [shape: f32[2,1,128], index: 11, kind: output, shape index: {}]
  %s12 = sld [smem:[#allocation0]]
  $region115: #{qnetwork_forward.1} parent=0
    _
  %s14 = ssub.s32 1, %s12
  %s15 = scalar_select 0, %s14, %s12
  $region1: #{qnetwork_forward.1} parent=0
    #allocation2 [shape = 'u8[163840]{0}', space=vmem, size = 0x28000, scoped, tag = 'input window, operand 0']
    #allocation3 [shape = 'u8[1024]{0}', space=vmem, size = 0x400, scoped, tag = 'output window, operand 0']
    #allocation4 [shape = 's32[2]{0}', space=sflag, size = 0x8, scoped, tag = 'scoped memory for qnetwork_forward.1']
    %16 = vsyncpa [#allocation4], 0
    %s17 = scalar_lea.sflag [#allocation4], 1
    %18 = vsyncpa %s17, 0
    loop: start=0, step=1, limit=4
    $region2: #{qnetwork_forward.1} parent=1 // loop_pre_header
      _
    $region3: #{qnetwork_forward.1} parent=1 // loop_header
      %s20 = sphi 0, %s24
      %p21 = scmp.ge.s32.totalorder %s20, 4
      %s30 = sphi 0, %s32
      %s33 = sphi 0, %s30
      %s34 = sphi 0, %s33
      %s50 = sphi 0, %s34
      %s54 = sphi 0, %s54
      %s56 = sphi 0, %s54
      %s57 = sphi 0, %s56
      %s71 = sphi 0, %s57
      %s75 = sphi 0, %s75
      %s77 = sphi 0, %s75
      %s78 = sphi 0, %s77
      %s92 = sphi 0, %s78
      %s96 = sphi 0, %s96
      %s98 = sphi 0, %s96
      %s99 = sphi 0, %s98
      %s113 = sphi 0, %s99
      %s117 = sphi 0, %s117
      %s119 = sphi 0, %s117
      %s120 = sphi 0, %s119
      %s134 = sphi 0, %s120
      %s138 = sphi 0, %s138
      %s140 = sphi 0, %s138
      %s141 = sphi 0, %s140
      %s155 = sphi 0, %s141
      %s159 = sphi 0, %s159
      %s161 = sphi 0, %s159
      %s162 = sphi 0, %s161
      %s176 = sphi 0, %s162
      %s180 = sphi 0, %s180
      %s182 = sphi 0, %s180
      %s183 = sphi 0, %s182
      %s197 = sphi 0, %s183
      %s201 = sphi 0, %s201
      %s203 = sphi 0, %s201
      %s204 = sphi 0, %s203
      %s218 = sphi 0, %s204
      %s222 = sphi 0, %s222
      %s224 = sphi 0, %s222
      %s225 = sphi 0, %s224
      %s239 = sphi 0, %s225
      %s243 = sphi 0, %s243
      %s245 = sphi 0, %s243
      %s246 = sphi 0, %s245
      %s260 = sphi 0, %s246
      %s266 = sphi 0, %s268
      %s269 = sphi 0, %s266
      %s270 = sphi 0, %s269
      %s286 = sphi 0, %s270
    $region4: #{qnetwork_forward.1} parent=1 // loop_header_branch
      %23 = sbr.rel (%p21) target = $region8
    $region5: #{qnetwork_forward.1} parent=1 // loop_body
      %s25 = ssub.s32 %s20, 1
      %s26 = ssub.s32 %s20, 2
      %s27 = sadd.s32 %s20, 1
      %s28 = ssub.s32 %s20, %s27
      %p29 = scmp.eq.s32.totalorder %s28, 0
      %s31 = sadd.s32 %s30, 1
      %s32 = scalar_select %p29, %s30, %s31
      %p35 = pneg %p29
      %p36 = scmp.eq.s32.totalorder %s20, 1
      %p37 = por %p35, %p36
      %p38 = scmp.ne.s32.totalorder %s30, %s33
      %p39 = scmp.eq.s32.totalorder %s20, 0
      %p40 = por %p38, %p39
      %p41 = scmp.ne.s32.totalorder %s30, %s33
      %p42 = scmp.eq.s32.totalorder %s25, 1
      %p43 = por %p41, %p42
      %p44 = scmp.ne.s32.totalorder %s33, %s34
      %p45 = scmp.eq.s32.totalorder %s25, 0
      %p46 = por %p44, %p45
      %p47 = scmp.ne.s32.totalorder %s33, %s34
      %p48 = scmp.eq.s32.totalorder %s26, 1
      %p49 = por %p47, %p48
      %p51 = scmp.ne.s32.totalorder %s34, %s50
      %p52 = scmp.eq.s32.totalorder %s26, 0
      %p53 = por %p51, %p52
      %s55 = sadd.s32 %s54, 1
      %p58 = scmp.eq.s32.totalorder %s20, 1
      %p59 = scmp.ne.s32.totalorder %s54, %s56
      %p60 = scmp.eq.s32.totalorder %s20, 0
      %p61 = por %p59, %p60
      %p62 = scmp.ne.s32.totalorder %s54, %s56
      %p63 = scmp.eq.s32.totalorder %s25, 1
      %p64 = por %p62, %p63
      %p65 = scmp.ne.s32.totalorder %s56, %s57
      %p66 = scmp.eq.s32.totalorder %s25, 0
      %p67 = por %p65, %p66
      %p68 = scmp.ne.s32.totalorder %s56, %s57
      %p69 = scmp.eq.s32.totalorder %s26, 1
      %p70 = por %p68, %p69
      %p72 = scmp.ne.s32.totalorder %s57, %s71
      %p73 = scmp.eq.s32.totalorder %s26, 0
      %p74 = por %p72, %p73
      %s76 = sadd.s32 %s75, 1
      %p79 = scmp.eq.s32.totalorder %s20, 1
      %p80 = scmp.ne.s32.totalorder %s75, %s77
      %p81 = scmp.eq.s32.totalorder %s20, 0
      %p82 = por %p80, %p81
      %p83 = scmp.ne.s32.totalorder %s75, %s77
      %p84 = scmp.eq.s32.totalorder %s25, 1
      %p85 = por %p83, %p84
      %p86 = scmp.ne.s32.totalorder %s77, %s78
      %p87 = scmp.eq.s32.totalorder %s25, 0
      %p88 = por %p86, %p87
      %p89 = scmp.ne.s32.totalorder %s77, %s78
      %p90 = scmp.eq.s32.totalorder %s26, 1
      %p91 = por %p89, %p90
      %p93 = scmp.ne.s32.totalorder %s78, %s92
      %p94 = scmp.eq.s32.totalorder %s26, 0
      %p95 = por %p93, %p94
      %s97 = sadd.s32 %s96, 1
      %p100 = scmp.eq.s32.totalorder %s20, 1
      %p101 = scmp.ne.s32.totalorder %s96, %s98
      %p102 = scmp.eq.s32.totalorder %s20, 0
      %p103 = por %p101, %p102
      %p104 = scmp.ne.s32.totalorder %s96, %s98
      %p105 = scmp.eq.s32.totalorder %s25, 1
      %p106 = por %p104, %p105
      %p107 = scmp.ne.s32.totalorder %s98, %s99
      %p108 = scmp.eq.s32.totalorder %s25, 0
      %p109 = por %p107, %p108
      %p110 = scmp.ne.s32.totalorder %s98, %s99
      %p111 = scmp.eq.s32.totalorder %s26, 1
      %p112 = por %p110, %p111
      %p114 = scmp.ne.s32.totalorder %s99, %s113
      %p115 = scmp.eq.s32.totalorder %s26, 0
      %p116 = por %p114, %p115
      %s118 = sadd.s32 %s117, 1
      %p121 = scmp.eq.s32.totalorder %s20, 1
      %p122 = scmp.ne.s32.totalorder %s117, %s119
      %p123 = scmp.eq.s32.totalorder %s20, 0
      %p124 = por %p122, %p123
      %p125 = scmp.ne.s32.totalorder %s117, %s119
      %p126 = scmp.eq.s32.totalorder %s25, 1
      %p127 = por %p125, %p126
      %p128 = scmp.ne.s32.totalorder %s119, %s120
      %p129 = scmp.eq.s32.totalorder %s25, 0
      %p130 = por %p128, %p129
      %p131 = scmp.ne.s32.totalorder %s119, %s120
      %p132 = scmp.eq.s32.totalorder %s26, 1
      %p133 = por %p131, %p132
      %p135 = scmp.ne.s32.totalorder %s120, %s134
      %p136 = scmp.eq.s32.totalorder %s26, 0
      %p137 = por %p135, %p136
      %s139 = sadd.s32 %s138, 1
      %p142 = scmp.eq.s32.totalorder %s20, 1
      %p143 = scmp.ne.s32.totalorder %s138, %s140
      %p144 = scmp.eq.s32.totalorder %s20, 0
      %p145 = por %p143, %p144
      %p146 = scmp.ne.s32.totalorder %s138, %s140
      %p147 = scmp.eq.s32.totalorder %s25, 1
      %p148 = por %p146, %p147
      %p149 = scmp.ne.s32.totalorder %s140, %s141
      %p150 = scmp.eq.s32.totalorder %s25, 0
      %p151 = por %p149, %p150
      %p152 = scmp.ne.s32.totalorder %s140, %s141
      %p153 = scmp.eq.s32.totalorder %s26, 1
      %p154 = por %p152, %p153
      %p156 = scmp.ne.s32.totalorder %s141, %s155
      %p157 = scmp.eq.s32.totalorder %s26, 0
      %p158 = por %p156, %p157
      %s160 = sadd.s32 %s159, 1
      %p163 = scmp.eq.s32.totalorder %s20, 1
      %p164 = scmp.ne.s32.totalorder %s159, %s161
      %p165 = scmp.eq.s32.totalorder %s20, 0
      %p166 = por %p164, %p165
      %p167 = scmp.ne.s32.totalorder %s159, %s161
      %p168 = scmp.eq.s32.totalorder %s25, 1
      %p169 = por %p167, %p168
      %p170 = scmp.ne.s32.totalorder %s161, %s162
      %p171 = scmp.eq.s32.totalorder %s25, 0
      %p172 = por %p170, %p171
      %p173 = scmp.ne.s32.totalorder %s161, %s162
      %p174 = scmp.eq.s32.totalorder %s26, 1
      %p175 = por %p173, %p174
      %p177 = scmp.ne.s32.totalorder %s162, %s176
      %p178 = scmp.eq.s32.totalorder %s26, 0
      %p179 = por %p177, %p178
      %s181 = sadd.s32 %s180, 1
      %p184 = scmp.eq.s32.totalorder %s20, 1
      %p185 = scmp.ne.s32.totalorder %s180, %s182
      %p186 = scmp.eq.s32.totalorder %s20, 0
      %p187 = por %p185, %p186
      %p188 = scmp.ne.s32.totalorder %s180, %s182
      %p189 = scmp.eq.s32.totalorder %s25, 1
      %p190 = por %p188, %p189
      %p191 = scmp.ne.s32.totalorder %s182, %s183
      %p192 = scmp.eq.s32.totalorder %s25, 0
      %p193 = por %p191, %p192
      %p194 = scmp.ne.s32.totalorder %s182, %s183
      %p195 = scmp.eq.s32.totalorder %s26, 1
      %p196 = por %p194, %p195
      %p198 = scmp.ne.s32.totalorder %s183, %s197
      %p199 = scmp.eq.s32.totalorder %s26, 0
      %p200 = por %p198, %p199
      %s202 = sadd.s32 %s201, 1
      %p205 = scmp.eq.s32.totalorder %s20, 1
      %p206 = scmp.ne.s32.totalorder %s201, %s203
      %p207 = scmp.eq.s32.totalorder %s20, 0
      %p208 = por %p206, %p207
      %p209 = scmp.ne.s32.totalorder %s201, %s203
      %p210 = scmp.eq.s32.totalorder %s25, 1
      %p211 = por %p209, %p210
      %p212 = scmp.ne.s32.totalorder %s203, %s204
      %p213 = scmp.eq.s32.totalorder %s25, 0
      %p214 = por %p212, %p213
      %p215 = scmp.ne.s32.totalorder %s203, %s204
      %p216 = scmp.eq.s32.totalorder %s26, 1
      %p217 = por %p215, %p216
      %p219 = scmp.ne.s32.totalorder %s204, %s218
      %p220 = scmp.eq.s32.totalorder %s26, 0
      %p221 = por %p219, %p220
      %s223 = sadd.s32 %s222, 1
      %p226 = scmp.eq.s32.totalorder %s20, 1
      %p227 = scmp.ne.s32.totalorder %s222, %s224
      %p228 = scmp.eq.s32.totalorder %s20, 0
      %p229 = por %p227, %p228
      %p230 = scmp.ne.s32.totalorder %s222, %s224
      %p231 = scmp.eq.s32.totalorder %s25, 1
      %p232 = por %p230, %p231
      %p233 = scmp.ne.s32.totalorder %s224, %s225
      %p234 = scmp.eq.s32.totalorder %s25, 0
      %p235 = por %p233, %p234
      %p236 = scmp.ne.s32.totalorder %s224, %s225
      %p237 = scmp.eq.s32.totalorder %s26, 1
      %p238 = por %p236, %p237
      %p240 = scmp.ne.s32.totalorder %s225, %s239
      %p241 = scmp.eq.s32.totalorder %s26, 0
      %p242 = por %p240, %p241
      %s244 = sadd.s32 %s243, 1
      %p247 = scmp.eq.s32.totalorder %s20, 1
      %p248 = scmp.ne.s32.totalorder %s243, %s245
      %p249 = scmp.eq.s32.totalorder %s20, 0
      %p250 = por %p248, %p249
      %p251 = scmp.ne.s32.totalorder %s243, %s245
      %p252 = scmp.eq.s32.totalorder %s25, 1
      %p253 = por %p251, %p252
      %p254 = scmp.ne.s32.totalorder %s245, %s246
      %p255 = scmp.eq.s32.totalorder %s25, 0
      %p256 = por %p254, %p255
      %p257 = scmp.ne.s32.totalorder %s245, %s246
      %p258 = scmp.eq.s32.totalorder %s26, 1
      %p259 = por %p257, %p258
      %p261 = scmp.ne.s32.totalorder %s246, %s260
      %p262 = scmp.eq.s32.totalorder %s26, 0
      %p263 = por %p261, %p262
      %s264 = ssub.s32 %s20, %s27
      %p265 = scmp.eq.s32.totalorder %s264, 0
      %s267 = sadd.s32 %s266, 1
      %s268 = scalar_select %p265, %s266, %s267
      %p271 = pneg %p265
      %p272 = scmp.eq.s32.totalorder %s20, 1
      %p273 = por %p271, %p272
      %p274 = scmp.ne.s32.totalorder %s266, %s269
      %p275 = scmp.eq.s32.totalorder %s20, 0
      %p276 = por %p274, %p275
      %p277 = scmp.ne.s32.totalorder %s266, %s269
      %p278 = scmp.eq.s32.totalorder %s25, 1
      %p279 = por %p277, %p278
      %p280 = scmp.ne.s32.totalorder %s269, %s270
      %p281 = scmp.eq.s32.totalorder %s25, 0
      %p282 = por %p280, %p281
      %p283 = scmp.ne.s32.totalorder %s269, %s270
      %p284 = scmp.eq.s32.totalorder %s26, 1
      %p285 = por %p283, %p284
      %p287 = scmp.ne.s32.totalorder %s270, %s286
      %p288 = scmp.eq.s32.totalorder %s26, 0
      %p289 = por %p287, %p288
      %p290 = scmp.le.s32.totalorder 1, %s20
      %p291 = scmp.lt.s32.totalorder %s20, 3
      %p292 = pnand %p290, %p291
      %p293 = pneg %p292
      // Predicated region
      $region9: #{qnetwork_forward.1} parent=5 // pred_check
        _
      $region10: #{qnetwork_forward.1} parent=5 // pred_check_branch
        %295 = sbr.rel (%p292) target = $region12
      $region11: #{qnetwork_forward.1} parent=5 // pred_region
        %s296 = ssub.s32 %s20, 1
        // Predicated region
        $region13: #{qnetwork_forward.1} parent=11 // pred_check
          %p297 = pneg %p67
        $region14: #{qnetwork_forward.1} parent=11 // pred_check_branch
          %299 = sbr.rel (%p297) target = $region16
        $region15: #{qnetwork_forward.1} parent=11 // pred_region
          _
        $region16: #{qnetwork_forward.1} parent=11 // pred_fallthru
          _
        // Predicated region
        $region17: #{qnetwork_forward.1} parent=11 // pred_check
          %p300 = pneg %p88
        $region18: #{qnetwork_forward.1} parent=11 // pred_check_branch
          %302 = sbr.rel (%p300) target = $region20
        $region19: #{qnetwork_forward.1} parent=11 // pred_region
          _
        $region20: #{qnetwork_forward.1} parent=11 // pred_fallthru
          _
        // Predicated region
        $region21: #{qnetwork_forward.1} parent=11 // pred_check
          %p303 = pneg %p109
        $region22: #{qnetwork_forward.1} parent=11 // pred_check_branch
          %305 = sbr.rel (%p303) target = $region24
        $region23: #{qnetwork_forward.1} parent=11 // pred_region
          _
        $region24: #{qnetwork_forward.1} parent=11 // pred_fallthru
          _
        // Predicated region
        $region25: #{qnetwork_forward.1} parent=11 // pred_check
          %p306 = pneg %p130
        $region26: #{qnetwork_forward.1} parent=11 // pred_check_branch
          %308 = sbr.rel (%p306) target = $region28
        $region27: #{qnetwork_forward.1} parent=11 // pred_region
          _
        $region28: #{qnetwork_forward.1} parent=11 // pred_fallthru
          _
        // Predicated region
        $region29: #{qnetwork_forward.1} parent=11 // pred_check
          %p309 = pneg %p151
        $region30: #{qnetwork_forward.1} parent=11 // pred_check_branch
          %311 = sbr.rel (%p309) target = $region32
        $region31: #{qnetwork_forward.1} parent=11 // pred_region
          _
        $region32: #{qnetwork_forward.1} parent=11 // pred_fallthru
          _
        // Predicated region
        $region33: #{qnetwork_forward.1} parent=11 // pred_check
          %p312 = pneg %p172
        $region34: #{qnetwork_forward.1} parent=11 // pred_check_branch
          %314 = sbr.rel (%p312) target = $region36
        $region35: #{qnetwork_forward.1} parent=11 // pred_region
          _
        $region36: #{qnetwork_forward.1} parent=11 // pred_fallthru
          _
        // Predicated region
        $region37: #{qnetwork_forward.1} parent=11 // pred_check
          %p315 = pneg %p193
        $region38: #{qnetwork_forward.1} parent=11 // pred_check_branch
          %317 = sbr.rel (%p315) target = $region40
        $region39: #{qnetwork_forward.1} parent=11 // pred_region
          _
        $region40: #{qnetwork_forward.1} parent=11 // pred_fallthru
          _
        // Predicated region
        $region41: #{qnetwork_forward.1} parent=11 // pred_check
          %p318 = pneg %p214
        $region42: #{qnetwork_forward.1} parent=11 // pred_check_branch
          %320 = sbr.rel (%p318) target = $region44
        $region43: #{qnetwork_forward.1} parent=11 // pred_region
          _
        $region44: #{qnetwork_forward.1} parent=11 // pred_fallthru
          _
        // Predicated region
        $region45: #{qnetwork_forward.1} parent=11 // pred_check
          %p321 = pneg %p235
        $region46: #{qnetwork_forward.1} parent=11 // pred_check_branch
          %323 = sbr.rel (%p321) target = $region48
        $region47: #{qnetwork_forward.1} parent=11 // pred_region
          _
        $region48: #{qnetwork_forward.1} parent=11 // pred_fallthru
          _
        // Predicated region
        $region49: #{qnetwork_forward.1} parent=11 // pred_check
          %p324 = pneg %p256
        $region50: #{qnetwork_forward.1} parent=11 // pred_check_branch
          %326 = sbr.rel (%p324) target = $region52
        $region51: #{qnetwork_forward.1} parent=11 // pred_region
          _
        $region52: #{qnetwork_forward.1} parent=11 // pred_fallthru
          _
      $region12: #{qnetwork_forward.1} parent=5 // pred_fallthru
        _
      %p327 = scmp.lt.s32.totalorder %s20, 2
      // Predicated region
      $region53: #{qnetwork_forward.1} parent=5 // pred_check
        %p328 = pneg %p327
      $region54: #{qnetwork_forward.1} parent=5 // pred_check_branch
        %330 = sbr.rel (%p328) target = $region56
      $region55: #{qnetwork_forward.1} parent=5 // pred_region
        // Predicated region
        $region57: #{qnetwork_forward.1} parent=55 // pred_check
          %p331 = pneg %p40
        $region58: #{qnetwork_forward.1} parent=55 // pred_check_branch
          %333 = sbr.rel (%p331) target = $region60
        $region59: #{qnetwork_forward.1} parent=55 // pred_region
          %s334 = sand.u32 %s30, 1
          %s335 = sand.u32 %s30, 1
          %s336 = smul.addr %s335, 160
          %s337 = scalar_lea.vmem [#allocation2], %s336
          %s338 = smul.addr %s20, 5
          %s339 = smul.addr %s338, 8
          %s340 = scalar_lea.vmem %s0, %s339
          // Predicated region
          $region61: #{qnetwork_forward.1} parent=59 // pred_check
            _
          $region62: #{qnetwork_forward.1} parent=59 // pred_check_branch
            %342 = sbr.rel (0) target = $region64
          $region63: #{qnetwork_forward.1} parent=59 // pred_region
            // Predicated region
            $region65: #{qnetwork_forward.1} parent=63 // pred_check
              _
            $region66: #{qnetwork_forward.1} parent=63 // pred_check_branch
              %344 = sbr.rel (0) target = $region68
            $region67: #{qnetwork_forward.1} parent=63 // pred_region
              // Predicated region
              $region80: #{qnetwork_forward.1} parent=67 // pred_check
                _
              $region81: #{qnetwork_forward.1} parent=67 // pred_check_branch
                %398 = sbr.rel (0) target = $region83
              $region82: #{qnetwork_forward.1} parent=67 // pred_region
                loop: start=0, step=1, limit=1
                $region84: #{qnetwork_forward.1} parent=82 // loop_pre_header
                  _
                $region85: #{qnetwork_forward.1} parent=82 // loop_header
                  %s400 = sphi 0, %s404
                  %p401 = scmp.ge.s32.totalorder %s400, 1
                  %s405 = sphi %s340, %s340
                  %s406 = sphi %s337, %s337
                $region86: #{qnetwork_forward.1} parent=82 // loop_header_branch
                  %403 = sbr.rel (%p401) target = $region90
                $region87: #{qnetwork_forward.1} parent=82 // loop_body
                  %v407 = vld [vmem:[%s405] sm:$0xff]
                  %408 = vst [vmem:[%s406] sm:$0xff] %v407
                  %v409 = vld [vmem:[%s405 + $0x8] sm:$0xff]
                  %410 = vst [vmem:[%s406 + $0x8] sm:$0xff] %v409
                  %v411 = vld [vmem:[%s405 + $0x10] sm:$0xff]
                  %412 = vst [vmem:[%s406 + $0x10] sm:$0xff] %v411
                  %v413 = vld [vmem:[%s405 + $0x18] sm:$0xff]
                  %414 = vst [vmem:[%s406 + $0x18] sm:$0xff] %v413
                  %v415 = vld [vmem:[%s405 + $0x20] sm:$0xff]
                  %416 = vst [vmem:[%s406 + $0x20] sm:$0xff] %v415
                  %v417 = vld [vmem:[%s405 + $0x50] sm:$0xff]
                  %418 = vst [vmem:[%s406 + $0x28] sm:$0xff] %v417
                  %v419 = vld [vmem:[%s405 + $0x58] sm:$0xff]
                  %420 = vst [vmem:[%s406 + $0x30] sm:$0xff] %v419
                  %v421 = vld [vmem:[%s405 + $0x60] sm:$0xff]
                  %422 = vst [vmem:[%s406 + $0x38] sm:$0xff] %v421
                  %v423 = vld [vmem:[%s405 + $0x68] sm:$0xff]
                  %424 = vst [vmem:[%s406 + $0x40] sm:$0xff] %v423
                  %v425 = vld [vmem:[%s405 + $0x70] sm:$0xff]
                  %426 = vst [vmem:[%s406 + $0x48] sm:$0xff] %v425
                  %v427 = vld [vmem:[%s405 + $0xa0] sm:$0xff]
                  %428 = vst [vmem:[%s406 + $0x50] sm:$0xff] %v427
                  %v429 = vld [vmem:[%s405 + $0xa8] sm:$0xff]
                  %430 = vst [vmem:[%s406 + $0x58] sm:$0xff] %v429
                  %v431 = vld [vmem:[%s405 + $0xb0] sm:$0xff]
                  %432 = vst [vmem:[%s406 + $0x60] sm:$0xff] %v431
                  %v433 = vld [vmem:[%s405 + $0xb8] sm:$0xff]
                  %434 = vst [vmem:[%s406 + $0x68] sm:$0xff] %v433
                  %v435 = vld [vmem:[%s405 + $0xc0] sm:$0xff]
                  %436 = vst [vmem:[%s406 + $0x70] sm:$0xff] %v435
                  %v437 = vld [vmem:[%s405 + $0xf0] sm:$0xff]
                  %438 = vst [vmem:[%s406 + $0x78] sm:$0xff] %v437
                  %v439 = vld [vmem:[%s405 + $0xf8] sm:$0xff]
                  %440 = vst [vmem:[%s406 + $0x80] sm:$0xff] %v439
                  %v441 = vld [vmem:[%s405 + $0x100] sm:$0xff]
                  %442 = vst [vmem:[%s406 + $0x88] sm:$0xff] %v441
                  %v443 = vld [vmem:[%s405 + $0x108] sm:$0xff]
                  %444 = vst [vmem:[%s406 + $0x90] sm:$0xff] %v443
                  %v445 = vld [vmem:[%s405 + $0x110] sm:$0xff]
                  %446 = vst [vmem:[%s406 + $0x98] sm:$0xff] %v445
                $region88: #{qnetwork_forward.1} parent=82 // loop_footer
                  %s404 = sadd.s32 1, %s400
                $region89: #{qnetwork_forward.1} parent=82 // loop_footer_branch
                  %399 = sbr.rel target = $region85
                $region90: #{qnetwork_forward.1} parent=82 // loop_exit
                  _
              $region83: #{qnetwork_forward.1} parent=67 // pred_fallthru
                _
              // Predicated region
              $region91: #{qnetwork_forward.1} parent=67 // pred_check
                _
              $region92: #{qnetwork_forward.1} parent=67 // pred_check_branch
                %448 = sbr.rel target = $region94
              $region93: #{qnetwork_forward.1} parent=67 // pred_region
                _
              $region94: #{qnetwork_forward.1} parent=67 // pred_fallthru
                _
            $region68: #{qnetwork_forward.1} parent=63 // pred_fallthru
              _
            // Predicated region
            $region69: #{qnetwork_forward.1} parent=63 // pred_check
              _
            $region70: #{qnetwork_forward.1} parent=63 // pred_check_branch
              %346 = sbr.rel target = $region72
            $region71: #{qnetwork_forward.1} parent=63 // pred_region
              %s348 = ssub.s32 256, 1
              loop: start=0, step=1, limit=1
              $region73: #{qnetwork_forward.1} parent=71 // loop_pre_header
                _
              $region74: #{qnetwork_forward.1} parent=71 // loop_header
                %s350 = sphi 0, %s354
                %p351 = scmp.ge.s32.totalorder %s350, 1
                %s355 = sphi %s340, %s340
                %s356 = sphi %s337, %s337
              $region75: #{qnetwork_forward.1} parent=71 // loop_header_branch
                %353 = sbr.rel (%p351) target = $region79
              $region76: #{qnetwork_forward.1} parent=71 // loop_body
                %v357 = vld [vmem:[%s355] sm:%s348]
                %358 = vst [vmem:[%s356] sm:%s348] %v357
                %v359 = vld [vmem:[%s355 + $0x8] sm:%s348]
                %360 = vst [vmem:[%s356 + $0x8] sm:%s348] %v359
                %v361 = vld [vmem:[%s355 + $0x10] sm:%s348]
                %362 = vst [vmem:[%s356 + $0x10] sm:%s348] %v361
                %v363 = vld [vmem:[%s355 + $0x18] sm:%s348]
                %364 = vst [vmem:[%s356 + $0x18] sm:%s348] %v363
                %v365 = vld [vmem:[%s355 + $0x20] sm:%s348]
                %366 = vst [vmem:[%s356 + $0x20] sm:%s348] %v365
                %v367 = vld [vmem:[%s355 + $0x50] sm:%s348]
                %368 = vst [vmem:[%s356 + $0x28] sm:%s348] %v367
                %v369 = vld [vmem:[%s355 + $0x58] sm:%s348]
                %370 = vst [vmem:[%s356 + $0x30] sm:%s348] %v369
                %v371 = vld [vmem:[%s355 + $0x60] sm:%s348]
                %372 = vst [vmem:[%s356 + $0x38] sm:%s348] %v371
                %v373 = vld [vmem:[%s355 + $0x68] sm:%s348]
                %374 = vst [vmem:[%s356 + $0x40] sm:%s348] %v373
                %v375 = vld [vmem:[%s355 + $0x70] sm:%s348]
                %376 = vst [vmem:[%s356 + $0x48] sm:%s348] %v375
                %v377 = vld [vmem:[%s355 + $0xa0] sm:%s348]
                %378 = vst [vmem:[%s356 + $0x50] sm:%s348] %v377
                %v379 = vld [vmem:[%s355 + $0xa8] sm:%s348]
                %380 = vst [vmem:[%s356 + $0x58] sm:%s348] %v379
                %v381 = vld [vmem:[%s355 + $0xb0] sm:%s348]
                %382 = vst [vmem:[%s356 + $0x60] sm:%s348] %v381
                %v383 = vld [vmem:[%s355 + $0xb8] sm:%s348]
                %384 = vst [vmem:[%s356 + $0x68] sm:%s348] %v383
                %v385 = vld [vmem:[%s355 + $0xc0] sm:%s348]
                %386 = vst [vmem:[%s356 + $0x70] sm:%s348] %v385
                %v387 = vld [vmem:[%s355 + $0xf0] sm:%s348]
                %388 = vst [vmem:[%s356 + $0x78] sm:%s348] %v387
                %v389 = vld [vmem:[%s355 + $0xf8] sm:%s348]
                %390 = vst [vmem:[%s356 + $0x80] sm:%s348] %v389
                %v391 = vld [vmem:[%s355 + $0x100] sm:%s348]
                %392 = vst [vmem:[%s356 + $0x88] sm:%s348] %v391
                %v393 = vld [vmem:[%s355 + $0x108] sm:%s348]
                %394 = vst [vmem:[%s356 + $0x90] sm:%s348] %v393
                %v395 = vld [vmem:[%s355 + $0x110] sm:%s348]
                %396 = vst [vmem:[%s356 + $0x98] sm:%s348] %v395
              $region77: #{qnetwork_forward.1} parent=71 // loop_footer
                %s354 = sadd.s32 1, %s350
              $region78: #{qnetwork_forward.1} parent=71 // loop_footer_branch
                %349 = sbr.rel target = $region74
              $region79: #{qnetwork_forward.1} parent=71 // loop_exit
                _
            $region72: #{qnetwork_forward.1} parent=63 // pred_fallthru
              _
          $region64: #{qnetwork_forward.1} parent=59 // pred_fallthru
            _
          %449 = vnop
        $region60: #{qnetwork_forward.1} parent=55 // pred_fallthru
          _
      $region56: #{qnetwork_forward.1} parent=5 // pred_fallthru
        _
      %p450 = scmp.le.s32.totalorder 1, %s20
      %p451 = scmp.lt.s32.totalorder %s20, 3
      %p452 = pnand %p450, %p451
      %p453 = pneg %p452
      // Predicated region
      $region95: #{qnetwork_forward.1} parent=5 // pred_check
        _
      $region96: #{qnetwork_forward.1} parent=5 // pred_check_branch
        %455 = sbr.rel (%p452) target = $region98
      $region97: #{qnetwork_forward.1} parent=5 // pred_region
        %s456 = ssub.s32 %s20, 1
        %s457 = sand.u32 %s33, 1
        %s458 = sand.u32 %s33, 1
        %s459 = smul.addr %s458, 160
        %s460 = scalar_lea.vmem [#allocation2], %s459
        // Predicated region
        $region99: #{qnetwork_forward.1} parent=97 // pred_check
          %p461 = pneg %p46
        $region100: #{qnetwork_forward.1} parent=97 // pred_check_branch
          %463 = sbr.rel (%p461) target = $region102
        $region101: #{qnetwork_forward.1} parent=97 // pred_region
          _
        $region102: #{qnetwork_forward.1} parent=97 // pred_fallthru
          _
        %s464 = sand.u32 %s33, 1
        %s465 = sand.u32 %s33, 1
        %s466 = smul.addr %s465, 160
        %s467 = scalar_lea.vmem [#allocation2], %s466
        %p468 = pneg %p46
        %p469 = pneg %p43
        %p470 = pneg %p67
        %p471 = pneg %p64
        %p472 = pneg %p88
        %p473 = pneg %p85
        %p474 = pneg %p109
        %p475 = pneg %p106
        %p476 = pneg %p130
        %p477 = pneg %p127
        %p478 = pneg %p151
        %p479 = pneg %p148
        %p480 = pneg %p172
        %p481 = pneg %p169
        %p482 = pneg %p193
        %p483 = pneg %p190
        %p484 = pneg %p214
        %p485 = pneg %p211
        %p486 = pneg %p235
        %p487 = pneg %p232
        %p488 = pneg %p256
        %p489 = pneg %p253
        %p490 = pneg %p282
        %p491 = pneg %p279
        %s492 = sand.u32 %s269, 1
        %s493 = scalar_lea.sflag [#allocation4], %s492
        %s494 = sand.u32 %s269, 1
        %s495 = scalar_lea.vmem [#allocation3], %s494
        %v497 = vld [vmem:[%s6] sm:$0x1]
        %v498 = vld [vmem:[%s7] sm:$0x1]
        %v499 = vld [vmem:[%s8] sm:$0x1]
        %v500 = vld [vmem:[%s460] sm:$0xf]
        %v501 = vpack.c.bf16 %v500, %v500
        %v502 = vld [vmem:[%s1] sm:$0xf]
        %v503 = vld [vmem:[%s1 + $0x4] sm:$0xf]
        %v504 = vld [vmem:[%s1 + $0x8] sm:$0xf]
        %v505 = vld [vmem:[%s1 + $0xc] sm:$0xf]
        %v506 = vld [vmem:[%s1 + $0x10] sm:$0xf]
        %v507 = vld [vmem:[%s1 + $0x14] sm:$0xf]
        %v508 = vld [vmem:[%s1 + $0x18] sm:$0xf]
        %v509 = vld [vmem:[%s1 + $0x1c] sm:$0xf]
        %s510 = scalar_lea.vmem %s460, 40 [#allocation2]
        %v511 = vld [vmem:[%s510] sm:$0xf]
        %v512 = vpack.c.bf16 %v511, %v511
        %s513 = scalar_lea.vmem %s1, 32
        %v514 = vld [vmem:[%s513] sm:$0xf]
        %v515 = vld [vmem:[%s513 + $0x4] sm:$0xf]
        %v516 = vld [vmem:[%s513 + $0x8] sm:$0xf]
        %v517 = vld [vmem:[%s513 + $0xc] sm:$0xf]
        %v518 = vld [vmem:[%s513 + $0x10] sm:$0xf]
        %v519 = vld [vmem:[%s513 + $0x14] sm:$0xf]
        %v520 = vld [vmem:[%s513 + $0x18] sm:$0xf]
        %v521 = vld [vmem:[%s513 + $0x1c] sm:$0xf]
        %v530 = vunpack.c.l.b16 %v514
        %v531 = vunpack.c.l.b16 %v515
        %v532 = vunpack.c.l.b16 %v516
        %v533 = vunpack.c.l.b16 %v517
        %v534 = vunpack.c.l.b16 %v518
        %v535 = vunpack.c.l.b16 %v519
        %v536 = vunpack.c.l.b16 %v520
        %v537 = vunpack.c.l.b16 %v521
        %v538 = vpack.c.b16 %v531, %v530
        %v539 = vpack.c.b16 %v533, %v532
        %v540 = vpack.c.b16 %v535, %v534
        %v541 = vpack.c.b16 %v537, %v536
        %vm546 = vcmask 523264
        %v548 = vsel %vm546, %v512, 0
        %550 = vmatprep.subr.bf16.mxu0 0
        %551 = vmatpush1.bf16.msra.mxu0 0
        %552 = vmatprep.subr.bf16.mxu0 0
        %553 = vmatpush1.bf16.msra.mxu0 0
        %554 = vmatprep.subr.bf16.mxu0 0
        %555 = vmatpush1.bf16.msra.mxu0 0
        %556 = vmatprep.subr.bf16.mxu0 0
        %557 = vmatpush1.bf16.msra.mxu0 0
        %558 = vmatprep.subr.bf16.mxu0 0
        %559 = vmatpush1.bf16.msra.mxu0 %v541
        %560 = vmatprep.subr.bf16.mxu0 0
        %561 = vmatpush1.bf16.msra.mxu0 %v540
        %562 = vmatprep.subr.bf16.mxu0 0
        %563 = vmatpush1.bf16.msra.mxu0 %v539
        %564 = vmatprep.subr.bf16.mxu0 0
        %565 = vmatpush1.bf16.msra.mxu0 %v538
        %566 = vmatprep.subr.bf16.mxu0 0
        %567 = vmatpush2.bf16.msra.mxu0 0
        %568 = vmatprep.subr.bf16.mxu0 0
        %569 = vmatpush2.bf16.msra.mxu0 0
        %570 = vmatprep.subr.bf16.mxu0 0
        %571 = vmatpush2.bf16.msra.mxu0 0
        %572 = vmatprep.subr.bf16.mxu0 0
        %573 = vmatpush2.bf16.msra.mxu0 0
        %574 = vmatprep.subr.bf16.mxu0 0
        %575 = vmatpush2.bf16.msra.mxu0 0
        %576 = vmatprep.subr.bf16.mxu0 0
        %577 = vmatpush2.bf16.msra.mxu0 0
        %578 = vmatprep.subr.bf16.mxu0 0
        %579 = vmatpush2.bf16.msra.mxu0 0
        %580 = vmatprep.subr.bf16.mxu0 0
        %581 = vmatpush2.bf16.msra.mxu0 0
        %582 = vmatprep.mubr.bf16.mxu0 0
        %583 = vmatmul.mubr.bf16.gmra.mxu0 %v548
        %v584 = vpop.f32.mrf.mxu0
        %v585 = vadd.f32 0.0, %v584
        %v586 = vpop.f32.mrf.mxu0
        %v587 = vpop.f32.mrf.mxu0
        %v588 = vpop.f32.mrf.mxu0
        %589 = vdwg.mxu0
        %v598 = vunpack.c.l.b16 %v502
        %v599 = vunpack.c.l.b16 %v503
        %v600 = vunpack.c.l.b16 %v504
        %v601 = vunpack.c.l.b16 %v505
        %v602 = vunpack.c.l.b16 %v506
        %v603 = vunpack.c.l.b16 %v507
        %v604 = vunpack.c.l.b16 %v508
        %v605 = vunpack.c.l.b16 %v509
        %v606 = vpack.c.b16 %v599, %v598
        %v607 = vpack.c.b16 %v601, %v600
        %v608 = vpack.c.b16 %v603, %v602
        %v609 = vpack.c.b16 %v605, %v604
        %v615 = vsel %vm546, %v501, 0
        %617 = vmatprep.subr.bf16.mxu0 0
        %618 = vmatpush1.bf16.msra.mxu0 0
        %619 = vmatprep.subr.bf16.mxu0 0
        %620 = vmatpush1.bf16.msra.mxu0 0
        %621 = vmatprep.subr.bf16.mxu0 0
        %622 = vmatpush1.bf16.msra.mxu0 0
        %623 = vmatprep.subr.bf16.mxu0 0
        %624 = vmatpush1.bf16.msra.mxu0 0
        %625 = vmatprep.subr.bf16.mxu0 0
        %626 = vmatpush1.bf16.msra.mxu0 %v609
        %627 = vmatprep.subr.bf16.mxu0 0
        %628 = vmatpush1.bf16.msra.mxu0 %v608
        %629 = vmatprep.subr.bf16.mxu0 0
        %630 = vmatpush1.bf16.msra.mxu0 %v607
        %631 = vmatprep.subr.bf16.mxu0 0
        %632 = vmatpush1.bf16.msra.mxu0 %v606
        %633 = vmatprep.subr.bf16.mxu0 0
        %634 = vmatpush2.bf16.msra.mxu0 0
        %635 = vmatprep.subr.bf16.mxu0 0
        %636 = vmatpush2.bf16.msra.mxu0 0
        %637 = vmatprep.subr.bf16.mxu0 0
        %638 = vmatpush2.bf16.msra.mxu0 0
        %639 = vmatprep.subr.bf16.mxu0 0
        %640 = vmatpush2.bf16.msra.mxu0 0
        %641 = vmatprep.subr.bf16.mxu0 0
        %642 = vmatpush2.bf16.msra.mxu0 0
        %643 = vmatprep.subr.bf16.mxu0 0
        %644 = vmatpush2.bf16.msra.mxu0 0
        %645 = vmatprep.subr.bf16.mxu0 0
        %646 = vmatpush2.bf16.msra.mxu0 0
        %647 = vmatprep.subr.bf16.mxu0 0
        %648 = vmatpush2.bf16.msra.mxu0 0
        %649 = vmatprep.mubr.bf16.mxu0 0
        %650 = vmatmul.mubr.bf16.gmra.mxu0 %v615
        %v651 = vpop.f32.mrf.mxu0
        %v652 = vadd.f32 %v585, %v651
        %v653 = vpop.f32.mrf.mxu0
        %v654 = vpop.f32.mrf.mxu0
        %v655 = vpop.f32.mrf.mxu0
        %656 = vdwg.mxu0
        %s657 = scalar_lea.vmem %s460, 80 [#allocation2]
        %v658 = vld [vmem:[%s657] sm:$0xf]
        %v659 = vpack.c.bf16 %v658, %v658
        %s660 = scalar_lea.vmem %s1, 64
        %v661 = vld [vmem:[%s660] sm:$0xf]
        %v662 = vld [vmem:[%s660 + $0x4] sm:$0xf]
        %v663 = vld [vmem:[%s660 + $0x8] sm:$0xf]
        %v664 = vld [vmem:[%s660 + $0xc] sm:$0xf]
        %v665 = vld [vmem:[%s660 + $0x10] sm:$0xf]
        %v666 = vld [vmem:[%s660 + $0x14] sm:$0xf]
        %v667 = vld [vmem:[%s660 + $0x18] sm:$0xf]
        %v668 = vld [vmem:[%s660 + $0x1c] sm:$0xf]
        %v677 = vunpack.c.l.b16 %v661
        %v678 = vunpack.c.l.b16 %v662
        %v679 = vunpack.c.l.b16 %v663
        %v680 = vunpack.c.l.b16 %v664
        %v681 = vunpack.c.l.b16 %v665
        %v682 = vunpack.c.l.b16 %v666
        %v683 = vunpack.c.l.b16 %v667
        %v684 = vunpack.c.l.b16 %v668
        %v685 = vpack.c.b16 %v678, %v677
        %v686 = vpack.c.b16 %v680, %v679
        %v687 = vpack.c.b16 %v682, %v681
        %v688 = vpack.c.b16 %v684, %v683
        %v694 = vsel %vm546, %v659, 0
        %696 = vmatprep.subr.bf16.mxu0 0
        %697 = vmatpush1.bf16.msra.mxu0 0
        %698 = vmatprep.subr.bf16.mxu0 0
        %699 = vmatpush1.bf16.msra.mxu0 0
        %700 = vmatprep.subr.bf16.mxu0 0
        %701 = vmatpush1.bf16.msra.mxu0 0
        %702 = vmatprep.subr.bf16.mxu0 0
        %703 = vmatpush1.bf16.msra.mxu0 0
        %704 = vmatprep.subr.bf16.mxu0 0
        %705 = vmatpush1.bf16.msra.mxu0 %v688
        %706 = vmatprep.subr.bf16.mxu0 0
        %707 = vmatpush1.bf16.msra.mxu0 %v687
        %708 = vmatprep.subr.bf16.mxu0 0
        %709 = vmatpush1.bf16.msra.mxu0 %v686
        %710 = vmatprep.subr.bf16.mxu0 0
        %711 = vmatpush1.bf16.msra.mxu0 %v685
        %712 = vmatprep.subr.bf16.mxu0 0
        %713 = vmatpush2.bf16.msra.mxu0 0
        %714 = vmatprep.subr.bf16.mxu0 0
        %715 = vmatpush2.bf16.msra.mxu0 0
        %716 = vmatprep.subr.bf16.mxu0 0
        %717 = vmatpush2.bf16.msra.mxu0 0
        %718 = vmatprep.subr.bf16.mxu0 0
        %719 = vmatpush2.bf16.msra.mxu0 0
        %720 = vmatprep.subr.bf16.mxu0 0
        %721 = vmatpush2.bf16.msra.mxu0 0
        %722 = vmatprep.subr.bf16.mxu0 0
        %723 = vmatpush2.bf16.msra.mxu0 0
        %724 = vmatprep.subr.bf16.mxu0 0
        %725 = vmatpush2.bf16.msra.mxu0 0
        %726 = vmatprep.subr.bf16.mxu0 0
        %727 = vmatpush2.bf16.msra.mxu0 0
        %728 = vmatprep.mubr.bf16.mxu0 0
        %729 = vmatmul.mubr.bf16.gmra.mxu0 %v694
        %v730 = vpop.f32.mrf.mxu0
        %v731 = vadd.f32 0.0, %v730
        %v732 = vpop.f32.mrf.mxu0
        %v733 = vpop.f32.mrf.mxu0
        %v734 = vpop.f32.mrf.mxu0
        %735 = vdwg.mxu0
        %v736 = vadd.f32 %v652, %v731
        %s737 = scalar_lea.vmem %s460, 120 [#allocation2]
        %v738 = vld [vmem:[%s737] sm:$0xf]
        %v739 = vpack.c.bf16 %v738, %v738
        %s740 = scalar_lea.vmem %s1, 96
        %v741 = vld [vmem:[%s740] sm:$0xf]
        %v742 = vld [vmem:[%s740 + $0x4] sm:$0xf]
        %v743 = vld [vmem:[%s740 + $0x8] sm:$0xf]
        %v744 = vld [vmem:[%s740 + $0xc] sm:$0xf]
        %v745 = vld [vmem:[%s740 + $0x10] sm:$0xf]
        %v746 = vld [vmem:[%s740 + $0x14] sm:$0xf]
        %v747 = vld [vmem:[%s740 + $0x18] sm:$0xf]
        %v748 = vld [vmem:[%s740 + $0x1c] sm:$0xf]
        %v757 = vunpack.c.l.b16 %v741
        %v758 = vunpack.c.l.b16 %v742
        %v759 = vunpack.c.l.b16 %v743
        %v760 = vunpack.c.l.b16 %v744
        %v761 = vunpack.c.l.b16 %v745
        %v762 = vunpack.c.l.b16 %v746
        %v763 = vunpack.c.l.b16 %v747
        %v764 = vunpack.c.l.b16 %v748
        %v765 = vpack.c.b16 %v758, %v757
        %v766 = vpack.c.b16 %v760, %v759
        %v767 = vpack.c.b16 %v762, %v761
        %v768 = vpack.c.b16 %v764, %v763
        %v774 = vsel %vm546, %v739, 0
        %776 = vmatprep.subr.bf16.mxu0 0
        %777 = vmatpush1.bf16.msra.mxu0 0
        %778 = vmatprep.subr.bf16.mxu0 0
        %779 = vmatpush1.bf16.msra.mxu0 0
        %780 = vmatprep.subr.bf16.mxu0 0
        %781 = vmatpush1.bf16.msra.mxu0 0
        %782 = vmatprep.subr.bf16.mxu0 0
        %783 = vmatpush1.bf16.msra.mxu0 0
        %784 = vmatprep.subr.bf16.mxu0 0
        %785 = vmatpush1.bf16.msra.mxu0 %v768
        %786 = vmatprep.subr.bf16.mxu0 0
        %787 = vmatpush1.bf16.msra.mxu0 %v767
        %788 = vmatprep.subr.bf16.mxu0 0
        %789 = vmatpush1.bf16.msra.mxu0 %v766
        %790 = vmatprep.subr.bf16.mxu0 0
        %791 = vmatpush1.bf16.msra.mxu0 %v765
        %792 = vmatprep.subr.bf16.mxu0 0
        %793 = vmatpush2.bf16.msra.mxu0 0
        %794 = vmatprep.subr.bf16.mxu0 0
        %795 = vmatpush2.bf16.msra.mxu0 0
        %796 = vmatprep.subr.bf16.mxu0 0
        %797 = vmatpush2.bf16.msra.mxu0 0
        %798 = vmatprep.subr.bf16.mxu0 0
        %799 = vmatpush2.bf16.msra.mxu0 0
        %800 = vmatprep.subr.bf16.mxu0 0
        %801 = vmatpush2.bf16.msra.mxu0 0
        %802 = vmatprep.subr.bf16.mxu0 0
        %803 = vmatpush2.bf16.msra.mxu0 0
        %804 = vmatprep.subr.bf16.mxu0 0
        %805 = vmatpush2.bf16.msra.mxu0 0
        %806 = vmatprep.subr.bf16.mxu0 0
        %807 = vmatpush2.bf16.msra.mxu0 0
        %808 = vmatprep.mubr.bf16.mxu0 0
        %809 = vmatmul.mubr.bf16.gmra.mxu0 %v774
        %v810 = vpop.f32.mrf.mxu0
        %v811 = vadd.f32 0.0, %v810
        %v812 = vpop.f32.mrf.mxu0
        %v813 = vpop.f32.mrf.mxu0
        %v814 = vpop.f32.mrf.mxu0
        %815 = vdwg.mxu0
        %v816 = vadd.f32 %v736, %v811
        %v818 = vlaneseq
        %v819 = vshrl.u32 %v818, 7
        %v820 = vsub.s32 0, %v819
        %v821 = vrot.slane %v497, %v820
        %v823 = vadd.f32 %v816, %v821
        %v824 = vmax.f32 %v823, 0.0
        %s825 = scalar_lea.vmem %s460, 8 [#allocation2]
        %v826 = vld [vmem:[%s825] sm:$0xf]
        %v827 = vpack.c.bf16 %v826, %v826
        %s828 = scalar_lea.vmem %s460, 48 [#allocation2]
        %v829 = vld [vmem:[%s828] sm:$0xf]
        %v830 = vpack.c.bf16 %v829, %v829
        %v832 = vsel %vm546, %v830, 0
        %834 = vmatprep.subr.bf16.mxu0 0
        %835 = vmatpush1.bf16.msra.mxu0 0
        %836 = vmatprep.subr.bf16.mxu0 0
        %837 = vmatpush1.bf16.msra.mxu0 0
        %838 = vmatprep.subr.bf16.mxu0 0
        %839 = vmatpush1.bf16.msra.mxu0 0
        %840 = vmatprep.subr.bf16.mxu0 0
        %841 = vmatpush1.bf16.msra.mxu0 0
        %842 = vmatprep.subr.bf16.mxu0 0
        %843 = vmatpush1.bf16.msra.mxu0 %v541
        %844 = vmatprep.subr.bf16.mxu0 0
        %845 = vmatpush1.bf16.msra.mxu0 %v540
        %846 = vmatprep.subr.bf16.mxu0 0
        %847 = vmatpush1.bf16.msra.mxu0 %v539
        %848 = vmatprep.subr.bf16.mxu0 0
        %849 = vmatpush1.bf16.msra.mxu0 %v538
        %850 = vmatprep.subr.bf16.mxu0 0
        %851 = vmatpush2.bf16.msra.mxu0 0
        %852 = vmatprep.subr.bf16.mxu0 0
        %853 = vmatpush2.bf16.msra.mxu0 0
        %854 = vmatprep.subr.bf16.mxu0 0
        %855 = vmatpush2.bf16.msra.mxu0 0
        %856 = vmatprep.subr.bf16.mxu0 0
        %857 = vmatpush2.bf16.msra.mxu0 0
        %858 = vmatprep.subr.bf16.mxu0 0
        %859 = vmatpush2.bf16.msra.mxu0 0
        %860 = vmatprep.subr.bf16.mxu0 0
        %861 = vmatpush2.bf16.msra.mxu0 0
        %862 = vmatprep.subr.bf16.mxu0 0
        %863 = vmatpush2.bf16.msra.mxu0 0
        %864 = vmatprep.subr.bf16.mxu0 0
        %865 = vmatpush2.bf16.msra.mxu0 0
        %866 = vmatprep.mubr.bf16.mxu0 0
        %867 = vmatmul.mubr.bf16.gmra.mxu0 %v832
        %v868 = vpop.f32.mrf.mxu0
        %v869 = vadd.f32 0.0, %v868
        %v870 = vpop.f32.mrf.mxu0
        %v871 = vpop.f32.mrf.mxu0
        %v872 = vpop.f32.mrf.mxu0
        %873 = vdwg.mxu0
        %v875 = vsel %vm546, %v827, 0
        %877 = vmatprep.subr.bf16.mxu0 0
        %878 = vmatpush1.bf16.msra.mxu0 0
        %879 = vmatprep.subr.bf16.mxu0 0
        %880 = vmatpush1.bf16.msra.mxu0 0
        %881 = vmatprep.subr.bf16.mxu0 0
        %882 = vmatpush1.bf16.msra.mxu0 0
        %883 = vmatprep.subr.bf16.mxu0 0
        %884 = vmatpush1.bf16.msra.mxu0 0
        %885 = vmatprep.subr.bf16.mxu0 0
        %886 = vmatpush1.bf16.msra.mxu0 %v609
        %887 = vmatprep.subr.bf16.mxu0 0
        %888 = vmatpush1.bf16.msra.mxu0 %v608
        %889 = vmatprep.subr.bf16.mxu0 0
        %890 = vmatpush1.bf16.msra.mxu0 %v607
        %891 = vmatprep.subr.bf16.mxu0 0
        %892 = vmatpush1.bf16.msra.mxu0 %v606
        %893 = vmatprep.subr.bf16.mxu0 0
        %894 = vmatpush2.bf16.msra.mxu0 0
        %895 = vmatprep.subr.bf16.mxu0 0
        %896 = vmatpush2.bf16.msra.mxu0 0
        %897 = vmatprep.subr.bf16.mxu0 0
        %898 = vmatpush2.bf16.msra.mxu0 0
        %899 = vmatprep.subr.bf16.mxu0 0
        %900 = vmatpush2.bf16.msra.mxu0 0
        %901 = vmatprep.subr.bf16.mxu0 0
        %902 = vmatpush2.bf16.msra.mxu0 0
        %903 = vmatprep.subr.bf16.mxu0 0
        %904 = vmatpush2.bf16.msra.mxu0 0
        %905 = vmatprep.subr.bf16.mxu0 0
        %906 = vmatpush2.bf16.msra.mxu0 0
        %907 = vmatprep.subr.bf16.mxu0 0
        %908 = vmatpush2.bf16.msra.mxu0 0
        %909 = vmatprep.mubr.bf16.mxu0 0
        %910 = vmatmul.mubr.bf16.gmra.mxu0 %v875
        %v911 = vpop.f32.mrf.mxu0
        %v912 = vadd.f32 %v869, %v911
        %v913 = vpop.f32.mrf.mxu0
        %v914 = vpop.f32.mrf.mxu0
        %v915 = vpop.f32.mrf.mxu0
        %916 = vdwg.mxu0
        %s917 = scalar_lea.vmem %s460, 88 [#allocation2]
        %v918 = vld [vmem:[%s917] sm:$0xf]
        %v919 = vpack.c.bf16 %v918, %v918
        %v921 = vsel %vm546, %v919, 0
        %923 = vmatprep.subr.bf16.mxu0 0
        %924 = vmatpush1.bf16.msra.mxu0 0
        %925 = vmatprep.subr.bf16.mxu0 0
        %926 = vmatpush1.bf16.msra.mxu0 0
        %927 = vmatprep.subr.bf16.mxu0 0
        %928 = vmatpush1.bf16.msra.mxu0 0
        %929 = vmatprep.subr.bf16.mxu0 0
        %930 = vmatpush1.bf16.msra.mxu0 0
        %931 = vmatprep.subr.bf16.mxu0 0
        %932 = vmatpush1.bf16.msra.mxu0 %v688
        %933 = vmatprep.subr.bf16.mxu0 0
        %934 = vmatpush1.bf16.msra.mxu0 %v687
        %935 = vmatprep.subr.bf16.mxu0 0
        %936 = vmatpush1.bf16.msra.mxu0 %v686
        %937 = vmatprep.subr.bf16.mxu0 0
        %938 = vmatpush1.bf16.msra.mxu0 %v685
        %939 = vmatprep.subr.bf16.mxu0 0
        %940 = vmatpush2.bf16.msra.mxu0 0
        %941 = vmatprep.subr.bf16.mxu0 0
        %942 = vmatpush2.bf16.msra.mxu0 0
        %943 = vmatprep.subr.bf16.mxu0 0
        %944 = vmatpush2.bf16.msra.mxu0 0
        %945 = vmatprep.subr.bf16.mxu0 0
        %946 = vmatpush2.bf16.msra.mxu0 0
        %947 = vmatprep.subr.bf16.mxu0 0
        %948 = vmatpush2.bf16.msra.mxu0 0
        %949 = vmatprep.subr.bf16.mxu0 0
        %950 = vmatpush2.bf16.msra.mxu0 0
        %951 = vmatprep.subr.bf16.mxu0 0
        %952 = vmatpush2.bf16.msra.mxu0 0
        %953 = vmatprep.subr.bf16.mxu0 0
        %954 = vmatpush2.bf16.msra.mxu0 0
        %955 = vmatprep.mubr.bf16.mxu0 0
        %956 = vmatmul.mubr.bf16.gmra.mxu0 %v921
        %v957 = vpop.f32.mrf.mxu0
        %v958 = vadd.f32 0.0, %v957
        %v959 = vpop.f32.mrf.mxu0
        %v960 = vpop.f32.mrf.mxu0
        %v961 = vpop.f32.mrf.mxu0
        %962 = vdwg.mxu0
        %v963 = vadd.f32 %v912, %v958
        %s964 = scalar_lea.vmem %s460, 128 [#allocation2]
        %v965 = vld [vmem:[%s964] sm:$0xf]
        %v966 = vpack.c.bf16 %v965, %v965
        %v968 = vsel %vm546, %v966, 0
        %970 = vmatprep.subr.bf16.mxu0 0
        %971 = vmatpush1.bf16.msra.mxu0 0
        %972 = vmatprep.subr.bf16.mxu0 0
        %973 = vmatpush1.bf16.msra.mxu0 0
        %974 = vmatprep.subr.bf16.mxu0 0
        %975 = vmatpush1.bf16.msra.mxu0 0
        %976 = vmatprep.subr.bf16.mxu0 0
        %977 = vmatpush1.bf16.msra.mxu0 0
        %978 = vmatprep.subr.bf16.mxu0 0
        %979 = vmatpush1.bf16.msra.mxu0 %v768
        %980 = vmatprep.subr.bf16.mxu0 0
        %981 = vmatpush1.bf16.msra.mxu0 %v767
        %982 = vmatprep.subr.bf16.mxu0 0
        %983 = vmatpush1.bf16.msra.mxu0 %v766
        %984 = vmatprep.subr.bf16.mxu0 0
        %985 = vmatpush1.bf16.msra.mxu0 %v765
        %986 = vmatprep.subr.bf16.mxu0 0
        %987 = vmatpush2.bf16.msra.mxu0 0
        %988 = vmatprep.subr.bf16.mxu0 0
        %989 = vmatpush2.bf16.msra.mxu0 0
        %990 = vmatprep.subr.bf16.mxu0 0
        %991 = vmatpush2.bf16.msra.mxu0 0
        %992 = vmatprep.subr.bf16.mxu0 0
        %993 = vmatpush2.bf16.msra.mxu0 0
        %994 = vmatprep.subr.bf16.mxu0 0
        %995 = vmatpush2.bf16.msra.mxu0 0
        %996 = vmatprep.subr.bf16.mxu0 0
        %997 = vmatpush2.bf16.msra.mxu0 0
        %998 = vmatprep.subr.bf16.mxu0 0
        %999 = vmatpush2.bf16.msra.mxu0 0
        %1000 = vmatprep.subr.bf16.mxu0 0
        %1001 = vmatpush2.bf16.msra.mxu0 0
        %1002 = vmatprep.mubr.bf16.mxu0 0
        %1003 = vmatmul.mubr.bf16.gmra.mxu0 %v968
        %v1004 = vpop.f32.mrf.mxu0
        %v1005 = vadd.f32 0.0, %v1004
        %v1006 = vpop.f32.mrf.mxu0
        %v1007 = vpop.f32.mrf.mxu0
        %v1008 = vpop.f32.mrf.mxu0
        %1009 = vdwg.mxu0
        %v1010 = vadd.f32 %v963, %v1005
        %v1011 = vadd.f32 %v1010, %v821
        %v1012 = vmax.f32 %v1011, 0.0
        %s1013 = scalar_lea.vmem %s460, 16 [#allocation2]
        %v1014 = vld [vmem:[%s1013] sm:$0xf]
        %v1015 = vpack.c.bf16 %v1014, %v1014
        %s1016 = scalar_lea.vmem %s460, 56 [#allocation2]
        %v1017 = vld [vmem:[%s1016] sm:$0xf]
        %v1018 = vpack.c.bf16 %v1017, %v1017
        %v1020 = vsel %vm546, %v1018, 0
        %1022 = vmatprep.subr.bf16.mxu0 0
        %1023 = vmatpush1.bf16.msra.mxu0 0
        %1024 = vmatprep.subr.bf16.mxu0 0
        %1025 = vmatpush1.bf16.msra.mxu0 0
        %1026 = vmatprep.subr.bf16.mxu0 0
        %1027 = vmatpush1.bf16.msra.mxu0 0
        %1028 = vmatprep.subr.bf16.mxu0 0
        %1029 = vmatpush1.bf16.msra.mxu0 0
        %1030 = vmatprep.subr.bf16.mxu0 0
        %1031 = vmatpush1.bf16.msra.mxu0 %v541
        %1032 = vmatprep.subr.bf16.mxu0 0
        %1033 = vmatpush1.bf16.msra.mxu0 %v540
        %1034 = vmatprep.subr.bf16.mxu0 0
        %1035 = vmatpush1.bf16.msra.mxu0 %v539
        %1036 = vmatprep.subr.bf16.mxu0 0
        %1037 = vmatpush1.bf16.msra.mxu0 %v538
        %1038 = vmatprep.subr.bf16.mxu0 0
        %1039 = vmatpush2.bf16.msra.mxu0 0
        %1040 = vmatprep.subr.bf16.mxu0 0
        %1041 = vmatpush2.bf16.msra.mxu0 0
        %1042 = vmatprep.subr.bf16.mxu0 0
        %1043 = vmatpush2.bf16.msra.mxu0 0
        %1044 = vmatprep.subr.bf16.mxu0 0
        %1045 = vmatpush2.bf16.msra.mxu0 0
        %1046 = vmatprep.subr.bf16.mxu0 0
        %1047 = vmatpush2.bf16.msra.mxu0 0
        %1048 = vmatprep.subr.bf16.mxu0 0
        %1049 = vmatpush2.bf16.msra.mxu0 0
        %1050 = vmatprep.subr.bf16.mxu0 0
        %1051 = vmatpush2.bf16.msra.mxu0 0
        %1052 = vmatprep.subr.bf16.mxu0 0
        %1053 = vmatpush2.bf16.msra.mxu0 0
        %1054 = vmatprep.mubr.bf16.mxu0 0
        %1055 = vmatmul.mubr.bf16.gmra.mxu0 %v1020
        %v1056 = vpop.f32.mrf.mxu0
        %v1057 = vadd.f32 0.0, %v1056
        %v1058 = vpop.f32.mrf.mxu0
        %v1059 = vpop.f32.mrf.mxu0
        %v1060 = vpop.f32.mrf.mxu0
        %1061 = vdwg.mxu0
        %v1063 = vsel %vm546, %v1015, 0
        %1065 = vmatprep.subr.bf16.mxu0 0
        %1066 = vmatpush1.bf16.msra.mxu0 0
        %1067 = vmatprep.subr.bf16.mxu0 0
        %1068 = vmatpush1.bf16.msra.mxu0 0
        %1069 = vmatprep.subr.bf16.mxu0 0
        %1070 = vmatpush1.bf16.msra.mxu0 0
        %1071 = vmatprep.subr.bf16.mxu0 0
        %1072 = vmatpush1.bf16.msra.mxu0 0
        %1073 = vmatprep.subr.bf16.mxu0 0
        %1074 = vmatpush1.bf16.msra.mxu0 %v609
        %1075 = vmatprep.subr.bf16.mxu0 0
        %1076 = vmatpush1.bf16.msra.mxu0 %v608
        %1077 = vmatprep.subr.bf16.mxu0 0
        %1078 = vmatpush1.bf16.msra.mxu0 %v607
        %1079 = vmatprep.subr.bf16.mxu0 0
        %1080 = vmatpush1.bf16.msra.mxu0 %v606
        %1081 = vmatprep.subr.bf16.mxu0 0
        %1082 = vmatpush2.bf16.msra.mxu0 0
        %1083 = vmatprep.subr.bf16.mxu0 0
        %1084 = vmatpush2.bf16.msra.mxu0 0
        %1085 = vmatprep.subr.bf16.mxu0 0
        %1086 = vmatpush2.bf16.msra.mxu0 0
        %1087 = vmatprep.subr.bf16.mxu0 0
        %1088 = vmatpush2.bf16.msra.mxu0 0
        %1089 = vmatprep.subr.bf16.mxu0 0
        %1090 = vmatpush2.bf16.msra.mxu0 0
        %1091 = vmatprep.subr.bf16.mxu0 0
        %1092 = vmatpush2.bf16.msra.mxu0 0
        %1093 = vmatprep.subr.bf16.mxu0 0
        %1094 = vmatpush2.bf16.msra.mxu0 0
        %1095 = vmatprep.subr.bf16.mxu0 0
        %1096 = vmatpush2.bf16.msra.mxu0 0
        %1097 = vmatprep.mubr.bf16.mxu0 0
        %1098 = vmatmul.mubr.bf16.gmra.mxu0 %v1063
        %v1099 = vpop.f32.mrf.mxu0
        %v1100 = vadd.f32 %v1057, %v1099
        %v1101 = vpop.f32.mrf.mxu0
        %v1102 = vpop.f32.mrf.mxu0
        %v1103 = vpop.f32.mrf.mxu0
        %1104 = vdwg.mxu0
        %s1105 = scalar_lea.vmem %s460, 96 [#allocation2]
        %v1106 = vld [vmem:[%s1105] sm:$0xf]
        %v1107 = vpack.c.bf16 %v1106, %v1106
        %v1109 = vsel %vm546, %v1107, 0
        %1111 = vmatprep.subr.bf16.mxu0 0
        %1112 = vmatpush1.bf16.msra.mxu0 0
        %1113 = vmatprep.subr.bf16.mxu0 0
        %1114 = vmatpush1.bf16.msra.mxu0 0
        %1115 = vmatprep.subr.bf16.mxu0 0
        %1116 = vmatpush1.bf16.msra.mxu0 0
        %1117 = vmatprep.subr.bf16.mxu0 0
        %1118 = vmatpush1.bf16.msra.mxu0 0
        %1119 = vmatprep.subr.bf16.mxu0 0
        %1120 = vmatpush1.bf16.msra.mxu0 %v688
        %1121 = vmatprep.subr.bf16.mxu0 0
        %1122 = vmatpush1.bf16.msra.mxu0 %v687
        %1123 = vmatprep.subr.bf16.mxu0 0
        %1124 = vmatpush1.bf16.msra.mxu0 %v686
        %1125 = vmatprep.subr.bf16.mxu0 0
        %1126 = vmatpush1.bf16.msra.mxu0 %v685
        %1127 = vmatprep.subr.bf16.mxu0 0
        %1128 = vmatpush2.bf16.msra.mxu0 0
        %1129 = vmatprep.subr.bf16.mxu0 0
        %1130 = vmatpush2.bf16.msra.mxu0 0
        %1131 = vmatprep.subr.bf16.mxu0 0
        %1132 = vmatpush2.bf16.msra.mxu0 0
        %1133 = vmatprep.subr.bf16.mxu0 0
        %1134 = vmatpush2.bf16.msra.mxu0 0
        %1135 = vmatprep.subr.bf16.mxu0 0
        %1136 = vmatpush2.bf16.msra.mxu0 0
        %1137 = vmatprep.subr.bf16.mxu0 0
        %1138 = vmatpush2.bf16.msra.mxu0 0
        %1139 = vmatprep.subr.bf16.mxu0 0
        %1140 = vmatpush2.bf16.msra.mxu0 0
        %1141 = vmatprep.subr.bf16.mxu0 0
        %1142 = vmatpush2.bf16.msra.mxu0 0
        %1143 = vmatprep.mubr.bf16.mxu0 0
        %1144 = vmatmul.mubr.bf16.gmra.mxu0 %v1109
        %v1145 = vpop.f32.mrf.mxu0
        %v1146 = vadd.f32 0.0, %v1145
        %v1147 = vpop.f32.mrf.mxu0
        %v1148 = vpop.f32.mrf.mxu0
        %v1149 = vpop.f32.mrf.mxu0
        %1150 = vdwg.mxu0
        %v1151 = vadd.f32 %v1100, %v1146
        %s1152 = scalar_lea.vmem %s460, 136 [#allocation2]
        %v1153 = vld [vmem:[%s1152] sm:$0xf]
        %v1154 = vpack.c.bf16 %v1153, %v1153
        %v1156 = vsel %vm546, %v1154, 0
        %1158 = vmatprep.subr.bf16.mxu0 0
        %1159 = vmatpush1.bf16.msra.mxu0 0
        %1160 = vmatprep.subr.bf16.mxu0 0
        %1161 = vmatpush1.bf16.msra.mxu0 0
        %1162 = vmatprep.subr.bf16.mxu0 0
        %1163 = vmatpush1.bf16.msra.mxu0 0
        %1164 = vmatprep.subr.bf16.mxu0 0
        %1165 = vmatpush1.bf16.msra.mxu0 0
        %1166 = vmatprep.subr.bf16.mxu0 0
        %1167 = vmatpush1.bf16.msra.mxu0 %v768
        %1168 = vmatprep.subr.bf16.mxu0 0
        %1169 = vmatpush1.bf16.msra.mxu0 %v767
        %1170 = vmatprep.subr.bf16.mxu0 0
        %1171 = vmatpush1.bf16.msra.mxu0 %v766
        %1172 = vmatprep.subr.bf16.mxu0 0
        %1173 = vmatpush1.bf16.msra.mxu0 %v765
        %1174 = vmatprep.subr.bf16.mxu0 0
        %1175 = vmatpush2.bf16.msra.mxu0 0
        %1176 = vmatprep.subr.bf16.mxu0 0
        %1177 = vmatpush2.bf16.msra.mxu0 0
        %1178 = vmatprep.subr.bf16.mxu0 0
        %1179 = vmatpush2.bf16.msra.mxu0 0
        %1180 = vmatprep.subr.bf16.mxu0 0
        %1181 = vmatpush2.bf16.msra.mxu0 0
        %1182 = vmatprep.subr.bf16.mxu0 0
        %1183 = vmatpush2.bf16.msra.mxu0 0
        %1184 = vmatprep.subr.bf16.mxu0 0
        %1185 = vmatpush2.bf16.msra.mxu0 0
        %1186 = vmatprep.subr.bf16.mxu0 0
        %1187 = vmatpush2.bf16.msra.mxu0 0
        %1188 = vmatprep.subr.bf16.mxu0 0
        %1189 = vmatpush2.bf16.msra.mxu0 0
        %1190 = vmatprep.mubr.bf16.mxu0 0
        %1191 = vmatmul.mubr.bf16.gmra.mxu0 %v1156
        %v1192 = vpop.f32.mrf.mxu0
        %v1193 = vadd.f32 0.0, %v1192
        %v1194 = vpop.f32.mrf.mxu0
        %v1195 = vpop.f32.mrf.mxu0
        %v1196 = vpop.f32.mrf.mxu0
        %1197 = vdwg.mxu0
        %v1198 = vadd.f32 %v1151, %v1193
        %v1199 = vadd.f32 %v1198, %v821
        %v1200 = vmax.f32 %v1199, 0.0
        %s1201 = scalar_lea.vmem %s460, 24 [#allocation2]
        %v1202 = vld [vmem:[%s1201] sm:$0xf]
        %v1203 = vpack.c.bf16 %v1202, %v1202
        %s1204 = scalar_lea.vmem %s460, 64 [#allocation2]
        %v1205 = vld [vmem:[%s1204] sm:$0xf]
        %v1206 = vpack.c.bf16 %v1205, %v1205
        %v1208 = vsel %vm546, %v1206, 0
        %1210 = vmatprep.subr.bf16.mxu0 0
        %1211 = vmatpush1.bf16.msra.mxu0 0
        %1212 = vmatprep.subr.bf16.mxu0 0
        %1213 = vmatpush1.bf16.msra.mxu0 0
        %1214 = vmatprep.subr.bf16.mxu0 0
        %1215 = vmatpush1.bf16.msra.mxu0 0
        %1216 = vmatprep.subr.bf16.mxu0 0
        %1217 = vmatpush1.bf16.msra.mxu0 0
        %1218 = vmatprep.subr.bf16.mxu0 0
        %1219 = vmatpush1.bf16.msra.mxu0 %v541
        %1220 = vmatprep.subr.bf16.mxu0 0
        %1221 = vmatpush1.bf16.msra.mxu0 %v540
        %1222 = vmatprep.subr.bf16.mxu0 0
        %1223 = vmatpush1.bf16.msra.mxu0 %v539
        %1224 = vmatprep.subr.bf16.mxu0 0
        %1225 = vmatpush1.bf16.msra.mxu0 %v538
        %1226 = vmatprep.subr.bf16.mxu0 0
        %1227 = vmatpush2.bf16.msra.mxu0 0
        %1228 = vmatprep.subr.bf16.mxu0 0
        %1229 = vmatpush2.bf16.msra.mxu0 0
        %1230 = vmatprep.subr.bf16.mxu0 0
        %1231 = vmatpush2.bf16.msra.mxu0 0
        %1232 = vmatprep.subr.bf16.mxu0 0
        %1233 = vmatpush2.bf16.msra.mxu0 0
        %1234 = vmatprep.subr.bf16.mxu0 0
        %1235 = vmatpush2.bf16.msra.mxu0 0
        %1236 = vmatprep.subr.bf16.mxu0 0
        %1237 = vmatpush2.bf16.msra.mxu0 0
        %1238 = vmatprep.subr.bf16.mxu0 0
        %1239 = vmatpush2.bf16.msra.mxu0 0
        %1240 = vmatprep.subr.bf16.mxu0 0
        %1241 = vmatpush2.bf16.msra.mxu0 0
        %1242 = vmatprep.mubr.bf16.mxu0 0
        %1243 = vmatmul.mubr.bf16.gmra.mxu0 %v1208
        %v1244 = vpop.f32.mrf.mxu0
        %v1245 = vadd.f32 0.0, %v1244
        %v1246 = vpop.f32.mrf.mxu0
        %v1247 = vpop.f32.mrf.mxu0
        %v1248 = vpop.f32.mrf.mxu0
        %1249 = vdwg.mxu0
        %v1251 = vsel %vm546, %v1203, 0
        %1253 = vmatprep.subr.bf16.mxu0 0
        %1254 = vmatpush1.bf16.msra.mxu0 0
        %1255 = vmatprep.subr.bf16.mxu0 0
        %1256 = vmatpush1.bf16.msra.mxu0 0
        %1257 = vmatprep.subr.bf16.mxu0 0
        %1258 = vmatpush1.bf16.msra.mxu0 0
        %1259 = vmatprep.subr.bf16.mxu0 0
        %1260 = vmatpush1.bf16.msra.mxu0 0
        %1261 = vmatprep.subr.bf16.mxu0 0
        %1262 = vmatpush1.bf16.msra.mxu0 %v609
        %1263 = vmatprep.subr.bf16.mxu0 0
        %1264 = vmatpush1.bf16.msra.mxu0 %v608
        %1265 = vmatprep.subr.bf16.mxu0 0
        %1266 = vmatpush1.bf16.msra.mxu0 %v607
        %1267 = vmatprep.subr.bf16.mxu0 0
        %1268 = vmatpush1.bf16.msra.mxu0 %v606
        %1269 = vmatprep.subr.bf16.mxu0 0
        %1270 = vmatpush2.bf16.msra.mxu0 0
        %1271 = vmatprep.subr.bf16.mxu0 0
        %1272 = vmatpush2.bf16.msra.mxu0 0
        %1273 = vmatprep.subr.bf16.mxu0 0
        %1274 = vmatpush2.bf16.msra.mxu0 0
        %1275 = vmatprep.subr.bf16.mxu0 0
        %1276 = vmatpush2.bf16.msra.mxu0 0
        %1277 = vmatprep.subr.bf16.mxu0 0
        %1278 = vmatpush2.bf16.msra.mxu0 0
        %1279 = vmatprep.subr.bf16.mxu0 0
        %1280 = vmatpush2.bf16.msra.mxu0 0
        %1281 = vmatprep.subr.bf16.mxu0 0
        %1282 = vmatpush2.bf16.msra.mxu0 0
        %1283 = vmatprep.subr.bf16.mxu0 0
        %1284 = vmatpush2.bf16.msra.mxu0 0
        %1285 = vmatprep.mubr.bf16.mxu0 0
        %1286 = vmatmul.mubr.bf16.gmra.mxu0 %v1251
        %v1287 = vpop.f32.mrf.mxu0
        %v1288 = vadd.f32 %v1245, %v1287
        %v1289 = vpop.f32.mrf.mxu0
        %v1290 = vpop.f32.mrf.mxu0
        %v1291 = vpop.f32.mrf.mxu0
        %1292 = vdwg.mxu0
        %s1293 = scalar_lea.vmem %s460, 104 [#allocation2]
        %v1294 = vld [vmem:[%s1293] sm:$0xf]
        %v1295 = vpack.c.bf16 %v1294, %v1294
        %v1297 = vsel %vm546, %v1295, 0
        %1299 = vmatprep.subr.bf16.mxu0 0
        %1300 = vmatpush1.bf16.msra.mxu0 0
        %1301 = vmatprep.subr.bf16.mxu0 0
        %1302 = vmatpush1.bf16.msra.mxu0 0
        %1303 = vmatprep.subr.bf16.mxu0 0
        %1304 = vmatpush1.bf16.msra.mxu0 0
        %1305 = vmatprep.subr.bf16.mxu0 0
        %1306 = vmatpush1.bf16.msra.mxu0 0
        %1307 = vmatprep.subr.bf16.mxu0 0
        %1308 = vmatpush1.bf16.msra.mxu0 %v688
        %1309 = vmatprep.subr.bf16.mxu0 0
        %1310 = vmatpush1.bf16.msra.mxu0 %v687
        %1311 = vmatprep.subr.bf16.mxu0 0
        %1312 = vmatpush1.bf16.msra.mxu0 %v686
        %1313 = vmatprep.subr.bf16.mxu0 0
        %1314 = vmatpush1.bf16.msra.mxu0 %v685
        %1315 = vmatprep.subr.bf16.mxu0 0
        %1316 = vmatpush2.bf16.msra.mxu0 0
        %1317 = vmatprep.subr.bf16.mxu0 0
        %1318 = vmatpush2.bf16.msra.mxu0 0
        %1319 = vmatprep.subr.bf16.mxu0 0
        %1320 = vmatpush2.bf16.msra.mxu0 0
        %1321 = vmatprep.subr.bf16.mxu0 0
        %1322 = vmatpush2.bf16.msra.mxu0 0
        %1323 = vmatprep.subr.bf16.mxu0 0
        %1324 = vmatpush2.bf16.msra.mxu0 0
        %1325 = vmatprep.subr.bf16.mxu0 0
        %1326 = vmatpush2.bf16.msra.mxu0 0
        %1327 = vmatprep.subr.bf16.mxu0 0
        %1328 = vmatpush2.bf16.msra.mxu0 0
        %1329 = vmatprep.subr.bf16.mxu0 0
        %1330 = vmatpush2.bf16.msra.mxu0 0
        %1331 = vmatprep.mubr.bf16.mxu0 0
        %1332 = vmatmul.mubr.bf16.gmra.mxu0 %v1297
        %v1333 = vpop.f32.mrf.mxu0
        %v1334 = vadd.f32 0.0, %v1333
        %v1335 = vpop.f32.mrf.mxu0
        %v1336 = vpop.f32.mrf.mxu0
        %v1337 = vpop.f32.mrf.mxu0
        %1338 = vdwg.mxu0
        %v1339 = vadd.f32 %v1288, %v1334
        %s1340 = scalar_lea.vmem %s460, 144 [#allocation2]
        %v1341 = vld [vmem:[%s1340] sm:$0xf]
        %v1342 = vpack.c.bf16 %v1341, %v1341
        %v1344 = vsel %vm546, %v1342, 0
        %1346 = vmatprep.subr.bf16.mxu0 0
        %1347 = vmatpush1.bf16.msra.mxu0 0
        %1348 = vmatprep.subr.bf16.mxu0 0
        %1349 = vmatpush1.bf16.msra.mxu0 0
        %1350 = vmatprep.subr.bf16.mxu0 0
        %1351 = vmatpush1.bf16.msra.mxu0 0
        %1352 = vmatprep.subr.bf16.mxu0 0
        %1353 = vmatpush1.bf16.msra.mxu0 0
        %1354 = vmatprep.subr.bf16.mxu0 0
        %1355 = vmatpush1.bf16.msra.mxu0 %v768
        %1356 = vmatprep.subr.bf16.mxu0 0
        %1357 = vmatpush1.bf16.msra.mxu0 %v767
        %1358 = vmatprep.subr.bf16.mxu0 0
        %1359 = vmatpush1.bf16.msra.mxu0 %v766
        %1360 = vmatprep.subr.bf16.mxu0 0
        %1361 = vmatpush1.bf16.msra.mxu0 %v765
        %1362 = vmatprep.subr.bf16.mxu0 0
        %1363 = vmatpush2.bf16.msra.mxu0 0
        %1364 = vmatprep.subr.bf16.mxu0 0
        %1365 = vmatpush2.bf16.msra.mxu0 0
        %1366 = vmatprep.subr.bf16.mxu0 0
        %1367 = vmatpush2.bf16.msra.mxu0 0
        %1368 = vmatprep.subr.bf16.mxu0 0
        %1369 = vmatpush2.bf16.msra.mxu0 0
        %1370 = vmatprep.subr.bf16.mxu0 0
        %1371 = vmatpush2.bf16.msra.mxu0 0
        %1372 = vmatprep.subr.bf16.mxu0 0
        %1373 = vmatpush2.bf16.msra.mxu0 0
        %1374 = vmatprep.subr.bf16.mxu0 0
        %1375 = vmatpush2.bf16.msra.mxu0 0
        %1376 = vmatprep.subr.bf16.mxu0 0
        %1377 = vmatpush2.bf16.msra.mxu0 0
        %1378 = vmatprep.mubr.bf16.mxu0 0
        %1379 = vmatmul.mubr.bf16.gmra.mxu0 %v1344
        %v1380 = vpop.f32.mrf.mxu0
        %v1381 = vadd.f32 0.0, %v1380
        %v1382 = vpop.f32.mrf.mxu0
        %v1383 = vpop.f32.mrf.mxu0
        %v1384 = vpop.f32.mrf.mxu0
        %1385 = vdwg.mxu0
        %v1386 = vadd.f32 %v1339, %v1381
        %v1387 = vadd.f32 %v1386, %v821
        %v1388 = vmax.f32 %v1387, 0.0
        %v1389 = vld [vmem:[%s460 + $0x1] sm:$0xf]
        %v1390 = vpack.c.bf16 %v1389, %v1389
        %v1392 = vsel %vm546, %v1390, 0
        %1394 = vmatprep.subr.bf16.mxu0 0
        %1395 = vmatpush1.bf16.msra.mxu0 0
        %1396 = vmatprep.subr.bf16.mxu0 0
        %1397 = vmatpush1.bf16.msra.mxu0 0
        %1398 = vmatprep.subr.bf16.mxu0 0
        %1399 = vmatpush1.bf16.msra.mxu0 0
        %1400 = vmatprep.subr.bf16.mxu0 0
        %1401 = vmatpush1.bf16.msra.mxu0 0
        %1402 = vmatprep.subr.bf16.mxu0 0
        %1403 = vmatpush1.bf16.msra.mxu0 %v541
        %1404 = vmatprep.subr.bf16.mxu0 0
        %1405 = vmatpush1.bf16.msra.mxu0 %v540
        %1406 = vmatprep.subr.bf16.mxu0 0
        %1407 = vmatpush1.bf16.msra.mxu0 %v539
        %1408 = vmatprep.subr.bf16.mxu0 0
        %1409 = vmatpush1.bf16.msra.mxu0 %v538
        %1410 = vmatprep.subr.bf16.mxu0 0
        %1411 = vmatpush2.bf16.msra.mxu0 0
        %1412 = vmatprep.subr.bf16.mxu0 0
        %1413 = vmatpush2.bf16.msra.mxu0 0
        %1414 = vmatprep.subr.bf16.mxu0 0
        %1415 = vmatpush2.bf16.msra.mxu0 0
        %1416 = vmatprep.subr.bf16.mxu0 0
        %1417 = vmatpush2.bf16.msra.mxu0 0
        %1418 = vmatprep.subr.bf16.mxu0 0
        %1419 = vmatpush2.bf16.msra.mxu0 0
        %1420 = vmatprep.subr.bf16.mxu0 0
        %1421 = vmatpush2.bf16.msra.mxu0 0
        %1422 = vmatprep.subr.bf16.mxu0 0
        %1423 = vmatpush2.bf16.msra.mxu0 0
        %1424 = vmatprep.subr.bf16.mxu0 0
        %1425 = vmatpush2.bf16.msra.mxu0 0
        %1426 = vmatprep.mubr.bf16.mxu0 0
        %1427 = vmatmul.mubr.bf16.gmra.mxu0 %v1392
        %v1428 = vpop.f32.mrf.mxu0
        %v1429 = vadd.f32 0.0, %v1428
        %v1430 = vpop.f32.mrf.mxu0
        %v1431 = vpop.f32.mrf.mxu0
        %v1432 = vpop.f32.mrf.mxu0
        %1433 = vdwg.mxu0
        %1434 = vmatprep.subr.bf16.mxu0 0
        %1435 = vmatpush1.bf16.msra.mxu0 0
        %1436 = vmatprep.subr.bf16.mxu0 0
        %1437 = vmatpush1.bf16.msra.mxu0 0
        %1438 = vmatprep.subr.bf16.mxu0 0
        %1439 = vmatpush1.bf16.msra.mxu0 0
        %1440 = vmatprep.subr.bf16.mxu0 0
        %1441 = vmatpush1.bf16.msra.mxu0 0
        %1442 = vmatprep.subr.bf16.mxu0 0
        %1443 = vmatpush1.bf16.msra.mxu0 %v609
        %1444 = vmatprep.subr.bf16.mxu0 0
        %1445 = vmatpush1.bf16.msra.mxu0 %v608
        %1446 = vmatprep.subr.bf16.mxu0 0
        %1447 = vmatpush1.bf16.msra.mxu0 %v607
        %1448 = vmatprep.subr.bf16.mxu0 0
        %1449 = vmatpush1.bf16.msra.mxu0 %v606
        %1450 = vmatprep.subr.bf16.mxu0 0
        %1451 = vmatpush2.bf16.msra.mxu0 0
        %1452 = vmatprep.subr.bf16.mxu0 0
        %1453 = vmatpush2.bf16.msra.mxu0 0
        %1454 = vmatprep.subr.bf16.mxu0 0
        %1455 = vmatpush2.bf16.msra.mxu0 0
        %1456 = vmatprep.subr.bf16.mxu0 0
        %1457 = vmatpush2.bf16.msra.mxu0 0
        %1458 = vmatprep.subr.bf16.mxu0 0
        %1459 = vmatpush2.bf16.msra.mxu0 0
        %1460 = vmatprep.subr.bf16.mxu0 0
        %1461 = vmatpush2.bf16.msra.mxu0 0
        %1462 = vmatprep.subr.bf16.mxu0 0
        %1463 = vmatpush2.bf16.msra.mxu0 0
        %1464 = vmatprep.subr.bf16.mxu0 0
        %1465 = vmatpush2.bf16.msra.mxu0 0
        %1466 = vmatprep.mubr.bf16.mxu0 0
        %1467 = vmatmul.mubr.bf16.gmra.mxu0 %v548
        %v1468 = vpop.f32.mrf.mxu0
        %v1469 = vadd.f32 %v1429, %v1468
        %v1470 = vpop.f32.mrf.mxu0
        %v1471 = vpop.f32.mrf.mxu0
        %v1472 = vpop.f32.mrf.mxu0
        %1473 = vdwg.mxu0
        %1474 = vmatprep.subr.bf16.mxu0 0
        %1475 = vmatpush1.bf16.msra.mxu0 0
        %1476 = vmatprep.subr.bf16.mxu0 0
        %1477 = vmatpush1.bf16.msra.mxu0 0
        %1478 = vmatprep.subr.bf16.mxu0 0
        %1479 = vmatpush1.bf16.msra.mxu0 0
        %1480 = vmatprep.subr.bf16.mxu0 0
        %1481 = vmatpush1.bf16.msra.mxu0 0
        %1482 = vmatprep.subr.bf16.mxu0 0
        %1483 = vmatpush1.bf16.msra.mxu0 %v688
        %1484 = vmatprep.subr.bf16.mxu0 0
        %1485 = vmatpush1.bf16.msra.mxu0 %v687
        %1486 = vmatprep.subr.bf16.mxu0 0
        %1487 = vmatpush1.bf16.msra.mxu0 %v686
        %1488 = vmatprep.subr.bf16.mxu0 0
        %1489 = vmatpush1.bf16.msra.mxu0 %v685
        %1490 = vmatprep.subr.bf16.mxu0 0
        %1491 = vmatpush2.bf16.msra.mxu0 0
        %1492 = vmatprep.subr.bf16.mxu0 0
        %1493 = vmatpush2.bf16.msra.mxu0 0
        %1494 = vmatprep.subr.bf16.mxu0 0
        %1495 = vmatpush2.bf16.msra.mxu0 0
        %1496 = vmatprep.subr.bf16.mxu0 0
        %1497 = vmatpush2.bf16.msra.mxu0 0
        %1498 = vmatprep.subr.bf16.mxu0 0
        %1499 = vmatpush2.bf16.msra.mxu0 0
        %1500 = vmatprep.subr.bf16.mxu0 0
        %1501 = vmatpush2.bf16.msra.mxu0 0
        %1502 = vmatprep.subr.bf16.mxu0 0
        %1503 = vmatpush2.bf16.msra.mxu0 0
        %1504 = vmatprep.subr.bf16.mxu0 0
        %1505 = vmatpush2.bf16.msra.mxu0 0
        %1506 = vmatprep.mubr.bf16.mxu0 0
        %1507 = vmatmul.mubr.bf16.gmra.mxu0 %v774
        %v1508 = vpop.f32.mrf.mxu0
        %v1509 = vadd.f32 0.0, %v1508
        %v1510 = vpop.f32.mrf.mxu0
        %v1511 = vpop.f32.mrf.mxu0
        %v1512 = vpop.f32.mrf.mxu0
        %1513 = vdwg.mxu0
        %v1514 = vadd.f32 %v1469, %v1509
        %v1515 = vld [vmem:[%s657 + $0x1] sm:$0xf]
        %v1516 = vpack.c.bf16 %v1515, %v1515
        %v1518 = vsel %vm546, %v1516, 0
        %1520 = vmatprep.subr.bf16.mxu0 0
        %1521 = vmatpush1.bf16.msra.mxu0 0
        %1522 = vmatprep.subr.bf16.mxu0 0
        %1523 = vmatpush1.bf16.msra.mxu0 0
        %1524 = vmatprep.subr.bf16.mxu0 0
        %1525 = vmatpush1.bf16.msra.mxu0 0
        %1526 = vmatprep.subr.bf16.mxu0 0
        %1527 = vmatpush1.bf16.msra.mxu0 0
        %1528 = vmatprep.subr.bf16.mxu0 0
        %1529 = vmatpush1.bf16.msra.mxu0 %v768
        %1530 = vmatprep.subr.bf16.mxu0 0
        %1531 = vmatpush1.bf16.msra.mxu0 %v767
        %1532 = vmatprep.subr.bf16.mxu0 0
        %1533 = vmatpush1.bf16.msra.mxu0 %v766
        %1534 = vmatprep.subr.bf16.mxu0 0
        %1535 = vmatpush1.bf16.msra.mxu0 %v765
        %1536 = vmatprep.subr.bf16.mxu0 0
        %1537 = vmatpush2.bf16.msra.mxu0 0
        %1538 = vmatprep.subr.bf16.mxu0 0
        %1539 = vmatpush2.bf16.msra.mxu0 0
        %1540 = vmatprep.subr.bf16.mxu0 0
        %1541 = vmatpush2.bf16.msra.mxu0 0
        %1542 = vmatprep.subr.bf16.mxu0 0
        %1543 = vmatpush2.bf16.msra.mxu0 0
        %1544 = vmatprep.subr.bf16.mxu0 0
        %1545 = vmatpush2.bf16.msra.mxu0 0
        %1546 = vmatprep.subr.bf16.mxu0 0
        %1547 = vmatpush2.bf16.msra.mxu0 0
        %1548 = vmatprep.subr.bf16.mxu0 0
        %1549 = vmatpush2.bf16.msra.mxu0 0
        %1550 = vmatprep.subr.bf16.mxu0 0
        %1551 = vmatpush2.bf16.msra.mxu0 0
        %1552 = vmatprep.mubr.bf16.mxu0 0
        %1553 = vmatmul.mubr.bf16.gmra.mxu0 %v1518
        %v1554 = vpop.f32.mrf.mxu0
        %v1555 = vadd.f32 0.0, %v1554
        %v1556 = vpop.f32.mrf.mxu0
        %v1557 = vpop.f32.mrf.mxu0
        %v1558 = vpop.f32.mrf.mxu0
        %1559 = vdwg.mxu0
        %v1560 = vadd.f32 %v1514, %v1555
        %v1561 = vadd.f32 %v1560, %v821
        %v1562 = vmax.f32 %v1561, 0.0
        %v1563 = vld [vmem:[%s825 + $0x1] sm:$0xf]
        %v1564 = vpack.c.bf16 %v1563, %v1563
        %v1566 = vsel %vm546, %v1564, 0
        %1568 = vmatprep.subr.bf16.mxu0 0
        %1569 = vmatpush1.bf16.msra.mxu0 0
        %1570 = vmatprep.subr.bf16.mxu0 0
        %1571 = vmatpush1.bf16.msra.mxu0 0
        %1572 = vmatprep.subr.bf16.mxu0 0
        %1573 = vmatpush1.bf16.msra.mxu0 0
        %1574 = vmatprep.subr.bf16.mxu0 0
        %1575 = vmatpush1.bf16.msra.mxu0 0
        %1576 = vmatprep.subr.bf16.mxu0 0
        %1577 = vmatpush1.bf16.msra.mxu0 %v541
        %1578 = vmatprep.subr.bf16.mxu0 0
        %1579 = vmatpush1.bf16.msra.mxu0 %v540
        %1580 = vmatprep.subr.bf16.mxu0 0
        %1581 = vmatpush1.bf16.msra.mxu0 %v539
        %1582 = vmatprep.subr.bf16.mxu0 0
        %1583 = vmatpush1.bf16.msra.mxu0 %v538
        %1584 = vmatprep.subr.bf16.mxu0 0
        %1585 = vmatpush2.bf16.msra.mxu0 0
        %1586 = vmatprep.subr.bf16.mxu0 0
        %1587 = vmatpush2.bf16.msra.mxu0 0
        %1588 = vmatprep.subr.bf16.mxu0 0
        %1589 = vmatpush2.bf16.msra.mxu0 0
        %1590 = vmatprep.subr.bf16.mxu0 0
        %1591 = vmatpush2.bf16.msra.mxu0 0
        %1592 = vmatprep.subr.bf16.mxu0 0
        %1593 = vmatpush2.bf16.msra.mxu0 0
        %1594 = vmatprep.subr.bf16.mxu0 0
        %1595 = vmatpush2.bf16.msra.mxu0 0
        %1596 = vmatprep.subr.bf16.mxu0 0
        %1597 = vmatpush2.bf16.msra.mxu0 0
        %1598 = vmatprep.subr.bf16.mxu0 0
        %1599 = vmatpush2.bf16.msra.mxu0 0
        %1600 = vmatprep.mubr.bf16.mxu0 0
        %1601 = vmatmul.mubr.bf16.gmra.mxu0 %v1566
        %v1602 = vpop.f32.mrf.mxu0
        %v1603 = vadd.f32 0.0, %v1602
        %v1604 = vpop.f32.mrf.mxu0
        %v1605 = vpop.f32.mrf.mxu0
        %v1606 = vpop.f32.mrf.mxu0
        %1607 = vdwg.mxu0
        %1608 = vmatprep.subr.bf16.mxu0 0
        %1609 = vmatpush1.bf16.msra.mxu0 0
        %1610 = vmatprep.subr.bf16.mxu0 0
        %1611 = vmatpush1.bf16.msra.mxu0 0
        %1612 = vmatprep.subr.bf16.mxu0 0
        %1613 = vmatpush1.bf16.msra.mxu0 0
        %1614 = vmatprep.subr.bf16.mxu0 0
        %1615 = vmatpush1.bf16.msra.mxu0 0
        %1616 = vmatprep.subr.bf16.mxu0 0
        %1617 = vmatpush1.bf16.msra.mxu0 %v609
        %1618 = vmatprep.subr.bf16.mxu0 0
        %1619 = vmatpush1.bf16.msra.mxu0 %v608
        %1620 = vmatprep.subr.bf16.mxu0 0
        %1621 = vmatpush1.bf16.msra.mxu0 %v607
        %1622 = vmatprep.subr.bf16.mxu0 0
        %1623 = vmatpush1.bf16.msra.mxu0 %v606
        %1624 = vmatprep.subr.bf16.mxu0 0
        %1625 = vmatpush2.bf16.msra.mxu0 0
        %1626 = vmatprep.subr.bf16.mxu0 0
        %1627 = vmatpush2.bf16.msra.mxu0 0
        %1628 = vmatprep.subr.bf16.mxu0 0
        %1629 = vmatpush2.bf16.msra.mxu0 0
        %1630 = vmatprep.subr.bf16.mxu0 0
        %1631 = vmatpush2.bf16.msra.mxu0 0
        %1632 = vmatprep.subr.bf16.mxu0 0
        %1633 = vmatpush2.bf16.msra.mxu0 0
        %1634 = vmatprep.subr.bf16.mxu0 0
        %1635 = vmatpush2.bf16.msra.mxu0 0
        %1636 = vmatprep.subr.bf16.mxu0 0
        %1637 = vmatpush2.bf16.msra.mxu0 0
        %1638 = vmatprep.subr.bf16.mxu0 0
        %1639 = vmatpush2.bf16.msra.mxu0 0
        %1640 = vmatprep.mubr.bf16.mxu0 0
        %1641 = vmatmul.mubr.bf16.gmra.mxu0 %v832
        %v1642 = vpop.f32.mrf.mxu0
        %v1643 = vadd.f32 %v1603, %v1642
        %v1644 = vpop.f32.mrf.mxu0
        %v1645 = vpop.f32.mrf.mxu0
        %v1646 = vpop.f32.mrf.mxu0
        %1647 = vdwg.mxu0
        %1648 = vmatprep.subr.bf16.mxu0 0
        %1649 = vmatpush1.bf16.msra.mxu0 0
        %1650 = vmatprep.subr.bf16.mxu0 0
        %1651 = vmatpush1.bf16.msra.mxu0 0
        %1652 = vmatprep.subr.bf16.mxu0 0
        %1653 = vmatpush1.bf16.msra.mxu0 0
        %1654 = vmatprep.subr.bf16.mxu0 0
        %1655 = vmatpush1.bf16.msra.mxu0 0
        %1656 = vmatprep.subr.bf16.mxu0 0
        %1657 = vmatpush1.bf16.msra.mxu0 %v688
        %1658 = vmatprep.subr.bf16.mxu0 0
        %1659 = vmatpush1.bf16.msra.mxu0 %v687
        %1660 = vmatprep.subr.bf16.mxu0 0
        %1661 = vmatpush1.bf16.msra.mxu0 %v686
        %1662 = vmatprep.subr.bf16.mxu0 0
        %1663 = vmatpush1.bf16.msra.mxu0 %v685
        %1664 = vmatprep.subr.bf16.mxu0 0
        %1665 = vmatpush2.bf16.msra.mxu0 0
        %1666 = vmatprep.subr.bf16.mxu0 0
        %1667 = vmatpush2.bf16.msra.mxu0 0
        %1668 = vmatprep.subr.bf16.mxu0 0
        %1669 = vmatpush2.bf16.msra.mxu0 0
        %1670 = vmatprep.subr.bf16.mxu0 0
        %1671 = vmatpush2.bf16.msra.mxu0 0
        %1672 = vmatprep.subr.bf16.mxu0 0
        %1673 = vmatpush2.bf16.msra.mxu0 0
        %1674 = vmatprep.subr.bf16.mxu0 0
        %1675 = vmatpush2.bf16.msra.mxu0 0
        %1676 = vmatprep.subr.bf16.mxu0 0
        %1677 = vmatpush2.bf16.msra.mxu0 0
        %1678 = vmatprep.subr.bf16.mxu0 0
        %1679 = vmatpush2.bf16.msra.mxu0 0
        %1680 = vmatprep.mubr.bf16.mxu0 0
        %1681 = vmatmul.mubr.bf16.gmra.mxu0 %v968
        %v1682 = vpop.f32.mrf.mxu0
        %v1683 = vadd.f32 0.0, %v1682
        %v1684 = vpop.f32.mrf.mxu0
        %v1685 = vpop.f32.mrf.mxu0
        %v1686 = vpop.f32.mrf.mxu0
        %1687 = vdwg.mxu0
        %v1688 = vadd.f32 %v1643, %v1683
        %v1689 = vld [vmem:[%s917 + $0x1] sm:$0xf]
        %v1690 = vpack.c.bf16 %v1689, %v1689
        %v1692 = vsel %vm546, %v1690, 0
        %1694 = vmatprep.subr.bf16.mxu0 0
        %1695 = vmatpush1.bf16.msra.mxu0 0
        %1696 = vmatprep.subr.bf16.mxu0 0
        %1697 = vmatpush1.bf16.msra.mxu0 0
        %1698 = vmatprep.subr.bf16.mxu0 0
        %1699 = vmatpush1.bf16.msra.mxu0 0
        %1700 = vmatprep.subr.bf16.mxu0 0
        %1701 = vmatpush1.bf16.msra.mxu0 0
        %1702 = vmatprep.subr.bf16.mxu0 0
        %1703 = vmatpush1.bf16.msra.mxu0 %v768
        %1704 = vmatprep.subr.bf16.mxu0 0
        %1705 = vmatpush1.bf16.msra.mxu0 %v767
        %1706 = vmatprep.subr.bf16.mxu0 0
        %1707 = vmatpush1.bf16.msra.mxu0 %v766
        %1708 = vmatprep.subr.bf16.mxu0 0
        %1709 = vmatpush1.bf16.msra.mxu0 %v765
        %1710 = vmatprep.subr.bf16.mxu0 0
        %1711 = vmatpush2.bf16.msra.mxu0 0
        %1712 = vmatprep.subr.bf16.mxu0 0
        %1713 = vmatpush2.bf16.msra.mxu0 0
        %1714 = vmatprep.subr.bf16.mxu0 0
        %1715 = vmatpush2.bf16.msra.mxu0 0
        %1716 = vmatprep.subr.bf16.mxu0 0
        %1717 = vmatpush2.bf16.msra.mxu0 0
        %1718 = vmatprep.subr.bf16.mxu0 0
        %1719 = vmatpush2.bf16.msra.mxu0 0
        %1720 = vmatprep.subr.bf16.mxu0 0
        %1721 = vmatpush2.bf16.msra.mxu0 0
        %1722 = vmatprep.subr.bf16.mxu0 0
        %1723 = vmatpush2.bf16.msra.mxu0 0
        %1724 = vmatprep.subr.bf16.mxu0 0
        %1725 = vmatpush2.bf16.msra.mxu0 0
        %1726 = vmatprep.mubr.bf16.mxu0 0
        %1727 = vmatmul.mubr.bf16.gmra.mxu0 %v1692
        %v1728 = vpop.f32.mrf.mxu0
        %v1729 = vadd.f32 0.0, %v1728
        %v1730 = vpop.f32.mrf.mxu0
        %v1731 = vpop.f32.mrf.mxu0
        %v1732 = vpop.f32.mrf.mxu0
        %1733 = vdwg.mxu0
        %v1734 = vadd.f32 %v1688, %v1729
        %v1735 = vadd.f32 %v1734, %v821
        %v1736 = vmax.f32 %v1735, 0.0
        %v1737 = vld [vmem:[%s1013 + $0x1] sm:$0xf]
        %v1738 = vpack.c.bf16 %v1737, %v1737
        %v1740 = vsel %vm546, %v1738, 0
        %1742 = vmatprep.subr.bf16.mxu0 0
        %1743 = vmatpush1.bf16.msra.mxu0 0
        %1744 = vmatprep.subr.bf16.mxu0 0
        %1745 = vmatpush1.bf16.msra.mxu0 0
        %1746 = vmatprep.subr.bf16.mxu0 0
        %1747 = vmatpush1.bf16.msra.mxu0 0
        %1748 = vmatprep.subr.bf16.mxu0 0
        %1749 = vmatpush1.bf16.msra.mxu0 0
        %1750 = vmatprep.subr.bf16.mxu0 0
        %1751 = vmatpush1.bf16.msra.mxu0 %v541
        %1752 = vmatprep.subr.bf16.mxu0 0
        %1753 = vmatpush1.bf16.msra.mxu0 %v540
        %1754 = vmatprep.subr.bf16.mxu0 0
        %1755 = vmatpush1.bf16.msra.mxu0 %v539
        %1756 = vmatprep.subr.bf16.mxu0 0
        %1757 = vmatpush1.bf16.msra.mxu0 %v538
        %1758 = vmatprep.subr.bf16.mxu0 0
        %1759 = vmatpush2.bf16.msra.mxu0 0
        %1760 = vmatprep.subr.bf16.mxu0 0
        %1761 = vmatpush2.bf16.msra.mxu0 0
        %1762 = vmatprep.subr.bf16.mxu0 0
        %1763 = vmatpush2.bf16.msra.mxu0 0
        %1764 = vmatprep.subr.bf16.mxu0 0
        %1765 = vmatpush2.bf16.msra.mxu0 0
        %1766 = vmatprep.subr.bf16.mxu0 0
        %1767 = vmatpush2.bf16.msra.mxu0 0
        %1768 = vmatprep.subr.bf16.mxu0 0
        %1769 = vmatpush2.bf16.msra.mxu0 0
        %1770 = vmatprep.subr.bf16.mxu0 0
        %1771 = vmatpush2.bf16.msra.mxu0 0
        %1772 = vmatprep.subr.bf16.mxu0 0
        %1773 = vmatpush2.bf16.msra.mxu0 0
        %1774 = vmatprep.mubr.bf16.mxu0 0
        %1775 = vmatmul.mubr.bf16.gmra.mxu0 %v1740
        %v1776 = vpop.f32.mrf.mxu0
        %v1777 = vadd.f32 0.0, %v1776
        %v1778 = vpop.f32.mrf.mxu0
        %v1779 = vpop.f32.mrf.mxu0
        %v1780 = vpop.f32.mrf.mxu0
        %1781 = vdwg.mxu0
        %1782 = vmatprep.subr.bf16.mxu0 0
        %1783 = vmatpush1.bf16.msra.mxu0 0
        %1784 = vmatprep.subr.bf16.mxu0 0
        %1785 = vmatpush1.bf16.msra.mxu0 0
        %1786 = vmatprep.subr.bf16.mxu0 0
        %1787 = vmatpush1.bf16.msra.mxu0 0
        %1788 = vmatprep.subr.bf16.mxu0 0
        %1789 = vmatpush1.bf16.msra.mxu0 0
        %1790 = vmatprep.subr.bf16.mxu0 0
        %1791 = vmatpush1.bf16.msra.mxu0 %v609
        %1792 = vmatprep.subr.bf16.mxu0 0
        %1793 = vmatpush1.bf16.msra.mxu0 %v608
        %1794 = vmatprep.subr.bf16.mxu0 0
        %1795 = vmatpush1.bf16.msra.mxu0 %v607
        %1796 = vmatprep.subr.bf16.mxu0 0
        %1797 = vmatpush1.bf16.msra.mxu0 %v606
        %1798 = vmatprep.subr.bf16.mxu0 0
        %1799 = vmatpush2.bf16.msra.mxu0 0
        %1800 = vmatprep.subr.bf16.mxu0 0
        %1801 = vmatpush2.bf16.msra.mxu0 0
        %1802 = vmatprep.subr.bf16.mxu0 0
        %1803 = vmatpush2.bf16.msra.mxu0 0
        %1804 = vmatprep.subr.bf16.mxu0 0
        %1805 = vmatpush2.bf16.msra.mxu0 0
        %1806 = vmatprep.subr.bf16.mxu0 0
        %1807 = vmatpush2.bf16.msra.mxu0 0
        %1808 = vmatprep.subr.bf16.mxu0 0
        %1809 = vmatpush2.bf16.msra.mxu0 0
        %1810 = vmatprep.subr.bf16.mxu0 0
        %1811 = vmatpush2.bf16.msra.mxu0 0
        %1812 = vmatprep.subr.bf16.mxu0 0
        %1813 = vmatpush2.bf16.msra.mxu0 0
        %1814 = vmatprep.mubr.bf16.mxu0 0
        %1815 = vmatmul.mubr.bf16.gmra.mxu0 %v1020
        %v1816 = vpop.f32.mrf.mxu0
        %v1817 = vadd.f32 %v1777, %v1816
        %v1818 = vpop.f32.mrf.mxu0
        %v1819 = vpop.f32.mrf.mxu0
        %v1820 = vpop.f32.mrf.mxu0
        %1821 = vdwg.mxu0
        %1822 = vmatprep.subr.bf16.mxu0 0
        %1823 = vmatpush1.bf16.msra.mxu0 0
        %1824 = vmatprep.subr.bf16.mxu0 0
        %1825 = vmatpush1.bf16.msra.mxu0 0
        %1826 = vmatprep.subr.bf16.mxu0 0
        %1827 = vmatpush1.bf16.msra.mxu0 0
        %1828 = vmatprep.subr.bf16.mxu0 0
        %1829 = vmatpush1.bf16.msra.mxu0 0
        %1830 = vmatprep.subr.bf16.mxu0 0
        %1831 = vmatpush1.bf16.msra.mxu0 %v688
        %1832 = vmatprep.subr.bf16.mxu0 0
        %1833 = vmatpush1.bf16.msra.mxu0 %v687
        %1834 = vmatprep.subr.bf16.mxu0 0
        %1835 = vmatpush1.bf16.msra.mxu0 %v686
        %1836 = vmatprep.subr.bf16.mxu0 0
        %1837 = vmatpush1.bf16.msra.mxu0 %v685
        %1838 = vmatprep.subr.bf16.mxu0 0
        %1839 = vmatpush2.bf16.msra.mxu0 0
        %1840 = vmatprep.subr.bf16.mxu0 0
        %1841 = vmatpush2.bf16.msra.mxu0 0
        %1842 = vmatprep.subr.bf16.mxu0 0
        %1843 = vmatpush2.bf16.msra.mxu0 0
        %1844 = vmatprep.subr.bf16.mxu0 0
        %1845 = vmatpush2.bf16.msra.mxu0 0
        %1846 = vmatprep.subr.bf16.mxu0 0
        %1847 = vmatpush2.bf16.msra.mxu0 0
        %1848 = vmatprep.subr.bf16.mxu0 0
        %1849 = vmatpush2.bf16.msra.mxu0 0
        %1850 = vmatprep.subr.bf16.mxu0 0
        %1851 = vmatpush2.bf16.msra.mxu0 0
        %1852 = vmatprep.subr.bf16.mxu0 0
        %1853 = vmatpush2.bf16.msra.mxu0 0
        %1854 = vmatprep.mubr.bf16.mxu0 0
        %1855 = vmatmul.mubr.bf16.gmra.mxu0 %v1156
        %v1856 = vpop.f32.mrf.mxu0
        %v1857 = vadd.f32 0.0, %v1856
        %v1858 = vpop.f32.mrf.mxu0
        %v1859 = vpop.f32.mrf.mxu0
        %v1860 = vpop.f32.mrf.mxu0
        %1861 = vdwg.mxu0
        %v1862 = vadd.f32 %v1817, %v1857
        %v1863 = vld [vmem:[%s1105 + $0x1] sm:$0xf]
        %v1864 = vpack.c.bf16 %v1863, %v1863
        %v1866 = vsel %vm546, %v1864, 0
        %1868 = vmatprep.subr.bf16.mxu0 0
        %1869 = vmatpush1.bf16.msra.mxu0 0
        %1870 = vmatprep.subr.bf16.mxu0 0
        %1871 = vmatpush1.bf16.msra.mxu0 0
        %1872 = vmatprep.subr.bf16.mxu0 0
        %1873 = vmatpush1.bf16.msra.mxu0 0
        %1874 = vmatprep.subr.bf16.mxu0 0
        %1875 = vmatpush1.bf16.msra.mxu0 0
        %1876 = vmatprep.subr.bf16.mxu0 0
        %1877 = vmatpush1.bf16.msra.mxu0 %v768
        %1878 = vmatprep.subr.bf16.mxu0 0
        %1879 = vmatpush1.bf16.msra.mxu0 %v767
        %1880 = vmatprep.subr.bf16.mxu0 0
        %1881 = vmatpush1.bf16.msra.mxu0 %v766
        %1882 = vmatprep.subr.bf16.mxu0 0
        %1883 = vmatpush1.bf16.msra.mxu0 %v765
        %1884 = vmatprep.subr.bf16.mxu0 0
        %1885 = vmatpush2.bf16.msra.mxu0 0
        %1886 = vmatprep.subr.bf16.mxu0 0
        %1887 = vmatpush2.bf16.msra.mxu0 0
        %1888 = vmatprep.subr.bf16.mxu0 0
        %1889 = vmatpush2.bf16.msra.mxu0 0
        %1890 = vmatprep.subr.bf16.mxu0 0
        %1891 = vmatpush2.bf16.msra.mxu0 0
        %1892 = vmatprep.subr.bf16.mxu0 0
        %1893 = vmatpush2.bf16.msra.mxu0 0
        %1894 = vmatprep.subr.bf16.mxu0 0
        %1895 = vmatpush2.bf16.msra.mxu0 0
        %1896 = vmatprep.subr.bf16.mxu0 0
        %1897 = vmatpush2.bf16.msra.mxu0 0
        %1898 = vmatprep.subr.bf16.mxu0 0
        %1899 = vmatpush2.bf16.msra.mxu0 0
        %1900 = vmatprep.mubr.bf16.mxu0 0
        %1901 = vmatmul.mubr.bf16.gmra.mxu0 %v1866
        %v1902 = vpop.f32.mrf.mxu0
        %v1903 = vadd.f32 0.0, %v1902
        %v1904 = vpop.f32.mrf.mxu0
        %v1905 = vpop.f32.mrf.mxu0
        %v1906 = vpop.f32.mrf.mxu0
        %1907 = vdwg.mxu0
        %v1908 = vadd.f32 %v1862, %v1903
        %v1909 = vadd.f32 %v1908, %v821
        %v1910 = vmax.f32 %v1909, 0.0
        %v1911 = vld [vmem:[%s1201 + $0x1] sm:$0xf]
        %v1912 = vpack.c.bf16 %v1911, %v1911
        %v1914 = vsel %vm546, %v1912, 0
        %1916 = vmatprep.subr.bf16.mxu0 0
        %1917 = vmatpush1.bf16.msra.mxu0 0
        %1918 = vmatprep.subr.bf16.mxu0 0
        %1919 = vmatpush1.bf16.msra.mxu0 0
        %1920 = vmatprep.subr.bf16.mxu0 0
        %1921 = vmatpush1.bf16.msra.mxu0 0
        %1922 = vmatprep.subr.bf16.mxu0 0
        %1923 = vmatpush1.bf16.msra.mxu0 0
        %1924 = vmatprep.subr.bf16.mxu0 0
        %1925 = vmatpush1.bf16.msra.mxu0 %v541
        %1926 = vmatprep.subr.bf16.mxu0 0
        %1927 = vmatpush1.bf16.msra.mxu0 %v540
        %1928 = vmatprep.subr.bf16.mxu0 0
        %1929 = vmatpush1.bf16.msra.mxu0 %v539
        %1930 = vmatprep.subr.bf16.mxu0 0
        %1931 = vmatpush1.bf16.msra.mxu0 %v538
        %1932 = vmatprep.subr.bf16.mxu0 0
        %1933 = vmatpush2.bf16.msra.mxu0 0
        %1934 = vmatprep.subr.bf16.mxu0 0
        %1935 = vmatpush2.bf16.msra.mxu0 0
        %1936 = vmatprep.subr.bf16.mxu0 0
        %1937 = vmatpush2.bf16.msra.mxu0 0
        %1938 = vmatprep.subr.bf16.mxu0 0
        %1939 = vmatpush2.bf16.msra.mxu0 0
        %1940 = vmatprep.subr.bf16.mxu0 0
        %1941 = vmatpush2.bf16.msra.mxu0 0
        %1942 = vmatprep.subr.bf16.mxu0 0
        %1943 = vmatpush2.bf16.msra.mxu0 0
        %1944 = vmatprep.subr.bf16.mxu0 0
        %1945 = vmatpush2.bf16.msra.mxu0 0
        %1946 = vmatprep.subr.bf16.mxu0 0
        %1947 = vmatpush2.bf16.msra.mxu0 0
        %1948 = vmatprep.mubr.bf16.mxu0 0
        %1949 = vmatmul.mubr.bf16.gmra.mxu0 %v1914
        %v1950 = vpop.f32.mrf.mxu0
        %v1951 = vadd.f32 0.0, %v1950
        %v1952 = vpop.f32.mrf.mxu0
        %v1953 = vpop.f32.mrf.mxu0
        %v1954 = vpop.f32.mrf.mxu0
        %1955 = vdwg.mxu0
        %1956 = vmatprep.subr.bf16.mxu0 0
        %1957 = vmatpush1.bf16.msra.mxu0 0
        %1958 = vmatprep.subr.bf16.mxu0 0
        %1959 = vmatpush1.bf16.msra.mxu0 0
        %1960 = vmatprep.subr.bf16.mxu0 0
        %1961 = vmatpush1.bf16.msra.mxu0 0
        %1962 = vmatprep.subr.bf16.mxu0 0
        %1963 = vmatpush1.bf16.msra.mxu0 0
        %1964 = vmatprep.subr.bf16.mxu0 0
        %1965 = vmatpush1.bf16.msra.mxu0 %v609
        %1966 = vmatprep.subr.bf16.mxu0 0
        %1967 = vmatpush1.bf16.msra.mxu0 %v608
        %1968 = vmatprep.subr.bf16.mxu0 0
        %1969 = vmatpush1.bf16.msra.mxu0 %v607
        %1970 = vmatprep.subr.bf16.mxu0 0
        %1971 = vmatpush1.bf16.msra.mxu0 %v606
        %1972 = vmatprep.subr.bf16.mxu0 0
        %1973 = vmatpush2.bf16.msra.mxu0 0
        %1974 = vmatprep.subr.bf16.mxu0 0
        %1975 = vmatpush2.bf16.msra.mxu0 0
        %1976 = vmatprep.subr.bf16.mxu0 0
        %1977 = vmatpush2.bf16.msra.mxu0 0
        %1978 = vmatprep.subr.bf16.mxu0 0
        %1979 = vmatpush2.bf16.msra.mxu0 0
        %1980 = vmatprep.subr.bf16.mxu0 0
        %1981 = vmatpush2.bf16.msra.mxu0 0
        %1982 = vmatprep.subr.bf16.mxu0 0
        %1983 = vmatpush2.bf16.msra.mxu0 0
        %1984 = vmatprep.subr.bf16.mxu0 0
        %1985 = vmatpush2.bf16.msra.mxu0 0
        %1986 = vmatprep.subr.bf16.mxu0 0
        %1987 = vmatpush2.bf16.msra.mxu0 0
        %1988 = vmatprep.mubr.bf16.mxu0 0
        %1989 = vmatmul.mubr.bf16.gmra.mxu0 %v1208
        %v1990 = vpop.f32.mrf.mxu0
        %v1991 = vadd.f32 %v1951, %v1990
        %v1992 = vpop.f32.mrf.mxu0
        %v1993 = vpop.f32.mrf.mxu0
        %v1994 = vpop.f32.mrf.mxu0
        %1995 = vdwg.mxu0
        %1996 = vmatprep.subr.bf16.mxu0 0
        %1997 = vmatpush1.bf16.msra.mxu0 0
        %1998 = vmatprep.subr.bf16.mxu0 0
        %1999 = vmatpush1.bf16.msra.mxu0 0
        %2000 = vmatprep.subr.bf16.mxu0 0
        %2001 = vmatpush1.bf16.msra.mxu0 0
        %2002 = vmatprep.subr.bf16.mxu0 0
        %2003 = vmatpush1.bf16.msra.mxu0 0
        %2004 = vmatprep.subr.bf16.mxu0 0
        %2005 = vmatpush1.bf16.msra.mxu0 %v688
        %2006 = vmatprep.subr.bf16.mxu0 0
        %2007 = vmatpush1.bf16.msra.mxu0 %v687
        %2008 = vmatprep.subr.bf16.mxu0 0
        %2009 = vmatpush1.bf16.msra.mxu0 %v686
        %2010 = vmatprep.subr.bf16.mxu0 0
        %2011 = vmatpush1.bf16.msra.mxu0 %v685
        %2012 = vmatprep.subr.bf16.mxu0 0
        %2013 = vmatpush2.bf16.msra.mxu0 0
        %2014 = vmatprep.subr.bf16.mxu0 0
        %2015 = vmatpush2.bf16.msra.mxu0 0
        %2016 = vmatprep.subr.bf16.mxu0 0
        %2017 = vmatpush2.bf16.msra.mxu0 0
        %2018 = vmatprep.subr.bf16.mxu0 0
        %2019 = vmatpush2.bf16.msra.mxu0 0
        %2020 = vmatprep.subr.bf16.mxu0 0
        %2021 = vmatpush2.bf16.msra.mxu0 0
        %2022 = vmatprep.subr.bf16.mxu0 0
        %2023 = vmatpush2.bf16.msra.mxu0 0
        %2024 = vmatprep.subr.bf16.mxu0 0
        %2025 = vmatpush2.bf16.msra.mxu0 0
        %2026 = vmatprep.subr.bf16.mxu0 0
        %2027 = vmatpush2.bf16.msra.mxu0 0
        %2028 = vmatprep.mubr.bf16.mxu0 0
        %2029 = vmatmul.mubr.bf16.gmra.mxu0 %v1344
        %v2030 = vpop.f32.mrf.mxu0
        %v2031 = vadd.f32 0.0, %v2030
        %v2032 = vpop.f32.mrf.mxu0
        %v2033 = vpop.f32.mrf.mxu0
        %v2034 = vpop.f32.mrf.mxu0
        %2035 = vdwg.mxu0
        %v2036 = vadd.f32 %v1991, %v2031
        %v2037 = vld [vmem:[%s1293 + $0x1] sm:$0xf]
        %v2038 = vpack.c.bf16 %v2037, %v2037
        %v2040 = vsel %vm546, %v2038, 0
        %2042 = vmatprep.subr.bf16.mxu0 0
        %2043 = vmatpush1.bf16.msra.mxu0 0
        %2044 = vmatprep.subr.bf16.mxu0 0
        %2045 = vmatpush1.bf16.msra.mxu0 0
        %2046 = vmatprep.subr.bf16.mxu0 0
        %2047 = vmatpush1.bf16.msra.mxu0 0
        %2048 = vmatprep.subr.bf16.mxu0 0
        %2049 = vmatpush1.bf16.msra.mxu0 0
        %2050 = vmatprep.subr.bf16.mxu0 0
        %2051 = vmatpush1.bf16.msra.mxu0 %v768
        %2052 = vmatprep.subr.bf16.mxu0 0
        %2053 = vmatpush1.bf16.msra.mxu0 %v767
        %2054 = vmatprep.subr.bf16.mxu0 0
        %2055 = vmatpush1.bf16.msra.mxu0 %v766
        %2056 = vmatprep.subr.bf16.mxu0 0
        %2057 = vmatpush1.bf16.msra.mxu0 %v765
        %2058 = vmatprep.subr.bf16.mxu0 0
        %2059 = vmatpush2.bf16.msra.mxu0 0
        %2060 = vmatprep.subr.bf16.mxu0 0
        %2061 = vmatpush2.bf16.msra.mxu0 0
        %2062 = vmatprep.subr.bf16.mxu0 0
        %2063 = vmatpush2.bf16.msra.mxu0 0
        %2064 = vmatprep.subr.bf16.mxu0 0
        %2065 = vmatpush2.bf16.msra.mxu0 0
        %2066 = vmatprep.subr.bf16.mxu0 0
        %2067 = vmatpush2.bf16.msra.mxu0 0
        %2068 = vmatprep.subr.bf16.mxu0 0
        %2069 = vmatpush2.bf16.msra.mxu0 0
        %2070 = vmatprep.subr.bf16.mxu0 0
        %2071 = vmatpush2.bf16.msra.mxu0 0
        %2072 = vmatprep.subr.bf16.mxu0 0
        %2073 = vmatpush2.bf16.msra.mxu0 0
        %2074 = vmatprep.mubr.bf16.mxu0 0
        %2075 = vmatmul.mubr.bf16.gmra.mxu0 %v2040
        %v2076 = vpop.f32.mrf.mxu0
        %v2077 = vadd.f32 0.0, %v2076
        %v2078 = vpop.f32.mrf.mxu0
        %v2079 = vpop.f32.mrf.mxu0
        %v2080 = vpop.f32.mrf.mxu0
        %2081 = vdwg.mxu0
        %v2082 = vadd.f32 %v2036, %v2077
        %v2083 = vadd.f32 %v2082, %v821
        %v2084 = vmax.f32 %v2083, 0.0
        %2085 = vmatprep.subr.bf16.mxu0 0
        %2086 = vmatpush1.bf16.msra.mxu0 0
        %2087 = vmatprep.subr.bf16.mxu0 0
        %2088 = vmatpush1.bf16.msra.mxu0 0
        %2089 = vmatprep.subr.bf16.mxu0 0
        %2090 = vmatpush1.bf16.msra.mxu0 0
        %2091 = vmatprep.subr.bf16.mxu0 0
        %2092 = vmatpush1.bf16.msra.mxu0 0
        %2093 = vmatprep.subr.bf16.mxu0 0
        %2094 = vmatpush1.bf16.msra.mxu0 %v541
        %2095 = vmatprep.subr.bf16.mxu0 0
        %2096 = vmatpush1.bf16.msra.mxu0 %v540
        %2097 = vmatprep.subr.bf16.mxu0 0
        %2098 = vmatpush1.bf16.msra.mxu0 %v539
        %2099 = vmatprep.subr.bf16.mxu0 0
        %2100 = vmatpush1.bf16.msra.mxu0 %v538
        %2101 = vmatprep.subr.bf16.mxu0 0
        %2102 = vmatpush2.bf16.msra.mxu0 0
        %2103 = vmatprep.subr.bf16.mxu0 0
        %2104 = vmatpush2.bf16.msra.mxu0 0
        %2105 = vmatprep.subr.bf16.mxu0 0
        %2106 = vmatpush2.bf16.msra.mxu0 0
        %2107 = vmatprep.subr.bf16.mxu0 0
        %2108 = vmatpush2.bf16.msra.mxu0 0
        %2109 = vmatprep.subr.bf16.mxu0 0
        %2110 = vmatpush2.bf16.msra.mxu0 0
        %2111 = vmatprep.subr.bf16.mxu0 0
        %2112 = vmatpush2.bf16.msra.mxu0 0
        %2113 = vmatprep.subr.bf16.mxu0 0
        %2114 = vmatpush2.bf16.msra.mxu0 0
        %2115 = vmatprep.subr.bf16.mxu0 0
        %2116 = vmatpush2.bf16.msra.mxu0 0
        %2117 = vmatprep.mubr.bf16.mxu0 0
        %2118 = vmatmul.mubr.bf16.gmra.mxu0 %v774
        %v2119 = vpop.f32.mrf.mxu0
        %v2120 = vadd.f32 0.0, %v2119
        %v2121 = vpop.f32.mrf.mxu0
        %v2122 = vpop.f32.mrf.mxu0
        %v2123 = vpop.f32.mrf.mxu0
        %2124 = vdwg.mxu0
        %2125 = vmatprep.subr.bf16.mxu0 0
        %2126 = vmatpush1.bf16.msra.mxu0 0
        %2127 = vmatprep.subr.bf16.mxu0 0
        %2128 = vmatpush1.bf16.msra.mxu0 0
        %2129 = vmatprep.subr.bf16.mxu0 0
        %2130 = vmatpush1.bf16.msra.mxu0 0
        %2131 = vmatprep.subr.bf16.mxu0 0
        %2132 = vmatpush1.bf16.msra.mxu0 0
        %2133 = vmatprep.subr.bf16.mxu0 0
        %2134 = vmatpush1.bf16.msra.mxu0 %v609
        %2135 = vmatprep.subr.bf16.mxu0 0
        %2136 = vmatpush1.bf16.msra.mxu0 %v608
        %2137 = vmatprep.subr.bf16.mxu0 0
        %2138 = vmatpush1.bf16.msra.mxu0 %v607
        %2139 = vmatprep.subr.bf16.mxu0 0
        %2140 = vmatpush1.bf16.msra.mxu0 %v606
        %2141 = vmatprep.subr.bf16.mxu0 0
        %2142 = vmatpush2.bf16.msra.mxu0 0
        %2143 = vmatprep.subr.bf16.mxu0 0
        %2144 = vmatpush2.bf16.msra.mxu0 0
        %2145 = vmatprep.subr.bf16.mxu0 0
        %2146 = vmatpush2.bf16.msra.mxu0 0
        %2147 = vmatprep.subr.bf16.mxu0 0
        %2148 = vmatpush2.bf16.msra.mxu0 0
        %2149 = vmatprep.subr.bf16.mxu0 0
        %2150 = vmatpush2.bf16.msra.mxu0 0
        %2151 = vmatprep.subr.bf16.mxu0 0
        %2152 = vmatpush2.bf16.msra.mxu0 0
        %2153 = vmatprep.subr.bf16.mxu0 0
        %2154 = vmatpush2.bf16.msra.mxu0 0
        %2155 = vmatprep.subr.bf16.mxu0 0
        %2156 = vmatpush2.bf16.msra.mxu0 0
        %2157 = vmatprep.mubr.bf16.mxu0 0
        %2158 = vmatmul.mubr.bf16.gmra.mxu0 %v694
        %v2159 = vpop.f32.mrf.mxu0
        %v2160 = vadd.f32 %v2120, %v2159
        %v2161 = vpop.f32.mrf.mxu0
        %v2162 = vpop.f32.mrf.mxu0
        %v2163 = vpop.f32.mrf.mxu0
        %2164 = vdwg.mxu0
        %2165 = vmatprep.subr.bf16.mxu0 0
        %2166 = vmatpush1.bf16.msra.mxu0 0
        %2167 = vmatprep.subr.bf16.mxu0 0
        %2168 = vmatpush1.bf16.msra.mxu0 0
        %2169 = vmatprep.subr.bf16.mxu0 0
        %2170 = vmatpush1.bf16.msra.mxu0 0
        %2171 = vmatprep.subr.bf16.mxu0 0
        %2172 = vmatpush1.bf16.msra.mxu0 0
        %2173 = vmatprep.subr.bf16.mxu0 0
        %2174 = vmatpush1.bf16.msra.mxu0 %v688
        %2175 = vmatprep.subr.bf16.mxu0 0
        %2176 = vmatpush1.bf16.msra.mxu0 %v687
        %2177 = vmatprep.subr.bf16.mxu0 0
        %2178 = vmatpush1.bf16.msra.mxu0 %v686
        %2179 = vmatprep.subr.bf16.mxu0 0
        %2180 = vmatpush1.bf16.msra.mxu0 %v685
        %2181 = vmatprep.subr.bf16.mxu0 0
        %2182 = vmatpush2.bf16.msra.mxu0 0
        %2183 = vmatprep.subr.bf16.mxu0 0
        %2184 = vmatpush2.bf16.msra.mxu0 0
        %2185 = vmatprep.subr.bf16.mxu0 0
        %2186 = vmatpush2.bf16.msra.mxu0 0
        %2187 = vmatprep.subr.bf16.mxu0 0
        %2188 = vmatpush2.bf16.msra.mxu0 0
        %2189 = vmatprep.subr.bf16.mxu0 0
        %2190 = vmatpush2.bf16.msra.mxu0 0
        %2191 = vmatprep.subr.bf16.mxu0 0
        %2192 = vmatpush2.bf16.msra.mxu0 0
        %2193 = vmatprep.subr.bf16.mxu0 0
        %2194 = vmatpush2.bf16.msra.mxu0 0
        %2195 = vmatprep.subr.bf16.mxu0 0
        %2196 = vmatpush2.bf16.msra.mxu0 0
        %2197 = vmatprep.mubr.bf16.mxu0 0
        %2198 = vmatmul.mubr.bf16.gmra.mxu0 %v875
        %v2199 = vpop.f32.mrf.mxu0
        %v2200 = vadd.f32 0.0, %v2199
        %v2201 = vpop.f32.mrf.mxu0
        %v2202 = vpop.f32.mrf.mxu0
        %v2203 = vpop.f32.mrf.mxu0
        %2204 = vdwg.mxu0
        %v2205 = vadd.f32 %v2160, %v2200
        %2206 = vmatprep.subr.bf16.mxu0 0
        %2207 = vmatpush1.bf16.msra.mxu0 0
        %2208 = vmatprep.subr.bf16.mxu0 0
        %2209 = vmatpush1.bf16.msra.mxu0 0
        %2210 = vmatprep.subr.bf16.mxu0 0
        %2211 = vmatpush1.bf16.msra.mxu0 0
        %2212 = vmatprep.subr.bf16.mxu0 0
        %2213 = vmatpush1.bf16.msra.mxu0 0
        %2214 = vmatprep.subr.bf16.mxu0 0
        %2215 = vmatpush1.bf16.msra.mxu0 %v768
        %2216 = vmatprep.subr.bf16.mxu0 0
        %2217 = vmatpush1.bf16.msra.mxu0 %v767
        %2218 = vmatprep.subr.bf16.mxu0 0
        %2219 = vmatpush1.bf16.msra.mxu0 %v766
        %2220 = vmatprep.subr.bf16.mxu0 0
        %2221 = vmatpush1.bf16.msra.mxu0 %v765
        %2222 = vmatprep.subr.bf16.mxu0 0
        %2223 = vmatpush2.bf16.msra.mxu0 0
        %2224 = vmatprep.subr.bf16.mxu0 0
        %2225 = vmatpush2.bf16.msra.mxu0 0
        %2226 = vmatprep.subr.bf16.mxu0 0
        %2227 = vmatpush2.bf16.msra.mxu0 0
        %2228 = vmatprep.subr.bf16.mxu0 0
        %2229 = vmatpush2.bf16.msra.mxu0 0
        %2230 = vmatprep.subr.bf16.mxu0 0
        %2231 = vmatpush2.bf16.msra.mxu0 0
        %2232 = vmatprep.subr.bf16.mxu0 0
        %2233 = vmatpush2.bf16.msra.mxu0 0
        %2234 = vmatprep.subr.bf16.mxu0 0
        %2235 = vmatpush2.bf16.msra.mxu0 0
        %2236 = vmatprep.subr.bf16.mxu0 0
        %2237 = vmatpush2.bf16.msra.mxu0 0
        %2238 = vmatprep.mubr.bf16.mxu0 0
        %2239 = vmatmul.mubr.bf16.gmra.mxu0 %v832
        %v2240 = vpop.f32.mrf.mxu0
        %v2241 = vadd.f32 0.0, %v2240
        %v2242 = vpop.f32.mrf.mxu0
        %v2243 = vpop.f32.mrf.mxu0
        %v2244 = vpop.f32.mrf.mxu0
        %2245 = vdwg.mxu0
        %v2246 = vadd.f32 %v2205, %v2241
        %v2247 = vadd.f32 %v2246, %v821
        %v2248 = vmax.f32 %v2247, 0.0
        %2249 = vmatprep.subr.bf16.mxu0 0
        %2250 = vmatpush1.bf16.msra.mxu0 0
        %2251 = vmatprep.subr.bf16.mxu0 0
        %2252 = vmatpush1.bf16.msra.mxu0 0
        %2253 = vmatprep.subr.bf16.mxu0 0
        %2254 = vmatpush1.bf16.msra.mxu0 0
        %2255 = vmatprep.subr.bf16.mxu0 0
        %2256 = vmatpush1.bf16.msra.mxu0 0
        %2257 = vmatprep.subr.bf16.mxu0 0
        %2258 = vmatpush1.bf16.msra.mxu0 %v541
        %2259 = vmatprep.subr.bf16.mxu0 0
        %2260 = vmatpush1.bf16.msra.mxu0 %v540
        %2261 = vmatprep.subr.bf16.mxu0 0
        %2262 = vmatpush1.bf16.msra.mxu0 %v539
        %2263 = vmatprep.subr.bf16.mxu0 0
        %2264 = vmatpush1.bf16.msra.mxu0 %v538
        %2265 = vmatprep.subr.bf16.mxu0 0
        %2266 = vmatpush2.bf16.msra.mxu0 0
        %2267 = vmatprep.subr.bf16.mxu0 0
        %2268 = vmatpush2.bf16.msra.mxu0 0
        %2269 = vmatprep.subr.bf16.mxu0 0
        %2270 = vmatpush2.bf16.msra.mxu0 0
        %2271 = vmatprep.subr.bf16.mxu0 0
        %2272 = vmatpush2.bf16.msra.mxu0 0
        %2273 = vmatprep.subr.bf16.mxu0 0
        %2274 = vmatpush2.bf16.msra.mxu0 0
        %2275 = vmatprep.subr.bf16.mxu0 0
        %2276 = vmatpush2.bf16.msra.mxu0 0
        %2277 = vmatprep.subr.bf16.mxu0 0
        %2278 = vmatpush2.bf16.msra.mxu0 0
        %2279 = vmatprep.subr.bf16.mxu0 0
        %2280 = vmatpush2.bf16.msra.mxu0 0
        %2281 = vmatprep.mubr.bf16.mxu0 0
        %2282 = vmatmul.mubr.bf16.gmra.mxu0 %v968
        %v2283 = vpop.f32.mrf.mxu0
        %v2284 = vadd.f32 0.0, %v2283
        %v2285 = vpop.f32.mrf.mxu0
        %v2286 = vpop.f32.mrf.mxu0
        %v2287 = vpop.f32.mrf.mxu0
        %2288 = vdwg.mxu0
        %2289 = vmatprep.subr.bf16.mxu0 0
        %2290 = vmatpush1.bf16.msra.mxu0 0
        %2291 = vmatprep.subr.bf16.mxu0 0
        %2292 = vmatpush1.bf16.msra.mxu0 0
        %2293 = vmatprep.subr.bf16.mxu0 0
        %2294 = vmatpush1.bf16.msra.mxu0 0
        %2295 = vmatprep.subr.bf16.mxu0 0
        %2296 = vmatpush1.bf16.msra.mxu0 0
        %2297 = vmatprep.subr.bf16.mxu0 0
        %2298 = vmatpush1.bf16.msra.mxu0 %v609
        %2299 = vmatprep.subr.bf16.mxu0 0
        %2300 = vmatpush1.bf16.msra.mxu0 %v608
        %2301 = vmatprep.subr.bf16.mxu0 0
        %2302 = vmatpush1.bf16.msra.mxu0 %v607
        %2303 = vmatprep.subr.bf16.mxu0 0
        %2304 = vmatpush1.bf16.msra.mxu0 %v606
        %2305 = vmatprep.subr.bf16.mxu0 0
        %2306 = vmatpush2.bf16.msra.mxu0 0
        %2307 = vmatprep.subr.bf16.mxu0 0
        %2308 = vmatpush2.bf16.msra.mxu0 0
        %2309 = vmatprep.subr.bf16.mxu0 0
        %2310 = vmatpush2.bf16.msra.mxu0 0
        %2311 = vmatprep.subr.bf16.mxu0 0
        %2312 = vmatpush2.bf16.msra.mxu0 0
        %2313 = vmatprep.subr.bf16.mxu0 0
        %2314 = vmatpush2.bf16.msra.mxu0 0
        %2315 = vmatprep.subr.bf16.mxu0 0
        %2316 = vmatpush2.bf16.msra.mxu0 0
        %2317 = vmatprep.subr.bf16.mxu0 0
        %2318 = vmatpush2.bf16.msra.mxu0 0
        %2319 = vmatprep.subr.bf16.mxu0 0
        %2320 = vmatpush2.bf16.msra.mxu0 0
        %2321 = vmatprep.mubr.bf16.mxu0 0
        %2322 = vmatmul.mubr.bf16.gmra.mxu0 %v921
        %v2323 = vpop.f32.mrf.mxu0
        %v2324 = vadd.f32 %v2284, %v2323
        %v2325 = vpop.f32.mrf.mxu0
        %v2326 = vpop.f32.mrf.mxu0
        %v2327 = vpop.f32.mrf.mxu0
        %2328 = vdwg.mxu0
        %2329 = vmatprep.subr.bf16.mxu0 0
        %2330 = vmatpush1.bf16.msra.mxu0 0
        %2331 = vmatprep.subr.bf16.mxu0 0
        %2332 = vmatpush1.bf16.msra.mxu0 0
        %2333 = vmatprep.subr.bf16.mxu0 0
        %2334 = vmatpush1.bf16.msra.mxu0 0
        %2335 = vmatprep.subr.bf16.mxu0 0
        %2336 = vmatpush1.bf16.msra.mxu0 0
        %2337 = vmatprep.subr.bf16.mxu0 0
        %2338 = vmatpush1.bf16.msra.mxu0 %v688
        %2339 = vmatprep.subr.bf16.mxu0 0
        %2340 = vmatpush1.bf16.msra.mxu0 %v687
        %2341 = vmatprep.subr.bf16.mxu0 0
        %2342 = vmatpush1.bf16.msra.mxu0 %v686
        %2343 = vmatprep.subr.bf16.mxu0 0
        %2344 = vmatpush1.bf16.msra.mxu0 %v685
        %2345 = vmatprep.subr.bf16.mxu0 0
        %2346 = vmatpush2.bf16.msra.mxu0 0
        %2347 = vmatprep.subr.bf16.mxu0 0
        %2348 = vmatpush2.bf16.msra.mxu0 0
        %2349 = vmatprep.subr.bf16.mxu0 0
        %2350 = vmatpush2.bf16.msra.mxu0 0
        %2351 = vmatprep.subr.bf16.mxu0 0
        %2352 = vmatpush2.bf16.msra.mxu0 0
        %2353 = vmatprep.subr.bf16.mxu0 0
        %2354 = vmatpush2.bf16.msra.mxu0 0
        %2355 = vmatprep.subr.bf16.mxu0 0
        %2356 = vmatpush2.bf16.msra.mxu0 0
        %2357 = vmatprep.subr.bf16.mxu0 0
        %2358 = vmatpush2.bf16.msra.mxu0 0
        %2359 = vmatprep.subr.bf16.mxu0 0
        %2360 = vmatpush2.bf16.msra.mxu0 0
        %2361 = vmatprep.mubr.bf16.mxu0 0
        %2362 = vmatmul.mubr.bf16.gmra.mxu0 %v1063
        %v2363 = vpop.f32.mrf.mxu0
        %v2364 = vadd.f32 0.0, %v2363
        %v2365 = vpop.f32.mrf.mxu0
        %v2366 = vpop.f32.mrf.mxu0
        %v2367 = vpop.f32.mrf.mxu0
        %2368 = vdwg.mxu0
        %v2369 = vadd.f32 %v2324, %v2364
        %2370 = vmatprep.subr.bf16.mxu0 0
        %2371 = vmatpush1.bf16.msra.mxu0 0
        %2372 = vmatprep.subr.bf16.mxu0 0
        %2373 = vmatpush1.bf16.msra.mxu0 0
        %2374 = vmatprep.subr.bf16.mxu0 0
        %2375 = vmatpush1.bf16.msra.mxu0 0
        %2376 = vmatprep.subr.bf16.mxu0 0
        %2377 = vmatpush1.bf16.msra.mxu0 0
        %2378 = vmatprep.subr.bf16.mxu0 0
        %2379 = vmatpush1.bf16.msra.mxu0 %v768
        %2380 = vmatprep.subr.bf16.mxu0 0
        %2381 = vmatpush1.bf16.msra.mxu0 %v767
        %2382 = vmatprep.subr.bf16.mxu0 0
        %2383 = vmatpush1.bf16.msra.mxu0 %v766
        %2384 = vmatprep.subr.bf16.mxu0 0
        %2385 = vmatpush1.bf16.msra.mxu0 %v765
        %2386 = vmatprep.subr.bf16.mxu0 0
        %2387 = vmatpush2.bf16.msra.mxu0 0
        %2388 = vmatprep.subr.bf16.mxu0 0
        %2389 = vmatpush2.bf16.msra.mxu0 0
        %2390 = vmatprep.subr.bf16.mxu0 0
        %2391 = vmatpush2.bf16.msra.mxu0 0
        %2392 = vmatprep.subr.bf16.mxu0 0
        %2393 = vmatpush2.bf16.msra.mxu0 0
        %2394 = vmatprep.subr.bf16.mxu0 0
        %2395 = vmatpush2.bf16.msra.mxu0 0
        %2396 = vmatprep.subr.bf16.mxu0 0
        %2397 = vmatpush2.bf16.msra.mxu0 0
        %2398 = vmatprep.subr.bf16.mxu0 0
        %2399 = vmatpush2.bf16.msra.mxu0 0
        %2400 = vmatprep.subr.bf16.mxu0 0
        %2401 = vmatpush2.bf16.msra.mxu0 0
        %2402 = vmatprep.mubr.bf16.mxu0 0
        %2403 = vmatmul.mubr.bf16.gmra.mxu0 %v1020
        %v2404 = vpop.f32.mrf.mxu0
        %v2405 = vadd.f32 0.0, %v2404
        %v2406 = vpop.f32.mrf.mxu0
        %v2407 = vpop.f32.mrf.mxu0
        %v2408 = vpop.f32.mrf.mxu0
        %2409 = vdwg.mxu0
        %v2410 = vadd.f32 %v2369, %v2405
        %v2411 = vadd.f32 %v2410, %v821
        %v2412 = vmax.f32 %v2411, 0.0
        %2413 = vmatprep.subr.bf16.mxu0 0
        %2414 = vmatpush1.bf16.msra.mxu0 0
        %2415 = vmatprep.subr.bf16.mxu0 0
        %2416 = vmatpush1.bf16.msra.mxu0 0
        %2417 = vmatprep.subr.bf16.mxu0 0
        %2418 = vmatpush1.bf16.msra.mxu0 0
        %2419 = vmatprep.subr.bf16.mxu0 0
        %2420 = vmatpush1.bf16.msra.mxu0 0
        %2421 = vmatprep.subr.bf16.mxu0 0
        %2422 = vmatpush1.bf16.msra.mxu0 %v541
        %2423 = vmatprep.subr.bf16.mxu0 0
        %2424 = vmatpush1.bf16.msra.mxu0 %v540
        %2425 = vmatprep.subr.bf16.mxu0 0
        %2426 = vmatpush1.bf16.msra.mxu0 %v539
        %2427 = vmatprep.subr.bf16.mxu0 0
        %2428 = vmatpush1.bf16.msra.mxu0 %v538
        %2429 = vmatprep.subr.bf16.mxu0 0
        %2430 = vmatpush2.bf16.msra.mxu0 0
        %2431 = vmatprep.subr.bf16.mxu0 0
        %2432 = vmatpush2.bf16.msra.mxu0 0
        %2433 = vmatprep.subr.bf16.mxu0 0
        %2434 = vmatpush2.bf16.msra.mxu0 0
        %2435 = vmatprep.subr.bf16.mxu0 0
        %2436 = vmatpush2.bf16.msra.mxu0 0
        %2437 = vmatprep.subr.bf16.mxu0 0
        %2438 = vmatpush2.bf16.msra.mxu0 0
        %2439 = vmatprep.subr.bf16.mxu0 0
        %2440 = vmatpush2.bf16.msra.mxu0 0
        %2441 = vmatprep.subr.bf16.mxu0 0
        %2442 = vmatpush2.bf16.msra.mxu0 0
        %2443 = vmatprep.subr.bf16.mxu0 0
        %2444 = vmatpush2.bf16.msra.mxu0 0
        %2445 = vmatprep.mubr.bf16.mxu0 0
        %2446 = vmatmul.mubr.bf16.gmra.mxu0 %v1156
        %v2447 = vpop.f32.mrf.mxu0
        %v2448 = vadd.f32 0.0, %v2447
        %v2449 = vpop.f32.mrf.mxu0
        %v2450 = vpop.f32.mrf.mxu0
        %v2451 = vpop.f32.mrf.mxu0
        %2452 = vdwg.mxu0
        %2453 = vmatprep.subr.bf16.mxu0 0
        %2454 = vmatpush1.bf16.msra.mxu0 0
        %2455 = vmatprep.subr.bf16.mxu0 0
        %2456 = vmatpush1.bf16.msra.mxu0 0
        %2457 = vmatprep.subr.bf16.mxu0 0
        %2458 = vmatpush1.bf16.msra.mxu0 0
        %2459 = vmatprep.subr.bf16.mxu0 0
        %2460 = vmatpush1.bf16.msra.mxu0 0
        %2461 = vmatprep.subr.bf16.mxu0 0
        %2462 = vmatpush1.bf16.msra.mxu0 %v609
        %2463 = vmatprep.subr.bf16.mxu0 0
        %2464 = vmatpush1.bf16.msra.mxu0 %v608
        %2465 = vmatprep.subr.bf16.mxu0 0
        %2466 = vmatpush1.bf16.msra.mxu0 %v607
        %2467 = vmatprep.subr.bf16.mxu0 0
        %2468 = vmatpush1.bf16.msra.mxu0 %v606
        %2469 = vmatprep.subr.bf16.mxu0 0
        %2470 = vmatpush2.bf16.msra.mxu0 0
        %2471 = vmatprep.subr.bf16.mxu0 0
        %2472 = vmatpush2.bf16.msra.mxu0 0
        %2473 = vmatprep.subr.bf16.mxu0 0
        %2474 = vmatpush2.bf16.msra.mxu0 0
        %2475 = vmatprep.subr.bf16.mxu0 0
        %2476 = vmatpush2.bf16.msra.mxu0 0
        %2477 = vmatprep.subr.bf16.mxu0 0
        %2478 = vmatpush2.bf16.msra.mxu0 0
        %2479 = vmatprep.subr.bf16.mxu0 0
        %2480 = vmatpush2.bf16.msra.mxu0 0
        %2481 = vmatprep.subr.bf16.mxu0 0
        %2482 = vmatpush2.bf16.msra.mxu0 0
        %2483 = vmatprep.subr.bf16.mxu0 0
        %2484 = vmatpush2.bf16.msra.mxu0 0
        %2485 = vmatprep.mubr.bf16.mxu0 0
        %2486 = vmatmul.mubr.bf16.gmra.mxu0 %v1109
        %v2487 = vpop.f32.mrf.mxu0
        %v2488 = vadd.f32 %v2448, %v2487
        %v2489 = vpop.f32.mrf.mxu0
        %v2490 = vpop.f32.mrf.mxu0
        %v2491 = vpop.f32.mrf.mxu0
        %2492 = vdwg.mxu0
        %2493 = vmatprep.subr.bf16.mxu0 0
        %2494 = vmatpush1.bf16.msra.mxu0 0
        %2495 = vmatprep.subr.bf16.mxu0 0
        %2496 = vmatpush1.bf16.msra.mxu0 0
        %2497 = vmatprep.subr.bf16.mxu0 0
        %2498 = vmatpush1.bf16.msra.mxu0 0
        %2499 = vmatprep.subr.bf16.mxu0 0
        %2500 = vmatpush1.bf16.msra.mxu0 0
        %2501 = vmatprep.subr.bf16.mxu0 0
        %2502 = vmatpush1.bf16.msra.mxu0 %v688
        %2503 = vmatprep.subr.bf16.mxu0 0
        %2504 = vmatpush1.bf16.msra.mxu0 %v687
        %2505 = vmatprep.subr.bf16.mxu0 0
        %2506 = vmatpush1.bf16.msra.mxu0 %v686
        %2507 = vmatprep.subr.bf16.mxu0 0
        %2508 = vmatpush1.bf16.msra.mxu0 %v685
        %2509 = vmatprep.subr.bf16.mxu0 0
        %2510 = vmatpush2.bf16.msra.mxu0 0
        %2511 = vmatprep.subr.bf16.mxu0 0
        %2512 = vmatpush2.bf16.msra.mxu0 0
        %2513 = vmatprep.subr.bf16.mxu0 0
        %2514 = vmatpush2.bf16.msra.mxu0 0
        %2515 = vmatprep.subr.bf16.mxu0 0
        %2516 = vmatpush2.bf16.msra.mxu0 0
        %2517 = vmatprep.subr.bf16.mxu0 0
        %2518 = vmatpush2.bf16.msra.mxu0 0
        %2519 = vmatprep.subr.bf16.mxu0 0
        %2520 = vmatpush2.bf16.msra.mxu0 0
        %2521 = vmatprep.subr.bf16.mxu0 0
        %2522 = vmatpush2.bf16.msra.mxu0 0
        %2523 = vmatprep.subr.bf16.mxu0 0
        %2524 = vmatpush2.bf16.msra.mxu0 0
        %2525 = vmatprep.mubr.bf16.mxu0 0
        %2526 = vmatmul.mubr.bf16.gmra.mxu0 %v1251
        %v2527 = vpop.f32.mrf.mxu0
        %v2528 = vadd.f32 0.0, %v2527
        %v2529 = vpop.f32.mrf.mxu0
        %v2530 = vpop.f32.mrf.mxu0
        %v2531 = vpop.f32.mrf.mxu0
        %2532 = vdwg.mxu0
        %v2533 = vadd.f32 %v2488, %v2528
        %2534 = vmatprep.subr.bf16.mxu0 0
        %2535 = vmatpush1.bf16.msra.mxu0 0
        %2536 = vmatprep.subr.bf16.mxu0 0
        %2537 = vmatpush1.bf16.msra.mxu0 0
        %2538 = vmatprep.subr.bf16.mxu0 0
        %2539 = vmatpush1.bf16.msra.mxu0 0
        %2540 = vmatprep.subr.bf16.mxu0 0
        %2541 = vmatpush1.bf16.msra.mxu0 0
        %2542 = vmatprep.subr.bf16.mxu0 0
        %2543 = vmatpush1.bf16.msra.mxu0 %v768
        %2544 = vmatprep.subr.bf16.mxu0 0
        %2545 = vmatpush1.bf16.msra.mxu0 %v767
        %2546 = vmatprep.subr.bf16.mxu0 0
        %2547 = vmatpush1.bf16.msra.mxu0 %v766
        %2548 = vmatprep.subr.bf16.mxu0 0
        %2549 = vmatpush1.bf16.msra.mxu0 %v765
        %2550 = vmatprep.subr.bf16.mxu0 0
        %2551 = vmatpush2.bf16.msra.mxu0 0
        %2552 = vmatprep.subr.bf16.mxu0 0
        %2553 = vmatpush2.bf16.msra.mxu0 0
        %2554 = vmatprep.subr.bf16.mxu0 0
        %2555 = vmatpush2.bf16.msra.mxu0 0
        %2556 = vmatprep.subr.bf16.mxu0 0
        %2557 = vmatpush2.bf16.msra.mxu0 0
        %2558 = vmatprep.subr.bf16.mxu0 0
        %2559 = vmatpush2.bf16.msra.mxu0 0
        %2560 = vmatprep.subr.bf16.mxu0 0
        %2561 = vmatpush2.bf16.msra.mxu0 0
        %2562 = vmatprep.subr.bf16.mxu0 0
        %2563 = vmatpush2.bf16.msra.mxu0 0
        %2564 = vmatprep.subr.bf16.mxu0 0
        %2565 = vmatpush2.bf16.msra.mxu0 0
        %2566 = vmatprep.mubr.bf16.mxu0 0
        %2567 = vmatmul.mubr.bf16.gmra.mxu0 %v1208
        %v2568 = vpop.f32.mrf.mxu0
        %v2569 = vadd.f32 0.0, %v2568
        %v2570 = vpop.f32.mrf.mxu0
        %v2571 = vpop.f32.mrf.mxu0
        %v2572 = vpop.f32.mrf.mxu0
        %2573 = vdwg.mxu0
        %v2574 = vadd.f32 %v2533, %v2569
        %v2575 = vadd.f32 %v2574, %v821
        %v2576 = vmax.f32 %v2575, 0.0
        %2577 = vmatprep.subr.bf16.mxu0 0
        %2578 = vmatpush1.bf16.msra.mxu0 0
        %2579 = vmatprep.subr.bf16.mxu0 0
        %2580 = vmatpush1.bf16.msra.mxu0 0
        %2581 = vmatprep.subr.bf16.mxu0 0
        %2582 = vmatpush1.bf16.msra.mxu0 0
        %2583 = vmatprep.subr.bf16.mxu0 0
        %2584 = vmatpush1.bf16.msra.mxu0 0
        %2585 = vmatprep.subr.bf16.mxu0 0
        %2586 = vmatpush1.bf16.msra.mxu0 %v541
        %2587 = vmatprep.subr.bf16.mxu0 0
        %2588 = vmatpush1.bf16.msra.mxu0 %v540
        %2589 = vmatprep.subr.bf16.mxu0 0
        %2590 = vmatpush1.bf16.msra.mxu0 %v539
        %2591 = vmatprep.subr.bf16.mxu0 0
        %2592 = vmatpush1.bf16.msra.mxu0 %v538
        %2593 = vmatprep.subr.bf16.mxu0 0
        %2594 = vmatpush2.bf16.msra.mxu0 0
        %2595 = vmatprep.subr.bf16.mxu0 0
        %2596 = vmatpush2.bf16.msra.mxu0 0
        %2597 = vmatprep.subr.bf16.mxu0 0
        %2598 = vmatpush2.bf16.msra.mxu0 0
        %2599 = vmatprep.subr.bf16.mxu0 0
        %2600 = vmatpush2.bf16.msra.mxu0 0
        %2601 = vmatprep.subr.bf16.mxu0 0
        %2602 = vmatpush2.bf16.msra.mxu0 0
        %2603 = vmatprep.subr.bf16.mxu0 0
        %2604 = vmatpush2.bf16.msra.mxu0 0
        %2605 = vmatprep.subr.bf16.mxu0 0
        %2606 = vmatpush2.bf16.msra.mxu0 0
        %2607 = vmatprep.subr.bf16.mxu0 0
        %2608 = vmatpush2.bf16.msra.mxu0 0
        %2609 = vmatprep.mubr.bf16.mxu0 0
        %2610 = vmatmul.mubr.bf16.gmra.mxu0 %v1344
        %v2611 = vpop.f32.mrf.mxu0
        %v2612 = vadd.f32 0.0, %v2611
        %v2613 = vpop.f32.mrf.mxu0
        %v2614 = vpop.f32.mrf.mxu0
        %v2615 = vpop.f32.mrf.mxu0
        %2616 = vdwg.mxu0
        %2617 = vmatprep.subr.bf16.mxu0 0
        %2618 = vmatpush1.bf16.msra.mxu0 0
        %2619 = vmatprep.subr.bf16.mxu0 0
        %2620 = vmatpush1.bf16.msra.mxu0 0
        %2621 = vmatprep.subr.bf16.mxu0 0
        %2622 = vmatpush1.bf16.msra.mxu0 0
        %2623 = vmatprep.subr.bf16.mxu0 0
        %2624 = vmatpush1.bf16.msra.mxu0 0
        %2625 = vmatprep.subr.bf16.mxu0 0
        %2626 = vmatpush1.bf16.msra.mxu0 %v609
        %2627 = vmatprep.subr.bf16.mxu0 0
        %2628 = vmatpush1.bf16.msra.mxu0 %v608
        %2629 = vmatprep.subr.bf16.mxu0 0
        %2630 = vmatpush1.bf16.msra.mxu0 %v607
        %2631 = vmatprep.subr.bf16.mxu0 0
        %2632 = vmatpush1.bf16.msra.mxu0 %v606
        %2633 = vmatprep.subr.bf16.mxu0 0
        %2634 = vmatpush2.bf16.msra.mxu0 0
        %2635 = vmatprep.subr.bf16.mxu0 0
        %2636 = vmatpush2.bf16.msra.mxu0 0
        %2637 = vmatprep.subr.bf16.mxu0 0
        %2638 = vmatpush2.bf16.msra.mxu0 0
        %2639 = vmatprep.subr.bf16.mxu0 0
        %2640 = vmatpush2.bf16.msra.mxu0 0
        %2641 = vmatprep.subr.bf16.mxu0 0
        %2642 = vmatpush2.bf16.msra.mxu0 0
        %2643 = vmatprep.subr.bf16.mxu0 0
        %2644 = vmatpush2.bf16.msra.mxu0 0
        %2645 = vmatprep.subr.bf16.mxu0 0
        %2646 = vmatpush2.bf16.msra.mxu0 0
        %2647 = vmatprep.subr.bf16.mxu0 0
        %2648 = vmatpush2.bf16.msra.mxu0 0
        %2649 = vmatprep.mubr.bf16.mxu0 0
        %2650 = vmatmul.mubr.bf16.gmra.mxu0 %v1297
        %v2651 = vpop.f32.mrf.mxu0
        %v2652 = vadd.f32 %v2612, %v2651
        %v2653 = vpop.f32.mrf.mxu0
        %v2654 = vpop.f32.mrf.mxu0
        %v2655 = vpop.f32.mrf.mxu0
        %2656 = vdwg.mxu0
        %s2657 = scalar_lea.vmem %s460, 32 [#allocation2]
        %v2658 = vld [vmem:[%s2657] sm:$0xf]
        %v2659 = vpack.c.bf16 %v2658, %v2658
        %v2661 = vsel %vm546, %v2659, 0
        %2663 = vmatprep.subr.bf16.mxu0 0
        %2664 = vmatpush1.bf16.msra.mxu0 0
        %2665 = vmatprep.subr.bf16.mxu0 0
        %2666 = vmatpush1.bf16.msra.mxu0 0
        %2667 = vmatprep.subr.bf16.mxu0 0
        %2668 = vmatpush1.bf16.msra.mxu0 0
        %2669 = vmatprep.subr.bf16.mxu0 0
        %2670 = vmatpush1.bf16.msra.mxu0 0
        %2671 = vmatprep.subr.bf16.mxu0 0
        %2672 = vmatpush1.bf16.msra.mxu0 %v688
        %2673 = vmatprep.subr.bf16.mxu0 0
        %2674 = vmatpush1.bf16.msra.mxu0 %v687
        %2675 = vmatprep.subr.bf16.mxu0 0
        %2676 = vmatpush1.bf16.msra.mxu0 %v686
        %2677 = vmatprep.subr.bf16.mxu0 0
        %2678 = vmatpush1.bf16.msra.mxu0 %v685
        %2679 = vmatprep.subr.bf16.mxu0 0
        %2680 = vmatpush2.bf16.msra.mxu0 0
        %2681 = vmatprep.subr.bf16.mxu0 0
        %2682 = vmatpush2.bf16.msra.mxu0 0
        %2683 = vmatprep.subr.bf16.mxu0 0
        %2684 = vmatpush2.bf16.msra.mxu0 0
        %2685 = vmatprep.subr.bf16.mxu0 0
        %2686 = vmatpush2.bf16.msra.mxu0 0
        %2687 = vmatprep.subr.bf16.mxu0 0
        %2688 = vmatpush2.bf16.msra.mxu0 0
        %2689 = vmatprep.subr.bf16.mxu0 0
        %2690 = vmatpush2.bf16.msra.mxu0 0
        %2691 = vmatprep.subr.bf16.mxu0 0
        %2692 = vmatpush2.bf16.msra.mxu0 0
        %2693 = vmatprep.subr.bf16.mxu0 0
        %2694 = vmatpush2.bf16.msra.mxu0 0
        %2695 = vmatprep.mubr.bf16.mxu0 0
        %2696 = vmatmul.mubr.bf16.gmra.mxu0 %v2661
        %v2697 = vpop.f32.mrf.mxu0
        %v2698 = vadd.f32 0.0, %v2697
        %v2699 = vpop.f32.mrf.mxu0
        %v2700 = vpop.f32.mrf.mxu0
        %v2701 = vpop.f32.mrf.mxu0
        %2702 = vdwg.mxu0
        %v2703 = vadd.f32 %v2652, %v2698
        %s2704 = scalar_lea.vmem %s460, 72 [#allocation2]
        %v2705 = vld [vmem:[%s2704] sm:$0xf]
        %v2706 = vpack.c.bf16 %v2705, %v2705
        %v2708 = vsel %vm546, %v2706, 0
        %2710 = vmatprep.subr.bf16.mxu0 0
        %2711 = vmatpush1.bf16.msra.mxu0 0
        %2712 = vmatprep.subr.bf16.mxu0 0
        %2713 = vmatpush1.bf16.msra.mxu0 0
        %2714 = vmatprep.subr.bf16.mxu0 0
        %2715 = vmatpush1.bf16.msra.mxu0 0
        %2716 = vmatprep.subr.bf16.mxu0 0
        %2717 = vmatpush1.bf16.msra.mxu0 0
        %2718 = vmatprep.subr.bf16.mxu0 0
        %2719 = vmatpush1.bf16.msra.mxu0 %v768
        %2720 = vmatprep.subr.bf16.mxu0 0
        %2721 = vmatpush1.bf16.msra.mxu0 %v767
        %2722 = vmatprep.subr.bf16.mxu0 0
        %2723 = vmatpush1.bf16.msra.mxu0 %v766
        %2724 = vmatprep.subr.bf16.mxu0 0
        %2725 = vmatpush1.bf16.msra.mxu0 %v765
        %2726 = vmatprep.subr.bf16.mxu0 0
        %2727 = vmatpush2.bf16.msra.mxu0 0
        %2728 = vmatprep.subr.bf16.mxu0 0
        %2729 = vmatpush2.bf16.msra.mxu0 0
        %2730 = vmatprep.subr.bf16.mxu0 0
        %2731 = vmatpush2.bf16.msra.mxu0 0
        %2732 = vmatprep.subr.bf16.mxu0 0
        %2733 = vmatpush2.bf16.msra.mxu0 0
        %2734 = vmatprep.subr.bf16.mxu0 0
        %2735 = vmatpush2.bf16.msra.mxu0 0
        %2736 = vmatprep.subr.bf16.mxu0 0
        %2737 = vmatpush2.bf16.msra.mxu0 0
        %2738 = vmatprep.subr.bf16.mxu0 0
        %2739 = vmatpush2.bf16.msra.mxu0 0
        %2740 = vmatprep.subr.bf16.mxu0 0
        %2741 = vmatpush2.bf16.msra.mxu0 0
        %2742 = vmatprep.mubr.bf16.mxu0 0
        %2743 = vmatmul.mubr.bf16.gmra.mxu0 %v2708
        %v2744 = vpop.f32.mrf.mxu0
        %v2745 = vadd.f32 0.0, %v2744
        %v2746 = vpop.f32.mrf.mxu0
        %v2747 = vpop.f32.mrf.mxu0
        %v2748 = vpop.f32.mrf.mxu0
        %2749 = vdwg.mxu0
        %v2750 = vadd.f32 %v2703, %v2745
        %v2751 = vadd.f32 %v2750, %v821
        %v2752 = vmax.f32 %v2751, 0.0
        %2753 = vmatprep.subr.bf16.mxu0 0
        %2754 = vmatpush1.bf16.msra.mxu0 0
        %2755 = vmatprep.subr.bf16.mxu0 0
        %2756 = vmatpush1.bf16.msra.mxu0 0
        %2757 = vmatprep.subr.bf16.mxu0 0
        %2758 = vmatpush1.bf16.msra.mxu0 0
        %2759 = vmatprep.subr.bf16.mxu0 0
        %2760 = vmatpush1.bf16.msra.mxu0 0
        %2761 = vmatprep.subr.bf16.mxu0 0
        %2762 = vmatpush1.bf16.msra.mxu0 %v541
        %2763 = vmatprep.subr.bf16.mxu0 0
        %2764 = vmatpush1.bf16.msra.mxu0 %v540
        %2765 = vmatprep.subr.bf16.mxu0 0
        %2766 = vmatpush1.bf16.msra.mxu0 %v539
        %2767 = vmatprep.subr.bf16.mxu0 0
        %2768 = vmatpush1.bf16.msra.mxu0 %v538
        %2769 = vmatprep.subr.bf16.mxu0 0
        %2770 = vmatpush2.bf16.msra.mxu0 0
        %2771 = vmatprep.subr.bf16.mxu0 0
        %2772 = vmatpush2.bf16.msra.mxu0 0
        %2773 = vmatprep.subr.bf16.mxu0 0
        %2774 = vmatpush2.bf16.msra.mxu0 0
        %2775 = vmatprep.subr.bf16.mxu0 0
        %2776 = vmatpush2.bf16.msra.mxu0 0
        %2777 = vmatprep.subr.bf16.mxu0 0
        %2778 = vmatpush2.bf16.msra.mxu0 0
        %2779 = vmatprep.subr.bf16.mxu0 0
        %2780 = vmatpush2.bf16.msra.mxu0 0
        %2781 = vmatprep.subr.bf16.mxu0 0
        %2782 = vmatpush2.bf16.msra.mxu0 0
        %2783 = vmatprep.subr.bf16.mxu0 0
        %2784 = vmatpush2.bf16.msra.mxu0 0
        %2785 = vmatprep.mubr.bf16.mxu0 0
        %2786 = vmatmul.mubr.bf16.gmra.mxu0 %v1518
        %v2787 = vpop.f32.mrf.mxu0
        %v2788 = vadd.f32 0.0, %v2787
        %v2789 = vpop.f32.mrf.mxu0
        %v2790 = vpop.f32.mrf.mxu0
        %v2791 = vpop.f32.mrf.mxu0
        %2792 = vdwg.mxu0
        %2793 = vmatprep.subr.bf16.mxu0 0
        %2794 = vmatpush1.bf16.msra.mxu0 0
        %2795 = vmatprep.subr.bf16.mxu0 0
        %2796 = vmatpush1.bf16.msra.mxu0 0
        %2797 = vmatprep.subr.bf16.mxu0 0
        %2798 = vmatpush1.bf16.msra.mxu0 0
        %2799 = vmatprep.subr.bf16.mxu0 0
        %2800 = vmatpush1.bf16.msra.mxu0 0
        %2801 = vmatprep.subr.bf16.mxu0 0
        %2802 = vmatpush1.bf16.msra.mxu0 %v609
        %2803 = vmatprep.subr.bf16.mxu0 0
        %2804 = vmatpush1.bf16.msra.mxu0 %v608
        %2805 = vmatprep.subr.bf16.mxu0 0
        %2806 = vmatpush1.bf16.msra.mxu0 %v607
        %2807 = vmatprep.subr.bf16.mxu0 0
        %2808 = vmatpush1.bf16.msra.mxu0 %v606
        %2809 = vmatprep.subr.bf16.mxu0 0
        %2810 = vmatpush2.bf16.msra.mxu0 0
        %2811 = vmatprep.subr.bf16.mxu0 0
        %2812 = vmatpush2.bf16.msra.mxu0 0
        %2813 = vmatprep.subr.bf16.mxu0 0
        %2814 = vmatpush2.bf16.msra.mxu0 0
        %2815 = vmatprep.subr.bf16.mxu0 0
        %2816 = vmatpush2.bf16.msra.mxu0 0
        %2817 = vmatprep.subr.bf16.mxu0 0
        %2818 = vmatpush2.bf16.msra.mxu0 0
        %2819 = vmatprep.subr.bf16.mxu0 0
        %2820 = vmatpush2.bf16.msra.mxu0 0
        %2821 = vmatprep.subr.bf16.mxu0 0
        %2822 = vmatpush2.bf16.msra.mxu0 0
        %2823 = vmatprep.subr.bf16.mxu0 0
        %2824 = vmatpush2.bf16.msra.mxu0 0
        %2825 = vmatprep.mubr.bf16.mxu0 0
        %2826 = vmatmul.mubr.bf16.gmra.mxu0 %v774
        %v2827 = vpop.f32.mrf.mxu0
        %v2828 = vadd.f32 %v2788, %v2827
        %v2829 = vpop.f32.mrf.mxu0
        %v2830 = vpop.f32.mrf.mxu0
        %v2831 = vpop.f32.mrf.mxu0
        %2832 = vdwg.mxu0
        %2833 = vmatprep.subr.bf16.mxu0 0
        %2834 = vmatpush1.bf16.msra.mxu0 0
        %2835 = vmatprep.subr.bf16.mxu0 0
        %2836 = vmatpush1.bf16.msra.mxu0 0
        %2837 = vmatprep.subr.bf16.mxu0 0
        %2838 = vmatpush1.bf16.msra.mxu0 0
        %2839 = vmatprep.subr.bf16.mxu0 0
        %2840 = vmatpush1.bf16.msra.mxu0 0
        %2841 = vmatprep.subr.bf16.mxu0 0
        %2842 = vmatpush1.bf16.msra.mxu0 %v688
        %2843 = vmatprep.subr.bf16.mxu0 0
        %2844 = vmatpush1.bf16.msra.mxu0 %v687
        %2845 = vmatprep.subr.bf16.mxu0 0
        %2846 = vmatpush1.bf16.msra.mxu0 %v686
        %2847 = vmatprep.subr.bf16.mxu0 0
        %2848 = vmatpush1.bf16.msra.mxu0 %v685
        %2849 = vmatprep.subr.bf16.mxu0 0
        %2850 = vmatpush2.bf16.msra.mxu0 0
        %2851 = vmatprep.subr.bf16.mxu0 0
        %2852 = vmatpush2.bf16.msra.mxu0 0
        %2853 = vmatprep.subr.bf16.mxu0 0
        %2854 = vmatpush2.bf16.msra.mxu0 0
        %2855 = vmatprep.subr.bf16.mxu0 0
        %2856 = vmatpush2.bf16.msra.mxu0 0
        %2857 = vmatprep.subr.bf16.mxu0 0
        %2858 = vmatpush2.bf16.msra.mxu0 0
        %2859 = vmatprep.subr.bf16.mxu0 0
        %2860 = vmatpush2.bf16.msra.mxu0 0
        %2861 = vmatprep.subr.bf16.mxu0 0
        %2862 = vmatpush2.bf16.msra.mxu0 0
        %2863 = vmatprep.subr.bf16.mxu0 0
        %2864 = vmatpush2.bf16.msra.mxu0 0
        %2865 = vmatprep.mubr.bf16.mxu0 0
        %2866 = vmatmul.mubr.bf16.gmra.mxu0 %v832
        %v2867 = vpop.f32.mrf.mxu0
        %v2868 = vadd.f32 0.0, %v2867
        %v2869 = vpop.f32.mrf.mxu0
        %v2870 = vpop.f32.mrf.mxu0
        %v2871 = vpop.f32.mrf.mxu0
        %2872 = vdwg.mxu0
        %v2873 = vadd.f32 %v2828, %v2868
        %2874 = vmatprep.subr.bf16.mxu0 0
        %2875 = vmatpush1.bf16.msra.mxu0 0
        %2876 = vmatprep.subr.bf16.mxu0 0
        %2877 = vmatpush1.bf16.msra.mxu0 0
        %2878 = vmatprep.subr.bf16.mxu0 0
        %2879 = vmatpush1.bf16.msra.mxu0 0
        %2880 = vmatprep.subr.bf16.mxu0 0
        %2881 = vmatpush1.bf16.msra.mxu0 0
        %2882 = vmatprep.subr.bf16.mxu0 0
        %2883 = vmatpush1.bf16.msra.mxu0 %v768
        %2884 = vmatprep.subr.bf16.mxu0 0
        %2885 = vmatpush1.bf16.msra.mxu0 %v767
        %2886 = vmatprep.subr.bf16.mxu0 0
        %2887 = vmatpush1.bf16.msra.mxu0 %v766
        %2888 = vmatprep.subr.bf16.mxu0 0
        %2889 = vmatpush1.bf16.msra.mxu0 %v765
        %2890 = vmatprep.subr.bf16.mxu0 0
        %2891 = vmatpush2.bf16.msra.mxu0 0
        %2892 = vmatprep.subr.bf16.mxu0 0
        %2893 = vmatpush2.bf16.msra.mxu0 0
        %2894 = vmatprep.subr.bf16.mxu0 0
        %2895 = vmatpush2.bf16.msra.mxu0 0
        %2896 = vmatprep.subr.bf16.mxu0 0
        %2897 = vmatpush2.bf16.msra.mxu0 0
        %2898 = vmatprep.subr.bf16.mxu0 0
        %2899 = vmatpush2.bf16.msra.mxu0 0
        %2900 = vmatprep.subr.bf16.mxu0 0
        %2901 = vmatpush2.bf16.msra.mxu0 0
        %2902 = vmatprep.subr.bf16.mxu0 0
        %2903 = vmatpush2.bf16.msra.mxu0 0
        %2904 = vmatprep.subr.bf16.mxu0 0
        %2905 = vmatpush2.bf16.msra.mxu0 0
        %2906 = vmatprep.mubr.bf16.mxu0 0
        %2907 = vmatmul.mubr.bf16.gmra.mxu0 %v1566
        %v2908 = vpop.f32.mrf.mxu0
        %v2909 = vadd.f32 0.0, %v2908
        %v2910 = vpop.f32.mrf.mxu0
        %v2911 = vpop.f32.mrf.mxu0
        %v2912 = vpop.f32.mrf.mxu0
        %2913 = vdwg.mxu0
        %v2914 = vadd.f32 %v2873, %v2909
        %v2915 = vadd.f32 %v2914, %v821
        %v2916 = vmax.f32 %v2915, 0.0
        %2917 = vmatprep.subr.bf16.mxu0 0
        %2918 = vmatpush1.bf16.msra.mxu0 0
        %2919 = vmatprep.subr.bf16.mxu0 0
        %2920 = vmatpush1.bf16.msra.mxu0 0
        %2921 = vmatprep.subr.bf16.mxu0 0
        %2922 = vmatpush1.bf16.msra.mxu0 0
        %2923 = vmatprep.subr.bf16.mxu0 0
        %2924 = vmatpush1.bf16.msra.mxu0 0
        %2925 = vmatprep.subr.bf16.mxu0 0
        %2926 = vmatpush1.bf16.msra.mxu0 %v541
        %2927 = vmatprep.subr.bf16.mxu0 0
        %2928 = vmatpush1.bf16.msra.mxu0 %v540
        %2929 = vmatprep.subr.bf16.mxu0 0
        %2930 = vmatpush1.bf16.msra.mxu0 %v539
        %2931 = vmatprep.subr.bf16.mxu0 0
        %2932 = vmatpush1.bf16.msra.mxu0 %v538
        %2933 = vmatprep.subr.bf16.mxu0 0
        %2934 = vmatpush2.bf16.msra.mxu0 0
        %2935 = vmatprep.subr.bf16.mxu0 0
        %2936 = vmatpush2.bf16.msra.mxu0 0
        %2937 = vmatprep.subr.bf16.mxu0 0
        %2938 = vmatpush2.bf16.msra.mxu0 0
        %2939 = vmatprep.subr.bf16.mxu0 0
        %2940 = vmatpush2.bf16.msra.mxu0 0
        %2941 = vmatprep.subr.bf16.mxu0 0
        %2942 = vmatpush2.bf16.msra.mxu0 0
        %2943 = vmatprep.subr.bf16.mxu0 0
        %2944 = vmatpush2.bf16.msra.mxu0 0
        %2945 = vmatprep.subr.bf16.mxu0 0
        %2946 = vmatpush2.bf16.msra.mxu0 0
        %2947 = vmatprep.subr.bf16.mxu0 0
        %2948 = vmatpush2.bf16.msra.mxu0 0
        %2949 = vmatprep.mubr.bf16.mxu0 0
        %2950 = vmatmul.mubr.bf16.gmra.mxu0 %v1692
        %v2951 = vpop.f32.mrf.mxu0
        %v2952 = vadd.f32 0.0, %v2951
        %v2953 = vpop.f32.mrf.mxu0
        %v2954 = vpop.f32.mrf.mxu0
        %v2955 = vpop.f32.mrf.mxu0
        %2956 = vdwg.mxu0
        %2957 = vmatprep.subr.bf16.mxu0 0
        %2958 = vmatpush1.bf16.msra.mxu0 0
        %2959 = vmatprep.subr.bf16.mxu0 0
        %2960 = vmatpush1.bf16.msra.mxu0 0
        %2961 = vmatprep.subr.bf16.mxu0 0
        %2962 = vmatpush1.bf16.msra.mxu0 0
        %2963 = vmatprep.subr.bf16.mxu0 0
        %2964 = vmatpush1.bf16.msra.mxu0 0
        %2965 = vmatprep.subr.bf16.mxu0 0
        %2966 = vmatpush1.bf16.msra.mxu0 %v609
        %2967 = vmatprep.subr.bf16.mxu0 0
        %2968 = vmatpush1.bf16.msra.mxu0 %v608
        %2969 = vmatprep.subr.bf16.mxu0 0
        %2970 = vmatpush1.bf16.msra.mxu0 %v607
        %2971 = vmatprep.subr.bf16.mxu0 0
        %2972 = vmatpush1.bf16.msra.mxu0 %v606
        %2973 = vmatprep.subr.bf16.mxu0 0
        %2974 = vmatpush2.bf16.msra.mxu0 0
        %2975 = vmatprep.subr.bf16.mxu0 0
        %2976 = vmatpush2.bf16.msra.mxu0 0
        %2977 = vmatprep.subr.bf16.mxu0 0
        %2978 = vmatpush2.bf16.msra.mxu0 0
        %2979 = vmatprep.subr.bf16.mxu0 0
        %2980 = vmatpush2.bf16.msra.mxu0 0
        %2981 = vmatprep.subr.bf16.mxu0 0
        %2982 = vmatpush2.bf16.msra.mxu0 0
        %2983 = vmatprep.subr.bf16.mxu0 0
        %2984 = vmatpush2.bf16.msra.mxu0 0
        %2985 = vmatprep.subr.bf16.mxu0 0
        %2986 = vmatpush2.bf16.msra.mxu0 0
        %2987 = vmatprep.subr.bf16.mxu0 0
        %2988 = vmatpush2.bf16.msra.mxu0 0
        %2989 = vmatprep.mubr.bf16.mxu0 0
        %2990 = vmatmul.mubr.bf16.gmra.mxu0 %v968
        %v2991 = vpop.f32.mrf.mxu0
        %v2992 = vadd.f32 %v2952, %v2991
        %v2993 = vpop.f32.mrf.mxu0
        %v2994 = vpop.f32.mrf.mxu0
        %v2995 = vpop.f32.mrf.mxu0
        %2996 = vdwg.mxu0
        %2997 = vmatprep.subr.bf16.mxu0 0
        %2998 = vmatpush1.bf16.msra.mxu0 0
        %2999 = vmatprep.subr.bf16.mxu0 0
        %3000 = vmatpush1.bf16.msra.mxu0 0
        %3001 = vmatprep.subr.bf16.mxu0 0
        %3002 = vmatpush1.bf16.msra.mxu0 0
        %3003 = vmatprep.subr.bf16.mxu0 0
        %3004 = vmatpush1.bf16.msra.mxu0 0
        %3005 = vmatprep.subr.bf16.mxu0 0
        %3006 = vmatpush1.bf16.msra.mxu0 %v688
        %3007 = vmatprep.subr.bf16.mxu0 0
        %3008 = vmatpush1.bf16.msra.mxu0 %v687
        %3009 = vmatprep.subr.bf16.mxu0 0
        %3010 = vmatpush1.bf16.msra.mxu0 %v686
        %3011 = vmatprep.subr.bf16.mxu0 0
        %3012 = vmatpush1.bf16.msra.mxu0 %v685
        %3013 = vmatprep.subr.bf16.mxu0 0
        %3014 = vmatpush2.bf16.msra.mxu0 0
        %3015 = vmatprep.subr.bf16.mxu0 0
        %3016 = vmatpush2.bf16.msra.mxu0 0
        %3017 = vmatprep.subr.bf16.mxu0 0
        %3018 = vmatpush2.bf16.msra.mxu0 0
        %3019 = vmatprep.subr.bf16.mxu0 0
        %3020 = vmatpush2.bf16.msra.mxu0 0
        %3021 = vmatprep.subr.bf16.mxu0 0
        %3022 = vmatpush2.bf16.msra.mxu0 0
        %3023 = vmatprep.subr.bf16.mxu0 0
        %3024 = vmatpush2.bf16.msra.mxu0 0
        %3025 = vmatprep.subr.bf16.mxu0 0
        %3026 = vmatpush2.bf16.msra.mxu0 0
        %3027 = vmatprep.subr.bf16.mxu0 0
        %3028 = vmatpush2.bf16.msra.mxu0 0
        %3029 = vmatprep.mubr.bf16.mxu0 0
        %3030 = vmatmul.mubr.bf16.gmra.mxu0 %v1020
        %v3031 = vpop.f32.mrf.mxu0
        %v3032 = vadd.f32 0.0, %v3031
        %v3033 = vpop.f32.mrf.mxu0
        %v3034 = vpop.f32.mrf.mxu0
        %v3035 = vpop.f32.mrf.mxu0
        %3036 = vdwg.mxu0
        %v3037 = vadd.f32 %v2992, %v3032
        %3038 = vmatprep.subr.bf16.mxu0 0
        %3039 = vmatpush1.bf16.msra.mxu0 0
        %3040 = vmatprep.subr.bf16.mxu0 0
        %3041 = vmatpush1.bf16.msra.mxu0 0
        %3042 = vmatprep.subr.bf16.mxu0 0
        %3043 = vmatpush1.bf16.msra.mxu0 0
        %3044 = vmatprep.subr.bf16.mxu0 0
        %3045 = vmatpush1.bf16.msra.mxu0 0
        %3046 = vmatprep.subr.bf16.mxu0 0
        %3047 = vmatpush1.bf16.msra.mxu0 %v768
        %3048 = vmatprep.subr.bf16.mxu0 0
        %3049 = vmatpush1.bf16.msra.mxu0 %v767
        %3050 = vmatprep.subr.bf16.mxu0 0
        %3051 = vmatpush1.bf16.msra.mxu0 %v766
        %3052 = vmatprep.subr.bf16.mxu0 0
        %3053 = vmatpush1.bf16.msra.mxu0 %v765
        %3054 = vmatprep.subr.bf16.mxu0 0
        %3055 = vmatpush2.bf16.msra.mxu0 0
        %3056 = vmatprep.subr.bf16.mxu0 0
        %3057 = vmatpush2.bf16.msra.mxu0 0
        %3058 = vmatprep.subr.bf16.mxu0 0
        %3059 = vmatpush2.bf16.msra.mxu0 0
        %3060 = vmatprep.subr.bf16.mxu0 0
        %3061 = vmatpush2.bf16.msra.mxu0 0
        %3062 = vmatprep.subr.bf16.mxu0 0
        %3063 = vmatpush2.bf16.msra.mxu0 0
        %3064 = vmatprep.subr.bf16.mxu0 0
        %3065 = vmatpush2.bf16.msra.mxu0 0
        %3066 = vmatprep.subr.bf16.mxu0 0
        %3067 = vmatpush2.bf16.msra.mxu0 0
        %3068 = vmatprep.subr.bf16.mxu0 0
        %3069 = vmatpush2.bf16.msra.mxu0 0
        %3070 = vmatprep.mubr.bf16.mxu0 0
        %3071 = vmatmul.mubr.bf16.gmra.mxu0 %v1740
        %v3072 = vpop.f32.mrf.mxu0
        %v3073 = vadd.f32 0.0, %v3072
        %v3074 = vpop.f32.mrf.mxu0
        %v3075 = vpop.f32.mrf.mxu0
        %v3076 = vpop.f32.mrf.mxu0
        %3077 = vdwg.mxu0
        %v3078 = vadd.f32 %v3037, %v3073
        %v3079 = vadd.f32 %v3078, %v821
        %v3080 = vmax.f32 %v3079, 0.0
        %3081 = vmatprep.subr.bf16.mxu0 0
        %3082 = vmatpush1.bf16.msra.mxu0 0
        %3083 = vmatprep.subr.bf16.mxu0 0
        %3084 = vmatpush1.bf16.msra.mxu0 0
        %3085 = vmatprep.subr.bf16.mxu0 0
        %3086 = vmatpush1.bf16.msra.mxu0 0
        %3087 = vmatprep.subr.bf16.mxu0 0
        %3088 = vmatpush1.bf16.msra.mxu0 0
        %3089 = vmatprep.subr.bf16.mxu0 0
        %3090 = vmatpush1.bf16.msra.mxu0 %v541
        %3091 = vmatprep.subr.bf16.mxu0 0
        %3092 = vmatpush1.bf16.msra.mxu0 %v540
        %3093 = vmatprep.subr.bf16.mxu0 0
        %3094 = vmatpush1.bf16.msra.mxu0 %v539
        %3095 = vmatprep.subr.bf16.mxu0 0
        %3096 = vmatpush1.bf16.msra.mxu0 %v538
        %3097 = vmatprep.subr.bf16.mxu0 0
        %3098 = vmatpush2.bf16.msra.mxu0 0
        %3099 = vmatprep.subr.bf16.mxu0 0
        %3100 = vmatpush2.bf16.msra.mxu0 0
        %3101 = vmatprep.subr.bf16.mxu0 0
        %3102 = vmatpush2.bf16.msra.mxu0 0
        %3103 = vmatprep.subr.bf16.mxu0 0
        %3104 = vmatpush2.bf16.msra.mxu0 0
        %3105 = vmatprep.subr.bf16.mxu0 0
        %3106 = vmatpush2.bf16.msra.mxu0 0
        %3107 = vmatprep.subr.bf16.mxu0 0
        %3108 = vmatpush2.bf16.msra.mxu0 0
        %3109 = vmatprep.subr.bf16.mxu0 0
        %3110 = vmatpush2.bf16.msra.mxu0 0
        %3111 = vmatprep.subr.bf16.mxu0 0
        %3112 = vmatpush2.bf16.msra.mxu0 0
        %3113 = vmatprep.mubr.bf16.mxu0 0
        %3114 = vmatmul.mubr.bf16.gmra.mxu0 %v1866
        %v3115 = vpop.f32.mrf.mxu0
        %v3116 = vadd.f32 0.0, %v3115
        %v3117 = vpop.f32.mrf.mxu0
        %v3118 = vpop.f32.mrf.mxu0
        %v3119 = vpop.f32.mrf.mxu0
        %3120 = vdwg.mxu0
        %3121 = vmatprep.subr.bf16.mxu0 0
        %3122 = vmatpush1.bf16.msra.mxu0 0
        %3123 = vmatprep.subr.bf16.mxu0 0
        %3124 = vmatpush1.bf16.msra.mxu0 0
        %3125 = vmatprep.subr.bf16.mxu0 0
        %3126 = vmatpush1.bf16.msra.mxu0 0
        %3127 = vmatprep.subr.bf16.mxu0 0
        %3128 = vmatpush1.bf16.msra.mxu0 0
        %3129 = vmatprep.subr.bf16.mxu0 0
        %3130 = vmatpush1.bf16.msra.mxu0 %v609
        %3131 = vmatprep.subr.bf16.mxu0 0
        %3132 = vmatpush1.bf16.msra.mxu0 %v608
        %3133 = vmatprep.subr.bf16.mxu0 0
        %3134 = vmatpush1.bf16.msra.mxu0 %v607
        %3135 = vmatprep.subr.bf16.mxu0 0
        %3136 = vmatpush1.bf16.msra.mxu0 %v606
        %3137 = vmatprep.subr.bf16.mxu0 0
        %3138 = vmatpush2.bf16.msra.mxu0 0
        %3139 = vmatprep.subr.bf16.mxu0 0
        %3140 = vmatpush2.bf16.msra.mxu0 0
        %3141 = vmatprep.subr.bf16.mxu0 0
        %3142 = vmatpush2.bf16.msra.mxu0 0
        %3143 = vmatprep.subr.bf16.mxu0 0
        %3144 = vmatpush2.bf16.msra.mxu0 0
        %3145 = vmatprep.subr.bf16.mxu0 0
        %3146 = vmatpush2.bf16.msra.mxu0 0
        %3147 = vmatprep.subr.bf16.mxu0 0
        %3148 = vmatpush2.bf16.msra.mxu0 0
        %3149 = vmatprep.subr.bf16.mxu0 0
        %3150 = vmatpush2.bf16.msra.mxu0 0
        %3151 = vmatprep.subr.bf16.mxu0 0
        %3152 = vmatpush2.bf16.msra.mxu0 0
        %3153 = vmatprep.mubr.bf16.mxu0 0
        %3154 = vmatmul.mubr.bf16.gmra.mxu0 %v1156
        %v3155 = vpop.f32.mrf.mxu0
        %v3156 = vadd.f32 %v3116, %v3155
        %v3157 = vpop.f32.mrf.mxu0
        %v3158 = vpop.f32.mrf.mxu0
        %v3159 = vpop.f32.mrf.mxu0
        %3160 = vdwg.mxu0
        %3161 = vmatprep.subr.bf16.mxu0 0
        %3162 = vmatpush1.bf16.msra.mxu0 0
        %3163 = vmatprep.subr.bf16.mxu0 0
        %3164 = vmatpush1.bf16.msra.mxu0 0
        %3165 = vmatprep.subr.bf16.mxu0 0
        %3166 = vmatpush1.bf16.msra.mxu0 0
        %3167 = vmatprep.subr.bf16.mxu0 0
        %3168 = vmatpush1.bf16.msra.mxu0 0
        %3169 = vmatprep.subr.bf16.mxu0 0
        %3170 = vmatpush1.bf16.msra.mxu0 %v688
        %3171 = vmatprep.subr.bf16.mxu0 0
        %3172 = vmatpush1.bf16.msra.mxu0 %v687
        %3173 = vmatprep.subr.bf16.mxu0 0
        %3174 = vmatpush1.bf16.msra.mxu0 %v686
        %3175 = vmatprep.subr.bf16.mxu0 0
        %3176 = vmatpush1.bf16.msra.mxu0 %v685
        %3177 = vmatprep.subr.bf16.mxu0 0
        %3178 = vmatpush2.bf16.msra.mxu0 0
        %3179 = vmatprep.subr.bf16.mxu0 0
        %3180 = vmatpush2.bf16.msra.mxu0 0
        %3181 = vmatprep.subr.bf16.mxu0 0
        %3182 = vmatpush2.bf16.msra.mxu0 0
        %3183 = vmatprep.subr.bf16.mxu0 0
        %3184 = vmatpush2.bf16.msra.mxu0 0
        %3185 = vmatprep.subr.bf16.mxu0 0
        %3186 = vmatpush2.bf16.msra.mxu0 0
        %3187 = vmatprep.subr.bf16.mxu0 0
        %3188 = vmatpush2.bf16.msra.mxu0 0
        %3189 = vmatprep.subr.bf16.mxu0 0
        %3190 = vmatpush2.bf16.msra.mxu0 0
        %3191 = vmatprep.subr.bf16.mxu0 0
        %3192 = vmatpush2.bf16.msra.mxu0 0
        %3193 = vmatprep.mubr.bf16.mxu0 0
        %3194 = vmatmul.mubr.bf16.gmra.mxu0 %v1208
        %v3195 = vpop.f32.mrf.mxu0
        %v3196 = vadd.f32 0.0, %v3195
        %v3197 = vpop.f32.mrf.mxu0
        %v3198 = vpop.f32.mrf.mxu0
        %v3199 = vpop.f32.mrf.mxu0
        %3200 = vdwg.mxu0
        %v3201 = vadd.f32 %v3156, %v3196
        %3202 = vmatprep.subr.bf16.mxu0 0
        %3203 = vmatpush1.bf16.msra.mxu0 0
        %3204 = vmatprep.subr.bf16.mxu0 0
        %3205 = vmatpush1.bf16.msra.mxu0 0
        %3206 = vmatprep.subr.bf16.mxu0 0
        %3207 = vmatpush1.bf16.msra.mxu0 0
        %3208 = vmatprep.subr.bf16.mxu0 0
        %3209 = vmatpush1.bf16.msra.mxu0 0
        %3210 = vmatprep.subr.bf16.mxu0 0
        %3211 = vmatpush1.bf16.msra.mxu0 %v768
        %3212 = vmatprep.subr.bf16.mxu0 0
        %3213 = vmatpush1.bf16.msra.mxu0 %v767
        %3214 = vmatprep.subr.bf16.mxu0 0
        %3215 = vmatpush1.bf16.msra.mxu0 %v766
        %3216 = vmatprep.subr.bf16.mxu0 0
        %3217 = vmatpush1.bf16.msra.mxu0 %v765
        %3218 = vmatprep.subr.bf16.mxu0 0
        %3219 = vmatpush2.bf16.msra.mxu0 0
        %3220 = vmatprep.subr.bf16.mxu0 0
        %3221 = vmatpush2.bf16.msra.mxu0 0
        %3222 = vmatprep.subr.bf16.mxu0 0
        %3223 = vmatpush2.bf16.msra.mxu0 0
        %3224 = vmatprep.subr.bf16.mxu0 0
        %3225 = vmatpush2.bf16.msra.mxu0 0
        %3226 = vmatprep.subr.bf16.mxu0 0
        %3227 = vmatpush2.bf16.msra.mxu0 0
        %3228 = vmatprep.subr.bf16.mxu0 0
        %3229 = vmatpush2.bf16.msra.mxu0 0
        %3230 = vmatprep.subr.bf16.mxu0 0
        %3231 = vmatpush2.bf16.msra.mxu0 0
        %3232 = vmatprep.subr.bf16.mxu0 0
        %3233 = vmatpush2.bf16.msra.mxu0 0
        %3234 = vmatprep.mubr.bf16.mxu0 0
        %3235 = vmatmul.mubr.bf16.gmra.mxu0 %v1914
        %v3236 = vpop.f32.mrf.mxu0
        %v3237 = vadd.f32 0.0, %v3236
        %v3238 = vpop.f32.mrf.mxu0
        %v3239 = vpop.f32.mrf.mxu0
        %v3240 = vpop.f32.mrf.mxu0
        %3241 = vdwg.mxu0
        %v3242 = vadd.f32 %v3201, %v3237
        %v3243 = vadd.f32 %v3242, %v821
        %v3244 = vmax.f32 %v3243, 0.0
        %3245 = vmatprep.subr.bf16.mxu0 0
        %3246 = vmatpush1.bf16.msra.mxu0 0
        %3247 = vmatprep.subr.bf16.mxu0 0
        %3248 = vmatpush1.bf16.msra.mxu0 0
        %3249 = vmatprep.subr.bf16.mxu0 0
        %3250 = vmatpush1.bf16.msra.mxu0 0
        %3251 = vmatprep.subr.bf16.mxu0 0
        %3252 = vmatpush1.bf16.msra.mxu0 0
        %3253 = vmatprep.subr.bf16.mxu0 0
        %3254 = vmatpush1.bf16.msra.mxu0 %v541
        %3255 = vmatprep.subr.bf16.mxu0 0
        %3256 = vmatpush1.bf16.msra.mxu0 %v540
        %3257 = vmatprep.subr.bf16.mxu0 0
        %3258 = vmatpush1.bf16.msra.mxu0 %v539
        %3259 = vmatprep.subr.bf16.mxu0 0
        %3260 = vmatpush1.bf16.msra.mxu0 %v538
        %3261 = vmatprep.subr.bf16.mxu0 0
        %3262 = vmatpush2.bf16.msra.mxu0 0
        %3263 = vmatprep.subr.bf16.mxu0 0
        %3264 = vmatpush2.bf16.msra.mxu0 0
        %3265 = vmatprep.subr.bf16.mxu0 0
        %3266 = vmatpush2.bf16.msra.mxu0 0
        %3267 = vmatprep.subr.bf16.mxu0 0
        %3268 = vmatpush2.bf16.msra.mxu0 0
        %3269 = vmatprep.subr.bf16.mxu0 0
        %3270 = vmatpush2.bf16.msra.mxu0 0
        %3271 = vmatprep.subr.bf16.mxu0 0
        %3272 = vmatpush2.bf16.msra.mxu0 0
        %3273 = vmatprep.subr.bf16.mxu0 0
        %3274 = vmatpush2.bf16.msra.mxu0 0
        %3275 = vmatprep.subr.bf16.mxu0 0
        %3276 = vmatpush2.bf16.msra.mxu0 0
        %3277 = vmatprep.mubr.bf16.mxu0 0
        %3278 = vmatmul.mubr.bf16.gmra.mxu0 %v2040
        %v3279 = vpop.f32.mrf.mxu0
        %v3280 = vadd.f32 0.0, %v3279
        %v3281 = vpop.f32.mrf.mxu0
        %v3282 = vpop.f32.mrf.mxu0
        %v3283 = vpop.f32.mrf.mxu0
        %3284 = vdwg.mxu0
        %3285 = vmatprep.subr.bf16.mxu0 0
        %3286 = vmatpush1.bf16.msra.mxu0 0
        %3287 = vmatprep.subr.bf16.mxu0 0
        %3288 = vmatpush1.bf16.msra.mxu0 0
        %3289 = vmatprep.subr.bf16.mxu0 0
        %3290 = vmatpush1.bf16.msra.mxu0 0
        %3291 = vmatprep.subr.bf16.mxu0 0
        %3292 = vmatpush1.bf16.msra.mxu0 0
        %3293 = vmatprep.subr.bf16.mxu0 0
        %3294 = vmatpush1.bf16.msra.mxu0 %v609
        %3295 = vmatprep.subr.bf16.mxu0 0
        %3296 = vmatpush1.bf16.msra.mxu0 %v608
        %3297 = vmatprep.subr.bf16.mxu0 0
        %3298 = vmatpush1.bf16.msra.mxu0 %v607
        %3299 = vmatprep.subr.bf16.mxu0 0
        %3300 = vmatpush1.bf16.msra.mxu0 %v606
        %3301 = vmatprep.subr.bf16.mxu0 0
        %3302 = vmatpush2.bf16.msra.mxu0 0
        %3303 = vmatprep.subr.bf16.mxu0 0
        %3304 = vmatpush2.bf16.msra.mxu0 0
        %3305 = vmatprep.subr.bf16.mxu0 0
        %3306 = vmatpush2.bf16.msra.mxu0 0
        %3307 = vmatprep.subr.bf16.mxu0 0
        %3308 = vmatpush2.bf16.msra.mxu0 0
        %3309 = vmatprep.subr.bf16.mxu0 0
        %3310 = vmatpush2.bf16.msra.mxu0 0
        %3311 = vmatprep.subr.bf16.mxu0 0
        %3312 = vmatpush2.bf16.msra.mxu0 0
        %3313 = vmatprep.subr.bf16.mxu0 0
        %3314 = vmatpush2.bf16.msra.mxu0 0
        %3315 = vmatprep.subr.bf16.mxu0 0
        %3316 = vmatpush2.bf16.msra.mxu0 0
        %3317 = vmatprep.mubr.bf16.mxu0 0
        %3318 = vmatmul.mubr.bf16.gmra.mxu0 %v1344
        %v3319 = vpop.f32.mrf.mxu0
        %v3320 = vadd.f32 %v3280, %v3319
        %v3321 = vpop.f32.mrf.mxu0
        %v3322 = vpop.f32.mrf.mxu0
        %v3323 = vpop.f32.mrf.mxu0
        %3324 = vdwg.mxu0
        %3325 = vmatprep.subr.bf16.mxu0 0
        %3326 = vmatpush1.bf16.msra.mxu0 0
        %3327 = vmatprep.subr.bf16.mxu0 0
        %3328 = vmatpush1.bf16.msra.mxu0 0
        %3329 = vmatprep.subr.bf16.mxu0 0
        %3330 = vmatpush1.bf16.msra.mxu0 0
        %3331 = vmatprep.subr.bf16.mxu0 0
        %3332 = vmatpush1.bf16.msra.mxu0 0
        %3333 = vmatprep.subr.bf16.mxu0 0
        %3334 = vmatpush1.bf16.msra.mxu0 %v688
        %3335 = vmatprep.subr.bf16.mxu0 0
        %3336 = vmatpush1.bf16.msra.mxu0 %v687
        %3337 = vmatprep.subr.bf16.mxu0 0
        %3338 = vmatpush1.bf16.msra.mxu0 %v686
        %3339 = vmatprep.subr.bf16.mxu0 0
        %3340 = vmatpush1.bf16.msra.mxu0 %v685
        %3341 = vmatprep.subr.bf16.mxu0 0
        %3342 = vmatpush2.bf16.msra.mxu0 0
        %3343 = vmatprep.subr.bf16.mxu0 0
        %3344 = vmatpush2.bf16.msra.mxu0 0
        %3345 = vmatprep.subr.bf16.mxu0 0
        %3346 = vmatpush2.bf16.msra.mxu0 0
        %3347 = vmatprep.subr.bf16.mxu0 0
        %3348 = vmatpush2.bf16.msra.mxu0 0
        %3349 = vmatprep.subr.bf16.mxu0 0
        %3350 = vmatpush2.bf16.msra.mxu0 0
        %3351 = vmatprep.subr.bf16.mxu0 0
        %3352 = vmatpush2.bf16.msra.mxu0 0
        %3353 = vmatprep.subr.bf16.mxu0 0
        %3354 = vmatpush2.bf16.msra.mxu0 0
        %3355 = vmatprep.subr.bf16.mxu0 0
        %3356 = vmatpush2.bf16.msra.mxu0 0
        %3357 = vmatprep.mubr.bf16.mxu0 0
        %3358 = vmatmul.mubr.bf16.gmra.mxu0 %v2708
        %v3359 = vpop.f32.mrf.mxu0
        %v3360 = vadd.f32 0.0, %v3359
        %v3361 = vpop.f32.mrf.mxu0
        %v3362 = vpop.f32.mrf.mxu0
        %v3363 = vpop.f32.mrf.mxu0
        %3364 = vdwg.mxu0
        %v3365 = vadd.f32 %v3320, %v3360
        %v3366 = vld [vmem:[%s2657 + $0x1] sm:$0xf]
        %v3367 = vpack.c.bf16 %v3366, %v3366
        %v3369 = vsel %vm546, %v3367, 0
        %3371 = vmatprep.subr.bf16.mxu0 0
        %3372 = vmatpush1.bf16.msra.mxu0 0
        %3373 = vmatprep.subr.bf16.mxu0 0
        %3374 = vmatpush1.bf16.msra.mxu0 0
        %3375 = vmatprep.subr.bf16.mxu0 0
        %3376 = vmatpush1.bf16.msra.mxu0 0
        %3377 = vmatprep.subr.bf16.mxu0 0
        %3378 = vmatpush1.bf16.msra.mxu0 0
        %3379 = vmatprep.subr.bf16.mxu0 0
        %3380 = vmatpush1.bf16.msra.mxu0 %v768
        %3381 = vmatprep.subr.bf16.mxu0 0
        %3382 = vmatpush1.bf16.msra.mxu0 %v767
        %3383 = vmatprep.subr.bf16.mxu0 0
        %3384 = vmatpush1.bf16.msra.mxu0 %v766
        %3385 = vmatprep.subr.bf16.mxu0 0
        %3386 = vmatpush1.bf16.msra.mxu0 %v765
        %3387 = vmatprep.subr.bf16.mxu0 0
        %3388 = vmatpush2.bf16.msra.mxu0 0
        %3389 = vmatprep.subr.bf16.mxu0 0
        %3390 = vmatpush2.bf16.msra.mxu0 0
        %3391 = vmatprep.subr.bf16.mxu0 0
        %3392 = vmatpush2.bf16.msra.mxu0 0
        %3393 = vmatprep.subr.bf16.mxu0 0
        %3394 = vmatpush2.bf16.msra.mxu0 0
        %3395 = vmatprep.subr.bf16.mxu0 0
        %3396 = vmatpush2.bf16.msra.mxu0 0
        %3397 = vmatprep.subr.bf16.mxu0 0
        %3398 = vmatpush2.bf16.msra.mxu0 0
        %3399 = vmatprep.subr.bf16.mxu0 0
        %3400 = vmatpush2.bf16.msra.mxu0 0
        %3401 = vmatprep.subr.bf16.mxu0 0
        %3402 = vmatpush2.bf16.msra.mxu0 0
        %3403 = vmatprep.mubr.bf16.mxu0 0
        %3404 = vmatmul.mubr.bf16.gmra.mxu0 %v3369
        %v3405 = vpop.f32.mrf.mxu0
        %v3406 = vadd.f32 0.0, %v3405
        %v3407 = vpop.f32.mrf.mxu0
        %v3408 = vpop.f32.mrf.mxu0
        %v3409 = vpop.f32.mrf.mxu0
        %3410 = vdwg.mxu0
        %v3411 = vadd.f32 %v3365, %v3406
        %v3412 = vadd.f32 %v3411, %v821
        %v3413 = vmax.f32 %v3412, 0.0
        %v3414 = vpack.c.bf16 %v824, %v824
        %v3415 = vld [vmem:[%s2] sm:$0xf]
        %v3416 = vld [vmem:[%s2 + $0x4] sm:$0xf]
        %v3417 = vld [vmem:[%s2 + $0x8] sm:$0xf]
        %v3418 = vld [vmem:[%s2 + $0xc] sm:$0xf]
        %v3419 = vpack.c.bf16 %v1562, %v1562
        %s3420 = scalar_lea.vmem %s2, 16
        %v3421 = vld [vmem:[%s3420] sm:$0xf]
        %v3422 = vld [vmem:[%s3420 + $0x4] sm:$0xf]
        %v3423 = vld [vmem:[%s3420 + $0x8] sm:$0xf]
        %v3424 = vld [vmem:[%s3420 + $0xc] sm:$0xf]
        %v3429 = vunpack.c.l.b16 %v3421
        %v3430 = vunpack.c.l.b16 %v3422
        %v3431 = vunpack.c.l.b16 %v3423
        %v3432 = vunpack.c.l.b16 %v3424
        %v3433 = vpack.c.b16 %v3430, %v3429
        %v3434 = vpack.c.b16 %v3432, %v3431
        %vm3437 = vcmask 261120
        %v3439 = vsel %vm3437, %v3419, 0
        %3441 = vmatprep.subr.bf16.mxu0 0
        %3442 = vmatpush1.bf16.msra.mxu0 0
        %3443 = vmatprep.subr.bf16.mxu0 0
        %3444 = vmatpush1.bf16.msra.mxu0 0
        %3445 = vmatprep.subr.bf16.mxu0 0
        %3446 = vmatpush1.bf16.msra.mxu0 0
        %3447 = vmatprep.subr.bf16.mxu0 0
        %3448 = vmatpush1.bf16.msra.mxu0 0
        %3449 = vmatprep.subr.bf16.mxu0 0
        %3450 = vmatpush1.bf16.msra.mxu0 0
        %3451 = vmatprep.subr.bf16.mxu0 0
        %3452 = vmatpush1.bf16.msra.mxu0 0
        %3453 = vmatprep.subr.bf16.mxu0 0
        %3454 = vmatpush1.bf16.msra.mxu0 %v3434
        %3455 = vmatprep.subr.bf16.mxu0 0
        %3456 = vmatpush1.bf16.msra.mxu0 %v3433
        %3457 = vmatprep.subr.bf16.mxu0 0
        %3458 = vmatpush2.bf16.msra.mxu0 0
        %3459 = vmatprep.subr.bf16.mxu0 0
        %3460 = vmatpush2.bf16.msra.mxu0 0
        %3461 = vmatprep.subr.bf16.mxu0 0
        %3462 = vmatpush2.bf16.msra.mxu0 0
        %3463 = vmatprep.subr.bf16.mxu0 0
        %3464 = vmatpush2.bf16.msra.mxu0 0
        %3465 = vmatprep.subr.bf16.mxu0 0
        %3466 = vmatpush2.bf16.msra.mxu0 0
        %3467 = vmatprep.subr.bf16.mxu0 0
        %3468 = vmatpush2.bf16.msra.mxu0 0
        %3469 = vmatprep.subr.bf16.mxu0 0
        %3470 = vmatpush2.bf16.msra.mxu0 0
        %3471 = vmatprep.subr.bf16.mxu0 0
        %3472 = vmatpush2.bf16.msra.mxu0 0
        %3473 = vmatprep.mubr.bf16.mxu0 0
        %3474 = vmatmul.mubr.bf16.gmra.mxu0 %v3439
        %v3475 = vpop.f32.mrf.mxu0
        %v3476 = vadd.f32 0.0, %v3475
        %v3477 = vpop.f32.mrf.mxu0
        %v3478 = vpop.f32.mrf.mxu0
        %v3479 = vpop.f32.mrf.mxu0
        %3480 = vdwg.mxu0
        %v3485 = vunpack.c.l.b16 %v3415
        %v3486 = vunpack.c.l.b16 %v3416
        %v3487 = vunpack.c.l.b16 %v3417
        %v3488 = vunpack.c.l.b16 %v3418
        %v3489 = vpack.c.b16 %v3486, %v3485
        %v3490 = vpack.c.b16 %v3488, %v3487
        %v3494 = vsel %vm3437, %v3414, 0
        %3496 = vmatprep.subr.bf16.mxu0 0
        %3497 = vmatpush1.bf16.msra.mxu0 0
        %3498 = vmatprep.subr.bf16.mxu0 0
        %3499 = vmatpush1.bf16.msra.mxu0 0
        %3500 = vmatprep.subr.bf16.mxu0 0
        %3501 = vmatpush1.bf16.msra.mxu0 0
        %3502 = vmatprep.subr.bf16.mxu0 0
        %3503 = vmatpush1.bf16.msra.mxu0 0
        %3504 = vmatprep.subr.bf16.mxu0 0
        %3505 = vmatpush1.bf16.msra.mxu0 0
        %3506 = vmatprep.subr.bf16.mxu0 0
        %3507 = vmatpush1.bf16.msra.mxu0 0
        %3508 = vmatprep.subr.bf16.mxu0 0
        %3509 = vmatpush1.bf16.msra.mxu0 %v3490
        %3510 = vmatprep.subr.bf16.mxu0 0
        %3511 = vmatpush1.bf16.msra.mxu0 %v3489
        %3512 = vmatprep.subr.bf16.mxu0 0
        %3513 = vmatpush2.bf16.msra.mxu0 0
        %3514 = vmatprep.subr.bf16.mxu0 0
        %3515 = vmatpush2.bf16.msra.mxu0 0
        %3516 = vmatprep.subr.bf16.mxu0 0
        %3517 = vmatpush2.bf16.msra.mxu0 0
        %3518 = vmatprep.subr.bf16.mxu0 0
        %3519 = vmatpush2.bf16.msra.mxu0 0
        %3520 = vmatprep.subr.bf16.mxu0 0
        %3521 = vmatpush2.bf16.msra.mxu0 0
        %3522 = vmatprep.subr.bf16.mxu0 0
        %3523 = vmatpush2.bf16.msra.mxu0 0
        %3524 = vmatprep.subr.bf16.mxu0 0
        %3525 = vmatpush2.bf16.msra.mxu0 0
        %3526 = vmatprep.subr.bf16.mxu0 0
        %3527 = vmatpush2.bf16.msra.mxu0 0
        %3528 = vmatprep.mubr.bf16.mxu0 0
        %3529 = vmatmul.mubr.bf16.gmra.mxu0 %v3494
        %v3530 = vpop.f32.mrf.mxu0
        %v3531 = vadd.f32 %v3476, %v3530
        %v3532 = vpop.f32.mrf.mxu0
        %v3533 = vpop.f32.mrf.mxu0
        %v3534 = vpop.f32.mrf.mxu0
        %3535 = vdwg.mxu0
        %s3536 = scalar_lea.vmem %s2, 32
        %v3537 = vld [vmem:[%s3536] sm:$0xf]
        %v3538 = vld [vmem:[%s3536 + $0x4] sm:$0xf]
        %v3539 = vld [vmem:[%s3536 + $0x8] sm:$0xf]
        %v3540 = vld [vmem:[%s3536 + $0xc] sm:$0xf]
        %v3541 = vshrl.u32 %v3414, 16
        %v3543 = vshll.u32 %v3414, 16
        %v3545 = vrot.slane %v3543, 1
        %v3546 = vor.u32 %v3541, %v3545
        %v3551 = vunpack.c.l.b16 %v3537
        %v3552 = vunpack.c.l.b16 %v3538
        %v3553 = vunpack.c.l.b16 %v3539
        %v3554 = vunpack.c.l.b16 %v3540
        %v3555 = vpack.c.b16 %v3552, %v3551
        %v3556 = vpack.c.b16 %v3554, %v3553
        %v3560 = vsel %vm3437, %v3546, 0
        %3562 = vmatprep.subr.bf16.mxu0 0
        %3563 = vmatpush1.bf16.msra.mxu0 0
        %3564 = vmatprep.subr.bf16.mxu0 0
        %3565 = vmatpush1.bf16.msra.mxu0 0
        %3566 = vmatprep.subr.bf16.mxu0 0
        %3567 = vmatpush1.bf16.msra.mxu0 0
        %3568 = vmatprep.subr.bf16.mxu0 0
        %3569 = vmatpush1.bf16.msra.mxu0 0
        %3570 = vmatprep.subr.bf16.mxu0 0
        %3571 = vmatpush1.bf16.msra.mxu0 0
        %3572 = vmatprep.subr.bf16.mxu0 0
        %3573 = vmatpush1.bf16.msra.mxu0 0
        %3574 = vmatprep.subr.bf16.mxu0 0
        %3575 = vmatpush1.bf16.msra.mxu0 %v3556
        %3576 = vmatprep.subr.bf16.mxu0 0
        %3577 = vmatpush1.bf16.msra.mxu0 %v3555
        %3578 = vmatprep.subr.bf16.mxu0 0
        %3579 = vmatpush2.bf16.msra.mxu0 0
        %3580 = vmatprep.subr.bf16.mxu0 0
        %3581 = vmatpush2.bf16.msra.mxu0 0
        %3582 = vmatprep.subr.bf16.mxu0 0
        %3583 = vmatpush2.bf16.msra.mxu0 0
        %3584 = vmatprep.subr.bf16.mxu0 0
        %3585 = vmatpush2.bf16.msra.mxu0 0
        %3586 = vmatprep.subr.bf16.mxu0 0
        %3587 = vmatpush2.bf16.msra.mxu0 0
        %3588 = vmatprep.subr.bf16.mxu0 0
        %3589 = vmatpush2.bf16.msra.mxu0 0
        %3590 = vmatprep.subr.bf16.mxu0 0
        %3591 = vmatpush2.bf16.msra.mxu0 0
        %3592 = vmatprep.subr.bf16.mxu0 0
        %3593 = vmatpush2.bf16.msra.mxu0 0
        %3594 = vmatprep.mubr.bf16.mxu0 0
        %3595 = vmatmul.mubr.bf16.gmra.mxu0 %v3560
        %v3596 = vpop.f32.mrf.mxu0
        %v3597 = vadd.f32 0.0, %v3596
        %v3598 = vpop.f32.mrf.mxu0
        %v3599 = vpop.f32.mrf.mxu0
        %v3600 = vpop.f32.mrf.mxu0
        %3601 = vdwg.mxu0
        %v3602 = vadd.f32 %v3531, %v3597
        %s3603 = scalar_lea.vmem %s2, 48
        %v3604 = vld [vmem:[%s3603] sm:$0xf]
        %v3605 = vld [vmem:[%s3603 + $0x4] sm:$0xf]
        %v3606 = vld [vmem:[%s3603 + $0x8] sm:$0xf]
        %v3607 = vld [vmem:[%s3603 + $0xc] sm:$0xf]
        %v3608 = vshrl.u32 %v3419, 16
        %v3610 = vshll.u32 %v3419, 16
        %v3612 = vrot.slane %v3610, 1
        %v3613 = vor.u32 %v3608, %v3612
        %v3618 = vunpack.c.l.b16 %v3604
        %v3619 = vunpack.c.l.b16 %v3605
        %v3620 = vunpack.c.l.b16 %v3606
        %v3621 = vunpack.c.l.b16 %v3607
        %v3622 = vpack.c.b16 %v3619, %v3618
        %v3623 = vpack.c.b16 %v3621, %v3620
        %v3627 = vsel %vm3437, %v3613, 0
        %3629 = vmatprep.subr.bf16.mxu0 0
        %3630 = vmatpush1.bf16.msra.mxu0 0
        %3631 = vmatprep.subr.bf16.mxu0 0
        %3632 = vmatpush1.bf16.msra.mxu0 0
        %3633 = vmatprep.subr.bf16.mxu0 0
        %3634 = vmatpush1.bf16.msra.mxu0 0
        %3635 = vmatprep.subr.bf16.mxu0 0
        %3636 = vmatpush1.bf16.msra.mxu0 0
        %3637 = vmatprep.subr.bf16.mxu0 0
        %3638 = vmatpush1.bf16.msra.mxu0 0
        %3639 = vmatprep.subr.bf16.mxu0 0
        %3640 = vmatpush1.bf16.msra.mxu0 0
        %3641 = vmatprep.subr.bf16.mxu0 0
        %3642 = vmatpush1.bf16.msra.mxu0 %v3623
        %3643 = vmatprep.subr.bf16.mxu0 0
        %3644 = vmatpush1.bf16.msra.mxu0 %v3622
        %3645 = vmatprep.subr.bf16.mxu0 0
        %3646 = vmatpush2.bf16.msra.mxu0 0
        %3647 = vmatprep.subr.bf16.mxu0 0
        %3648 = vmatpush2.bf16.msra.mxu0 0
        %3649 = vmatprep.subr.bf16.mxu0 0
        %3650 = vmatpush2.bf16.msra.mxu0 0
        %3651 = vmatprep.subr.bf16.mxu0 0
        %3652 = vmatpush2.bf16.msra.mxu0 0
        %3653 = vmatprep.subr.bf16.mxu0 0
        %3654 = vmatpush2.bf16.msra.mxu0 0
        %3655 = vmatprep.subr.bf16.mxu0 0
        %3656 = vmatpush2.bf16.msra.mxu0 0
        %3657 = vmatprep.subr.bf16.mxu0 0
        %3658 = vmatpush2.bf16.msra.mxu0 0
        %3659 = vmatprep.subr.bf16.mxu0 0
        %3660 = vmatpush2.bf16.msra.mxu0 0
        %3661 = vmatprep.mubr.bf16.mxu0 0
        %3662 = vmatmul.mubr.bf16.gmra.mxu0 %v3627
        %v3663 = vpop.f32.mrf.mxu0
        %v3664 = vadd.f32 0.0, %v3663
        %v3665 = vpop.f32.mrf.mxu0
        %v3666 = vpop.f32.mrf.mxu0
        %v3667 = vpop.f32.mrf.mxu0
        %3668 = vdwg.mxu0
        %v3669 = vadd.f32 %v3602, %v3664
        %v3670 = vpack.c.bf16 %v2248, %v2248
        %s3671 = scalar_lea.vmem %s2, 64
        %v3672 = vld [vmem:[%s3671] sm:$0xf]
        %v3673 = vld [vmem:[%s3671 + $0x4] sm:$0xf]
        %v3674 = vld [vmem:[%s3671 + $0x8] sm:$0xf]
        %v3675 = vld [vmem:[%s3671 + $0xc] sm:$0xf]
        %v3680 = vunpack.c.l.b16 %v3672
        %v3681 = vunpack.c.l.b16 %v3673
        %v3682 = vunpack.c.l.b16 %v3674
        %v3683 = vunpack.c.l.b16 %v3675
        %v3684 = vpack.c.b16 %v3681, %v3680
        %v3685 = vpack.c.b16 %v3683, %v3682
        %v3689 = vsel %vm3437, %v3670, 0
        %3691 = vmatprep.subr.bf16.mxu0 0
        %3692 = vmatpush1.bf16.msra.mxu0 0
        %3693 = vmatprep.subr.bf16.mxu0 0
        %3694 = vmatpush1.bf16.msra.mxu0 0
        %3695 = vmatprep.subr.bf16.mxu0 0
        %3696 = vmatpush1.bf16.msra.mxu0 0
        %3697 = vmatprep.subr.bf16.mxu0 0
        %3698 = vmatpush1.bf16.msra.mxu0 0
        %3699 = vmatprep.subr.bf16.mxu0 0
        %3700 = vmatpush1.bf16.msra.mxu0 0
        %3701 = vmatprep.subr.bf16.mxu0 0
        %3702 = vmatpush1.bf16.msra.mxu0 0
        %3703 = vmatprep.subr.bf16.mxu0 0
        %3704 = vmatpush1.bf16.msra.mxu0 %v3685
        %3705 = vmatprep.subr.bf16.mxu0 0
        %3706 = vmatpush1.bf16.msra.mxu0 %v3684
        %3707 = vmatprep.subr.bf16.mxu0 0
        %3708 = vmatpush2.bf16.msra.mxu0 0
        %3709 = vmatprep.subr.bf16.mxu0 0
        %3710 = vmatpush2.bf16.msra.mxu0 0
        %3711 = vmatprep.subr.bf16.mxu0 0
        %3712 = vmatpush2.bf16.msra.mxu0 0
        %3713 = vmatprep.subr.bf16.mxu0 0
        %3714 = vmatpush2.bf16.msra.mxu0 0
        %3715 = vmatprep.subr.bf16.mxu0 0
        %3716 = vmatpush2.bf16.msra.mxu0 0
        %3717 = vmatprep.subr.bf16.mxu0 0
        %3718 = vmatpush2.bf16.msra.mxu0 0
        %3719 = vmatprep.subr.bf16.mxu0 0
        %3720 = vmatpush2.bf16.msra.mxu0 0
        %3721 = vmatprep.subr.bf16.mxu0 0
        %3722 = vmatpush2.bf16.msra.mxu0 0
        %3723 = vmatprep.mubr.bf16.mxu0 0
        %3724 = vmatmul.mubr.bf16.gmra.mxu0 %v3689
        %v3725 = vpop.f32.mrf.mxu0
        %v3726 = vadd.f32 0.0, %v3725
        %v3727 = vpop.f32.mrf.mxu0
        %v3728 = vpop.f32.mrf.mxu0
        %v3729 = vpop.f32.mrf.mxu0
        %3730 = vdwg.mxu0
        %v3731 = vadd.f32 %v3669, %v3726
        %v3732 = vpack.c.bf16 %v2916, %v2916
        %s3733 = scalar_lea.vmem %s2, 80
        %v3734 = vld [vmem:[%s3733] sm:$0xf]
        %v3735 = vld [vmem:[%s3733 + $0x4] sm:$0xf]
        %v3736 = vld [vmem:[%s3733 + $0x8] sm:$0xf]
        %v3737 = vld [vmem:[%s3733 + $0xc] sm:$0xf]
        %v3742 = vunpack.c.l.b16 %v3734
        %v3743 = vunpack.c.l.b16 %v3735
        %v3744 = vunpack.c.l.b16 %v3736
        %v3745 = vunpack.c.l.b16 %v3737
        %v3746 = vpack.c.b16 %v3743, %v3742
        %v3747 = vpack.c.b16 %v3745, %v3744
        %v3751 = vsel %vm3437, %v3732, 0
        %3753 = vmatprep.subr.bf16.mxu0 0
        %3754 = vmatpush1.bf16.msra.mxu0 0
        %3755 = vmatprep.subr.bf16.mxu0 0
        %3756 = vmatpush1.bf16.msra.mxu0 0
        %3757 = vmatprep.subr.bf16.mxu0 0
        %3758 = vmatpush1.bf16.msra.mxu0 0
        %3759 = vmatprep.subr.bf16.mxu0 0
        %3760 = vmatpush1.bf16.msra.mxu0 0
        %3761 = vmatprep.subr.bf16.mxu0 0
        %3762 = vmatpush1.bf16.msra.mxu0 0
        %3763 = vmatprep.subr.bf16.mxu0 0
        %3764 = vmatpush1.bf16.msra.mxu0 0
        %3765 = vmatprep.subr.bf16.mxu0 0
        %3766 = vmatpush1.bf16.msra.mxu0 %v3747
        %3767 = vmatprep.subr.bf16.mxu0 0
        %3768 = vmatpush1.bf16.msra.mxu0 %v3746
        %3769 = vmatprep.subr.bf16.mxu0 0
        %3770 = vmatpush2.bf16.msra.mxu0 0
        %3771 = vmatprep.subr.bf16.mxu0 0
        %3772 = vmatpush2.bf16.msra.mxu0 0
        %3773 = vmatprep.subr.bf16.mxu0 0
        %3774 = vmatpush2.bf16.msra.mxu0 0
        %3775 = vmatprep.subr.bf16.mxu0 0
        %3776 = vmatpush2.bf16.msra.mxu0 0
        %3777 = vmatprep.subr.bf16.mxu0 0
        %3778 = vmatpush2.bf16.msra.mxu0 0
        %3779 = vmatprep.subr.bf16.mxu0 0
        %3780 = vmatpush2.bf16.msra.mxu0 0
        %3781 = vmatprep.subr.bf16.mxu0 0
        %3782 = vmatpush2.bf16.msra.mxu0 0
        %3783 = vmatprep.subr.bf16.mxu0 0
        %3784 = vmatpush2.bf16.msra.mxu0 0
        %3785 = vmatprep.mubr.bf16.mxu0 0
        %3786 = vmatmul.mubr.bf16.gmra.mxu0 %v3751
        %v3787 = vpop.f32.mrf.mxu0
        %v3788 = vadd.f32 0.0, %v3787
        %v3789 = vpop.f32.mrf.mxu0
        %v3790 = vpop.f32.mrf.mxu0
        %v3791 = vpop.f32.mrf.mxu0
        %3792 = vdwg.mxu0
        %v3793 = vadd.f32 %v3731, %v3788
        %s3794 = scalar_lea.vmem %s2, 96
        %v3795 = vld [vmem:[%s3794] sm:$0xf]
        %v3796 = vld [vmem:[%s3794 + $0x4] sm:$0xf]
        %v3797 = vld [vmem:[%s3794 + $0x8] sm:$0xf]
        %v3798 = vld [vmem:[%s3794 + $0xc] sm:$0xf]
        %v3799 = vshrl.u32 %v3670, 16
        %v3801 = vshll.u32 %v3670, 16
        %v3803 = vrot.slane %v3801, 1
        %v3804 = vor.u32 %v3799, %v3803
        %v3809 = vunpack.c.l.b16 %v3795
        %v3810 = vunpack.c.l.b16 %v3796
        %v3811 = vunpack.c.l.b16 %v3797
        %v3812 = vunpack.c.l.b16 %v3798
        %v3813 = vpack.c.b16 %v3810, %v3809
        %v3814 = vpack.c.b16 %v3812, %v3811
        %v3818 = vsel %vm3437, %v3804, 0
        %3820 = vmatprep.subr.bf16.mxu0 0
        %3821 = vmatpush1.bf16.msra.mxu0 0
        %3822 = vmatprep.subr.bf16.mxu0 0
        %3823 = vmatpush1.bf16.msra.mxu0 0
        %3824 = vmatprep.subr.bf16.mxu0 0
        %3825 = vmatpush1.bf16.msra.mxu0 0
        %3826 = vmatprep.subr.bf16.mxu0 0
        %3827 = vmatpush1.bf16.msra.mxu0 0
        %3828 = vmatprep.subr.bf16.mxu0 0
        %3829 = vmatpush1.bf16.msra.mxu0 0
        %3830 = vmatprep.subr.bf16.mxu0 0
        %3831 = vmatpush1.bf16.msra.mxu0 0
        %3832 = vmatprep.subr.bf16.mxu0 0
        %3833 = vmatpush1.bf16.msra.mxu0 %v3814
        %3834 = vmatprep.subr.bf16.mxu0 0
        %3835 = vmatpush1.bf16.msra.mxu0 %v3813
        %3836 = vmatprep.subr.bf16.mxu0 0
        %3837 = vmatpush2.bf16.msra.mxu0 0
        %3838 = vmatprep.subr.bf16.mxu0 0
        %3839 = vmatpush2.bf16.msra.mxu0 0
        %3840 = vmatprep.subr.bf16.mxu0 0
        %3841 = vmatpush2.bf16.msra.mxu0 0
        %3842 = vmatprep.subr.bf16.mxu0 0
        %3843 = vmatpush2.bf16.msra.mxu0 0
        %3844 = vmatprep.subr.bf16.mxu0 0
        %3845 = vmatpush2.bf16.msra.mxu0 0
        %3846 = vmatprep.subr.bf16.mxu0 0
        %3847 = vmatpush2.bf16.msra.mxu0 0
        %3848 = vmatprep.subr.bf16.mxu0 0
        %3849 = vmatpush2.bf16.msra.mxu0 0
        %3850 = vmatprep.subr.bf16.mxu0 0
        %3851 = vmatpush2.bf16.msra.mxu0 0
        %3852 = vmatprep.mubr.bf16.mxu0 0
        %3853 = vmatmul.mubr.bf16.gmra.mxu0 %v3818
        %v3854 = vpop.f32.mrf.mxu0
        %v3855 = vadd.f32 0.0, %v3854
        %v3856 = vpop.f32.mrf.mxu0
        %v3857 = vpop.f32.mrf.mxu0
        %v3858 = vpop.f32.mrf.mxu0
        %3859 = vdwg.mxu0
        %v3860 = vadd.f32 %v3793, %v3855
        %s3861 = scalar_lea.vmem %s2, 112
        %v3862 = vld [vmem:[%s3861] sm:$0xf]
        %v3863 = vld [vmem:[%s3861 + $0x4] sm:$0xf]
        %v3864 = vld [vmem:[%s3861 + $0x8] sm:$0xf]
        %v3865 = vld [vmem:[%s3861 + $0xc] sm:$0xf]
        %v3866 = vshrl.u32 %v3732, 16
        %v3868 = vshll.u32 %v3732, 16
        %v3870 = vrot.slane %v3868, 1
        %v3871 = vor.u32 %v3866, %v3870
        %v3876 = vunpack.c.l.b16 %v3862
        %v3877 = vunpack.c.l.b16 %v3863
        %v3878 = vunpack.c.l.b16 %v3864
        %v3879 = vunpack.c.l.b16 %v3865
        %v3880 = vpack.c.b16 %v3877, %v3876
        %v3881 = vpack.c.b16 %v3879, %v3878
        %v3885 = vsel %vm3437, %v3871, 0
        %3887 = vmatprep.subr.bf16.mxu0 0
        %3888 = vmatpush1.bf16.msra.mxu0 0
        %3889 = vmatprep.subr.bf16.mxu0 0
        %3890 = vmatpush1.bf16.msra.mxu0 0
        %3891 = vmatprep.subr.bf16.mxu0 0
        %3892 = vmatpush1.bf16.msra.mxu0 0
        %3893 = vmatprep.subr.bf16.mxu0 0
        %3894 = vmatpush1.bf16.msra.mxu0 0
        %3895 = vmatprep.subr.bf16.mxu0 0
        %3896 = vmatpush1.bf16.msra.mxu0 0
        %3897 = vmatprep.subr.bf16.mxu0 0
        %3898 = vmatpush1.bf16.msra.mxu0 0
        %3899 = vmatprep.subr.bf16.mxu0 0
        %3900 = vmatpush1.bf16.msra.mxu0 %v3881
        %3901 = vmatprep.subr.bf16.mxu0 0
        %3902 = vmatpush1.bf16.msra.mxu0 %v3880
        %3903 = vmatprep.subr.bf16.mxu0 0
        %3904 = vmatpush2.bf16.msra.mxu0 0
        %3905 = vmatprep.subr.bf16.mxu0 0
        %3906 = vmatpush2.bf16.msra.mxu0 0
        %3907 = vmatprep.subr.bf16.mxu0 0
        %3908 = vmatpush2.bf16.msra.mxu0 0
        %3909 = vmatprep.subr.bf16.mxu0 0
        %3910 = vmatpush2.bf16.msra.mxu0 0
        %3911 = vmatprep.subr.bf16.mxu0 0
        %3912 = vmatpush2.bf16.msra.mxu0 0
        %3913 = vmatprep.subr.bf16.mxu0 0
        %3914 = vmatpush2.bf16.msra.mxu0 0
        %3915 = vmatprep.subr.bf16.mxu0 0
        %3916 = vmatpush2.bf16.msra.mxu0 0
        %3917 = vmatprep.subr.bf16.mxu0 0
        %3918 = vmatpush2.bf16.msra.mxu0 0
        %3919 = vmatprep.mubr.bf16.mxu0 0
        %3920 = vmatmul.mubr.bf16.gmra.mxu0 %v3885
        %v3921 = vpop.f32.mrf.mxu0
        %v3922 = vadd.f32 0.0, %v3921
        %v3923 = vpop.f32.mrf.mxu0
        %v3924 = vpop.f32.mrf.mxu0
        %v3925 = vpop.f32.mrf.mxu0
        %3926 = vdwg.mxu0
        %v3927 = vadd.f32 %v3860, %v3922
        %v3928 = vpack.c.bf16 %v1012, %v1012
        %s3929 = scalar_lea.vmem %s2, 128
        %v3930 = vld [vmem:[%s3929] sm:$0xf]
        %v3931 = vld [vmem:[%s3929 + $0x4] sm:$0xf]
        %v3932 = vld [vmem:[%s3929 + $0x8] sm:$0xf]
        %v3933 = vld [vmem:[%s3929 + $0xc] sm:$0xf]
        %v3938 = vunpack.c.l.b16 %v3930
        %v3939 = vunpack.c.l.b16 %v3931
        %v3940 = vunpack.c.l.b16 %v3932
        %v3941 = vunpack.c.l.b16 %v3933
        %v3942 = vpack.c.b16 %v3939, %v3938
        %v3943 = vpack.c.b16 %v3941, %v3940
        %v3947 = vsel %vm3437, %v3928, 0
        %3949 = vmatprep.subr.bf16.mxu0 0
        %3950 = vmatpush1.bf16.msra.mxu0 0
        %3951 = vmatprep.subr.bf16.mxu0 0
        %3952 = vmatpush1.bf16.msra.mxu0 0
        %3953 = vmatprep.subr.bf16.mxu0 0
        %3954 = vmatpush1.bf16.msra.mxu0 0
        %3955 = vmatprep.subr.bf16.mxu0 0
        %3956 = vmatpush1.bf16.msra.mxu0 0
        %3957 = vmatprep.subr.bf16.mxu0 0
        %3958 = vmatpush1.bf16.msra.mxu0 0
        %3959 = vmatprep.subr.bf16.mxu0 0
        %3960 = vmatpush1.bf16.msra.mxu0 0
        %3961 = vmatprep.subr.bf16.mxu0 0
        %3962 = vmatpush1.bf16.msra.mxu0 %v3943
        %3963 = vmatprep.subr.bf16.mxu0 0
        %3964 = vmatpush1.bf16.msra.mxu0 %v3942
        %3965 = vmatprep.subr.bf16.mxu0 0
        %3966 = vmatpush2.bf16.msra.mxu0 0
        %3967 = vmatprep.subr.bf16.mxu0 0
        %3968 = vmatpush2.bf16.msra.mxu0 0
        %3969 = vmatprep.subr.bf16.mxu0 0
        %3970 = vmatpush2.bf16.msra.mxu0 0
        %3971 = vmatprep.subr.bf16.mxu0 0
        %3972 = vmatpush2.bf16.msra.mxu0 0
        %3973 = vmatprep.subr.bf16.mxu0 0
        %3974 = vmatpush2.bf16.msra.mxu0 0
        %3975 = vmatprep.subr.bf16.mxu0 0
        %3976 = vmatpush2.bf16.msra.mxu0 0
        %3977 = vmatprep.subr.bf16.mxu0 0
        %3978 = vmatpush2.bf16.msra.mxu0 0
        %3979 = vmatprep.subr.bf16.mxu0 0
        %3980 = vmatpush2.bf16.msra.mxu0 0
        %3981 = vmatprep.mubr.bf16.mxu0 0
        %3982 = vmatmul.mubr.bf16.gmra.mxu0 %v3947
        %v3983 = vpop.f32.mrf.mxu0
        %v3984 = vadd.f32 0.0, %v3983
        %v3985 = vpop.f32.mrf.mxu0
        %v3986 = vpop.f32.mrf.mxu0
        %v3987 = vpop.f32.mrf.mxu0
        %3988 = vdwg.mxu0
        %v3989 = vadd.f32 %v3927, %v3984
        %v3990 = vpack.c.bf16 %v1736, %v1736
        %s3991 = scalar_lea.vmem %s2, 144
        %v3992 = vld [vmem:[%s3991] sm:$0xf]
        %v3993 = vld [vmem:[%s3991 + $0x4] sm:$0xf]
        %v3994 = vld [vmem:[%s3991 + $0x8] sm:$0xf]
        %v3995 = vld [vmem:[%s3991 + $0xc] sm:$0xf]
        %v4000 = vunpack.c.l.b16 %v3992
        %v4001 = vunpack.c.l.b16 %v3993
        %v4002 = vunpack.c.l.b16 %v3994
        %v4003 = vunpack.c.l.b16 %v3995
        %v4004 = vpack.c.b16 %v4001, %v4000
        %v4005 = vpack.c.b16 %v4003, %v4002
        %v4009 = vsel %vm3437, %v3990, 0
        %4011 = vmatprep.subr.bf16.mxu0 0
        %4012 = vmatpush1.bf16.msra.mxu0 0
        %4013 = vmatprep.subr.bf16.mxu0 0
        %4014 = vmatpush1.bf16.msra.mxu0 0
        %4015 = vmatprep.subr.bf16.mxu0 0
        %4016 = vmatpush1.bf16.msra.mxu0 0
        %4017 = vmatprep.subr.bf16.mxu0 0
        %4018 = vmatpush1.bf16.msra.mxu0 0
        %4019 = vmatprep.subr.bf16.mxu0 0
        %4020 = vmatpush1.bf16.msra.mxu0 0
        %4021 = vmatprep.subr.bf16.mxu0 0
        %4022 = vmatpush1.bf16.msra.mxu0 0
        %4023 = vmatprep.subr.bf16.mxu0 0
        %4024 = vmatpush1.bf16.msra.mxu0 %v4005
        %4025 = vmatprep.subr.bf16.mxu0 0
        %4026 = vmatpush1.bf16.msra.mxu0 %v4004
        %4027 = vmatprep.subr.bf16.mxu0 0
        %4028 = vmatpush2.bf16.msra.mxu0 0
        %4029 = vmatprep.subr.bf16.mxu0 0
        %4030 = vmatpush2.bf16.msra.mxu0 0
        %4031 = vmatprep.subr.bf16.mxu0 0
        %4032 = vmatpush2.bf16.msra.mxu0 0
        %4033 = vmatprep.subr.bf16.mxu0 0
        %4034 = vmatpush2.bf16.msra.mxu0 0
        %4035 = vmatprep.subr.bf16.mxu0 0
        %4036 = vmatpush2.bf16.msra.mxu0 0
        %4037 = vmatprep.subr.bf16.mxu0 0
        %4038 = vmatpush2.bf16.msra.mxu0 0
        %4039 = vmatprep.subr.bf16.mxu0 0
        %4040 = vmatpush2.bf16.msra.mxu0 0
        %4041 = vmatprep.subr.bf16.mxu0 0
        %4042 = vmatpush2.bf16.msra.mxu0 0
        %4043 = vmatprep.mubr.bf16.mxu0 0
        %4044 = vmatmul.mubr.bf16.gmra.mxu0 %v4009
        %v4045 = vpop.f32.mrf.mxu0
        %v4046 = vadd.f32 0.0, %v4045
        %v4047 = vpop.f32.mrf.mxu0
        %v4048 = vpop.f32.mrf.mxu0
        %v4049 = vpop.f32.mrf.mxu0
        %4050 = vdwg.mxu0
        %v4051 = vadd.f32 %v3989, %v4046
        %s4052 = scalar_lea.vmem %s2, 160
        %v4053 = vld [vmem:[%s4052] sm:$0xf]
        %v4054 = vld [vmem:[%s4052 + $0x4] sm:$0xf]
        %v4055 = vld [vmem:[%s4052 + $0x8] sm:$0xf]
        %v4056 = vld [vmem:[%s4052 + $0xc] sm:$0xf]
        %v4057 = vshrl.u32 %v3928, 16
        %v4059 = vshll.u32 %v3928, 16
        %v4061 = vrot.slane %v4059, 1
        %v4062 = vor.u32 %v4057, %v4061
        %v4067 = vunpack.c.l.b16 %v4053
        %v4068 = vunpack.c.l.b16 %v4054
        %v4069 = vunpack.c.l.b16 %v4055
        %v4070 = vunpack.c.l.b16 %v4056
        %v4071 = vpack.c.b16 %v4068, %v4067
        %v4072 = vpack.c.b16 %v4070, %v4069
        %v4076 = vsel %vm3437, %v4062, 0
        %4078 = vmatprep.subr.bf16.mxu0 0
        %4079 = vmatpush1.bf16.msra.mxu0 0
        %4080 = vmatprep.subr.bf16.mxu0 0
        %4081 = vmatpush1.bf16.msra.mxu0 0
        %4082 = vmatprep.subr.bf16.mxu0 0
        %4083 = vmatpush1.bf16.msra.mxu0 0
        %4084 = vmatprep.subr.bf16.mxu0 0
        %4085 = vmatpush1.bf16.msra.mxu0 0
        %4086 = vmatprep.subr.bf16.mxu0 0
        %4087 = vmatpush1.bf16.msra.mxu0 0
        %4088 = vmatprep.subr.bf16.mxu0 0
        %4089 = vmatpush1.bf16.msra.mxu0 0
        %4090 = vmatprep.subr.bf16.mxu0 0
        %4091 = vmatpush1.bf16.msra.mxu0 %v4072
        %4092 = vmatprep.subr.bf16.mxu0 0
        %4093 = vmatpush1.bf16.msra.mxu0 %v4071
        %4094 = vmatprep.subr.bf16.mxu0 0
        %4095 = vmatpush2.bf16.msra.mxu0 0
        %4096 = vmatprep.subr.bf16.mxu0 0
        %4097 = vmatpush2.bf16.msra.mxu0 0
        %4098 = vmatprep.subr.bf16.mxu0 0
        %4099 = vmatpush2.bf16.msra.mxu0 0
        %4100 = vmatprep.subr.bf16.mxu0 0
        %4101 = vmatpush2.bf16.msra.mxu0 0
        %4102 = vmatprep.subr.bf16.mxu0 0
        %4103 = vmatpush2.bf16.msra.mxu0 0
        %4104 = vmatprep.subr.bf16.mxu0 0
        %4105 = vmatpush2.bf16.msra.mxu0 0
        %4106 = vmatprep.subr.bf16.mxu0 0
        %4107 = vmatpush2.bf16.msra.mxu0 0
        %4108 = vmatprep.subr.bf16.mxu0 0
        %4109 = vmatpush2.bf16.msra.mxu0 0
        %4110 = vmatprep.mubr.bf16.mxu0 0
        %4111 = vmatmul.mubr.bf16.gmra.mxu0 %v4076
        %v4112 = vpop.f32.mrf.mxu0
        %v4113 = vadd.f32 0.0, %v4112
        %v4114 = vpop.f32.mrf.mxu0
        %v4115 = vpop.f32.mrf.mxu0
        %v4116 = vpop.f32.mrf.mxu0
        %4117 = vdwg.mxu0
        %v4118 = vadd.f32 %v4051, %v4113
        %s4119 = scalar_lea.vmem %s2, 176
        %v4120 = vld [vmem:[%s4119] sm:$0xf]
        %v4121 = vld [vmem:[%s4119 + $0x4] sm:$0xf]
        %v4122 = vld [vmem:[%s4119 + $0x8] sm:$0xf]
        %v4123 = vld [vmem:[%s4119 + $0xc] sm:$0xf]
        %v4124 = vshrl.u32 %v3990, 16
        %v4126 = vshll.u32 %v3990, 16
        %v4128 = vrot.slane %v4126, 1
        %v4129 = vor.u32 %v4124, %v4128
        %v4134 = vunpack.c.l.b16 %v4120
        %v4135 = vunpack.c.l.b16 %v4121
        %v4136 = vunpack.c.l.b16 %v4122
        %v4137 = vunpack.c.l.b16 %v4123
        %v4138 = vpack.c.b16 %v4135, %v4134
        %v4139 = vpack.c.b16 %v4137, %v4136
        %v4143 = vsel %vm3437, %v4129, 0
        %4145 = vmatprep.subr.bf16.mxu0 0
        %4146 = vmatpush1.bf16.msra.mxu0 0
        %4147 = vmatprep.subr.bf16.mxu0 0
        %4148 = vmatpush1.bf16.msra.mxu0 0
        %4149 = vmatprep.subr.bf16.mxu0 0
        %4150 = vmatpush1.bf16.msra.mxu0 0
        %4151 = vmatprep.subr.bf16.mxu0 0
        %4152 = vmatpush1.bf16.msra.mxu0 0
        %4153 = vmatprep.subr.bf16.mxu0 0
        %4154 = vmatpush1.bf16.msra.mxu0 0
        %4155 = vmatprep.subr.bf16.mxu0 0
        %4156 = vmatpush1.bf16.msra.mxu0 0
        %4157 = vmatprep.subr.bf16.mxu0 0
        %4158 = vmatpush1.bf16.msra.mxu0 %v4139
        %4159 = vmatprep.subr.bf16.mxu0 0
        %4160 = vmatpush1.bf16.msra.mxu0 %v4138
        %4161 = vmatprep.subr.bf16.mxu0 0
        %4162 = vmatpush2.bf16.msra.mxu0 0
        %4163 = vmatprep.subr.bf16.mxu0 0
        %4164 = vmatpush2.bf16.msra.mxu0 0
        %4165 = vmatprep.subr.bf16.mxu0 0
        %4166 = vmatpush2.bf16.msra.mxu0 0
        %4167 = vmatprep.subr.bf16.mxu0 0
        %4168 = vmatpush2.bf16.msra.mxu0 0
        %4169 = vmatprep.subr.bf16.mxu0 0
        %4170 = vmatpush2.bf16.msra.mxu0 0
        %4171 = vmatprep.subr.bf16.mxu0 0
        %4172 = vmatpush2.bf16.msra.mxu0 0
        %4173 = vmatprep.subr.bf16.mxu0 0
        %4174 = vmatpush2.bf16.msra.mxu0 0
        %4175 = vmatprep.subr.bf16.mxu0 0
        %4176 = vmatpush2.bf16.msra.mxu0 0
        %4177 = vmatprep.mubr.bf16.mxu0 0
        %4178 = vmatmul.mubr.bf16.gmra.mxu0 %v4143
        %v4179 = vpop.f32.mrf.mxu0
        %v4180 = vadd.f32 0.0, %v4179
        %v4181 = vpop.f32.mrf.mxu0
        %v4182 = vpop.f32.mrf.mxu0
        %v4183 = vpop.f32.mrf.mxu0
        %4184 = vdwg.mxu0
        %v4185 = vadd.f32 %v4118, %v4180
        %v4186 = vpack.c.bf16 %v2412, %v2412
        %s4187 = scalar_lea.vmem %s2, 192
        %v4188 = vld [vmem:[%s4187] sm:$0xf]
        %v4189 = vld [vmem:[%s4187 + $0x4] sm:$0xf]
        %v4190 = vld [vmem:[%s4187 + $0x8] sm:$0xf]
        %v4191 = vld [vmem:[%s4187 + $0xc] sm:$0xf]
        %v4196 = vunpack.c.l.b16 %v4188
        %v4197 = vunpack.c.l.b16 %v4189
        %v4198 = vunpack.c.l.b16 %v4190
        %v4199 = vunpack.c.l.b16 %v4191
        %v4200 = vpack.c.b16 %v4197, %v4196
        %v4201 = vpack.c.b16 %v4199, %v4198
        %v4205 = vsel %vm3437, %v4186, 0
        %4207 = vmatprep.subr.bf16.mxu0 0
        %4208 = vmatpush1.bf16.msra.mxu0 0
        %4209 = vmatprep.subr.bf16.mxu0 0
        %4210 = vmatpush1.bf16.msra.mxu0 0
        %4211 = vmatprep.subr.bf16.mxu0 0
        %4212 = vmatpush1.bf16.msra.mxu0 0
        %4213 = vmatprep.subr.bf16.mxu0 0
        %4214 = vmatpush1.bf16.msra.mxu0 0
        %4215 = vmatprep.subr.bf16.mxu0 0
        %4216 = vmatpush1.bf16.msra.mxu0 0
        %4217 = vmatprep.subr.bf16.mxu0 0
        %4218 = vmatpush1.bf16.msra.mxu0 0
        %4219 = vmatprep.subr.bf16.mxu0 0
        %4220 = vmatpush1.bf16.msra.mxu0 %v4201
        %4221 = vmatprep.subr.bf16.mxu0 0
        %4222 = vmatpush1.bf16.msra.mxu0 %v4200
        %4223 = vmatprep.subr.bf16.mxu0 0
        %4224 = vmatpush2.bf16.msra.mxu0 0
        %4225 = vmatprep.subr.bf16.mxu0 0
        %4226 = vmatpush2.bf16.msra.mxu0 0
        %4227 = vmatprep.subr.bf16.mxu0 0
        %4228 = vmatpush2.bf16.msra.mxu0 0
        %4229 = vmatprep.subr.bf16.mxu0 0
        %4230 = vmatpush2.bf16.msra.mxu0 0
        %4231 = vmatprep.subr.bf16.mxu0 0
        %4232 = vmatpush2.bf16.msra.mxu0 0
        %4233 = vmatprep.subr.bf16.mxu0 0
        %4234 = vmatpush2.bf16.msra.mxu0 0
        %4235 = vmatprep.subr.bf16.mxu0 0
        %4236 = vmatpush2.bf16.msra.mxu0 0
        %4237 = vmatprep.subr.bf16.mxu0 0
        %4238 = vmatpush2.bf16.msra.mxu0 0
        %4239 = vmatprep.mubr.bf16.mxu0 0
        %4240 = vmatmul.mubr.bf16.gmra.mxu0 %v4205
        %v4241 = vpop.f32.mrf.mxu0
        %v4242 = vadd.f32 0.0, %v4241
        %v4243 = vpop.f32.mrf.mxu0
        %v4244 = vpop.f32.mrf.mxu0
        %v4245 = vpop.f32.mrf.mxu0
        %4246 = vdwg.mxu0
        %v4247 = vadd.f32 %v4185, %v4242
        %v4248 = vpack.c.bf16 %v3080, %v3080
        %s4249 = scalar_lea.vmem %s2, 208
        %v4250 = vld [vmem:[%s4249] sm:$0xf]
        %v4251 = vld [vmem:[%s4249 + $0x4] sm:$0xf]
        %v4252 = vld [vmem:[%s4249 + $0x8] sm:$0xf]
        %v4253 = vld [vmem:[%s4249 + $0xc] sm:$0xf]
        %v4258 = vunpack.c.l.b16 %v4250
        %v4259 = vunpack.c.l.b16 %v4251
        %v4260 = vunpack.c.l.b16 %v4252
        %v4261 = vunpack.c.l.b16 %v4253
        %v4262 = vpack.c.b16 %v4259, %v4258
        %v4263 = vpack.c.b16 %v4261, %v4260
        %v4267 = vsel %vm3437, %v4248, 0
        %4269 = vmatprep.subr.bf16.mxu0 0
        %4270 = vmatpush1.bf16.msra.mxu0 0
        %4271 = vmatprep.subr.bf16.mxu0 0
        %4272 = vmatpush1.bf16.msra.mxu0 0
        %4273 = vmatprep.subr.bf16.mxu0 0
        %4274 = vmatpush1.bf16.msra.mxu0 0
        %4275 = vmatprep.subr.bf16.mxu0 0
        %4276 = vmatpush1.bf16.msra.mxu0 0
        %4277 = vmatprep.subr.bf16.mxu0 0
        %4278 = vmatpush1.bf16.msra.mxu0 0
        %4279 = vmatprep.subr.bf16.mxu0 0
        %4280 = vmatpush1.bf16.msra.mxu0 0
        %4281 = vmatprep.subr.bf16.mxu0 0
        %4282 = vmatpush1.bf16.msra.mxu0 %v4263
        %4283 = vmatprep.subr.bf16.mxu0 0
        %4284 = vmatpush1.bf16.msra.mxu0 %v4262
        %4285 = vmatprep.subr.bf16.mxu0 0
        %4286 = vmatpush2.bf16.msra.mxu0 0
        %4287 = vmatprep.subr.bf16.mxu0 0
        %4288 = vmatpush2.bf16.msra.mxu0 0
        %4289 = vmatprep.subr.bf16.mxu0 0
        %4290 = vmatpush2.bf16.msra.mxu0 0
        %4291 = vmatprep.subr.bf16.mxu0 0
        %4292 = vmatpush2.bf16.msra.mxu0 0
        %4293 = vmatprep.subr.bf16.mxu0 0
        %4294 = vmatpush2.bf16.msra.mxu0 0
        %4295 = vmatprep.subr.bf16.mxu0 0
        %4296 = vmatpush2.bf16.msra.mxu0 0
        %4297 = vmatprep.subr.bf16.mxu0 0
        %4298 = vmatpush2.bf16.msra.mxu0 0
        %4299 = vmatprep.subr.bf16.mxu0 0
        %4300 = vmatpush2.bf16.msra.mxu0 0
        %4301 = vmatprep.mubr.bf16.mxu0 0
        %4302 = vmatmul.mubr.bf16.gmra.mxu0 %v4267
        %v4303 = vpop.f32.mrf.mxu0
        %v4304 = vadd.f32 0.0, %v4303
        %v4305 = vpop.f32.mrf.mxu0
        %v4306 = vpop.f32.mrf.mxu0
        %v4307 = vpop.f32.mrf.mxu0
        %4308 = vdwg.mxu0
        %v4309 = vadd.f32 %v4247, %v4304
        %s4310 = scalar_lea.vmem %s2, 224
        %v4311 = vld [vmem:[%s4310] sm:$0xf]
        %v4312 = vld [vmem:[%s4310 + $0x4] sm:$0xf]
        %v4313 = vld [vmem:[%s4310 + $0x8] sm:$0xf]
        %v4314 = vld [vmem:[%s4310 + $0xc] sm:$0xf]
        %v4315 = vshrl.u32 %v4186, 16
        %v4317 = vshll.u32 %v4186, 16
        %v4319 = vrot.slane %v4317, 1
        %v4320 = vor.u32 %v4315, %v4319
        %v4325 = vunpack.c.l.b16 %v4311
        %v4326 = vunpack.c.l.b16 %v4312
        %v4327 = vunpack.c.l.b16 %v4313
        %v4328 = vunpack.c.l.b16 %v4314
        %v4329 = vpack.c.b16 %v4326, %v4325
        %v4330 = vpack.c.b16 %v4328, %v4327
        %v4334 = vsel %vm3437, %v4320, 0
        %4336 = vmatprep.subr.bf16.mxu0 0
        %4337 = vmatpush1.bf16.msra.mxu0 0
        %4338 = vmatprep.subr.bf16.mxu0 0
        %4339 = vmatpush1.bf16.msra.mxu0 0
        %4340 = vmatprep.subr.bf16.mxu0 0
        %4341 = vmatpush1.bf16.msra.mxu0 0
        %4342 = vmatprep.subr.bf16.mxu0 0
        %4343 = vmatpush1.bf16.msra.mxu0 0
        %4344 = vmatprep.subr.bf16.mxu0 0
        %4345 = vmatpush1.bf16.msra.mxu0 0
        %4346 = vmatprep.subr.bf16.mxu0 0
        %4347 = vmatpush1.bf16.msra.mxu0 0
        %4348 = vmatprep.subr.bf16.mxu0 0
        %4349 = vmatpush1.bf16.msra.mxu0 %v4330
        %4350 = vmatprep.subr.bf16.mxu0 0
        %4351 = vmatpush1.bf16.msra.mxu0 %v4329
        %4352 = vmatprep.subr.bf16.mxu0 0
        %4353 = vmatpush2.bf16.msra.mxu0 0
        %4354 = vmatprep.subr.bf16.mxu0 0
        %4355 = vmatpush2.bf16.msra.mxu0 0
        %4356 = vmatprep.subr.bf16.mxu0 0
        %4357 = vmatpush2.bf16.msra.mxu0 0
        %4358 = vmatprep.subr.bf16.mxu0 0
        %4359 = vmatpush2.bf16.msra.mxu0 0
        %4360 = vmatprep.subr.bf16.mxu0 0
        %4361 = vmatpush2.bf16.msra.mxu0 0
        %4362 = vmatprep.subr.bf16.mxu0 0
        %4363 = vmatpush2.bf16.msra.mxu0 0
        %4364 = vmatprep.subr.bf16.mxu0 0
        %4365 = vmatpush2.bf16.msra.mxu0 0
        %4366 = vmatprep.subr.bf16.mxu0 0
        %4367 = vmatpush2.bf16.msra.mxu0 0
        %4368 = vmatprep.mubr.bf16.mxu0 0
        %4369 = vmatmul.mubr.bf16.gmra.mxu0 %v4334
        %v4370 = vpop.f32.mrf.mxu0
        %v4371 = vadd.f32 0.0, %v4370
        %v4372 = vpop.f32.mrf.mxu0
        %v4373 = vpop.f32.mrf.mxu0
        %v4374 = vpop.f32.mrf.mxu0
        %4375 = vdwg.mxu0
        %v4376 = vadd.f32 %v4309, %v4371
        %s4377 = scalar_lea.vmem %s2, 240
        %v4378 = vld [vmem:[%s4377] sm:$0xf]
        %v4379 = vld [vmem:[%s4377 + $0x4] sm:$0xf]
        %v4380 = vld [vmem:[%s4377 + $0x8] sm:$0xf]
        %v4381 = vld [vmem:[%s4377 + $0xc] sm:$0xf]
        %v4382 = vshrl.u32 %v4248, 16
        %v4384 = vshll.u32 %v4248, 16
        %v4386 = vrot.slane %v4384, 1
        %v4387 = vor.u32 %v4382, %v4386
        %v4392 = vunpack.c.l.b16 %v4378
        %v4393 = vunpack.c.l.b16 %v4379
        %v4394 = vunpack.c.l.b16 %v4380
        %v4395 = vunpack.c.l.b16 %v4381
        %v4396 = vpack.c.b16 %v4393, %v4392
        %v4397 = vpack.c.b16 %v4395, %v4394
        %v4401 = vsel %vm3437, %v4387, 0
        %4403 = vmatprep.subr.bf16.mxu0 0
        %4404 = vmatpush1.bf16.msra.mxu0 0
        %4405 = vmatprep.subr.bf16.mxu0 0
        %4406 = vmatpush1.bf16.msra.mxu0 0
        %4407 = vmatprep.subr.bf16.mxu0 0
        %4408 = vmatpush1.bf16.msra.mxu0 0
        %4409 = vmatprep.subr.bf16.mxu0 0
        %4410 = vmatpush1.bf16.msra.mxu0 0
        %4411 = vmatprep.subr.bf16.mxu0 0
        %4412 = vmatpush1.bf16.msra.mxu0 0
        %4413 = vmatprep.subr.bf16.mxu0 0
        %4414 = vmatpush1.bf16.msra.mxu0 0
        %4415 = vmatprep.subr.bf16.mxu0 0
        %4416 = vmatpush1.bf16.msra.mxu0 %v4397
        %4417 = vmatprep.subr.bf16.mxu0 0
        %4418 = vmatpush1.bf16.msra.mxu0 %v4396
        %4419 = vmatprep.subr.bf16.mxu0 0
        %4420 = vmatpush2.bf16.msra.mxu0 0
        %4421 = vmatprep.subr.bf16.mxu0 0
        %4422 = vmatpush2.bf16.msra.mxu0 0
        %4423 = vmatprep.subr.bf16.mxu0 0
        %4424 = vmatpush2.bf16.msra.mxu0 0
        %4425 = vmatprep.subr.bf16.mxu0 0
        %4426 = vmatpush2.bf16.msra.mxu0 0
        %4427 = vmatprep.subr.bf16.mxu0 0
        %4428 = vmatpush2.bf16.msra.mxu0 0
        %4429 = vmatprep.subr.bf16.mxu0 0
        %4430 = vmatpush2.bf16.msra.mxu0 0
        %4431 = vmatprep.subr.bf16.mxu0 0
        %4432 = vmatpush2.bf16.msra.mxu0 0
        %4433 = vmatprep.subr.bf16.mxu0 0
        %4434 = vmatpush2.bf16.msra.mxu0 0
        %4435 = vmatprep.mubr.bf16.mxu0 0
        %4436 = vmatmul.mubr.bf16.gmra.mxu0 %v4401
        %v4437 = vpop.f32.mrf.mxu0
        %v4438 = vadd.f32 0.0, %v4437
        %v4439 = vpop.f32.mrf.mxu0
        %v4440 = vpop.f32.mrf.mxu0
        %v4441 = vpop.f32.mrf.mxu0
        %4442 = vdwg.mxu0
        %v4443 = vadd.f32 %v4376, %v4438
        %v4445 = vlaneseq
        %v4446 = vshrl.u32 %v4445, 7
        %v4447 = vsub.s32 0, %v4446
        %v4448 = vrot.slane %v498, %v4447
        %v4450 = vadd.f32 %v4443, %v4448
        %v4451 = vmax.f32 %v4450, 0.0
        %4452 = vmatprep.subr.bf16.mxu0 0
        %4453 = vmatpush1.bf16.msra.mxu0 0
        %4454 = vmatprep.subr.bf16.mxu0 0
        %4455 = vmatpush1.bf16.msra.mxu0 0
        %4456 = vmatprep.subr.bf16.mxu0 0
        %4457 = vmatpush1.bf16.msra.mxu0 0
        %4458 = vmatprep.subr.bf16.mxu0 0
        %4459 = vmatpush1.bf16.msra.mxu0 0
        %4460 = vmatprep.subr.bf16.mxu0 0
        %4461 = vmatpush1.bf16.msra.mxu0 0
        %4462 = vmatprep.subr.bf16.mxu0 0
        %4463 = vmatpush1.bf16.msra.mxu0 0
        %4464 = vmatprep.subr.bf16.mxu0 0
        %4465 = vmatpush1.bf16.msra.mxu0 %v3434
        %4466 = vmatprep.subr.bf16.mxu0 0
        %4467 = vmatpush1.bf16.msra.mxu0 %v3433
        %4468 = vmatprep.subr.bf16.mxu0 0
        %4469 = vmatpush2.bf16.msra.mxu0 0
        %4470 = vmatprep.subr.bf16.mxu0 0
        %4471 = vmatpush2.bf16.msra.mxu0 0
        %4472 = vmatprep.subr.bf16.mxu0 0
        %4473 = vmatpush2.bf16.msra.mxu0 0
        %4474 = vmatprep.subr.bf16.mxu0 0
        %4475 = vmatpush2.bf16.msra.mxu0 0
        %4476 = vmatprep.subr.bf16.mxu0 0
        %4477 = vmatpush2.bf16.msra.mxu0 0
        %4478 = vmatprep.subr.bf16.mxu0 0
        %4479 = vmatpush2.bf16.msra.mxu0 0
        %4480 = vmatprep.subr.bf16.mxu0 0
        %4481 = vmatpush2.bf16.msra.mxu0 0
        %4482 = vmatprep.subr.bf16.mxu0 0
        %4483 = vmatpush2.bf16.msra.mxu0 0
        %4484 = vmatprep.mubr.bf16.mxu0 0
        %4485 = vmatmul.mubr.bf16.gmra.mxu0 %v4009
        %v4486 = vpop.f32.mrf.mxu0
        %v4487 = vadd.f32 0.0, %v4486
        %v4488 = vpop.f32.mrf.mxu0
        %v4489 = vpop.f32.mrf.mxu0
        %v4490 = vpop.f32.mrf.mxu0
        %4491 = vdwg.mxu0
        %4492 = vmatprep.subr.bf16.mxu0 0
        %4493 = vmatpush1.bf16.msra.mxu0 0
        %4494 = vmatprep.subr.bf16.mxu0 0
        %4495 = vmatpush1.bf16.msra.mxu0 0
        %4496 = vmatprep.subr.bf16.mxu0 0
        %4497 = vmatpush1.bf16.msra.mxu0 0
        %4498 = vmatprep.subr.bf16.mxu0 0
        %4499 = vmatpush1.bf16.msra.mxu0 0
        %4500 = vmatprep.subr.bf16.mxu0 0
        %4501 = vmatpush1.bf16.msra.mxu0 0
        %4502 = vmatprep.subr.bf16.mxu0 0
        %4503 = vmatpush1.bf16.msra.mxu0 0
        %4504 = vmatprep.subr.bf16.mxu0 0
        %4505 = vmatpush1.bf16.msra.mxu0 %v3490
        %4506 = vmatprep.subr.bf16.mxu0 0
        %4507 = vmatpush1.bf16.msra.mxu0 %v3489
        %4508 = vmatprep.subr.bf16.mxu0 0
        %4509 = vmatpush2.bf16.msra.mxu0 0
        %4510 = vmatprep.subr.bf16.mxu0 0
        %4511 = vmatpush2.bf16.msra.mxu0 0
        %4512 = vmatprep.subr.bf16.mxu0 0
        %4513 = vmatpush2.bf16.msra.mxu0 0
        %4514 = vmatprep.subr.bf16.mxu0 0
        %4515 = vmatpush2.bf16.msra.mxu0 0
        %4516 = vmatprep.subr.bf16.mxu0 0
        %4517 = vmatpush2.bf16.msra.mxu0 0
        %4518 = vmatprep.subr.bf16.mxu0 0
        %4519 = vmatpush2.bf16.msra.mxu0 0
        %4520 = vmatprep.subr.bf16.mxu0 0
        %4521 = vmatpush2.bf16.msra.mxu0 0
        %4522 = vmatprep.subr.bf16.mxu0 0
        %4523 = vmatpush2.bf16.msra.mxu0 0
        %4524 = vmatprep.mubr.bf16.mxu0 0
        %4525 = vmatmul.mubr.bf16.gmra.mxu0 %v3947
        %v4526 = vpop.f32.mrf.mxu0
        %v4527 = vadd.f32 %v4487, %v4526
        %v4528 = vpop.f32.mrf.mxu0
        %v4529 = vpop.f32.mrf.mxu0
        %v4530 = vpop.f32.mrf.mxu0
        %4531 = vdwg.mxu0
        %4532 = vmatprep.subr.bf16.mxu0 0
        %4533 = vmatpush1.bf16.msra.mxu0 0
        %4534 = vmatprep.subr.bf16.mxu0 0
        %4535 = vmatpush1.bf16.msra.mxu0 0
        %4536 = vmatprep.subr.bf16.mxu0 0
        %4537 = vmatpush1.bf16.msra.mxu0 0
        %4538 = vmatprep.subr.bf16.mxu0 0
        %4539 = vmatpush1.bf16.msra.mxu0 0
        %4540 = vmatprep.subr.bf16.mxu0 0
        %4541 = vmatpush1.bf16.msra.mxu0 0
        %4542 = vmatprep.subr.bf16.mxu0 0
        %4543 = vmatpush1.bf16.msra.mxu0 0
        %4544 = vmatprep.subr.bf16.mxu0 0
        %4545 = vmatpush1.bf16.msra.mxu0 %v3556
        %4546 = vmatprep.subr.bf16.mxu0 0
        %4547 = vmatpush1.bf16.msra.mxu0 %v3555
        %4548 = vmatprep.subr.bf16.mxu0 0
        %4549 = vmatpush2.bf16.msra.mxu0 0
        %4550 = vmatprep.subr.bf16.mxu0 0
        %4551 = vmatpush2.bf16.msra.mxu0 0
        %4552 = vmatprep.subr.bf16.mxu0 0
        %4553 = vmatpush2.bf16.msra.mxu0 0
        %4554 = vmatprep.subr.bf16.mxu0 0
        %4555 = vmatpush2.bf16.msra.mxu0 0
        %4556 = vmatprep.subr.bf16.mxu0 0
        %4557 = vmatpush2.bf16.msra.mxu0 0
        %4558 = vmatprep.subr.bf16.mxu0 0
        %4559 = vmatpush2.bf16.msra.mxu0 0
        %4560 = vmatprep.subr.bf16.mxu0 0
        %4561 = vmatpush2.bf16.msra.mxu0 0
        %4562 = vmatprep.subr.bf16.mxu0 0
        %4563 = vmatpush2.bf16.msra.mxu0 0
        %4564 = vmatprep.mubr.bf16.mxu0 0
        %4565 = vmatmul.mubr.bf16.gmra.mxu0 %v4076
        %v4566 = vpop.f32.mrf.mxu0
        %v4567 = vadd.f32 0.0, %v4566
        %v4568 = vpop.f32.mrf.mxu0
        %v4569 = vpop.f32.mrf.mxu0
        %v4570 = vpop.f32.mrf.mxu0
        %4571 = vdwg.mxu0
        %v4572 = vadd.f32 %v4527, %v4567
        %4573 = vmatprep.subr.bf16.mxu0 0
        %4574 = vmatpush1.bf16.msra.mxu0 0
        %4575 = vmatprep.subr.bf16.mxu0 0
        %4576 = vmatpush1.bf16.msra.mxu0 0
        %4577 = vmatprep.subr.bf16.mxu0 0
        %4578 = vmatpush1.bf16.msra.mxu0 0
        %4579 = vmatprep.subr.bf16.mxu0 0
        %4580 = vmatpush1.bf16.msra.mxu0 0
        %4581 = vmatprep.subr.bf16.mxu0 0
        %4582 = vmatpush1.bf16.msra.mxu0 0
        %4583 = vmatprep.subr.bf16.mxu0 0
        %4584 = vmatpush1.bf16.msra.mxu0 0
        %4585 = vmatprep.subr.bf16.mxu0 0
        %4586 = vmatpush1.bf16.msra.mxu0 %v3623
        %4587 = vmatprep.subr.bf16.mxu0 0
        %4588 = vmatpush1.bf16.msra.mxu0 %v3622
        %4589 = vmatprep.subr.bf16.mxu0 0
        %4590 = vmatpush2.bf16.msra.mxu0 0
        %4591 = vmatprep.subr.bf16.mxu0 0
        %4592 = vmatpush2.bf16.msra.mxu0 0
        %4593 = vmatprep.subr.bf16.mxu0 0
        %4594 = vmatpush2.bf16.msra.mxu0 0
        %4595 = vmatprep.subr.bf16.mxu0 0
        %4596 = vmatpush2.bf16.msra.mxu0 0
        %4597 = vmatprep.subr.bf16.mxu0 0
        %4598 = vmatpush2.bf16.msra.mxu0 0
        %4599 = vmatprep.subr.bf16.mxu0 0
        %4600 = vmatpush2.bf16.msra.mxu0 0
        %4601 = vmatprep.subr.bf16.mxu0 0
        %4602 = vmatpush2.bf16.msra.mxu0 0
        %4603 = vmatprep.subr.bf16.mxu0 0
        %4604 = vmatpush2.bf16.msra.mxu0 0
        %4605 = vmatprep.mubr.bf16.mxu0 0
        %4606 = vmatmul.mubr.bf16.gmra.mxu0 %v4143
        %v4607 = vpop.f32.mrf.mxu0
        %v4608 = vadd.f32 0.0, %v4607
        %v4609 = vpop.f32.mrf.mxu0
        %v4610 = vpop.f32.mrf.mxu0
        %v4611 = vpop.f32.mrf.mxu0
        %4612 = vdwg.mxu0
        %v4613 = vadd.f32 %v4572, %v4608
        %4614 = vmatprep.subr.bf16.mxu0 0
        %4615 = vmatpush1.bf16.msra.mxu0 0
        %4616 = vmatprep.subr.bf16.mxu0 0
        %4617 = vmatpush1.bf16.msra.mxu0 0
        %4618 = vmatprep.subr.bf16.mxu0 0
        %4619 = vmatpush1.bf16.msra.mxu0 0
        %4620 = vmatprep.subr.bf16.mxu0 0
        %4621 = vmatpush1.bf16.msra.mxu0 0
        %4622 = vmatprep.subr.bf16.mxu0 0
        %4623 = vmatpush1.bf16.msra.mxu0 0
        %4624 = vmatprep.subr.bf16.mxu0 0
        %4625 = vmatpush1.bf16.msra.mxu0 0
        %4626 = vmatprep.subr.bf16.mxu0 0
        %4627 = vmatpush1.bf16.msra.mxu0 %v3685
        %4628 = vmatprep.subr.bf16.mxu0 0
        %4629 = vmatpush1.bf16.msra.mxu0 %v3684
        %4630 = vmatprep.subr.bf16.mxu0 0
        %4631 = vmatpush2.bf16.msra.mxu0 0
        %4632 = vmatprep.subr.bf16.mxu0 0
        %4633 = vmatpush2.bf16.msra.mxu0 0
        %4634 = vmatprep.subr.bf16.mxu0 0
        %4635 = vmatpush2.bf16.msra.mxu0 0
        %4636 = vmatprep.subr.bf16.mxu0 0
        %4637 = vmatpush2.bf16.msra.mxu0 0
        %4638 = vmatprep.subr.bf16.mxu0 0
        %4639 = vmatpush2.bf16.msra.mxu0 0
        %4640 = vmatprep.subr.bf16.mxu0 0
        %4641 = vmatpush2.bf16.msra.mxu0 0
        %4642 = vmatprep.subr.bf16.mxu0 0
        %4643 = vmatpush2.bf16.msra.mxu0 0
        %4644 = vmatprep.subr.bf16.mxu0 0
        %4645 = vmatpush2.bf16.msra.mxu0 0
        %4646 = vmatprep.mubr.bf16.mxu0 0
        %4647 = vmatmul.mubr.bf16.gmra.mxu0 %v4205
        %v4648 = vpop.f32.mrf.mxu0
        %v4649 = vadd.f32 0.0, %v4648
        %v4650 = vpop.f32.mrf.mxu0
        %v4651 = vpop.f32.mrf.mxu0
        %v4652 = vpop.f32.mrf.mxu0
        %4653 = vdwg.mxu0
        %v4654 = vadd.f32 %v4613, %v4649
        %4655 = vmatprep.subr.bf16.mxu0 0
        %4656 = vmatpush1.bf16.msra.mxu0 0
        %4657 = vmatprep.subr.bf16.mxu0 0
        %4658 = vmatpush1.bf16.msra.mxu0 0
        %4659 = vmatprep.subr.bf16.mxu0 0
        %4660 = vmatpush1.bf16.msra.mxu0 0
        %4661 = vmatprep.subr.bf16.mxu0 0
        %4662 = vmatpush1.bf16.msra.mxu0 0
        %4663 = vmatprep.subr.bf16.mxu0 0
        %4664 = vmatpush1.bf16.msra.mxu0 0
        %4665 = vmatprep.subr.bf16.mxu0 0
        %4666 = vmatpush1.bf16.msra.mxu0 0
        %4667 = vmatprep.subr.bf16.mxu0 0
        %4668 = vmatpush1.bf16.msra.mxu0 %v3747
        %4669 = vmatprep.subr.bf16.mxu0 0
        %4670 = vmatpush1.bf16.msra.mxu0 %v3746
        %4671 = vmatprep.subr.bf16.mxu0 0
        %4672 = vmatpush2.bf16.msra.mxu0 0
        %4673 = vmatprep.subr.bf16.mxu0 0
        %4674 = vmatpush2.bf16.msra.mxu0 0
        %4675 = vmatprep.subr.bf16.mxu0 0
        %4676 = vmatpush2.bf16.msra.mxu0 0
        %4677 = vmatprep.subr.bf16.mxu0 0
        %4678 = vmatpush2.bf16.msra.mxu0 0
        %4679 = vmatprep.subr.bf16.mxu0 0
        %4680 = vmatpush2.bf16.msra.mxu0 0
        %4681 = vmatprep.subr.bf16.mxu0 0
        %4682 = vmatpush2.bf16.msra.mxu0 0
        %4683 = vmatprep.subr.bf16.mxu0 0
        %4684 = vmatpush2.bf16.msra.mxu0 0
        %4685 = vmatprep.subr.bf16.mxu0 0
        %4686 = vmatpush2.bf16.msra.mxu0 0
        %4687 = vmatprep.mubr.bf16.mxu0 0
        %4688 = vmatmul.mubr.bf16.gmra.mxu0 %v4267
        %v4689 = vpop.f32.mrf.mxu0
        %v4690 = vadd.f32 0.0, %v4689
        %v4691 = vpop.f32.mrf.mxu0
        %v4692 = vpop.f32.mrf.mxu0
        %v4693 = vpop.f32.mrf.mxu0
        %4694 = vdwg.mxu0
        %v4695 = vadd.f32 %v4654, %v4690
        %4696 = vmatprep.subr.bf16.mxu0 0
        %4697 = vmatpush1.bf16.msra.mxu0 0
        %4698 = vmatprep.subr.bf16.mxu0 0
        %4699 = vmatpush1.bf16.msra.mxu0 0
        %4700 = vmatprep.subr.bf16.mxu0 0
        %4701 = vmatpush1.bf16.msra.mxu0 0
        %4702 = vmatprep.subr.bf16.mxu0 0
        %4703 = vmatpush1.bf16.msra.mxu0 0
        %4704 = vmatprep.subr.bf16.mxu0 0
        %4705 = vmatpush1.bf16.msra.mxu0 0
        %4706 = vmatprep.subr.bf16.mxu0 0
        %4707 = vmatpush1.bf16.msra.mxu0 0
        %4708 = vmatprep.subr.bf16.mxu0 0
        %4709 = vmatpush1.bf16.msra.mxu0 %v3814
        %4710 = vmatprep.subr.bf16.mxu0 0
        %4711 = vmatpush1.bf16.msra.mxu0 %v3813
        %4712 = vmatprep.subr.bf16.mxu0 0
        %4713 = vmatpush2.bf16.msra.mxu0 0
        %4714 = vmatprep.subr.bf16.mxu0 0
        %4715 = vmatpush2.bf16.msra.mxu0 0
        %4716 = vmatprep.subr.bf16.mxu0 0
        %4717 = vmatpush2.bf16.msra.mxu0 0
        %4718 = vmatprep.subr.bf16.mxu0 0
        %4719 = vmatpush2.bf16.msra.mxu0 0
        %4720 = vmatprep.subr.bf16.mxu0 0
        %4721 = vmatpush2.bf16.msra.mxu0 0
        %4722 = vmatprep.subr.bf16.mxu0 0
        %4723 = vmatpush2.bf16.msra.mxu0 0
        %4724 = vmatprep.subr.bf16.mxu0 0
        %4725 = vmatpush2.bf16.msra.mxu0 0
        %4726 = vmatprep.subr.bf16.mxu0 0
        %4727 = vmatpush2.bf16.msra.mxu0 0
        %4728 = vmatprep.mubr.bf16.mxu0 0
        %4729 = vmatmul.mubr.bf16.gmra.mxu0 %v4334
        %v4730 = vpop.f32.mrf.mxu0
        %v4731 = vadd.f32 0.0, %v4730
        %v4732 = vpop.f32.mrf.mxu0
        %v4733 = vpop.f32.mrf.mxu0
        %v4734 = vpop.f32.mrf.mxu0
        %4735 = vdwg.mxu0
        %v4736 = vadd.f32 %v4695, %v4731
        %4737 = vmatprep.subr.bf16.mxu0 0
        %4738 = vmatpush1.bf16.msra.mxu0 0
        %4739 = vmatprep.subr.bf16.mxu0 0
        %4740 = vmatpush1.bf16.msra.mxu0 0
        %4741 = vmatprep.subr.bf16.mxu0 0
        %4742 = vmatpush1.bf16.msra.mxu0 0
        %4743 = vmatprep.subr.bf16.mxu0 0
        %4744 = vmatpush1.bf16.msra.mxu0 0
        %4745 = vmatprep.subr.bf16.mxu0 0
        %4746 = vmatpush1.bf16.msra.mxu0 0
        %4747 = vmatprep.subr.bf16.mxu0 0
        %4748 = vmatpush1.bf16.msra.mxu0 0
        %4749 = vmatprep.subr.bf16.mxu0 0
        %4750 = vmatpush1.bf16.msra.mxu0 %v3881
        %4751 = vmatprep.subr.bf16.mxu0 0
        %4752 = vmatpush1.bf16.msra.mxu0 %v3880
        %4753 = vmatprep.subr.bf16.mxu0 0
        %4754 = vmatpush2.bf16.msra.mxu0 0
        %4755 = vmatprep.subr.bf16.mxu0 0
        %4756 = vmatpush2.bf16.msra.mxu0 0
        %4757 = vmatprep.subr.bf16.mxu0 0
        %4758 = vmatpush2.bf16.msra.mxu0 0
        %4759 = vmatprep.subr.bf16.mxu0 0
        %4760 = vmatpush2.bf16.msra.mxu0 0
        %4761 = vmatprep.subr.bf16.mxu0 0
        %4762 = vmatpush2.bf16.msra.mxu0 0
        %4763 = vmatprep.subr.bf16.mxu0 0
        %4764 = vmatpush2.bf16.msra.mxu0 0
        %4765 = vmatprep.subr.bf16.mxu0 0
        %4766 = vmatpush2.bf16.msra.mxu0 0
        %4767 = vmatprep.subr.bf16.mxu0 0
        %4768 = vmatpush2.bf16.msra.mxu0 0
        %4769 = vmatprep.mubr.bf16.mxu0 0
        %4770 = vmatmul.mubr.bf16.gmra.mxu0 %v4401
        %v4771 = vpop.f32.mrf.mxu0
        %v4772 = vadd.f32 0.0, %v4771
        %v4773 = vpop.f32.mrf.mxu0
        %v4774 = vpop.f32.mrf.mxu0
        %v4775 = vpop.f32.mrf.mxu0
        %4776 = vdwg.mxu0
        %v4777 = vadd.f32 %v4736, %v4772
        %v4778 = vpack.c.bf16 %v1200, %v1200
        %v4780 = vsel %vm3437, %v4778, 0
        %4782 = vmatprep.subr.bf16.mxu0 0
        %4783 = vmatpush1.bf16.msra.mxu0 0
        %4784 = vmatprep.subr.bf16.mxu0 0
        %4785 = vmatpush1.bf16.msra.mxu0 0
        %4786 = vmatprep.subr.bf16.mxu0 0
        %4787 = vmatpush1.bf16.msra.mxu0 0
        %4788 = vmatprep.subr.bf16.mxu0 0
        %4789 = vmatpush1.bf16.msra.mxu0 0
        %4790 = vmatprep.subr.bf16.mxu0 0
        %4791 = vmatpush1.bf16.msra.mxu0 0
        %4792 = vmatprep.subr.bf16.mxu0 0
        %4793 = vmatpush1.bf16.msra.mxu0 0
        %4794 = vmatprep.subr.bf16.mxu0 0
        %4795 = vmatpush1.bf16.msra.mxu0 %v3943
        %4796 = vmatprep.subr.bf16.mxu0 0
        %4797 = vmatpush1.bf16.msra.mxu0 %v3942
        %4798 = vmatprep.subr.bf16.mxu0 0
        %4799 = vmatpush2.bf16.msra.mxu0 0
        %4800 = vmatprep.subr.bf16.mxu0 0
        %4801 = vmatpush2.bf16.msra.mxu0 0
        %4802 = vmatprep.subr.bf16.mxu0 0
        %4803 = vmatpush2.bf16.msra.mxu0 0
        %4804 = vmatprep.subr.bf16.mxu0 0
        %4805 = vmatpush2.bf16.msra.mxu0 0
        %4806 = vmatprep.subr.bf16.mxu0 0
        %4807 = vmatpush2.bf16.msra.mxu0 0
        %4808 = vmatprep.subr.bf16.mxu0 0
        %4809 = vmatpush2.bf16.msra.mxu0 0
        %4810 = vmatprep.subr.bf16.mxu0 0
        %4811 = vmatpush2.bf16.msra.mxu0 0
        %4812 = vmatprep.subr.bf16.mxu0 0
        %4813 = vmatpush2.bf16.msra.mxu0 0
        %4814 = vmatprep.mubr.bf16.mxu0 0
        %4815 = vmatmul.mubr.bf16.gmra.mxu0 %v4780
        %v4816 = vpop.f32.mrf.mxu0
        %v4817 = vadd.f32 0.0, %v4816
        %v4818 = vpop.f32.mrf.mxu0
        %v4819 = vpop.f32.mrf.mxu0
        %v4820 = vpop.f32.mrf.mxu0
        %4821 = vdwg.mxu0
        %v4822 = vadd.f32 %v4777, %v4817
        %v4823 = vpack.c.bf16 %v1910, %v1910
        %v4825 = vsel %vm3437, %v4823, 0
        %4827 = vmatprep.subr.bf16.mxu0 0
        %4828 = vmatpush1.bf16.msra.mxu0 0
        %4829 = vmatprep.subr.bf16.mxu0 0
        %4830 = vmatpush1.bf16.msra.mxu0 0
        %4831 = vmatprep.subr.bf16.mxu0 0
        %4832 = vmatpush1.bf16.msra.mxu0 0
        %4833 = vmatprep.subr.bf16.mxu0 0
        %4834 = vmatpush1.bf16.msra.mxu0 0
        %4835 = vmatprep.subr.bf16.mxu0 0
        %4836 = vmatpush1.bf16.msra.mxu0 0
        %4837 = vmatprep.subr.bf16.mxu0 0
        %4838 = vmatpush1.bf16.msra.mxu0 0
        %4839 = vmatprep.subr.bf16.mxu0 0
        %4840 = vmatpush1.bf16.msra.mxu0 %v4005
        %4841 = vmatprep.subr.bf16.mxu0 0
        %4842 = vmatpush1.bf16.msra.mxu0 %v4004
        %4843 = vmatprep.subr.bf16.mxu0 0
        %4844 = vmatpush2.bf16.msra.mxu0 0
        %4845 = vmatprep.subr.bf16.mxu0 0
        %4846 = vmatpush2.bf16.msra.mxu0 0
        %4847 = vmatprep.subr.bf16.mxu0 0
        %4848 = vmatpush2.bf16.msra.mxu0 0
        %4849 = vmatprep.subr.bf16.mxu0 0
        %4850 = vmatpush2.bf16.msra.mxu0 0
        %4851 = vmatprep.subr.bf16.mxu0 0
        %4852 = vmatpush2.bf16.msra.mxu0 0
        %4853 = vmatprep.subr.bf16.mxu0 0
        %4854 = vmatpush2.bf16.msra.mxu0 0
        %4855 = vmatprep.subr.bf16.mxu0 0
        %4856 = vmatpush2.bf16.msra.mxu0 0
        %4857 = vmatprep.subr.bf16.mxu0 0
        %4858 = vmatpush2.bf16.msra.mxu0 0
        %4859 = vmatprep.mubr.bf16.mxu0 0
        %4860 = vmatmul.mubr.bf16.gmra.mxu0 %v4825
        %v4861 = vpop.f32.mrf.mxu0
        %v4862 = vadd.f32 0.0, %v4861
        %v4863 = vpop.f32.mrf.mxu0
        %v4864 = vpop.f32.mrf.mxu0
        %v4865 = vpop.f32.mrf.mxu0
        %4866 = vdwg.mxu0
        %v4867 = vadd.f32 %v4822, %v4862
        %v4868 = vshrl.u32 %v4778, 16
        %v4870 = vshll.u32 %v4778, 16
        %v4872 = vrot.slane %v4870, 1
        %v4873 = vor.u32 %v4868, %v4872
        %v4875 = vsel %vm3437, %v4873, 0
        %4877 = vmatprep.subr.bf16.mxu0 0
        %4878 = vmatpush1.bf16.msra.mxu0 0
        %4879 = vmatprep.subr.bf16.mxu0 0
        %4880 = vmatpush1.bf16.msra.mxu0 0
        %4881 = vmatprep.subr.bf16.mxu0 0
        %4882 = vmatpush1.bf16.msra.mxu0 0
        %4883 = vmatprep.subr.bf16.mxu0 0
        %4884 = vmatpush1.bf16.msra.mxu0 0
        %4885 = vmatprep.subr.bf16.mxu0 0
        %4886 = vmatpush1.bf16.msra.mxu0 0
        %4887 = vmatprep.subr.bf16.mxu0 0
        %4888 = vmatpush1.bf16.msra.mxu0 0
        %4889 = vmatprep.subr.bf16.mxu0 0
        %4890 = vmatpush1.bf16.msra.mxu0 %v4072
        %4891 = vmatprep.subr.bf16.mxu0 0
        %4892 = vmatpush1.bf16.msra.mxu0 %v4071
        %4893 = vmatprep.subr.bf16.mxu0 0
        %4894 = vmatpush2.bf16.msra.mxu0 0
        %4895 = vmatprep.subr.bf16.mxu0 0
        %4896 = vmatpush2.bf16.msra.mxu0 0
        %4897 = vmatprep.subr.bf16.mxu0 0
        %4898 = vmatpush2.bf16.msra.mxu0 0
        %4899 = vmatprep.subr.bf16.mxu0 0
        %4900 = vmatpush2.bf16.msra.mxu0 0
        %4901 = vmatprep.subr.bf16.mxu0 0
        %4902 = vmatpush2.bf16.msra.mxu0 0
        %4903 = vmatprep.subr.bf16.mxu0 0
        %4904 = vmatpush2.bf16.msra.mxu0 0
        %4905 = vmatprep.subr.bf16.mxu0 0
        %4906 = vmatpush2.bf16.msra.mxu0 0
        %4907 = vmatprep.subr.bf16.mxu0 0
        %4908 = vmatpush2.bf16.msra.mxu0 0
        %4909 = vmatprep.mubr.bf16.mxu0 0
        %4910 = vmatmul.mubr.bf16.gmra.mxu0 %v4875
        %v4911 = vpop.f32.mrf.mxu0
        %v4912 = vadd.f32 0.0, %v4911
        %v4913 = vpop.f32.mrf.mxu0
        %v4914 = vpop.f32.mrf.mxu0
        %v4915 = vpop.f32.mrf.mxu0
        %4916 = vdwg.mxu0
        %v4917 = vadd.f32 %v4867, %v4912
        %v4918 = vshrl.u32 %v4823, 16
        %v4920 = vshll.u32 %v4823, 16
        %v4922 = vrot.slane %v4920, 1
        %v4923 = vor.u32 %v4918, %v4922
        %v4925 = vsel %vm3437, %v4923, 0
        %4927 = vmatprep.subr.bf16.mxu0 0
        %4928 = vmatpush1.bf16.msra.mxu0 0
        %4929 = vmatprep.subr.bf16.mxu0 0
        %4930 = vmatpush1.bf16.msra.mxu0 0
        %4931 = vmatprep.subr.bf16.mxu0 0
        %4932 = vmatpush1.bf16.msra.mxu0 0
        %4933 = vmatprep.subr.bf16.mxu0 0
        %4934 = vmatpush1.bf16.msra.mxu0 0
        %4935 = vmatprep.subr.bf16.mxu0 0
        %4936 = vmatpush1.bf16.msra.mxu0 0
        %4937 = vmatprep.subr.bf16.mxu0 0
        %4938 = vmatpush1.bf16.msra.mxu0 0
        %4939 = vmatprep.subr.bf16.mxu0 0
        %4940 = vmatpush1.bf16.msra.mxu0 %v4139
        %4941 = vmatprep.subr.bf16.mxu0 0
        %4942 = vmatpush1.bf16.msra.mxu0 %v4138
        %4943 = vmatprep.subr.bf16.mxu0 0
        %4944 = vmatpush2.bf16.msra.mxu0 0
        %4945 = vmatprep.subr.bf16.mxu0 0
        %4946 = vmatpush2.bf16.msra.mxu0 0
        %4947 = vmatprep.subr.bf16.mxu0 0
        %4948 = vmatpush2.bf16.msra.mxu0 0
        %4949 = vmatprep.subr.bf16.mxu0 0
        %4950 = vmatpush2.bf16.msra.mxu0 0
        %4951 = vmatprep.subr.bf16.mxu0 0
        %4952 = vmatpush2.bf16.msra.mxu0 0
        %4953 = vmatprep.subr.bf16.mxu0 0
        %4954 = vmatpush2.bf16.msra.mxu0 0
        %4955 = vmatprep.subr.bf16.mxu0 0
        %4956 = vmatpush2.bf16.msra.mxu0 0
        %4957 = vmatprep.subr.bf16.mxu0 0
        %4958 = vmatpush2.bf16.msra.mxu0 0
        %4959 = vmatprep.mubr.bf16.mxu0 0
        %4960 = vmatmul.mubr.bf16.gmra.mxu0 %v4925
        %v4961 = vpop.f32.mrf.mxu0
        %v4962 = vadd.f32 0.0, %v4961
        %v4963 = vpop.f32.mrf.mxu0
        %v4964 = vpop.f32.mrf.mxu0
        %v4965 = vpop.f32.mrf.mxu0
        %4966 = vdwg.mxu0
        %v4967 = vadd.f32 %v4917, %v4962
        %v4968 = vpack.c.bf16 %v2576, %v2576
        %v4970 = vsel %vm3437, %v4968, 0
        %4972 = vmatprep.subr.bf16.mxu0 0
        %4973 = vmatpush1.bf16.msra.mxu0 0
        %4974 = vmatprep.subr.bf16.mxu0 0
        %4975 = vmatpush1.bf16.msra.mxu0 0
        %4976 = vmatprep.subr.bf16.mxu0 0
        %4977 = vmatpush1.bf16.msra.mxu0 0
        %4978 = vmatprep.subr.bf16.mxu0 0
        %4979 = vmatpush1.bf16.msra.mxu0 0
        %4980 = vmatprep.subr.bf16.mxu0 0
        %4981 = vmatpush1.bf16.msra.mxu0 0
        %4982 = vmatprep.subr.bf16.mxu0 0
        %4983 = vmatpush1.bf16.msra.mxu0 0
        %4984 = vmatprep.subr.bf16.mxu0 0
        %4985 = vmatpush1.bf16.msra.mxu0 %v4201
        %4986 = vmatprep.subr.bf16.mxu0 0
        %4987 = vmatpush1.bf16.msra.mxu0 %v4200
        %4988 = vmatprep.subr.bf16.mxu0 0
        %4989 = vmatpush2.bf16.msra.mxu0 0
        %4990 = vmatprep.subr.bf16.mxu0 0
        %4991 = vmatpush2.bf16.msra.mxu0 0
        %4992 = vmatprep.subr.bf16.mxu0 0
        %4993 = vmatpush2.bf16.msra.mxu0 0
        %4994 = vmatprep.subr.bf16.mxu0 0
        %4995 = vmatpush2.bf16.msra.mxu0 0
        %4996 = vmatprep.subr.bf16.mxu0 0
        %4997 = vmatpush2.bf16.msra.mxu0 0
        %4998 = vmatprep.subr.bf16.mxu0 0
        %4999 = vmatpush2.bf16.msra.mxu0 0
        %5000 = vmatprep.subr.bf16.mxu0 0
        %5001 = vmatpush2.bf16.msra.mxu0 0
        %5002 = vmatprep.subr.bf16.mxu0 0
        %5003 = vmatpush2.bf16.msra.mxu0 0
        %5004 = vmatprep.mubr.bf16.mxu0 0
        %5005 = vmatmul.mubr.bf16.gmra.mxu0 %v4970
        %v5006 = vpop.f32.mrf.mxu0
        %v5007 = vadd.f32 0.0, %v5006
        %v5008 = vpop.f32.mrf.mxu0
        %v5009 = vpop.f32.mrf.mxu0
        %v5010 = vpop.f32.mrf.mxu0
        %5011 = vdwg.mxu0
        %v5012 = vadd.f32 %v4967, %v5007
        %v5013 = vpack.c.bf16 %v3244, %v3244
        %v5015 = vsel %vm3437, %v5013, 0
        %5017 = vmatprep.subr.bf16.mxu0 0
        %5018 = vmatpush1.bf16.msra.mxu0 0
        %5019 = vmatprep.subr.bf16.mxu0 0
        %5020 = vmatpush1.bf16.msra.mxu0 0
        %5021 = vmatprep.subr.bf16.mxu0 0
        %5022 = vmatpush1.bf16.msra.mxu0 0
        %5023 = vmatprep.subr.bf16.mxu0 0
        %5024 = vmatpush1.bf16.msra.mxu0 0
        %5025 = vmatprep.subr.bf16.mxu0 0
        %5026 = vmatpush1.bf16.msra.mxu0 0
        %5027 = vmatprep.subr.bf16.mxu0 0
        %5028 = vmatpush1.bf16.msra.mxu0 0
        %5029 = vmatprep.subr.bf16.mxu0 0
        %5030 = vmatpush1.bf16.msra.mxu0 %v4263
        %5031 = vmatprep.subr.bf16.mxu0 0
        %5032 = vmatpush1.bf16.msra.mxu0 %v4262
        %5033 = vmatprep.subr.bf16.mxu0 0
        %5034 = vmatpush2.bf16.msra.mxu0 0
        %5035 = vmatprep.subr.bf16.mxu0 0
        %5036 = vmatpush2.bf16.msra.mxu0 0
        %5037 = vmatprep.subr.bf16.mxu0 0
        %5038 = vmatpush2.bf16.msra.mxu0 0
        %5039 = vmatprep.subr.bf16.mxu0 0
        %5040 = vmatpush2.bf16.msra.mxu0 0
        %5041 = vmatprep.subr.bf16.mxu0 0
        %5042 = vmatpush2.bf16.msra.mxu0 0
        %5043 = vmatprep.subr.bf16.mxu0 0
        %5044 = vmatpush2.bf16.msra.mxu0 0
        %5045 = vmatprep.subr.bf16.mxu0 0
        %5046 = vmatpush2.bf16.msra.mxu0 0
        %5047 = vmatprep.subr.bf16.mxu0 0
        %5048 = vmatpush2.bf16.msra.mxu0 0
        %5049 = vmatprep.mubr.bf16.mxu0 0
        %5050 = vmatmul.mubr.bf16.gmra.mxu0 %v5015
        %v5051 = vpop.f32.mrf.mxu0
        %v5052 = vadd.f32 0.0, %v5051
        %v5053 = vpop.f32.mrf.mxu0
        %v5054 = vpop.f32.mrf.mxu0
        %v5055 = vpop.f32.mrf.mxu0
        %5056 = vdwg.mxu0
        %v5057 = vadd.f32 %v5012, %v5052
        %v5058 = vshrl.u32 %v4968, 16
        %v5060 = vshll.u32 %v4968, 16
        %v5062 = vrot.slane %v5060, 1
        %v5063 = vor.u32 %v5058, %v5062
        %v5065 = vsel %vm3437, %v5063, 0
        %5067 = vmatprep.subr.bf16.mxu0 0
        %5068 = vmatpush1.bf16.msra.mxu0 0
        %5069 = vmatprep.subr.bf16.mxu0 0
        %5070 = vmatpush1.bf16.msra.mxu0 0
        %5071 = vmatprep.subr.bf16.mxu0 0
        %5072 = vmatpush1.bf16.msra.mxu0 0
        %5073 = vmatprep.subr.bf16.mxu0 0
        %5074 = vmatpush1.bf16.msra.mxu0 0
        %5075 = vmatprep.subr.bf16.mxu0 0
        %5076 = vmatpush1.bf16.msra.mxu0 0
        %5077 = vmatprep.subr.bf16.mxu0 0
        %5078 = vmatpush1.bf16.msra.mxu0 0
        %5079 = vmatprep.subr.bf16.mxu0 0
        %5080 = vmatpush1.bf16.msra.mxu0 %v4330
        %5081 = vmatprep.subr.bf16.mxu0 0
        %5082 = vmatpush1.bf16.msra.mxu0 %v4329
        %5083 = vmatprep.subr.bf16.mxu0 0
        %5084 = vmatpush2.bf16.msra.mxu0 0
        %5085 = vmatprep.subr.bf16.mxu0 0
        %5086 = vmatpush2.bf16.msra.mxu0 0
        %5087 = vmatprep.subr.bf16.mxu0 0
        %5088 = vmatpush2.bf16.msra.mxu0 0
        %5089 = vmatprep.subr.bf16.mxu0 0
        %5090 = vmatpush2.bf16.msra.mxu0 0
        %5091 = vmatprep.subr.bf16.mxu0 0
        %5092 = vmatpush2.bf16.msra.mxu0 0
        %5093 = vmatprep.subr.bf16.mxu0 0
        %5094 = vmatpush2.bf16.msra.mxu0 0
        %5095 = vmatprep.subr.bf16.mxu0 0
        %5096 = vmatpush2.bf16.msra.mxu0 0
        %5097 = vmatprep.subr.bf16.mxu0 0
        %5098 = vmatpush2.bf16.msra.mxu0 0
        %5099 = vmatprep.mubr.bf16.mxu0 0
        %5100 = vmatmul.mubr.bf16.gmra.mxu0 %v5065
        %v5101 = vpop.f32.mrf.mxu0
        %v5102 = vadd.f32 0.0, %v5101
        %v5103 = vpop.f32.mrf.mxu0
        %v5104 = vpop.f32.mrf.mxu0
        %v5105 = vpop.f32.mrf.mxu0
        %5106 = vdwg.mxu0
        %v5107 = vadd.f32 %v5057, %v5102
        %v5108 = vshrl.u32 %v5013, 16
        %v5110 = vshll.u32 %v5013, 16
        %v5112 = vrot.slane %v5110, 1
        %v5113 = vor.u32 %v5108, %v5112
        %v5115 = vsel %vm3437, %v5113, 0
        %5117 = vmatprep.subr.bf16.mxu0 0
        %5118 = vmatpush1.bf16.msra.mxu0 0
        %5119 = vmatprep.subr.bf16.mxu0 0
        %5120 = vmatpush1.bf16.msra.mxu0 0
        %5121 = vmatprep.subr.bf16.mxu0 0
        %5122 = vmatpush1.bf16.msra.mxu0 0
        %5123 = vmatprep.subr.bf16.mxu0 0
        %5124 = vmatpush1.bf16.msra.mxu0 0
        %5125 = vmatprep.subr.bf16.mxu0 0
        %5126 = vmatpush1.bf16.msra.mxu0 0
        %5127 = vmatprep.subr.bf16.mxu0 0
        %5128 = vmatpush1.bf16.msra.mxu0 0
        %5129 = vmatprep.subr.bf16.mxu0 0
        %5130 = vmatpush1.bf16.msra.mxu0 %v4397
        %5131 = vmatprep.subr.bf16.mxu0 0
        %5132 = vmatpush1.bf16.msra.mxu0 %v4396
        %5133 = vmatprep.subr.bf16.mxu0 0
        %5134 = vmatpush2.bf16.msra.mxu0 0
        %5135 = vmatprep.subr.bf16.mxu0 0
        %5136 = vmatpush2.bf16.msra.mxu0 0
        %5137 = vmatprep.subr.bf16.mxu0 0
        %5138 = vmatpush2.bf16.msra.mxu0 0
        %5139 = vmatprep.subr.bf16.mxu0 0
        %5140 = vmatpush2.bf16.msra.mxu0 0
        %5141 = vmatprep.subr.bf16.mxu0 0
        %5142 = vmatpush2.bf16.msra.mxu0 0
        %5143 = vmatprep.subr.bf16.mxu0 0
        %5144 = vmatpush2.bf16.msra.mxu0 0
        %5145 = vmatprep.subr.bf16.mxu0 0
        %5146 = vmatpush2.bf16.msra.mxu0 0
        %5147 = vmatprep.subr.bf16.mxu0 0
        %5148 = vmatpush2.bf16.msra.mxu0 0
        %5149 = vmatprep.mubr.bf16.mxu0 0
        %5150 = vmatmul.mubr.bf16.gmra.mxu0 %v5115
        %v5151 = vpop.f32.mrf.mxu0
        %v5152 = vadd.f32 0.0, %v5151
        %v5153 = vpop.f32.mrf.mxu0
        %v5154 = vpop.f32.mrf.mxu0
        %v5155 = vpop.f32.mrf.mxu0
        %5156 = vdwg.mxu0
        %v5157 = vadd.f32 %v5107, %v5152
        %v5158 = vadd.f32 %v5157, %v4448
        %v5159 = vmax.f32 %v5158, 0.0
        %5160 = vmatprep.subr.bf16.mxu0 0
        %5161 = vmatpush1.bf16.msra.mxu0 0
        %5162 = vmatprep.subr.bf16.mxu0 0
        %5163 = vmatpush1.bf16.msra.mxu0 0
        %5164 = vmatprep.subr.bf16.mxu0 0
        %5165 = vmatpush1.bf16.msra.mxu0 0
        %5166 = vmatprep.subr.bf16.mxu0 0
        %5167 = vmatpush1.bf16.msra.mxu0 0
        %5168 = vmatprep.subr.bf16.mxu0 0
        %5169 = vmatpush1.bf16.msra.mxu0 0
        %5170 = vmatprep.subr.bf16.mxu0 0
        %5171 = vmatpush1.bf16.msra.mxu0 0
        %5172 = vmatprep.subr.bf16.mxu0 0
        %5173 = vmatpush1.bf16.msra.mxu0 %v3434
        %5174 = vmatprep.subr.bf16.mxu0 0
        %5175 = vmatpush1.bf16.msra.mxu0 %v3433
        %5176 = vmatprep.subr.bf16.mxu0 0
        %5177 = vmatpush2.bf16.msra.mxu0 0
        %5178 = vmatprep.subr.bf16.mxu0 0
        %5179 = vmatpush2.bf16.msra.mxu0 0
        %5180 = vmatprep.subr.bf16.mxu0 0
        %5181 = vmatpush2.bf16.msra.mxu0 0
        %5182 = vmatprep.subr.bf16.mxu0 0
        %5183 = vmatpush2.bf16.msra.mxu0 0
        %5184 = vmatprep.subr.bf16.mxu0 0
        %5185 = vmatpush2.bf16.msra.mxu0 0
        %5186 = vmatprep.subr.bf16.mxu0 0
        %5187 = vmatpush2.bf16.msra.mxu0 0
        %5188 = vmatprep.subr.bf16.mxu0 0
        %5189 = vmatpush2.bf16.msra.mxu0 0
        %5190 = vmatprep.subr.bf16.mxu0 0
        %5191 = vmatpush2.bf16.msra.mxu0 0
        %5192 = vmatprep.mubr.bf16.mxu0 0
        %5193 = vmatmul.mubr.bf16.gmra.mxu0 %v4825
        %v5194 = vpop.f32.mrf.mxu0
        %v5195 = vadd.f32 0.0, %v5194
        %v5196 = vpop.f32.mrf.mxu0
        %v5197 = vpop.f32.mrf.mxu0
        %v5198 = vpop.f32.mrf.mxu0
        %5199 = vdwg.mxu0
        %5200 = vmatprep.subr.bf16.mxu0 0
        %5201 = vmatpush1.bf16.msra.mxu0 0
        %5202 = vmatprep.subr.bf16.mxu0 0
        %5203 = vmatpush1.bf16.msra.mxu0 0
        %5204 = vmatprep.subr.bf16.mxu0 0
        %5205 = vmatpush1.bf16.msra.mxu0 0
        %5206 = vmatprep.subr.bf16.mxu0 0
        %5207 = vmatpush1.bf16.msra.mxu0 0
        %5208 = vmatprep.subr.bf16.mxu0 0
        %5209 = vmatpush1.bf16.msra.mxu0 0
        %5210 = vmatprep.subr.bf16.mxu0 0
        %5211 = vmatpush1.bf16.msra.mxu0 0
        %5212 = vmatprep.subr.bf16.mxu0 0
        %5213 = vmatpush1.bf16.msra.mxu0 %v3490
        %5214 = vmatprep.subr.bf16.mxu0 0
        %5215 = vmatpush1.bf16.msra.mxu0 %v3489
        %5216 = vmatprep.subr.bf16.mxu0 0
        %5217 = vmatpush2.bf16.msra.mxu0 0
        %5218 = vmatprep.subr.bf16.mxu0 0
        %5219 = vmatpush2.bf16.msra.mxu0 0
        %5220 = vmatprep.subr.bf16.mxu0 0
        %5221 = vmatpush2.bf16.msra.mxu0 0
        %5222 = vmatprep.subr.bf16.mxu0 0
        %5223 = vmatpush2.bf16.msra.mxu0 0
        %5224 = vmatprep.subr.bf16.mxu0 0
        %5225 = vmatpush2.bf16.msra.mxu0 0
        %5226 = vmatprep.subr.bf16.mxu0 0
        %5227 = vmatpush2.bf16.msra.mxu0 0
        %5228 = vmatprep.subr.bf16.mxu0 0
        %5229 = vmatpush2.bf16.msra.mxu0 0
        %5230 = vmatprep.subr.bf16.mxu0 0
        %5231 = vmatpush2.bf16.msra.mxu0 0
        %5232 = vmatprep.mubr.bf16.mxu0 0
        %5233 = vmatmul.mubr.bf16.gmra.mxu0 %v4780
        %v5234 = vpop.f32.mrf.mxu0
        %v5235 = vadd.f32 %v5195, %v5234
        %v5236 = vpop.f32.mrf.mxu0
        %v5237 = vpop.f32.mrf.mxu0
        %v5238 = vpop.f32.mrf.mxu0
        %5239 = vdwg.mxu0
        %5240 = vmatprep.subr.bf16.mxu0 0
        %5241 = vmatpush1.bf16.msra.mxu0 0
        %5242 = vmatprep.subr.bf16.mxu0 0
        %5243 = vmatpush1.bf16.msra.mxu0 0
        %5244 = vmatprep.subr.bf16.mxu0 0
        %5245 = vmatpush1.bf16.msra.mxu0 0
        %5246 = vmatprep.subr.bf16.mxu0 0
        %5247 = vmatpush1.bf16.msra.mxu0 0
        %5248 = vmatprep.subr.bf16.mxu0 0
        %5249 = vmatpush1.bf16.msra.mxu0 0
        %5250 = vmatprep.subr.bf16.mxu0 0
        %5251 = vmatpush1.bf16.msra.mxu0 0
        %5252 = vmatprep.subr.bf16.mxu0 0
        %5253 = vmatpush1.bf16.msra.mxu0 %v3556
        %5254 = vmatprep.subr.bf16.mxu0 0
        %5255 = vmatpush1.bf16.msra.mxu0 %v3555
        %5256 = vmatprep.subr.bf16.mxu0 0
        %5257 = vmatpush2.bf16.msra.mxu0 0
        %5258 = vmatprep.subr.bf16.mxu0 0
        %5259 = vmatpush2.bf16.msra.mxu0 0
        %5260 = vmatprep.subr.bf16.mxu0 0
        %5261 = vmatpush2.bf16.msra.mxu0 0
        %5262 = vmatprep.subr.bf16.mxu0 0
        %5263 = vmatpush2.bf16.msra.mxu0 0
        %5264 = vmatprep.subr.bf16.mxu0 0
        %5265 = vmatpush2.bf16.msra.mxu0 0
        %5266 = vmatprep.subr.bf16.mxu0 0
        %5267 = vmatpush2.bf16.msra.mxu0 0
        %5268 = vmatprep.subr.bf16.mxu0 0
        %5269 = vmatpush2.bf16.msra.mxu0 0
        %5270 = vmatprep.subr.bf16.mxu0 0
        %5271 = vmatpush2.bf16.msra.mxu0 0
        %5272 = vmatprep.mubr.bf16.mxu0 0
        %5273 = vmatmul.mubr.bf16.gmra.mxu0 %v4875
        %v5274 = vpop.f32.mrf.mxu0
        %v5275 = vadd.f32 0.0, %v5274
        %v5276 = vpop.f32.mrf.mxu0
        %v5277 = vpop.f32.mrf.mxu0
        %v5278 = vpop.f32.mrf.mxu0
        %5279 = vdwg.mxu0
        %v5280 = vadd.f32 %v5235, %v5275
        %5281 = vmatprep.subr.bf16.mxu0 0
        %5282 = vmatpush1.bf16.msra.mxu0 0
        %5283 = vmatprep.subr.bf16.mxu0 0
        %5284 = vmatpush1.bf16.msra.mxu0 0
        %5285 = vmatprep.subr.bf16.mxu0 0
        %5286 = vmatpush1.bf16.msra.mxu0 0
        %5287 = vmatprep.subr.bf16.mxu0 0
        %5288 = vmatpush1.bf16.msra.mxu0 0
        %5289 = vmatprep.subr.bf16.mxu0 0
        %5290 = vmatpush1.bf16.msra.mxu0 0
        %5291 = vmatprep.subr.bf16.mxu0 0
        %5292 = vmatpush1.bf16.msra.mxu0 0
        %5293 = vmatprep.subr.bf16.mxu0 0
        %5294 = vmatpush1.bf16.msra.mxu0 %v3623
        %5295 = vmatprep.subr.bf16.mxu0 0
        %5296 = vmatpush1.bf16.msra.mxu0 %v3622
        %5297 = vmatprep.subr.bf16.mxu0 0
        %5298 = vmatpush2.bf16.msra.mxu0 0
        %5299 = vmatprep.subr.bf16.mxu0 0
        %5300 = vmatpush2.bf16.msra.mxu0 0
        %5301 = vmatprep.subr.bf16.mxu0 0
        %5302 = vmatpush2.bf16.msra.mxu0 0
        %5303 = vmatprep.subr.bf16.mxu0 0
        %5304 = vmatpush2.bf16.msra.mxu0 0
        %5305 = vmatprep.subr.bf16.mxu0 0
        %5306 = vmatpush2.bf16.msra.mxu0 0
        %5307 = vmatprep.subr.bf16.mxu0 0
        %5308 = vmatpush2.bf16.msra.mxu0 0
        %5309 = vmatprep.subr.bf16.mxu0 0
        %5310 = vmatpush2.bf16.msra.mxu0 0
        %5311 = vmatprep.subr.bf16.mxu0 0
        %5312 = vmatpush2.bf16.msra.mxu0 0
        %5313 = vmatprep.mubr.bf16.mxu0 0
        %5314 = vmatmul.mubr.bf16.gmra.mxu0 %v4925
        %v5315 = vpop.f32.mrf.mxu0
        %v5316 = vadd.f32 0.0, %v5315
        %v5317 = vpop.f32.mrf.mxu0
        %v5318 = vpop.f32.mrf.mxu0
        %v5319 = vpop.f32.mrf.mxu0
        %5320 = vdwg.mxu0
        %v5321 = vadd.f32 %v5280, %v5316
        %5322 = vmatprep.subr.bf16.mxu0 0
        %5323 = vmatpush1.bf16.msra.mxu0 0
        %5324 = vmatprep.subr.bf16.mxu0 0
        %5325 = vmatpush1.bf16.msra.mxu0 0
        %5326 = vmatprep.subr.bf16.mxu0 0
        %5327 = vmatpush1.bf16.msra.mxu0 0
        %5328 = vmatprep.subr.bf16.mxu0 0
        %5329 = vmatpush1.bf16.msra.mxu0 0
        %5330 = vmatprep.subr.bf16.mxu0 0
        %5331 = vmatpush1.bf16.msra.mxu0 0
        %5332 = vmatprep.subr.bf16.mxu0 0
        %5333 = vmatpush1.bf16.msra.mxu0 0
        %5334 = vmatprep.subr.bf16.mxu0 0
        %5335 = vmatpush1.bf16.msra.mxu0 %v3685
        %5336 = vmatprep.subr.bf16.mxu0 0
        %5337 = vmatpush1.bf16.msra.mxu0 %v3684
        %5338 = vmatprep.subr.bf16.mxu0 0
        %5339 = vmatpush2.bf16.msra.mxu0 0
        %5340 = vmatprep.subr.bf16.mxu0 0
        %5341 = vmatpush2.bf16.msra.mxu0 0
        %5342 = vmatprep.subr.bf16.mxu0 0
        %5343 = vmatpush2.bf16.msra.mxu0 0
        %5344 = vmatprep.subr.bf16.mxu0 0
        %5345 = vmatpush2.bf16.msra.mxu0 0
        %5346 = vmatprep.subr.bf16.mxu0 0
        %5347 = vmatpush2.bf16.msra.mxu0 0
        %5348 = vmatprep.subr.bf16.mxu0 0
        %5349 = vmatpush2.bf16.msra.mxu0 0
        %5350 = vmatprep.subr.bf16.mxu0 0
        %5351 = vmatpush2.bf16.msra.mxu0 0
        %5352 = vmatprep.subr.bf16.mxu0 0
        %5353 = vmatpush2.bf16.msra.mxu0 0
        %5354 = vmatprep.mubr.bf16.mxu0 0
        %5355 = vmatmul.mubr.bf16.gmra.mxu0 %v4970
        %v5356 = vpop.f32.mrf.mxu0
        %v5357 = vadd.f32 0.0, %v5356
        %v5358 = vpop.f32.mrf.mxu0
        %v5359 = vpop.f32.mrf.mxu0
        %v5360 = vpop.f32.mrf.mxu0
        %5361 = vdwg.mxu0
        %v5362 = vadd.f32 %v5321, %v5357
        %5363 = vmatprep.subr.bf16.mxu0 0
        %5364 = vmatpush1.bf16.msra.mxu0 0
        %5365 = vmatprep.subr.bf16.mxu0 0
        %5366 = vmatpush1.bf16.msra.mxu0 0
        %5367 = vmatprep.subr.bf16.mxu0 0
        %5368 = vmatpush1.bf16.msra.mxu0 0
        %5369 = vmatprep.subr.bf16.mxu0 0
        %5370 = vmatpush1.bf16.msra.mxu0 0
        %5371 = vmatprep.subr.bf16.mxu0 0
        %5372 = vmatpush1.bf16.msra.mxu0 0
        %5373 = vmatprep.subr.bf16.mxu0 0
        %5374 = vmatpush1.bf16.msra.mxu0 0
        %5375 = vmatprep.subr.bf16.mxu0 0
        %5376 = vmatpush1.bf16.msra.mxu0 %v3747
        %5377 = vmatprep.subr.bf16.mxu0 0
        %5378 = vmatpush1.bf16.msra.mxu0 %v3746
        %5379 = vmatprep.subr.bf16.mxu0 0
        %5380 = vmatpush2.bf16.msra.mxu0 0
        %5381 = vmatprep.subr.bf16.mxu0 0
        %5382 = vmatpush2.bf16.msra.mxu0 0
        %5383 = vmatprep.subr.bf16.mxu0 0
        %5384 = vmatpush2.bf16.msra.mxu0 0
        %5385 = vmatprep.subr.bf16.mxu0 0
        %5386 = vmatpush2.bf16.msra.mxu0 0
        %5387 = vmatprep.subr.bf16.mxu0 0
        %5388 = vmatpush2.bf16.msra.mxu0 0
        %5389 = vmatprep.subr.bf16.mxu0 0
        %5390 = vmatpush2.bf16.msra.mxu0 0
        %5391 = vmatprep.subr.bf16.mxu0 0
        %5392 = vmatpush2.bf16.msra.mxu0 0
        %5393 = vmatprep.subr.bf16.mxu0 0
        %5394 = vmatpush2.bf16.msra.mxu0 0
        %5395 = vmatprep.mubr.bf16.mxu0 0
        %5396 = vmatmul.mubr.bf16.gmra.mxu0 %v5015
        %v5397 = vpop.f32.mrf.mxu0
        %v5398 = vadd.f32 0.0, %v5397
        %v5399 = vpop.f32.mrf.mxu0
        %v5400 = vpop.f32.mrf.mxu0
        %v5401 = vpop.f32.mrf.mxu0
        %5402 = vdwg.mxu0
        %v5403 = vadd.f32 %v5362, %v5398
        %5404 = vmatprep.subr.bf16.mxu0 0
        %5405 = vmatpush1.bf16.msra.mxu0 0
        %5406 = vmatprep.subr.bf16.mxu0 0
        %5407 = vmatpush1.bf16.msra.mxu0 0
        %5408 = vmatprep.subr.bf16.mxu0 0
        %5409 = vmatpush1.bf16.msra.mxu0 0
        %5410 = vmatprep.subr.bf16.mxu0 0
        %5411 = vmatpush1.bf16.msra.mxu0 0
        %5412 = vmatprep.subr.bf16.mxu0 0
        %5413 = vmatpush1.bf16.msra.mxu0 0
        %5414 = vmatprep.subr.bf16.mxu0 0
        %5415 = vmatpush1.bf16.msra.mxu0 0
        %5416 = vmatprep.subr.bf16.mxu0 0
        %5417 = vmatpush1.bf16.msra.mxu0 %v3814
        %5418 = vmatprep.subr.bf16.mxu0 0
        %5419 = vmatpush1.bf16.msra.mxu0 %v3813
        %5420 = vmatprep.subr.bf16.mxu0 0
        %5421 = vmatpush2.bf16.msra.mxu0 0
        %5422 = vmatprep.subr.bf16.mxu0 0
        %5423 = vmatpush2.bf16.msra.mxu0 0
        %5424 = vmatprep.subr.bf16.mxu0 0
        %5425 = vmatpush2.bf16.msra.mxu0 0
        %5426 = vmatprep.subr.bf16.mxu0 0
        %5427 = vmatpush2.bf16.msra.mxu0 0
        %5428 = vmatprep.subr.bf16.mxu0 0
        %5429 = vmatpush2.bf16.msra.mxu0 0
        %5430 = vmatprep.subr.bf16.mxu0 0
        %5431 = vmatpush2.bf16.msra.mxu0 0
        %5432 = vmatprep.subr.bf16.mxu0 0
        %5433 = vmatpush2.bf16.msra.mxu0 0
        %5434 = vmatprep.subr.bf16.mxu0 0
        %5435 = vmatpush2.bf16.msra.mxu0 0
        %5436 = vmatprep.mubr.bf16.mxu0 0
        %5437 = vmatmul.mubr.bf16.gmra.mxu0 %v5065
        %v5438 = vpop.f32.mrf.mxu0
        %v5439 = vadd.f32 0.0, %v5438
        %v5440 = vpop.f32.mrf.mxu0
        %v5441 = vpop.f32.mrf.mxu0
        %v5442 = vpop.f32.mrf.mxu0
        %5443 = vdwg.mxu0
        %v5444 = vadd.f32 %v5403, %v5439
        %5445 = vmatprep.subr.bf16.mxu0 0
        %5446 = vmatpush1.bf16.msra.mxu0 0
        %5447 = vmatprep.subr.bf16.mxu0 0
        %5448 = vmatpush1.bf16.msra.mxu0 0
        %5449 = vmatprep.subr.bf16.mxu0 0
        %5450 = vmatpush1.bf16.msra.mxu0 0
        %5451 = vmatprep.subr.bf16.mxu0 0
        %5452 = vmatpush1.bf16.msra.mxu0 0
        %5453 = vmatprep.subr.bf16.mxu0 0
        %5454 = vmatpush1.bf16.msra.mxu0 0
        %5455 = vmatprep.subr.bf16.mxu0 0
        %5456 = vmatpush1.bf16.msra.mxu0 0
        %5457 = vmatprep.subr.bf16.mxu0 0
        %5458 = vmatpush1.bf16.msra.mxu0 %v3881
        %5459 = vmatprep.subr.bf16.mxu0 0
        %5460 = vmatpush1.bf16.msra.mxu0 %v3880
        %5461 = vmatprep.subr.bf16.mxu0 0
        %5462 = vmatpush2.bf16.msra.mxu0 0
        %5463 = vmatprep.subr.bf16.mxu0 0
        %5464 = vmatpush2.bf16.msra.mxu0 0
        %5465 = vmatprep.subr.bf16.mxu0 0
        %5466 = vmatpush2.bf16.msra.mxu0 0
        %5467 = vmatprep.subr.bf16.mxu0 0
        %5468 = vmatpush2.bf16.msra.mxu0 0
        %5469 = vmatprep.subr.bf16.mxu0 0
        %5470 = vmatpush2.bf16.msra.mxu0 0
        %5471 = vmatprep.subr.bf16.mxu0 0
        %5472 = vmatpush2.bf16.msra.mxu0 0
        %5473 = vmatprep.subr.bf16.mxu0 0
        %5474 = vmatpush2.bf16.msra.mxu0 0
        %5475 = vmatprep.subr.bf16.mxu0 0
        %5476 = vmatpush2.bf16.msra.mxu0 0
        %5477 = vmatprep.mubr.bf16.mxu0 0
        %5478 = vmatmul.mubr.bf16.gmra.mxu0 %v5115
        %v5479 = vpop.f32.mrf.mxu0
        %v5480 = vadd.f32 0.0, %v5479
        %v5481 = vpop.f32.mrf.mxu0
        %v5482 = vpop.f32.mrf.mxu0
        %v5483 = vpop.f32.mrf.mxu0
        %5484 = vdwg.mxu0
        %v5485 = vadd.f32 %v5444, %v5480
        %v5486 = vpack.c.bf16 %v1388, %v1388
        %v5488 = vsel %vm3437, %v5486, 0
        %5490 = vmatprep.subr.bf16.mxu0 0
        %5491 = vmatpush1.bf16.msra.mxu0 0
        %5492 = vmatprep.subr.bf16.mxu0 0
        %5493 = vmatpush1.bf16.msra.mxu0 0
        %5494 = vmatprep.subr.bf16.mxu0 0
        %5495 = vmatpush1.bf16.msra.mxu0 0
        %5496 = vmatprep.subr.bf16.mxu0 0
        %5497 = vmatpush1.bf16.msra.mxu0 0
        %5498 = vmatprep.subr.bf16.mxu0 0
        %5499 = vmatpush1.bf16.msra.mxu0 0
        %5500 = vmatprep.subr.bf16.mxu0 0
        %5501 = vmatpush1.bf16.msra.mxu0 0
        %5502 = vmatprep.subr.bf16.mxu0 0
        %5503 = vmatpush1.bf16.msra.mxu0 %v3943
        %5504 = vmatprep.subr.bf16.mxu0 0
        %5505 = vmatpush1.bf16.msra.mxu0 %v3942
        %5506 = vmatprep.subr.bf16.mxu0 0
        %5507 = vmatpush2.bf16.msra.mxu0 0
        %5508 = vmatprep.subr.bf16.mxu0 0
        %5509 = vmatpush2.bf16.msra.mxu0 0
        %5510 = vmatprep.subr.bf16.mxu0 0
        %5511 = vmatpush2.bf16.msra.mxu0 0
        %5512 = vmatprep.subr.bf16.mxu0 0
        %5513 = vmatpush2.bf16.msra.mxu0 0
        %5514 = vmatprep.subr.bf16.mxu0 0
        %5515 = vmatpush2.bf16.msra.mxu0 0
        %5516 = vmatprep.subr.bf16.mxu0 0
        %5517 = vmatpush2.bf16.msra.mxu0 0
        %5518 = vmatprep.subr.bf16.mxu0 0
        %5519 = vmatpush2.bf16.msra.mxu0 0
        %5520 = vmatprep.subr.bf16.mxu0 0
        %5521 = vmatpush2.bf16.msra.mxu0 0
        %5522 = vmatprep.mubr.bf16.mxu0 0
        %5523 = vmatmul.mubr.bf16.gmra.mxu0 %v5488
        %v5524 = vpop.f32.mrf.mxu0
        %v5525 = vadd.f32 0.0, %v5524
        %v5526 = vpop.f32.mrf.mxu0
        %v5527 = vpop.f32.mrf.mxu0
        %v5528 = vpop.f32.mrf.mxu0
        %5529 = vdwg.mxu0
        %v5530 = vadd.f32 %v5485, %v5525
        %v5531 = vpack.c.bf16 %v2084, %v2084
        %v5533 = vsel %vm3437, %v5531, 0
        %5535 = vmatprep.subr.bf16.mxu0 0
        %5536 = vmatpush1.bf16.msra.mxu0 0
        %5537 = vmatprep.subr.bf16.mxu0 0
        %5538 = vmatpush1.bf16.msra.mxu0 0
        %5539 = vmatprep.subr.bf16.mxu0 0
        %5540 = vmatpush1.bf16.msra.mxu0 0
        %5541 = vmatprep.subr.bf16.mxu0 0
        %5542 = vmatpush1.bf16.msra.mxu0 0
        %5543 = vmatprep.subr.bf16.mxu0 0
        %5544 = vmatpush1.bf16.msra.mxu0 0
        %5545 = vmatprep.subr.bf16.mxu0 0
        %5546 = vmatpush1.bf16.msra.mxu0 0
        %5547 = vmatprep.subr.bf16.mxu0 0
        %5548 = vmatpush1.bf16.msra.mxu0 %v4005
        %5549 = vmatprep.subr.bf16.mxu0 0
        %5550 = vmatpush1.bf16.msra.mxu0 %v4004
        %5551 = vmatprep.subr.bf16.mxu0 0
        %5552 = vmatpush2.bf16.msra.mxu0 0
        %5553 = vmatprep.subr.bf16.mxu0 0
        %5554 = vmatpush2.bf16.msra.mxu0 0
        %5555 = vmatprep.subr.bf16.mxu0 0
        %5556 = vmatpush2.bf16.msra.mxu0 0
        %5557 = vmatprep.subr.bf16.mxu0 0
        %5558 = vmatpush2.bf16.msra.mxu0 0
        %5559 = vmatprep.subr.bf16.mxu0 0
        %5560 = vmatpush2.bf16.msra.mxu0 0
        %5561 = vmatprep.subr.bf16.mxu0 0
        %5562 = vmatpush2.bf16.msra.mxu0 0
        %5563 = vmatprep.subr.bf16.mxu0 0
        %5564 = vmatpush2.bf16.msra.mxu0 0
        %5565 = vmatprep.subr.bf16.mxu0 0
        %5566 = vmatpush2.bf16.msra.mxu0 0
        %5567 = vmatprep.mubr.bf16.mxu0 0
        %5568 = vmatmul.mubr.bf16.gmra.mxu0 %v5533
        %v5569 = vpop.f32.mrf.mxu0
        %v5570 = vadd.f32 0.0, %v5569
        %v5571 = vpop.f32.mrf.mxu0
        %v5572 = vpop.f32.mrf.mxu0
        %v5573 = vpop.f32.mrf.mxu0
        %5574 = vdwg.mxu0
        %v5575 = vadd.f32 %v5530, %v5570
        %v5576 = vshrl.u32 %v5486, 16
        %v5578 = vshll.u32 %v5486, 16
        %v5580 = vrot.slane %v5578, 1
        %v5581 = vor.u32 %v5576, %v5580
        %v5583 = vsel %vm3437, %v5581, 0
        %5585 = vmatprep.subr.bf16.mxu0 0
        %5586 = vmatpush1.bf16.msra.mxu0 0
        %5587 = vmatprep.subr.bf16.mxu0 0
        %5588 = vmatpush1.bf16.msra.mxu0 0
        %5589 = vmatprep.subr.bf16.mxu0 0
        %5590 = vmatpush1.bf16.msra.mxu0 0
        %5591 = vmatprep.subr.bf16.mxu0 0
        %5592 = vmatpush1.bf16.msra.mxu0 0
        %5593 = vmatprep.subr.bf16.mxu0 0
        %5594 = vmatpush1.bf16.msra.mxu0 0
        %5595 = vmatprep.subr.bf16.mxu0 0
        %5596 = vmatpush1.bf16.msra.mxu0 0
        %5597 = vmatprep.subr.bf16.mxu0 0
        %5598 = vmatpush1.bf16.msra.mxu0 %v4072
        %5599 = vmatprep.subr.bf16.mxu0 0
        %5600 = vmatpush1.bf16.msra.mxu0 %v4071
        %5601 = vmatprep.subr.bf16.mxu0 0
        %5602 = vmatpush2.bf16.msra.mxu0 0
        %5603 = vmatprep.subr.bf16.mxu0 0
        %5604 = vmatpush2.bf16.msra.mxu0 0
        %5605 = vmatprep.subr.bf16.mxu0 0
        %5606 = vmatpush2.bf16.msra.mxu0 0
        %5607 = vmatprep.subr.bf16.mxu0 0
        %5608 = vmatpush2.bf16.msra.mxu0 0
        %5609 = vmatprep.subr.bf16.mxu0 0
        %5610 = vmatpush2.bf16.msra.mxu0 0
        %5611 = vmatprep.subr.bf16.mxu0 0
        %5612 = vmatpush2.bf16.msra.mxu0 0
        %5613 = vmatprep.subr.bf16.mxu0 0
        %5614 = vmatpush2.bf16.msra.mxu0 0
        %5615 = vmatprep.subr.bf16.mxu0 0
        %5616 = vmatpush2.bf16.msra.mxu0 0
        %5617 = vmatprep.mubr.bf16.mxu0 0
        %5618 = vmatmul.mubr.bf16.gmra.mxu0 %v5583
        %v5619 = vpop.f32.mrf.mxu0
        %v5620 = vadd.f32 0.0, %v5619
        %v5621 = vpop.f32.mrf.mxu0
        %v5622 = vpop.f32.mrf.mxu0
        %v5623 = vpop.f32.mrf.mxu0
        %5624 = vdwg.mxu0
        %v5625 = vadd.f32 %v5575, %v5620
        %v5626 = vshrl.u32 %v5531, 16
        %v5628 = vshll.u32 %v5531, 16
        %v5630 = vrot.slane %v5628, 1
        %v5631 = vor.u32 %v5626, %v5630
        %v5633 = vsel %vm3437, %v5631, 0
        %5635 = vmatprep.subr.bf16.mxu0 0
        %5636 = vmatpush1.bf16.msra.mxu0 0
        %5637 = vmatprep.subr.bf16.mxu0 0
        %5638 = vmatpush1.bf16.msra.mxu0 0
        %5639 = vmatprep.subr.bf16.mxu0 0
        %5640 = vmatpush1.bf16.msra.mxu0 0
        %5641 = vmatprep.subr.bf16.mxu0 0
        %5642 = vmatpush1.bf16.msra.mxu0 0
        %5643 = vmatprep.subr.bf16.mxu0 0
        %5644 = vmatpush1.bf16.msra.mxu0 0
        %5645 = vmatprep.subr.bf16.mxu0 0
        %5646 = vmatpush1.bf16.msra.mxu0 0
        %5647 = vmatprep.subr.bf16.mxu0 0
        %5648 = vmatpush1.bf16.msra.mxu0 %v4139
        %5649 = vmatprep.subr.bf16.mxu0 0
        %5650 = vmatpush1.bf16.msra.mxu0 %v4138
        %5651 = vmatprep.subr.bf16.mxu0 0
        %5652 = vmatpush2.bf16.msra.mxu0 0
        %5653 = vmatprep.subr.bf16.mxu0 0
        %5654 = vmatpush2.bf16.msra.mxu0 0
        %5655 = vmatprep.subr.bf16.mxu0 0
        %5656 = vmatpush2.bf16.msra.mxu0 0
        %5657 = vmatprep.subr.bf16.mxu0 0
        %5658 = vmatpush2.bf16.msra.mxu0 0
        %5659 = vmatprep.subr.bf16.mxu0 0
        %5660 = vmatpush2.bf16.msra.mxu0 0
        %5661 = vmatprep.subr.bf16.mxu0 0
        %5662 = vmatpush2.bf16.msra.mxu0 0
        %5663 = vmatprep.subr.bf16.mxu0 0
        %5664 = vmatpush2.bf16.msra.mxu0 0
        %5665 = vmatprep.subr.bf16.mxu0 0
        %5666 = vmatpush2.bf16.msra.mxu0 0
        %5667 = vmatprep.mubr.bf16.mxu0 0
        %5668 = vmatmul.mubr.bf16.gmra.mxu0 %v5633
        %v5669 = vpop.f32.mrf.mxu0
        %v5670 = vadd.f32 0.0, %v5669
        %v5671 = vpop.f32.mrf.mxu0
        %v5672 = vpop.f32.mrf.mxu0
        %v5673 = vpop.f32.mrf.mxu0
        %5674 = vdwg.mxu0
        %v5675 = vadd.f32 %v5625, %v5670
        %v5676 = vpack.c.bf16 %v2752, %v2752
        %v5678 = vsel %vm3437, %v5676, 0
        %5680 = vmatprep.subr.bf16.mxu0 0
        %5681 = vmatpush1.bf16.msra.mxu0 0
        %5682 = vmatprep.subr.bf16.mxu0 0
        %5683 = vmatpush1.bf16.msra.mxu0 0
        %5684 = vmatprep.subr.bf16.mxu0 0
        %5685 = vmatpush1.bf16.msra.mxu0 0
        %5686 = vmatprep.subr.bf16.mxu0 0
        %5687 = vmatpush1.bf16.msra.mxu0 0
        %5688 = vmatprep.subr.bf16.mxu0 0
        %5689 = vmatpush1.bf16.msra.mxu0 0
        %5690 = vmatprep.subr.bf16.mxu0 0
        %5691 = vmatpush1.bf16.msra.mxu0 0
        %5692 = vmatprep.subr.bf16.mxu0 0
        %5693 = vmatpush1.bf16.msra.mxu0 %v4201
        %5694 = vmatprep.subr.bf16.mxu0 0
        %5695 = vmatpush1.bf16.msra.mxu0 %v4200
        %5696 = vmatprep.subr.bf16.mxu0 0
        %5697 = vmatpush2.bf16.msra.mxu0 0
        %5698 = vmatprep.subr.bf16.mxu0 0
        %5699 = vmatpush2.bf16.msra.mxu0 0
        %5700 = vmatprep.subr.bf16.mxu0 0
        %5701 = vmatpush2.bf16.msra.mxu0 0
        %5702 = vmatprep.subr.bf16.mxu0 0
        %5703 = vmatpush2.bf16.msra.mxu0 0
        %5704 = vmatprep.subr.bf16.mxu0 0
        %5705 = vmatpush2.bf16.msra.mxu0 0
        %5706 = vmatprep.subr.bf16.mxu0 0
        %5707 = vmatpush2.bf16.msra.mxu0 0
        %5708 = vmatprep.subr.bf16.mxu0 0
        %5709 = vmatpush2.bf16.msra.mxu0 0
        %5710 = vmatprep.subr.bf16.mxu0 0
        %5711 = vmatpush2.bf16.msra.mxu0 0
        %5712 = vmatprep.mubr.bf16.mxu0 0
        %5713 = vmatmul.mubr.bf16.gmra.mxu0 %v5678
        %v5714 = vpop.f32.mrf.mxu0
        %v5715 = vadd.f32 0.0, %v5714
        %v5716 = vpop.f32.mrf.mxu0
        %v5717 = vpop.f32.mrf.mxu0
        %v5718 = vpop.f32.mrf.mxu0
        %5719 = vdwg.mxu0
        %v5720 = vadd.f32 %v5675, %v5715
        %v5721 = vpack.c.bf16 %v3413, %v3413
        %v5723 = vsel %vm3437, %v5721, 0
        %5725 = vmatprep.subr.bf16.mxu0 0
        %5726 = vmatpush1.bf16.msra.mxu0 0
        %5727 = vmatprep.subr.bf16.mxu0 0
        %5728 = vmatpush1.bf16.msra.mxu0 0
        %5729 = vmatprep.subr.bf16.mxu0 0
        %5730 = vmatpush1.bf16.msra.mxu0 0
        %5731 = vmatprep.subr.bf16.mxu0 0
        %5732 = vmatpush1.bf16.msra.mxu0 0
        %5733 = vmatprep.subr.bf16.mxu0 0
        %5734 = vmatpush1.bf16.msra.mxu0 0
        %5735 = vmatprep.subr.bf16.mxu0 0
        %5736 = vmatpush1.bf16.msra.mxu0 0
        %5737 = vmatprep.subr.bf16.mxu0 0
        %5738 = vmatpush1.bf16.msra.mxu0 %v4263
        %5739 = vmatprep.subr.bf16.mxu0 0
        %5740 = vmatpush1.bf16.msra.mxu0 %v4262
        %5741 = vmatprep.subr.bf16.mxu0 0
        %5742 = vmatpush2.bf16.msra.mxu0 0
        %5743 = vmatprep.subr.bf16.mxu0 0
        %5744 = vmatpush2.bf16.msra.mxu0 0
        %5745 = vmatprep.subr.bf16.mxu0 0
        %5746 = vmatpush2.bf16.msra.mxu0 0
        %5747 = vmatprep.subr.bf16.mxu0 0
        %5748 = vmatpush2.bf16.msra.mxu0 0
        %5749 = vmatprep.subr.bf16.mxu0 0
        %5750 = vmatpush2.bf16.msra.mxu0 0
        %5751 = vmatprep.subr.bf16.mxu0 0
        %5752 = vmatpush2.bf16.msra.mxu0 0
        %5753 = vmatprep.subr.bf16.mxu0 0
        %5754 = vmatpush2.bf16.msra.mxu0 0
        %5755 = vmatprep.subr.bf16.mxu0 0
        %5756 = vmatpush2.bf16.msra.mxu0 0
        %5757 = vmatprep.mubr.bf16.mxu0 0
        %5758 = vmatmul.mubr.bf16.gmra.mxu0 %v5723
        %v5759 = vpop.f32.mrf.mxu0
        %v5760 = vadd.f32 0.0, %v5759
        %v5761 = vpop.f32.mrf.mxu0
        %v5762 = vpop.f32.mrf.mxu0
        %v5763 = vpop.f32.mrf.mxu0
        %5764 = vdwg.mxu0
        %v5765 = vadd.f32 %v5720, %v5760
        %v5766 = vshrl.u32 %v5676, 16
        %v5768 = vshll.u32 %v5676, 16
        %v5770 = vrot.slane %v5768, 1
        %v5771 = vor.u32 %v5766, %v5770
        %v5773 = vsel %vm3437, %v5771, 0
        %5775 = vmatprep.subr.bf16.mxu0 0
        %5776 = vmatpush1.bf16.msra.mxu0 0
        %5777 = vmatprep.subr.bf16.mxu0 0
        %5778 = vmatpush1.bf16.msra.mxu0 0
        %5779 = vmatprep.subr.bf16.mxu0 0
        %5780 = vmatpush1.bf16.msra.mxu0 0
        %5781 = vmatprep.subr.bf16.mxu0 0
        %5782 = vmatpush1.bf16.msra.mxu0 0
        %5783 = vmatprep.subr.bf16.mxu0 0
        %5784 = vmatpush1.bf16.msra.mxu0 0
        %5785 = vmatprep.subr.bf16.mxu0 0
        %5786 = vmatpush1.bf16.msra.mxu0 0
        %5787 = vmatprep.subr.bf16.mxu0 0
        %5788 = vmatpush1.bf16.msra.mxu0 %v4330
        %5789 = vmatprep.subr.bf16.mxu0 0
        %5790 = vmatpush1.bf16.msra.mxu0 %v4329
        %5791 = vmatprep.subr.bf16.mxu0 0
        %5792 = vmatpush2.bf16.msra.mxu0 0
        %5793 = vmatprep.subr.bf16.mxu0 0
        %5794 = vmatpush2.bf16.msra.mxu0 0
        %5795 = vmatprep.subr.bf16.mxu0 0
        %5796 = vmatpush2.bf16.msra.mxu0 0
        %5797 = vmatprep.subr.bf16.mxu0 0
        %5798 = vmatpush2.bf16.msra.mxu0 0
        %5799 = vmatprep.subr.bf16.mxu0 0
        %5800 = vmatpush2.bf16.msra.mxu0 0
        %5801 = vmatprep.subr.bf16.mxu0 0
        %5802 = vmatpush2.bf16.msra.mxu0 0
        %5803 = vmatprep.subr.bf16.mxu0 0
        %5804 = vmatpush2.bf16.msra.mxu0 0
        %5805 = vmatprep.subr.bf16.mxu0 0
        %5806 = vmatpush2.bf16.msra.mxu0 0
        %5807 = vmatprep.mubr.bf16.mxu0 0
        %5808 = vmatmul.mubr.bf16.gmra.mxu0 %v5773
        %v5809 = vpop.f32.mrf.mxu0
        %v5810 = vadd.f32 0.0, %v5809
        %v5811 = vpop.f32.mrf.mxu0
        %v5812 = vpop.f32.mrf.mxu0
        %v5813 = vpop.f32.mrf.mxu0
        %5814 = vdwg.mxu0
        %v5815 = vadd.f32 %v5765, %v5810
        %v5816 = vshrl.u32 %v5721, 16
        %v5818 = vshll.u32 %v5721, 16
        %v5820 = vrot.slane %v5818, 1
        %v5821 = vor.u32 %v5816, %v5820
        %v5823 = vsel %vm3437, %v5821, 0
        %5825 = vmatprep.subr.bf16.mxu0 0
        %5826 = vmatpush1.bf16.msra.mxu0 0
        %5827 = vmatprep.subr.bf16.mxu0 0
        %5828 = vmatpush1.bf16.msra.mxu0 0
        %5829 = vmatprep.subr.bf16.mxu0 0
        %5830 = vmatpush1.bf16.msra.mxu0 0
        %5831 = vmatprep.subr.bf16.mxu0 0
        %5832 = vmatpush1.bf16.msra.mxu0 0
        %5833 = vmatprep.subr.bf16.mxu0 0
        %5834 = vmatpush1.bf16.msra.mxu0 0
        %5835 = vmatprep.subr.bf16.mxu0 0
        %5836 = vmatpush1.bf16.msra.mxu0 0
        %5837 = vmatprep.subr.bf16.mxu0 0
        %5838 = vmatpush1.bf16.msra.mxu0 %v4397
        %5839 = vmatprep.subr.bf16.mxu0 0
        %5840 = vmatpush1.bf16.msra.mxu0 %v4396
        %5841 = vmatprep.subr.bf16.mxu0 0
        %5842 = vmatpush2.bf16.msra.mxu0 0
        %5843 = vmatprep.subr.bf16.mxu0 0
        %5844 = vmatpush2.bf16.msra.mxu0 0
        %5845 = vmatprep.subr.bf16.mxu0 0
        %5846 = vmatpush2.bf16.msra.mxu0 0
        %5847 = vmatprep.subr.bf16.mxu0 0
        %5848 = vmatpush2.bf16.msra.mxu0 0
        %5849 = vmatprep.subr.bf16.mxu0 0
        %5850 = vmatpush2.bf16.msra.mxu0 0
        %5851 = vmatprep.subr.bf16.mxu0 0
        %5852 = vmatpush2.bf16.msra.mxu0 0
        %5853 = vmatprep.subr.bf16.mxu0 0
        %5854 = vmatpush2.bf16.msra.mxu0 0
        %5855 = vmatprep.subr.bf16.mxu0 0
        %5856 = vmatpush2.bf16.msra.mxu0 0
        %5857 = vmatprep.mubr.bf16.mxu0 0
        %5858 = vmatmul.mubr.bf16.gmra.mxu0 %v5823
        %v5859 = vpop.f32.mrf.mxu0
        %v5860 = vadd.f32 0.0, %v5859
        %v5861 = vpop.f32.mrf.mxu0
        %v5862 = vpop.f32.mrf.mxu0
        %v5863 = vpop.f32.mrf.mxu0
        %5864 = vdwg.mxu0
        %v5865 = vadd.f32 %v5815, %v5860
        %v5866 = vadd.f32 %v5865, %v4448
        %v5867 = vmax.f32 %v5866, 0.0
        %v5868 = vpack.c.bf16 %v4451, %v4451
        %v5869 = vld [vmem:[%s3] sm:$0xf]
        %v5870 = vld [vmem:[%s3 + $0x4] sm:$0xf]
        %v5871 = vld [vmem:[%s3 + $0x8] sm:$0xf]
        %v5872 = vld [vmem:[%s3 + $0xc] sm:$0xf]
        %v5873 = vld [vmem:[%s3 + $0x10] sm:$0xf]
        %v5874 = vld [vmem:[%s3 + $0x14] sm:$0xf]
        %v5875 = vld [vmem:[%s3 + $0x18] sm:$0xf]
        %v5876 = vld [vmem:[%s3 + $0x1c] sm:$0xf]
        %s5877 = scalar_lea.vmem %s3, 32
        %v5878 = vld [vmem:[%s5877] sm:$0xf]
        %v5879 = vld [vmem:[%s5877 + $0x4] sm:$0xf]
        %v5880 = vld [vmem:[%s5877 + $0x8] sm:$0xf]
        %v5881 = vld [vmem:[%s5877 + $0xc] sm:$0xf]
        %v5882 = vld [vmem:[%s5877 + $0x10] sm:$0xf]
        %v5883 = vld [vmem:[%s5877 + $0x14] sm:$0xf]
        %v5884 = vld [vmem:[%s5877 + $0x18] sm:$0xf]
        %v5885 = vld [vmem:[%s5877 + $0x1c] sm:$0xf]
        %v5887 = vshrl.u32 %v5868, 16
        %v5897 = vunpack.c.l.b16 %v5878
        %v5898 = vunpack.c.l.b16 %v5879
        %v5899 = vunpack.c.l.b16 %v5880
        %v5900 = vunpack.c.l.b16 %v5881
        %v5901 = vunpack.c.l.b16 %v5882
        %v5902 = vunpack.c.l.b16 %v5883
        %v5903 = vunpack.c.l.b16 %v5884
        %v5904 = vunpack.c.l.b16 %v5885
        %v5905 = vpack.c.b16 %v5898, %v5897
        %v5906 = vpack.c.b16 %v5900, %v5899
        %v5907 = vpack.c.b16 %v5902, %v5901
        %v5908 = vpack.c.b16 %v5904, %v5903
        %v5914 = vsel %vm546, %v5887, 0
        %5916 = vmatprep.subr.bf16.mxu0 0
        %5917 = vmatpush1.bf16.msra.mxu0 0
        %5918 = vmatprep.subr.bf16.mxu0 0
        %5919 = vmatpush1.bf16.msra.mxu0 0
        %5920 = vmatprep.subr.bf16.mxu0 0
        %5921 = vmatpush1.bf16.msra.mxu0 0
        %5922 = vmatprep.subr.bf16.mxu0 0
        %5923 = vmatpush1.bf16.msra.mxu0 0
        %5924 = vmatprep.subr.bf16.mxu0 0
        %5925 = vmatpush1.bf16.msra.mxu0 %v5908
        %5926 = vmatprep.subr.bf16.mxu0 0
        %5927 = vmatpush1.bf16.msra.mxu0 %v5907
        %5928 = vmatprep.subr.bf16.mxu0 0
        %5929 = vmatpush1.bf16.msra.mxu0 %v5906
        %5930 = vmatprep.subr.bf16.mxu0 0
        %5931 = vmatpush1.bf16.msra.mxu0 %v5905
        %5932 = vmatprep.subr.bf16.mxu0 0
        %5933 = vmatpush2.bf16.msra.mxu0 0
        %5934 = vmatprep.subr.bf16.mxu0 0
        %5935 = vmatpush2.bf16.msra.mxu0 0
        %5936 = vmatprep.subr.bf16.mxu0 0
        %5937 = vmatpush2.bf16.msra.mxu0 0
        %5938 = vmatprep.subr.bf16.mxu0 0
        %5939 = vmatpush2.bf16.msra.mxu0 0
        %5940 = vmatprep.subr.bf16.mxu0 0
        %5941 = vmatpush2.bf16.msra.mxu0 0
        %5942 = vmatprep.subr.bf16.mxu0 0
        %5943 = vmatpush2.bf16.msra.mxu0 0
        %5944 = vmatprep.subr.bf16.mxu0 0
        %5945 = vmatpush2.bf16.msra.mxu0 0
        %5946 = vmatprep.subr.bf16.mxu0 0
        %5947 = vmatpush2.bf16.msra.mxu0 0
        %5948 = vmatprep.mubr.bf16.mxu0 0
        %5949 = vmatmul.mubr.bf16.gmra.mxu0 %v5914
        %v5950 = vpop.f32.mrf.mxu0
        %v5951 = vadd.f32 0.0, %v5950
        %v5952 = vpop.f32.mrf.mxu0
        %v5953 = vpop.f32.mrf.mxu0
        %v5954 = vpop.f32.mrf.mxu0
        %5955 = vdwg.mxu0
        %v5964 = vunpack.c.l.b16 %v5869
        %v5965 = vunpack.c.l.b16 %v5870
        %v5966 = vunpack.c.l.b16 %v5871
        %v5967 = vunpack.c.l.b16 %v5872
        %v5968 = vunpack.c.l.b16 %v5873
        %v5969 = vunpack.c.l.b16 %v5874
        %v5970 = vunpack.c.l.b16 %v5875
        %v5971 = vunpack.c.l.b16 %v5876
        %v5972 = vpack.c.b16 %v5965, %v5964
        %v5973 = vpack.c.b16 %v5967, %v5966
        %v5974 = vpack.c.b16 %v5969, %v5968
        %v5975 = vpack.c.b16 %v5971, %v5970
        %v5980 = vsel %vm546, %v5868, 0
        %5982 = vmatprep.subr.bf16.mxu0 0
        %5983 = vmatpush1.bf16.msra.mxu0 0
        %5984 = vmatprep.subr.bf16.mxu0 0
        %5985 = vmatpush1.bf16.msra.mxu0 0
        %5986 = vmatprep.subr.bf16.mxu0 0
        %5987 = vmatpush1.bf16.msra.mxu0 0
        %5988 = vmatprep.subr.bf16.mxu0 0
        %5989 = vmatpush1.bf16.msra.mxu0 0
        %5990 = vmatprep.subr.bf16.mxu0 0
        %5991 = vmatpush1.bf16.msra.mxu0 %v5975
        %5992 = vmatprep.subr.bf16.mxu0 0
        %5993 = vmatpush1.bf16.msra.mxu0 %v5974
        %5994 = vmatprep.subr.bf16.mxu0 0
        %5995 = vmatpush1.bf16.msra.mxu0 %v5973
        %5996 = vmatprep.subr.bf16.mxu0 0
        %5997 = vmatpush1.bf16.msra.mxu0 %v5972
        %5998 = vmatprep.subr.bf16.mxu0 0
        %5999 = vmatpush2.bf16.msra.mxu0 0
        %6000 = vmatprep.subr.bf16.mxu0 0
        %6001 = vmatpush2.bf16.msra.mxu0 0
        %6002 = vmatprep.subr.bf16.mxu0 0
        %6003 = vmatpush2.bf16.msra.mxu0 0
        %6004 = vmatprep.subr.bf16.mxu0 0
        %6005 = vmatpush2.bf16.msra.mxu0 0
        %6006 = vmatprep.subr.bf16.mxu0 0
        %6007 = vmatpush2.bf16.msra.mxu0 0
        %6008 = vmatprep.subr.bf16.mxu0 0
        %6009 = vmatpush2.bf16.msra.mxu0 0
        %6010 = vmatprep.subr.bf16.mxu0 0
        %6011 = vmatpush2.bf16.msra.mxu0 0
        %6012 = vmatprep.subr.bf16.mxu0 0
        %6013 = vmatpush2.bf16.msra.mxu0 0
        %6014 = vmatprep.mubr.bf16.mxu0 0
        %6015 = vmatmul.mubr.bf16.gmra.mxu0 %v5980
        %v6016 = vpop.f32.mrf.mxu0
        %v6017 = vadd.f32 %v5951, %v6016
        %v6018 = vpop.f32.mrf.mxu0
        %v6019 = vpop.f32.mrf.mxu0
        %v6020 = vpop.f32.mrf.mxu0
        %6021 = vdwg.mxu0
        %s6022 = scalar_lea.vmem %s3, 64
        %v6023 = vld [vmem:[%s6022] sm:$0xf]
        %v6024 = vld [vmem:[%s6022 + $0x4] sm:$0xf]
        %v6025 = vld [vmem:[%s6022 + $0x8] sm:$0xf]
        %v6026 = vld [vmem:[%s6022 + $0xc] sm:$0xf]
        %v6027 = vld [vmem:[%s6022 + $0x10] sm:$0xf]
        %v6028 = vld [vmem:[%s6022 + $0x14] sm:$0xf]
        %v6029 = vld [vmem:[%s6022 + $0x18] sm:$0xf]
        %v6030 = vld [vmem:[%s6022 + $0x1c] sm:$0xf]
        %v6032 = vrot.slane %v5868, 1
        %v6041 = vunpack.c.l.b16 %v6023
        %v6042 = vunpack.c.l.b16 %v6024
        %v6043 = vunpack.c.l.b16 %v6025
        %v6044 = vunpack.c.l.b16 %v6026
        %v6045 = vunpack.c.l.b16 %v6027
        %v6046 = vunpack.c.l.b16 %v6028
        %v6047 = vunpack.c.l.b16 %v6029
        %v6048 = vunpack.c.l.b16 %v6030
        %v6049 = vpack.c.b16 %v6042, %v6041
        %v6050 = vpack.c.b16 %v6044, %v6043
        %v6051 = vpack.c.b16 %v6046, %v6045
        %v6052 = vpack.c.b16 %v6048, %v6047
        %v6058 = vsel %vm546, %v6032, 0
        %6060 = vmatprep.subr.bf16.mxu0 0
        %6061 = vmatpush1.bf16.msra.mxu0 0
        %6062 = vmatprep.subr.bf16.mxu0 0
        %6063 = vmatpush1.bf16.msra.mxu0 0
        %6064 = vmatprep.subr.bf16.mxu0 0
        %6065 = vmatpush1.bf16.msra.mxu0 0
        %6066 = vmatprep.subr.bf16.mxu0 0
        %6067 = vmatpush1.bf16.msra.mxu0 0
        %6068 = vmatprep.subr.bf16.mxu0 0
        %6069 = vmatpush1.bf16.msra.mxu0 %v6052
        %6070 = vmatprep.subr.bf16.mxu0 0
        %6071 = vmatpush1.bf16.msra.mxu0 %v6051
        %6072 = vmatprep.subr.bf16.mxu0 0
        %6073 = vmatpush1.bf16.msra.mxu0 %v6050
        %6074 = vmatprep.subr.bf16.mxu0 0
        %6075 = vmatpush1.bf16.msra.mxu0 %v6049
        %6076 = vmatprep.subr.bf16.mxu0 0
        %6077 = vmatpush2.bf16.msra.mxu0 0
        %6078 = vmatprep.subr.bf16.mxu0 0
        %6079 = vmatpush2.bf16.msra.mxu0 0
        %6080 = vmatprep.subr.bf16.mxu0 0
        %6081 = vmatpush2.bf16.msra.mxu0 0
        %6082 = vmatprep.subr.bf16.mxu0 0
        %6083 = vmatpush2.bf16.msra.mxu0 0
        %6084 = vmatprep.subr.bf16.mxu0 0
        %6085 = vmatpush2.bf16.msra.mxu0 0
        %6086 = vmatprep.subr.bf16.mxu0 0
        %6087 = vmatpush2.bf16.msra.mxu0 0
        %6088 = vmatprep.subr.bf16.mxu0 0
        %6089 = vmatpush2.bf16.msra.mxu0 0
        %6090 = vmatprep.subr.bf16.mxu0 0
        %6091 = vmatpush2.bf16.msra.mxu0 0
        %6092 = vmatprep.mubr.bf16.mxu0 0
        %6093 = vmatmul.mubr.bf16.gmra.mxu0 %v6058
        %v6094 = vpop.f32.mrf.mxu0
        %v6095 = vadd.f32 0.0, %v6094
        %v6096 = vpop.f32.mrf.mxu0
        %v6097 = vpop.f32.mrf.mxu0
        %v6098 = vpop.f32.mrf.mxu0
        %6099 = vdwg.mxu0
        %v6100 = vadd.f32 %v6017, %v6095
        %v6101 = vpack.c.bf16 %v5159, %v5159
        %s6102 = scalar_lea.vmem %s3, 96
        %v6103 = vld [vmem:[%s6102] sm:$0xf]
        %v6104 = vld [vmem:[%s6102 + $0x4] sm:$0xf]
        %v6105 = vld [vmem:[%s6102 + $0x8] sm:$0xf]
        %v6106 = vld [vmem:[%s6102 + $0xc] sm:$0xf]
        %v6107 = vld [vmem:[%s6102 + $0x10] sm:$0xf]
        %v6108 = vld [vmem:[%s6102 + $0x14] sm:$0xf]
        %v6109 = vld [vmem:[%s6102 + $0x18] sm:$0xf]
        %v6110 = vld [vmem:[%s6102 + $0x1c] sm:$0xf]
        %v6119 = vunpack.c.l.b16 %v6103
        %v6120 = vunpack.c.l.b16 %v6104
        %v6121 = vunpack.c.l.b16 %v6105
        %v6122 = vunpack.c.l.b16 %v6106
        %v6123 = vunpack.c.l.b16 %v6107
        %v6124 = vunpack.c.l.b16 %v6108
        %v6125 = vunpack.c.l.b16 %v6109
        %v6126 = vunpack.c.l.b16 %v6110
        %v6127 = vpack.c.b16 %v6120, %v6119
        %v6128 = vpack.c.b16 %v6122, %v6121
        %v6129 = vpack.c.b16 %v6124, %v6123
        %v6130 = vpack.c.b16 %v6126, %v6125
        %v6136 = vsel %vm546, %v6101, 0
        %6138 = vmatprep.subr.bf16.mxu0 0
        %6139 = vmatpush1.bf16.msra.mxu0 0
        %6140 = vmatprep.subr.bf16.mxu0 0
        %6141 = vmatpush1.bf16.msra.mxu0 0
        %6142 = vmatprep.subr.bf16.mxu0 0
        %6143 = vmatpush1.bf16.msra.mxu0 0
        %6144 = vmatprep.subr.bf16.mxu0 0
        %6145 = vmatpush1.bf16.msra.mxu0 0
        %6146 = vmatprep.subr.bf16.mxu0 0
        %6147 = vmatpush1.bf16.msra.mxu0 %v6130
        %6148 = vmatprep.subr.bf16.mxu0 0
        %6149 = vmatpush1.bf16.msra.mxu0 %v6129
        %6150 = vmatprep.subr.bf16.mxu0 0
        %6151 = vmatpush1.bf16.msra.mxu0 %v6128
        %6152 = vmatprep.subr.bf16.mxu0 0
        %6153 = vmatpush1.bf16.msra.mxu0 %v6127
        %6154 = vmatprep.subr.bf16.mxu0 0
        %6155 = vmatpush2.bf16.msra.mxu0 0
        %6156 = vmatprep.subr.bf16.mxu0 0
        %6157 = vmatpush2.bf16.msra.mxu0 0
        %6158 = vmatprep.subr.bf16.mxu0 0
        %6159 = vmatpush2.bf16.msra.mxu0 0
        %6160 = vmatprep.subr.bf16.mxu0 0
        %6161 = vmatpush2.bf16.msra.mxu0 0
        %6162 = vmatprep.subr.bf16.mxu0 0
        %6163 = vmatpush2.bf16.msra.mxu0 0
        %6164 = vmatprep.subr.bf16.mxu0 0
        %6165 = vmatpush2.bf16.msra.mxu0 0
        %6166 = vmatprep.subr.bf16.mxu0 0
        %6167 = vmatpush2.bf16.msra.mxu0 0
        %6168 = vmatprep.subr.bf16.mxu0 0
        %6169 = vmatpush2.bf16.msra.mxu0 0
        %6170 = vmatprep.mubr.bf16.mxu0 0
        %6171 = vmatmul.mubr.bf16.gmra.mxu0 %v6136
        %v6172 = vpop.f32.mrf.mxu0
        %v6173 = vadd.f32 0.0, %v6172
        %v6174 = vpop.f32.mrf.mxu0
        %v6175 = vpop.f32.mrf.mxu0
        %v6176 = vpop.f32.mrf.mxu0
        %6177 = vdwg.mxu0
        %v6178 = vadd.f32 %v6100, %v6173
        %s6179 = scalar_lea.vmem %s3, 128
        %v6180 = vld [vmem:[%s6179] sm:$0xf]
        %v6181 = vld [vmem:[%s6179 + $0x4] sm:$0xf]
        %v6182 = vld [vmem:[%s6179 + $0x8] sm:$0xf]
        %v6183 = vld [vmem:[%s6179 + $0xc] sm:$0xf]
        %v6184 = vld [vmem:[%s6179 + $0x10] sm:$0xf]
        %v6185 = vld [vmem:[%s6179 + $0x14] sm:$0xf]
        %v6186 = vld [vmem:[%s6179 + $0x18] sm:$0xf]
        %v6187 = vld [vmem:[%s6179 + $0x1c] sm:$0xf]
        %v6188 = vshrl.u32 %v6101, 16
        %v6198 = vunpack.c.l.b16 %v6180
        %v6199 = vunpack.c.l.b16 %v6181
        %v6200 = vunpack.c.l.b16 %v6182
        %v6201 = vunpack.c.l.b16 %v6183
        %v6202 = vunpack.c.l.b16 %v6184
        %v6203 = vunpack.c.l.b16 %v6185
        %v6204 = vunpack.c.l.b16 %v6186
        %v6205 = vunpack.c.l.b16 %v6187
        %v6206 = vpack.c.b16 %v6199, %v6198
        %v6207 = vpack.c.b16 %v6201, %v6200
        %v6208 = vpack.c.b16 %v6203, %v6202
        %v6209 = vpack.c.b16 %v6205, %v6204
        %v6215 = vsel %vm546, %v6188, 0
        %6217 = vmatprep.subr.bf16.mxu0 0
        %6218 = vmatpush1.bf16.msra.mxu0 0
        %6219 = vmatprep.subr.bf16.mxu0 0
        %6220 = vmatpush1.bf16.msra.mxu0 0
        %6221 = vmatprep.subr.bf16.mxu0 0
        %6222 = vmatpush1.bf16.msra.mxu0 0
        %6223 = vmatprep.subr.bf16.mxu0 0
        %6224 = vmatpush1.bf16.msra.mxu0 0
        %6225 = vmatprep.subr.bf16.mxu0 0
        %6226 = vmatpush1.bf16.msra.mxu0 %v6209
        %6227 = vmatprep.subr.bf16.mxu0 0
        %6228 = vmatpush1.bf16.msra.mxu0 %v6208
        %6229 = vmatprep.subr.bf16.mxu0 0
        %6230 = vmatpush1.bf16.msra.mxu0 %v6207
        %6231 = vmatprep.subr.bf16.mxu0 0
        %6232 = vmatpush1.bf16.msra.mxu0 %v6206
        %6233 = vmatprep.subr.bf16.mxu0 0
        %6234 = vmatpush2.bf16.msra.mxu0 0
        %6235 = vmatprep.subr.bf16.mxu0 0
        %6236 = vmatpush2.bf16.msra.mxu0 0
        %6237 = vmatprep.subr.bf16.mxu0 0
        %6238 = vmatpush2.bf16.msra.mxu0 0
        %6239 = vmatprep.subr.bf16.mxu0 0
        %6240 = vmatpush2.bf16.msra.mxu0 0
        %6241 = vmatprep.subr.bf16.mxu0 0
        %6242 = vmatpush2.bf16.msra.mxu0 0
        %6243 = vmatprep.subr.bf16.mxu0 0
        %6244 = vmatpush2.bf16.msra.mxu0 0
        %6245 = vmatprep.subr.bf16.mxu0 0
        %6246 = vmatpush2.bf16.msra.mxu0 0
        %6247 = vmatprep.subr.bf16.mxu0 0
        %6248 = vmatpush2.bf16.msra.mxu0 0
        %6249 = vmatprep.mubr.bf16.mxu0 0
        %6250 = vmatmul.mubr.bf16.gmra.mxu0 %v6215
        %v6251 = vpop.f32.mrf.mxu0
        %v6252 = vadd.f32 0.0, %v6251
        %v6253 = vpop.f32.mrf.mxu0
        %v6254 = vpop.f32.mrf.mxu0
        %v6255 = vpop.f32.mrf.mxu0
        %6256 = vdwg.mxu0
        %v6257 = vadd.f32 %v6178, %v6252
        %s6258 = scalar_lea.vmem %s3, 160
        %v6259 = vld [vmem:[%s6258] sm:$0xf]
        %v6260 = vld [vmem:[%s6258 + $0x4] sm:$0xf]
        %v6261 = vld [vmem:[%s6258 + $0x8] sm:$0xf]
        %v6262 = vld [vmem:[%s6258 + $0xc] sm:$0xf]
        %v6263 = vld [vmem:[%s6258 + $0x10] sm:$0xf]
        %v6264 = vld [vmem:[%s6258 + $0x14] sm:$0xf]
        %v6265 = vld [vmem:[%s6258 + $0x18] sm:$0xf]
        %v6266 = vld [vmem:[%s6258 + $0x1c] sm:$0xf]
        %v6268 = vrot.slane %v6101, 1
        %v6277 = vunpack.c.l.b16 %v6259
        %v6278 = vunpack.c.l.b16 %v6260
        %v6279 = vunpack.c.l.b16 %v6261
        %v6280 = vunpack.c.l.b16 %v6262
        %v6281 = vunpack.c.l.b16 %v6263
        %v6282 = vunpack.c.l.b16 %v6264
        %v6283 = vunpack.c.l.b16 %v6265
        %v6284 = vunpack.c.l.b16 %v6266
        %v6285 = vpack.c.b16 %v6278, %v6277
        %v6286 = vpack.c.b16 %v6280, %v6279
        %v6287 = vpack.c.b16 %v6282, %v6281
        %v6288 = vpack.c.b16 %v6284, %v6283
        %v6294 = vsel %vm546, %v6268, 0
        %6296 = vmatprep.subr.bf16.mxu0 0
        %6297 = vmatpush1.bf16.msra.mxu0 0
        %6298 = vmatprep.subr.bf16.mxu0 0
        %6299 = vmatpush1.bf16.msra.mxu0 0
        %6300 = vmatprep.subr.bf16.mxu0 0
        %6301 = vmatpush1.bf16.msra.mxu0 0
        %6302 = vmatprep.subr.bf16.mxu0 0
        %6303 = vmatpush1.bf16.msra.mxu0 0
        %6304 = vmatprep.subr.bf16.mxu0 0
        %6305 = vmatpush1.bf16.msra.mxu0 %v6288
        %6306 = vmatprep.subr.bf16.mxu0 0
        %6307 = vmatpush1.bf16.msra.mxu0 %v6287
        %6308 = vmatprep.subr.bf16.mxu0 0
        %6309 = vmatpush1.bf16.msra.mxu0 %v6286
        %6310 = vmatprep.subr.bf16.mxu0 0
        %6311 = vmatpush1.bf16.msra.mxu0 %v6285
        %6312 = vmatprep.subr.bf16.mxu0 0
        %6313 = vmatpush2.bf16.msra.mxu0 0
        %6314 = vmatprep.subr.bf16.mxu0 0
        %6315 = vmatpush2.bf16.msra.mxu0 0
        %6316 = vmatprep.subr.bf16.mxu0 0
        %6317 = vmatpush2.bf16.msra.mxu0 0
        %6318 = vmatprep.subr.bf16.mxu0 0
        %6319 = vmatpush2.bf16.msra.mxu0 0
        %6320 = vmatprep.subr.bf16.mxu0 0
        %6321 = vmatpush2.bf16.msra.mxu0 0
        %6322 = vmatprep.subr.bf16.mxu0 0
        %6323 = vmatpush2.bf16.msra.mxu0 0
        %6324 = vmatprep.subr.bf16.mxu0 0
        %6325 = vmatpush2.bf16.msra.mxu0 0
        %6326 = vmatprep.subr.bf16.mxu0 0
        %6327 = vmatpush2.bf16.msra.mxu0 0
        %6328 = vmatprep.mubr.bf16.mxu0 0
        %6329 = vmatmul.mubr.bf16.gmra.mxu0 %v6294
        %v6330 = vpop.f32.mrf.mxu0
        %v6331 = vadd.f32 0.0, %v6330
        %v6332 = vpop.f32.mrf.mxu0
        %v6333 = vpop.f32.mrf.mxu0
        %v6334 = vpop.f32.mrf.mxu0
        %6335 = vdwg.mxu0
        %v6336 = vadd.f32 %v6257, %v6331
        %v6337 = vpack.c.bf16 %v5867, %v5867
        %s6338 = scalar_lea.vmem %s3, 192
        %v6339 = vld [vmem:[%s6338] sm:$0xf]
        %v6340 = vld [vmem:[%s6338 + $0x4] sm:$0xf]
        %v6341 = vld [vmem:[%s6338 + $0x8] sm:$0xf]
        %v6342 = vld [vmem:[%s6338 + $0xc] sm:$0xf]
        %v6343 = vld [vmem:[%s6338 + $0x10] sm:$0xf]
        %v6344 = vld [vmem:[%s6338 + $0x14] sm:$0xf]
        %v6345 = vld [vmem:[%s6338 + $0x18] sm:$0xf]
        %v6346 = vld [vmem:[%s6338 + $0x1c] sm:$0xf]
        %v6355 = vunpack.c.l.b16 %v6339
        %v6356 = vunpack.c.l.b16 %v6340
        %v6357 = vunpack.c.l.b16 %v6341
        %v6358 = vunpack.c.l.b16 %v6342
        %v6359 = vunpack.c.l.b16 %v6343
        %v6360 = vunpack.c.l.b16 %v6344
        %v6361 = vunpack.c.l.b16 %v6345
        %v6362 = vunpack.c.l.b16 %v6346
        %v6363 = vpack.c.b16 %v6356, %v6355
        %v6364 = vpack.c.b16 %v6358, %v6357
        %v6365 = vpack.c.b16 %v6360, %v6359
        %v6366 = vpack.c.b16 %v6362, %v6361
        %v6372 = vsel %vm546, %v6337, 0
        %6374 = vmatprep.subr.bf16.mxu0 0
        %6375 = vmatpush1.bf16.msra.mxu0 0
        %6376 = vmatprep.subr.bf16.mxu0 0
        %6377 = vmatpush1.bf16.msra.mxu0 0
        %6378 = vmatprep.subr.bf16.mxu0 0
        %6379 = vmatpush1.bf16.msra.mxu0 0
        %6380 = vmatprep.subr.bf16.mxu0 0
        %6381 = vmatpush1.bf16.msra.mxu0 0
        %6382 = vmatprep.subr.bf16.mxu0 0
        %6383 = vmatpush1.bf16.msra.mxu0 %v6366
        %6384 = vmatprep.subr.bf16.mxu0 0
        %6385 = vmatpush1.bf16.msra.mxu0 %v6365
        %6386 = vmatprep.subr.bf16.mxu0 0
        %6387 = vmatpush1.bf16.msra.mxu0 %v6364
        %6388 = vmatprep.subr.bf16.mxu0 0
        %6389 = vmatpush1.bf16.msra.mxu0 %v6363
        %6390 = vmatprep.subr.bf16.mxu0 0
        %6391 = vmatpush2.bf16.msra.mxu0 0
        %6392 = vmatprep.subr.bf16.mxu0 0
        %6393 = vmatpush2.bf16.msra.mxu0 0
        %6394 = vmatprep.subr.bf16.mxu0 0
        %6395 = vmatpush2.bf16.msra.mxu0 0
        %6396 = vmatprep.subr.bf16.mxu0 0
        %6397 = vmatpush2.bf16.msra.mxu0 0
        %6398 = vmatprep.subr.bf16.mxu0 0
        %6399 = vmatpush2.bf16.msra.mxu0 0
        %6400 = vmatprep.subr.bf16.mxu0 0
        %6401 = vmatpush2.bf16.msra.mxu0 0
        %6402 = vmatprep.subr.bf16.mxu0 0
        %6403 = vmatpush2.bf16.msra.mxu0 0
        %6404 = vmatprep.subr.bf16.mxu0 0
        %6405 = vmatpush2.bf16.msra.mxu0 0
        %6406 = vmatprep.mubr.bf16.mxu0 0
        %6407 = vmatmul.mubr.bf16.gmra.mxu0 %v6372
        %v6408 = vpop.f32.mrf.mxu0
        %v6409 = vadd.f32 0.0, %v6408
        %v6410 = vpop.f32.mrf.mxu0
        %v6411 = vpop.f32.mrf.mxu0
        %v6412 = vpop.f32.mrf.mxu0
        %6413 = vdwg.mxu0
        %v6414 = vadd.f32 %v6336, %v6409
        %s6415 = scalar_lea.vmem %s3, 224
        %v6416 = vld [vmem:[%s6415] sm:$0xf]
        %v6417 = vld [vmem:[%s6415 + $0x4] sm:$0xf]
        %v6418 = vld [vmem:[%s6415 + $0x8] sm:$0xf]
        %v6419 = vld [vmem:[%s6415 + $0xc] sm:$0xf]
        %v6420 = vld [vmem:[%s6415 + $0x10] sm:$0xf]
        %v6421 = vld [vmem:[%s6415 + $0x14] sm:$0xf]
        %v6422 = vld [vmem:[%s6415 + $0x18] sm:$0xf]
        %v6423 = vld [vmem:[%s6415 + $0x1c] sm:$0xf]
        %v6424 = vshrl.u32 %v6337, 16
        %v6434 = vunpack.c.l.b16 %v6416
        %v6435 = vunpack.c.l.b16 %v6417
        %v6436 = vunpack.c.l.b16 %v6418
        %v6437 = vunpack.c.l.b16 %v6419
        %v6438 = vunpack.c.l.b16 %v6420
        %v6439 = vunpack.c.l.b16 %v6421
        %v6440 = vunpack.c.l.b16 %v6422
        %v6441 = vunpack.c.l.b16 %v6423
        %v6442 = vpack.c.b16 %v6435, %v6434
        %v6443 = vpack.c.b16 %v6437, %v6436
        %v6444 = vpack.c.b16 %v6439, %v6438
        %v6445 = vpack.c.b16 %v6441, %v6440
        %v6451 = vsel %vm546, %v6424, 0
        %6453 = vmatprep.subr.bf16.mxu0 0
        %6454 = vmatpush1.bf16.msra.mxu0 0
        %6455 = vmatprep.subr.bf16.mxu0 0
        %6456 = vmatpush1.bf16.msra.mxu0 0
        %6457 = vmatprep.subr.bf16.mxu0 0
        %6458 = vmatpush1.bf16.msra.mxu0 0
        %6459 = vmatprep.subr.bf16.mxu0 0
        %6460 = vmatpush1.bf16.msra.mxu0 0
        %6461 = vmatprep.subr.bf16.mxu0 0
        %6462 = vmatpush1.bf16.msra.mxu0 %v6445
        %6463 = vmatprep.subr.bf16.mxu0 0
        %6464 = vmatpush1.bf16.msra.mxu0 %v6444
        %6465 = vmatprep.subr.bf16.mxu0 0
        %6466 = vmatpush1.bf16.msra.mxu0 %v6443
        %6467 = vmatprep.subr.bf16.mxu0 0
        %6468 = vmatpush1.bf16.msra.mxu0 %v6442
        %6469 = vmatprep.subr.bf16.mxu0 0
        %6470 = vmatpush2.bf16.msra.mxu0 0
        %6471 = vmatprep.subr.bf16.mxu0 0
        %6472 = vmatpush2.bf16.msra.mxu0 0
        %6473 = vmatprep.subr.bf16.mxu0 0
        %6474 = vmatpush2.bf16.msra.mxu0 0
        %6475 = vmatprep.subr.bf16.mxu0 0
        %6476 = vmatpush2.bf16.msra.mxu0 0
        %6477 = vmatprep.subr.bf16.mxu0 0
        %6478 = vmatpush2.bf16.msra.mxu0 0
        %6479 = vmatprep.subr.bf16.mxu0 0
        %6480 = vmatpush2.bf16.msra.mxu0 0
        %6481 = vmatprep.subr.bf16.mxu0 0
        %6482 = vmatpush2.bf16.msra.mxu0 0
        %6483 = vmatprep.subr.bf16.mxu0 0
        %6484 = vmatpush2.bf16.msra.mxu0 0
        %6485 = vmatprep.mubr.bf16.mxu0 0
        %6486 = vmatmul.mubr.bf16.gmra.mxu0 %v6451
        %v6487 = vpop.f32.mrf.mxu0
        %v6488 = vadd.f32 0.0, %v6487
        %v6489 = vpop.f32.mrf.mxu0
        %v6490 = vpop.f32.mrf.mxu0
        %v6491 = vpop.f32.mrf.mxu0
        %6492 = vdwg.mxu0
        %v6493 = vadd.f32 %v6414, %v6488
        %s6494 = scalar_lea.vmem %s3, 256
        %v6495 = vld [vmem:[%s6494] sm:$0xf]
        %v6496 = vld [vmem:[%s6494 + $0x4] sm:$0xf]
        %v6497 = vld [vmem:[%s6494 + $0x8] sm:$0xf]
        %v6498 = vld [vmem:[%s6494 + $0xc] sm:$0xf]
        %v6499 = vld [vmem:[%s6494 + $0x10] sm:$0xf]
        %v6500 = vld [vmem:[%s6494 + $0x14] sm:$0xf]
        %v6501 = vld [vmem:[%s6494 + $0x18] sm:$0xf]
        %v6502 = vld [vmem:[%s6494 + $0x1c] sm:$0xf]
        %v6504 = vrot.slane %v6337, 1
        %v6513 = vunpack.c.l.b16 %v6495
        %v6514 = vunpack.c.l.b16 %v6496
        %v6515 = vunpack.c.l.b16 %v6497
        %v6516 = vunpack.c.l.b16 %v6498
        %v6517 = vunpack.c.l.b16 %v6499
        %v6518 = vunpack.c.l.b16 %v6500
        %v6519 = vunpack.c.l.b16 %v6501
        %v6520 = vunpack.c.l.b16 %v6502
        %v6521 = vpack.c.b16 %v6514, %v6513
        %v6522 = vpack.c.b16 %v6516, %v6515
        %v6523 = vpack.c.b16 %v6518, %v6517
        %v6524 = vpack.c.b16 %v6520, %v6519
        %v6530 = vsel %vm546, %v6504, 0
        %6532 = vmatprep.subr.bf16.mxu0 0
        %6533 = vmatpush1.bf16.msra.mxu0 0
        %6534 = vmatprep.subr.bf16.mxu0 0
        %6535 = vmatpush1.bf16.msra.mxu0 0
        %6536 = vmatprep.subr.bf16.mxu0 0
        %6537 = vmatpush1.bf16.msra.mxu0 0
        %6538 = vmatprep.subr.bf16.mxu0 0
        %6539 = vmatpush1.bf16.msra.mxu0 0
        %6540 = vmatprep.subr.bf16.mxu0 0
        %6541 = vmatpush1.bf16.msra.mxu0 %v6524
        %6542 = vmatprep.subr.bf16.mxu0 0
        %6543 = vmatpush1.bf16.msra.mxu0 %v6523
        %6544 = vmatprep.subr.bf16.mxu0 0
        %6545 = vmatpush1.bf16.msra.mxu0 %v6522
        %6546 = vmatprep.subr.bf16.mxu0 0
        %6547 = vmatpush1.bf16.msra.mxu0 %v6521
        %6548 = vmatprep.subr.bf16.mxu0 0
        %6549 = vmatpush2.bf16.msra.mxu0 0
        %6550 = vmatprep.subr.bf16.mxu0 0
        %6551 = vmatpush2.bf16.msra.mxu0 0
        %6552 = vmatprep.subr.bf16.mxu0 0
        %6553 = vmatpush2.bf16.msra.mxu0 0
        %6554 = vmatprep.subr.bf16.mxu0 0
        %6555 = vmatpush2.bf16.msra.mxu0 0
        %6556 = vmatprep.subr.bf16.mxu0 0
        %6557 = vmatpush2.bf16.msra.mxu0 0
        %6558 = vmatprep.subr.bf16.mxu0 0
        %6559 = vmatpush2.bf16.msra.mxu0 0
        %6560 = vmatprep.subr.bf16.mxu0 0
        %6561 = vmatpush2.bf16.msra.mxu0 0
        %6562 = vmatprep.subr.bf16.mxu0 0
        %6563 = vmatpush2.bf16.msra.mxu0 0
        %6564 = vmatprep.mubr.bf16.mxu0 0
        %6565 = vmatmul.mubr.bf16.gmra.mxu0 %v6530
        %v6566 = vpop.f32.mrf.mxu0
        %v6567 = vadd.f32 0.0, %v6566
        %v6568 = vpop.f32.mrf.mxu0
        %v6569 = vpop.f32.mrf.mxu0
        %v6570 = vpop.f32.mrf.mxu0
        %6571 = vdwg.mxu0
        %v6572 = vadd.f32 %v6493, %v6567
        %v6573 = vadd.f32 %v6572, %v499
        %v6574 = vmax.f32 %v6573, 0.0
        %v6575 = vpack.c.bf16 %v6574, %v6574
        %v6576 = vld [vmem:[%s4] sm:$0xff]
        %v6577 = vld [vmem:[%s4 + $0x8] sm:$0xff]
        %v6578 = vld [vmem:[%s4 + $0x10] sm:$0xff]
        %v6579 = vld [vmem:[%s4 + $0x18] sm:$0xff]
        %v6580 = vld [vmem:[%s4 + $0x20] sm:$0xff]
        %v6581 = vld [vmem:[%s4 + $0x28] sm:$0xff]
        %v6582 = vld [vmem:[%s4 + $0x30] sm:$0xff]
        %v6583 = vld [vmem:[%s4 + $0x38] sm:$0xff]
        %v6584 = vld [vmem:[%s4 + $0x40] sm:$0xff]
        %v6585 = vld [vmem:[%s4 + $0x48] sm:$0xff]
        %v6586 = vld [vmem:[%s4 + $0x50] sm:$0xff]
        %v6587 = vld [vmem:[%s4 + $0x58] sm:$0xff]
        %v6588 = vld [vmem:[%s4 + $0x60] sm:$0xff]
        %v6589 = vld [vmem:[%s4 + $0x68] sm:$0xff]
        %v6590 = vld [vmem:[%s4 + $0x70] sm:$0xff]
        %v6591 = vld [vmem:[%s4 + $0x78] sm:$0xff]
        %v6592 = vld [vmem:[%s9] sm:$0xf]
        %v6609 = vunpack.c.l.b16 %v6576
        %v6610 = vunpack.c.h.b16 %v6576
        %v6611 = vunpack.c.l.b16 %v6577
        %v6612 = vunpack.c.h.b16 %v6577
        %v6613 = vunpack.c.l.b16 %v6578
        %v6614 = vunpack.c.h.b16 %v6578
        %v6615 = vunpack.c.l.b16 %v6579
        %v6616 = vunpack.c.h.b16 %v6579
        %v6617 = vunpack.c.l.b16 %v6580
        %v6618 = vunpack.c.h.b16 %v6580
        %v6619 = vunpack.c.l.b16 %v6581
        %v6620 = vunpack.c.h.b16 %v6581
        %v6621 = vunpack.c.l.b16 %v6582
        %v6622 = vunpack.c.h.b16 %v6582
        %v6623 = vunpack.c.l.b16 %v6583
        %v6624 = vunpack.c.h.b16 %v6583
        %v6625 = vunpack.c.l.b16 %v6584
        %v6626 = vunpack.c.h.b16 %v6584
        %v6627 = vunpack.c.l.b16 %v6585
        %v6628 = vunpack.c.h.b16 %v6585
        %v6629 = vunpack.c.l.b16 %v6586
        %v6630 = vunpack.c.h.b16 %v6586
        %v6631 = vunpack.c.l.b16 %v6587
        %v6632 = vunpack.c.h.b16 %v6587
        %v6633 = vunpack.c.l.b16 %v6588
        %v6634 = vunpack.c.h.b16 %v6588
        %v6635 = vunpack.c.l.b16 %v6589
        %v6636 = vunpack.c.h.b16 %v6589
        %v6637 = vunpack.c.l.b16 %v6590
        %v6638 = vunpack.c.h.b16 %v6590
        %v6639 = vunpack.c.l.b16 %v6591
        %v6640 = vunpack.c.h.b16 %v6591
        %v6641 = vpack.c.b16 %v6613, %v6609
        %v6642 = vpack.c.b16 %v6614, %v6610
        %v6643 = vpack.c.b16 %v6615, %v6611
        %v6644 = vpack.c.b16 %v6616, %v6612
        %v6645 = vpack.c.b16 %v6621, %v6617
        %v6646 = vpack.c.b16 %v6622, %v6618
        %v6647 = vpack.c.b16 %v6623, %v6619
        %v6648 = vpack.c.b16 %v6624, %v6620
        %v6649 = vpack.c.b16 %v6629, %v6625
        %v6650 = vpack.c.b16 %v6630, %v6626
        %v6651 = vpack.c.b16 %v6631, %v6627
        %v6652 = vpack.c.b16 %v6632, %v6628
        %v6653 = vpack.c.b16 %v6637, %v6633
        %v6654 = vpack.c.b16 %v6638, %v6634
        %v6655 = vpack.c.b16 %v6639, %v6635
        %v6656 = vpack.c.b16 %v6640, %v6636
        %v6674 = vlaneseq
        %v6675 = vshrl.u32 %v6674, 7
        %v6676 = vsub.s32 0, %v6675
        %v6677 = vrot.slane %v6592, %v6676
        %v6678 = vlaneseq
        %v6679 = vshrl.u32 %v6678, 7
        %v6680 = vsub.s32 1, %v6679
        %v6681 = vrot.slane %v6592, %v6680
        %v6682 = vlaneseq
        %v6683 = vshrl.u32 %v6682, 7
        %v6684 = vsub.s32 2, %v6683
        %v6685 = vrot.slane %v6592, %v6684
        %v6686 = vlaneseq
        %v6687 = vshrl.u32 %v6686, 7
        %v6688 = vsub.s32 3, %v6687
        %v6689 = vrot.slane %v6592, %v6688
        %v6695 = vsel %vm546, %v6575, 0
        %6697 = vmatprep.subr.bf16.mxu0 0
        %6698 = vmatpush1.bf16.msra.mxu0 0
        %6699 = vmatprep.subr.bf16.mxu0 0
        %6700 = vmatpush1.bf16.msra.mxu0 0
        %6701 = vmatprep.subr.bf16.mxu0 0
        %6702 = vmatpush1.bf16.msra.mxu0 0
        %6703 = vmatprep.subr.bf16.mxu0 0
        %6704 = vmatpush1.bf16.msra.mxu0 0
        %6705 = vmatprep.subr.bf16.mxu0 %v6654
        %6706 = vmatpush1.bf16.msra.mxu0 %v6653
        %6707 = vmatprep.subr.bf16.mxu0 %v6650
        %6708 = vmatpush1.bf16.msra.mxu0 %v6649
        %6709 = vmatprep.subr.bf16.mxu0 %v6646
        %6710 = vmatpush1.bf16.msra.mxu0 %v6645
        %6711 = vmatprep.subr.bf16.mxu0 %v6642
        %6712 = vmatpush1.bf16.msra.mxu0 %v6641
        %6713 = vmatprep.subr.bf16.mxu0 0
        %6714 = vmatpush2.bf16.msra.mxu0 0
        %6715 = vmatprep.subr.bf16.mxu0 0
        %6716 = vmatpush2.bf16.msra.mxu0 0
        %6717 = vmatprep.subr.bf16.mxu0 0
        %6718 = vmatpush2.bf16.msra.mxu0 0
        %6719 = vmatprep.subr.bf16.mxu0 0
        %6720 = vmatpush2.bf16.msra.mxu0 0
        %6721 = vmatprep.subr.bf16.mxu0 0
        %6722 = vmatpush2.bf16.msra.mxu0 0
        %6723 = vmatprep.subr.bf16.mxu0 0
        %6724 = vmatpush2.bf16.msra.mxu0 0
        %6725 = vmatprep.subr.bf16.mxu0 0
        %6726 = vmatpush2.bf16.msra.mxu0 0
        %6727 = vmatprep.subr.bf16.mxu0 0
        %6728 = vmatpush2.bf16.msra.mxu0 0
        %6729 = vmatprep.mubr.bf16.mxu0 0
        %6730 = vmatmul.mubr.bf16.gmra.mxu0 %v6695
        %v6731 = vpop.f32.mrf.mxu0
        %v6732 = vadd.f32 %v6677, %v6731
        %v6733 = vpop.f32.mrf.mxu0
        %v6734 = vadd.f32 %v6681, %v6733
        %v6735 = vpop.f32.mrf.mxu0
        %v6736 = vpop.f32.mrf.mxu0
        %6737 = vdwg.mxu0
        %6738 = vmatprep.subr.bf16.mxu0 0
        %6739 = vmatpush1.bf16.msra.mxu0 0
        %6740 = vmatprep.subr.bf16.mxu0 0
        %6741 = vmatpush1.bf16.msra.mxu0 0
        %6742 = vmatprep.subr.bf16.mxu0 0
        %6743 = vmatpush1.bf16.msra.mxu0 0
        %6744 = vmatprep.subr.bf16.mxu0 0
        %6745 = vmatpush1.bf16.msra.mxu0 0
        %6746 = vmatprep.subr.bf16.mxu0 %v6656
        %6747 = vmatpush1.bf16.msra.mxu0 %v6655
        %6748 = vmatprep.subr.bf16.mxu0 %v6652
        %6749 = vmatpush1.bf16.msra.mxu0 %v6651
        %6750 = vmatprep.subr.bf16.mxu0 %v6648
        %6751 = vmatpush1.bf16.msra.mxu0 %v6647
        %6752 = vmatprep.subr.bf16.mxu0 %v6644
        %6753 = vmatpush1.bf16.msra.mxu0 %v6643
        %6754 = vmatprep.subr.bf16.mxu0 0
        %6755 = vmatpush2.bf16.msra.mxu0 0
        %6756 = vmatprep.subr.bf16.mxu0 0
        %6757 = vmatpush2.bf16.msra.mxu0 0
        %6758 = vmatprep.subr.bf16.mxu0 0
        %6759 = vmatpush2.bf16.msra.mxu0 0
        %6760 = vmatprep.subr.bf16.mxu0 0
        %6761 = vmatpush2.bf16.msra.mxu0 0
        %6762 = vmatprep.subr.bf16.mxu0 0
        %6763 = vmatpush2.bf16.msra.mxu0 0
        %6764 = vmatprep.subr.bf16.mxu0 0
        %6765 = vmatpush2.bf16.msra.mxu0 0
        %6766 = vmatprep.subr.bf16.mxu0 0
        %6767 = vmatpush2.bf16.msra.mxu0 0
        %6768 = vmatprep.subr.bf16.mxu0 0
        %6769 = vmatpush2.bf16.msra.mxu0 0
        %6770 = vmatprep.mubr.bf16.mxu0 0
        %6771 = vmatmul.mubr.bf16.gmra.mxu0 %v6695
        %v6772 = vpop.f32.mrf.mxu0
        %v6773 = vadd.f32 %v6685, %v6772
        %v6774 = vpop.f32.mrf.mxu0
        %v6775 = vadd.f32 %v6689, %v6774
        %v6776 = vpop.f32.mrf.mxu0
        %v6777 = vpop.f32.mrf.mxu0
        %6778 = vdwg.mxu0
        %v6779 = vmax.f32 %v6732, 0.0
        %v6780 = vmax.f32 %v6734, 0.0
        %v6781 = vmax.f32 %v6773, 0.0
        %v6782 = vmax.f32 %v6775, 0.0
        %v6783 = vpack.c.bf16 %v6779, %v6779
        %v6784 = vpack.c.bf16 %v6780, %v6780
        %v6785 = vpack.c.bf16 %v6781, %v6781
        %v6786 = vpack.c.bf16 %v6782, %v6782
        %v6787 = vld [vmem:[%s5] sm:$0xf]
        %v6788 = vld [vmem:[%s5 + $0x4] sm:$0xf]
        %v6789 = vld [vmem:[%s5 + $0x8] sm:$0xf]
        %v6790 = vld [vmem:[%s5 + $0xc] sm:$0xf]
        %v6791 = vld [vmem:[%s5 + $0x10] sm:$0xf]
        %v6792 = vld [vmem:[%s5 + $0x14] sm:$0xf]
        %v6793 = vld [vmem:[%s5 + $0x18] sm:$0xf]
        %v6794 = vld [vmem:[%s5 + $0x1c] sm:$0xf]
        %v6795 = vld [vmem:[%s5 + $0x20] sm:$0xf]
        %v6796 = vld [vmem:[%s5 + $0x24] sm:$0xf]
        %v6797 = vld [vmem:[%s5 + $0x28] sm:$0xf]
        %v6798 = vld [vmem:[%s5 + $0x2c] sm:$0xf]
        %v6799 = vld [vmem:[%s5 + $0x30] sm:$0xf]
        %v6800 = vld [vmem:[%s5 + $0x34] sm:$0xf]
        %v6801 = vld [vmem:[%s5 + $0x38] sm:$0xf]
        %v6802 = vld [vmem:[%s5 + $0x3c] sm:$0xf]
        %v6803 = vld [vmem:[%s5 + $0x40] sm:$0xf]
        %v6804 = vld [vmem:[%s5 + $0x44] sm:$0xf]
        %v6805 = vld [vmem:[%s5 + $0x48] sm:$0xf]
        %v6806 = vld [vmem:[%s5 + $0x4c] sm:$0xf]
        %v6807 = vld [vmem:[%s5 + $0x50] sm:$0xf]
        %v6808 = vld [vmem:[%s5 + $0x54] sm:$0xf]
        %v6809 = vld [vmem:[%s5 + $0x58] sm:$0xf]
        %v6810 = vld [vmem:[%s5 + $0x5c] sm:$0xf]
        %v6811 = vld [vmem:[%s5 + $0x60] sm:$0xf]
        %v6812 = vld [vmem:[%s5 + $0x64] sm:$0xf]
        %v6813 = vld [vmem:[%s5 + $0x68] sm:$0xf]
        %v6814 = vld [vmem:[%s5 + $0x6c] sm:$0xf]
        %v6815 = vld [vmem:[%s5 + $0x70] sm:$0xf]
        %v6816 = vld [vmem:[%s5 + $0x74] sm:$0xf]
        %v6817 = vld [vmem:[%s5 + $0x78] sm:$0xf]
        %v6818 = vld [vmem:[%s5 + $0x7c] sm:$0xf]
        %v6819 = vld [vmem:[%s5 + $0x80] sm:$0xf]
        %v6820 = vld [vmem:[%s5 + $0x84] sm:$0xf]
        %v6821 = vld [vmem:[%s5 + $0x88] sm:$0xf]
        %v6822 = vld [vmem:[%s5 + $0x8c] sm:$0xf]
        %v6823 = vld [vmem:[%s5 + $0x90] sm:$0xf]
        %v6824 = vld [vmem:[%s5 + $0x94] sm:$0xf]
        %v6825 = vld [vmem:[%s5 + $0x98] sm:$0xf]
        %v6826 = vld [vmem:[%s5 + $0x9c] sm:$0xf]
        %v6827 = vld [vmem:[%s5 + $0xa0] sm:$0xf]
        %v6828 = vld [vmem:[%s5 + $0xa4] sm:$0xf]
        %v6829 = vld [vmem:[%s5 + $0xa8] sm:$0xf]
        %v6830 = vld [vmem:[%s5 + $0xac] sm:$0xf]
        %v6831 = vld [vmem:[%s5 + $0xb0] sm:$0xf]
        %v6832 = vld [vmem:[%s5 + $0xb4] sm:$0xf]
        %v6833 = vld [vmem:[%s5 + $0xb8] sm:$0xf]
        %v6834 = vld [vmem:[%s5 + $0xbc] sm:$0xf]
        %v6835 = vld [vmem:[%s5 + $0xc0] sm:$0xf]
        %v6836 = vld [vmem:[%s5 + $0xc4] sm:$0xf]
        %v6837 = vld [vmem:[%s5 + $0xc8] sm:$0xf]
        %v6838 = vld [vmem:[%s5 + $0xcc] sm:$0xf]
        %v6839 = vld [vmem:[%s5 + $0xd0] sm:$0xf]
        %v6840 = vld [vmem:[%s5 + $0xd4] sm:$0xf]
        %v6841 = vld [vmem:[%s5 + $0xd8] sm:$0xf]
        %v6842 = vld [vmem:[%s5 + $0xdc] sm:$0xf]
        %v6843 = vld [vmem:[%s5 + $0xe0] sm:$0xf]
        %v6844 = vld [vmem:[%s5 + $0xe4] sm:$0xf]
        %v6845 = vld [vmem:[%s5 + $0xe8] sm:$0xf]
        %v6846 = vld [vmem:[%s5 + $0xec] sm:$0xf]
        %v6847 = vld [vmem:[%s5 + $0xf0] sm:$0xf]
        %v6848 = vld [vmem:[%s5 + $0xf4] sm:$0xf]
        %v6849 = vld [vmem:[%s5 + $0xf8] sm:$0xf]
        %v6850 = vld [vmem:[%s5 + $0xfc] sm:$0xf]
        %v6851 = vld [vmem:[%s10] sm:$0x1]
        %v6916 = vunpack.c.l.b16 %v6787
        %v6917 = vunpack.c.l.b16 %v6788
        %v6918 = vunpack.c.l.b16 %v6789
        %v6919 = vunpack.c.l.b16 %v6790
        %v6920 = vunpack.c.l.b16 %v6791
        %v6921 = vunpack.c.l.b16 %v6792
        %v6922 = vunpack.c.l.b16 %v6793
        %v6923 = vunpack.c.l.b16 %v6794
        %v6924 = vunpack.c.l.b16 %v6795
        %v6925 = vunpack.c.l.b16 %v6796
        %v6926 = vunpack.c.l.b16 %v6797
        %v6927 = vunpack.c.l.b16 %v6798
        %v6928 = vunpack.c.l.b16 %v6799
        %v6929 = vunpack.c.l.b16 %v6800
        %v6930 = vunpack.c.l.b16 %v6801
        %v6931 = vunpack.c.l.b16 %v6802
        %v6932 = vunpack.c.l.b16 %v6803
        %v6933 = vunpack.c.l.b16 %v6804
        %v6934 = vunpack.c.l.b16 %v6805
        %v6935 = vunpack.c.l.b16 %v6806
        %v6936 = vunpack.c.l.b16 %v6807
        %v6937 = vunpack.c.l.b16 %v6808
        %v6938 = vunpack.c.l.b16 %v6809
        %v6939 = vunpack.c.l.b16 %v6810
        %v6940 = vunpack.c.l.b16 %v6811
        %v6941 = vunpack.c.l.b16 %v6812
        %v6942 = vunpack.c.l.b16 %v6813
        %v6943 = vunpack.c.l.b16 %v6814
        %v6944 = vunpack.c.l.b16 %v6815
        %v6945 = vunpack.c.l.b16 %v6816
        %v6946 = vunpack.c.l.b16 %v6817
        %v6947 = vunpack.c.l.b16 %v6818
        %v6948 = vunpack.c.l.b16 %v6819
        %v6949 = vunpack.c.l.b16 %v6820
        %v6950 = vunpack.c.l.b16 %v6821
        %v6951 = vunpack.c.l.b16 %v6822
        %v6952 = vunpack.c.l.b16 %v6823
        %v6953 = vunpack.c.l.b16 %v6824
        %v6954 = vunpack.c.l.b16 %v6825
        %v6955 = vunpack.c.l.b16 %v6826
        %v6956 = vunpack.c.l.b16 %v6827
        %v6957 = vunpack.c.l.b16 %v6828
        %v6958 = vunpack.c.l.b16 %v6829
        %v6959 = vunpack.c.l.b16 %v6830
        %v6960 = vunpack.c.l.b16 %v6831
        %v6961 = vunpack.c.l.b16 %v6832
        %v6962 = vunpack.c.l.b16 %v6833
        %v6963 = vunpack.c.l.b16 %v6834
        %v6964 = vunpack.c.l.b16 %v6835
        %v6965 = vunpack.c.l.b16 %v6836
        %v6966 = vunpack.c.l.b16 %v6837
        %v6967 = vunpack.c.l.b16 %v6838
        %v6968 = vunpack.c.l.b16 %v6839
        %v6969 = vunpack.c.l.b16 %v6840
        %v6970 = vunpack.c.l.b16 %v6841
        %v6971 = vunpack.c.l.b16 %v6842
        %v6972 = vunpack.c.l.b16 %v6843
        %v6973 = vunpack.c.l.b16 %v6844
        %v6974 = vunpack.c.l.b16 %v6845
        %v6975 = vunpack.c.l.b16 %v6846
        %v6976 = vunpack.c.l.b16 %v6847
        %v6977 = vunpack.c.l.b16 %v6848
        %v6978 = vunpack.c.l.b16 %v6849
        %v6979 = vunpack.c.l.b16 %v6850
        %v6980 = vpack.c.b16 %v6917, %v6916
        %v6981 = vpack.c.b16 %v6919, %v6918
        %v6982 = vpack.c.b16 %v6921, %v6920
        %v6983 = vpack.c.b16 %v6923, %v6922
        %v6984 = vpack.c.b16 %v6925, %v6924
        %v6985 = vpack.c.b16 %v6927, %v6926
        %v6986 = vpack.c.b16 %v6929, %v6928
        %v6987 = vpack.c.b16 %v6931, %v6930
        %v6988 = vpack.c.b16 %v6933, %v6932
        %v6989 = vpack.c.b16 %v6935, %v6934
        %v6990 = vpack.c.b16 %v6937, %v6936
        %v6991 = vpack.c.b16 %v6939, %v6938
        %v6992 = vpack.c.b16 %v6941, %v6940
        %v6993 = vpack.c.b16 %v6943, %v6942
        %v6994 = vpack.c.b16 %v6945, %v6944
        %v6995 = vpack.c.b16 %v6947, %v6946
        %v6996 = vpack.c.b16 %v6949, %v6948
        %v6997 = vpack.c.b16 %v6951, %v6950
        %v6998 = vpack.c.b16 %v6953, %v6952
        %v6999 = vpack.c.b16 %v6955, %v6954
        %v7000 = vpack.c.b16 %v6957, %v6956
        %v7001 = vpack.c.b16 %v6959, %v6958
        %v7002 = vpack.c.b16 %v6961, %v6960
        %v7003 = vpack.c.b16 %v6963, %v6962
        %v7004 = vpack.c.b16 %v6965, %v6964
        %v7005 = vpack.c.b16 %v6967, %v6966
        %v7006 = vpack.c.b16 %v6969, %v6968
        %v7007 = vpack.c.b16 %v6971, %v6970
        %v7008 = vpack.c.b16 %v6973, %v6972
        %v7009 = vpack.c.b16 %v6975, %v6974
        %v7010 = vpack.c.b16 %v6977, %v6976
        %v7011 = vpack.c.b16 %v6979, %v6978
        %7044 = vmatprep.subr.bf16.mxu0 0
        %7045 = vmatpush1.bf16.msra.mxu0 %v6987
        %7046 = vmatprep.subr.bf16.mxu0 0
        %7047 = vmatpush1.bf16.msra.mxu0 %v6986
        %7048 = vmatprep.subr.bf16.mxu0 0
        %7049 = vmatpush1.bf16.msra.mxu0 %v6985
        %7050 = vmatprep.subr.bf16.mxu0 0
        %7051 = vmatpush1.bf16.msra.mxu0 %v6984
        %7052 = vmatprep.subr.bf16.mxu0 0
        %7053 = vmatpush1.bf16.msra.mxu0 %v6983
        %7054 = vmatprep.subr.bf16.mxu0 0
        %7055 = vmatpush1.bf16.msra.mxu0 %v6982
        %7056 = vmatprep.subr.bf16.mxu0 0
        %7057 = vmatpush1.bf16.msra.mxu0 %v6981
        %7058 = vmatprep.subr.bf16.mxu0 0
        %7059 = vmatpush1.bf16.msra.mxu0 %v6980
        %7060 = vmatprep.subr.bf16.mxu0 0
        %7061 = vmatpush2.bf16.msra.mxu0 %v6995
        %7062 = vmatprep.subr.bf16.mxu0 0
        %7063 = vmatpush2.bf16.msra.mxu0 %v6994
        %7064 = vmatprep.subr.bf16.mxu0 0
        %7065 = vmatpush2.bf16.msra.mxu0 %v6993
        %7066 = vmatprep.subr.bf16.mxu0 0
        %7067 = vmatpush2.bf16.msra.mxu0 %v6992
        %7068 = vmatprep.subr.bf16.mxu0 0
        %7069 = vmatpush2.bf16.msra.mxu0 %v6991
        %7070 = vmatprep.subr.bf16.mxu0 0
        %7071 = vmatpush2.bf16.msra.mxu0 %v6990
        %7072 = vmatprep.subr.bf16.mxu0 0
        %7073 = vmatpush2.bf16.msra.mxu0 %v6989
        %7074 = vmatprep.subr.bf16.mxu0 0
        %7075 = vmatpush2.bf16.msra.mxu0 %v6988
        %7076 = vmatprep.mubr.bf16.mxu0 %v6784
        %7077 = vmatmul.mubr.bf16.gmra.mxu0 %v6783
        %v7078 = vpop.f32.mrf.mxu0
        %v7079 = vadd.f32 %v6851, %v7078
        %v7080 = vpop.f32.mrf.mxu0
        %v7081 = vpop.f32.mrf.mxu0
        %v7082 = vpop.f32.mrf.mxu0
        %7083 = vdwg.mxu0
        %7084 = vmatprep.subr.bf16.mxu0 0
        %7085 = vmatpush1.bf16.msra.mxu0 %v7003
        %7086 = vmatprep.subr.bf16.mxu0 0
        %7087 = vmatpush1.bf16.msra.mxu0 %v7002
        %7088 = vmatprep.subr.bf16.mxu0 0
        %7089 = vmatpush1.bf16.msra.mxu0 %v7001
        %7090 = vmatprep.subr.bf16.mxu0 0
        %7091 = vmatpush1.bf16.msra.mxu0 %v7000
        %7092 = vmatprep.subr.bf16.mxu0 0
        %7093 = vmatpush1.bf16.msra.mxu0 %v6999
        %7094 = vmatprep.subr.bf16.mxu0 0
        %7095 = vmatpush1.bf16.msra.mxu0 %v6998
        %7096 = vmatprep.subr.bf16.mxu0 0
        %7097 = vmatpush1.bf16.msra.mxu0 %v6997
        %7098 = vmatprep.subr.bf16.mxu0 0
        %7099 = vmatpush1.bf16.msra.mxu0 %v6996
        %7100 = vmatprep.subr.bf16.mxu0 0
        %7101 = vmatpush2.bf16.msra.mxu0 %v7011
        %7102 = vmatprep.subr.bf16.mxu0 0
        %7103 = vmatpush2.bf16.msra.mxu0 %v7010
        %7104 = vmatprep.subr.bf16.mxu0 0
        %7105 = vmatpush2.bf16.msra.mxu0 %v7009
        %7106 = vmatprep.subr.bf16.mxu0 0
        %7107 = vmatpush2.bf16.msra.mxu0 %v7008
        %7108 = vmatprep.subr.bf16.mxu0 0
        %7109 = vmatpush2.bf16.msra.mxu0 %v7007
        %7110 = vmatprep.subr.bf16.mxu0 0
        %7111 = vmatpush2.bf16.msra.mxu0 %v7006
        %7112 = vmatprep.subr.bf16.mxu0 0
        %7113 = vmatpush2.bf16.msra.mxu0 %v7005
        %7114 = vmatprep.subr.bf16.mxu0 0
        %7115 = vmatpush2.bf16.msra.mxu0 %v7004
        %7116 = vmatprep.mubr.bf16.mxu0 %v6786
        %7117 = vmatmul.mubr.bf16.gmra.mxu0 %v6785
        %v7118 = vpop.f32.mrf.mxu0
        %v7119 = vadd.f32 %v7079, %v7118
        %v7120 = vpop.f32.mrf.mxu0
        %v7121 = vpop.f32.mrf.mxu0
        %v7122 = vpop.f32.mrf.mxu0
        %7123 = vdwg.mxu0
        %7124 = vst [vmem:[%s495] sm:$0x1] %v7119
        %s7125 = sand.u32 %s269, 1
        %s7126 = scalar_lea.sflag [#allocation4], %s7125
        %s7127 = sand.u32 %s269, 1
        %s7128 = scalar_lea.vmem [#allocation3], %s7127
        // Predicated region
        $region103: #{qnetwork_forward.1} parent=97 // pred_check
          %p7129 = pneg %p279
        $region104: #{qnetwork_forward.1} parent=97 // pred_check_branch
          %7131 = sbr.rel (%p7129) target = $region106
        $region105: #{qnetwork_forward.1} parent=97 // pred_region
          %s7133 = ssub.s32 16, 16
          %7134 = vsyncadd %s7126, %s7133
          %s7135 = smul.addr %s25, 16
          %s7136 = scalar_lea.hbm %s11, %s7135
          %s7138 = sshll.u32 %s7128, 4
          %s7139 = int_to_ptr.vmem [resolvable:$true] %s7138
          %7141 = dma.vmem_to_hbm [thread:$0]  %s7139, 16, %s7136, %s7126
        $region106: #{qnetwork_forward.1} parent=97 // pred_fallthru
          _
      $region98: #{qnetwork_forward.1} parent=5 // pred_fallthru
        _
      %p7142 = scmp.le.s32.totalorder 2, %s20
      // Predicated region
      $region107: #{qnetwork_forward.1} parent=5 // pred_check
        %p7143 = pneg %p7142
      $region108: #{qnetwork_forward.1} parent=5 // pred_check_branch
        %7145 = sbr.rel (%p7143) target = $region110
      $region109: #{qnetwork_forward.1} parent=5 // pred_region
        %s7146 = ssub.s32 %s20, 2
        // Predicated region
        $region111: #{qnetwork_forward.1} parent=109 // pred_check
          %p7147 = pneg %p285
        $region112: #{qnetwork_forward.1} parent=109 // pred_check_branch
          %7149 = sbr.rel (%p7147) target = $region114
        $region113: #{qnetwork_forward.1} parent=109 // pred_region
          %s7150 = sand.u32 %s270, 1
          %s7151 = scalar_lea.sflag [#allocation4], %s7150
          %s7152 = sand.u32 %s270, 1
          %s7153 = scalar_lea.vmem [#allocation3], %s7152
          %7154 = dma.done %s7151, 16
        $region114: #{qnetwork_forward.1} parent=109 // pred_fallthru
          _
      $region110: #{qnetwork_forward.1} parent=5 // pred_fallthru
        _
    $region6: #{qnetwork_forward.1} parent=1 // loop_footer
      %s24 = sadd.s32 1, %s20
    $region7: #{qnetwork_forward.1} parent=1 // loop_footer_branch
      %19 = sbr.rel target = $region3
    $region8: #{qnetwork_forward.1} parent=1 // loop_exit
      _
    %7155 = vsyncpa [#allocation4], 1
    %s7156 = scalar_lea.sflag [#allocation4], 1
    %7157 = vsyncpa %s7156, 1

</llo_original>
